<compile_context>
chip_gen: v7x
topology: tpu7x:2x2x1
jax: 0.10.0
libtpu: 0.0.40
codegen_flags: <defaults>
</compile_context>

<pallas_src>
import numpy as np
import jax
import jax.numpy as jnp
from jax import lax
from jax.experimental import pallas as pl
from jax.experimental.pallas import tpu as pltpu


LANE = 128                              # fused head output width (value | advantages, padded)
MAX_TN = 256                            # max batch rows per tile
_INPUT_BLOCK_BUDGET = 8 * 1024 * 1024   # per-buffer VMEM budget for the x tile


def _round_up(x, m):
    return (x + m - 1) // m * m


def _conv_out(n, k, s):
    return (n - k) // s + 1


def _vmem_limit_bytes():
    """Generation-aware scoped-VMEM limit (v5e/v6e: 128 MiB, v7x: 64 MiB physical)."""
    try:
        cap = int(pltpu.get_tpu_info().vmem_capacity_bytes)
    except Exception:                    # query unavailable -> conservative default
        cap = 64 * 1024 * 1024
    return max(32 * 1024 * 1024, min(100 * 1024 * 1024, (cap * 3) // 4))


def _pick_batch_tile(n, row_bytes, dtype):
    """Batch rows per tile: VMEM-bounded, sublane-packed, >=2 tiles when useful."""
    sub = 16 if dtype == jnp.bfloat16 else 8          # bf16 packs 2 rows per sublane
    vmem_cap = max(sub, min(MAX_TN, (_INPUT_BLOCK_BUDGET // row_bytes) // sub * sub))
    if n <= 2 * sub:                                   # too small to split across cores
        return min(n, vmem_cap)
    two_way = _round_up(pl.cdiv(n, 2), sub)            # >=2 tiles for v7x megacore
    return min(n, vmem_cap, two_way)


# ----------------------------- fused Pallas kernel ----------------------------- #

def _make_fused_kernel(C, H, W):
    """Build the fused forward kernel + intermediate scratch widths for (C, H, W)."""
    h1, w1 = _conv_out(H, 8, 4), _conv_out(W, 8, 4)
    h2, w2 = _conv_out(h1, 4, 2), _conv_out(w1, 4, 2)
    h3, w3 = _conv_out(h2, 3, 1), _conv_out(w2, 3, 1)
    assert h3 >= 1 and w3 >= 1, "input spatial dims too small for the conv trunk"
    #          k  s  row_in_width  n_out_rows  row_out_width
    convs = ((8, 4, W * C,         h1,         w1 * 32),
             (4, 2, w1 * 32,       h2,         w2 * 64),
             (3, 1, w2 * 64,       h3,         w3 * 64))

    def kernel(x_ref, w1_ref, b1_ref, w2_ref, b2_ref, w3_ref, b3_ref,
               wf_ref, bf_ref, wh_ref, bh_ref, o_ref, y1_ref, y2_ref, y3_ref):
        cdtype = w1_ref.dtype
        src = x_ref
        for (k, s, row_w, oh_out, out_w), w_r, b_r, y_r in zip(
                convs,
                (w1_ref, w2_ref, w3_ref),
                (b1_ref, b2_ref, b3_ref),
                (y1_ref, y2_ref, y3_ref)):
            # One MXU matmul per output spatial row: a contiguous window of k
            # input rows (static VMEM slice) x banded weight == conv row + ReLU.
            for oh in range(oh_out):
                lo = oh * s * row_w
                window = src[:, lo:lo + k * row_w]
                acc = jnp.dot(window, w_r[...], preferred_element_type=jnp.float32)
                acc = jnp.maximum(acc + b_r[...], 0.0)
                y_r[:, oh * out_w:(oh + 1) * out_w] = acc.astype(cdtype)
            src = y_r
        # fc1 (+ReLU) and the fused value|advantage head (lane-dense 128-wide store).
        h = jnp.dot(y3_ref[...], wf_ref[...], preferred_element_type=jnp.float32)
        h = jnp.maximum(h + bf_ref[...], 0.0).astype(cdtype)
        out = jnp.dot(h, wh_ref[...], preferred_element_type=jnp.float32) + bh_ref[...]
        o_ref[...] = out.astype(o_ref.dtype)

    widths = (h1 * w1 * 32, h2 * w2 * 64, h3 * w3 * 64)
    return kernel, widths


def dqn_forward(x_nchw, kp, n_actions):
    """x_nchw: (N, C, H, W) fp32 state.  kp: kernel-ready params (prepare_params)."""
    N, C, H, W = x_nchw.shape
    cdtype = kp['cv1_w'].dtype
    # NCHW -> NHWC flattened to (N, H*W*C); the only XLA op on the hot path.
    x = jnp.transpose(x_nchw, (0, 2, 3, 1)).reshape(N, H * W * C).astype(cdtype)

    kernel, (y1_w, y2_w, y3_w) = _make_fused_kernel(C, H, W)
    row_bytes = H * W * C * jnp.dtype(cdtype).itemsize
    tn = _pick_batch_tile(N, row_bytes, cdtype)

    resident = (kp['cv1_w'], kp['cv1_b'], kp['cv2_w'], kp['cv2_b'],
                kp['cv3_w'], kp['cv3_b'], kp['fc1_w'], kp['fc1_b'],
                kp['head_w'], kp['head_b'])

    def _const_spec(a):
        nd = a.ndim
        return pl.BlockSpec(a.shape, lambda i, _nd=nd: (0,) * _nd)

    out = pl.pallas_call(
        kernel,
        out_shape=jax.ShapeDtypeStruct((N, LANE), jnp.float32),
        grid=(pl.cdiv(N, tn),),
        in_specs=[pl.BlockSpec((tn, H * W * C), lambda i: (i, 0))] +
                 [_const_spec(a) for a in resident],
        out_specs=pl.BlockSpec((tn, LANE), lambda i: (i, 0)),
        scratch_shapes=[pltpu.VMEM((tn, y1_w), cdtype),
                        pltpu.VMEM((tn, y2_w), cdtype),
                        pltpu.VMEM((tn, y3_w), cdtype)],
        compiler_params=pltpu.CompilerParams(
            dimension_semantics=("parallel",),
            vmem_limit_bytes=_vmem_limit_bytes()),
    )(x, *resident)

    val = out[:, :1]
    adv = out[:, 1:1 + n_actions]
    return val, adv


# ------------------- one-time weight layout preparation --------------------- #

def _banded_conv(w_oihw, b, win, stride, compute_dtype):
    """Fold the kh x kw patch extraction (incl. W-direction stride) into a
    (KH*Win*Cin, OW*Cout) banded weight, so one conv output row is ONE matmul
    against a contiguous VMEM window of the NHWC-flattened input."""
    w = np.asarray(w_oihw, np.float32)                  # (Cout, Cin, KH, KW)
    cout, cin, kh, kw = w.shape
    ow = _conv_out(win, kw, stride)
    band = np.zeros((kh * win * cin, ow * cout), np.float32)
    for ki in range(kh):
        for o in range(ow):
            for kj in range(kw):
                r0 = (ki * win + o * stride + kj) * cin
                band[r0:r0 + cin, o * cout:(o + 1) * cout] = w[:, :, ki, kj].T
    bias = np.tile(np.asarray(b, np.float32), ow).reshape(1, ow * cout)
    return jnp.asarray(band, compute_dtype), jnp.asarray(bias)


def prepare_params(params, input_dims, n_actions, compute_dtype=jnp.float32):
    """One-time prep: banded conv weights (real Cin, no channel zero-pad in K),
    fc1 with PyTorch's NCHW flatten order folded into its rows, value+advantage
    heads fused into a single lane-dense (512, 128) matmul."""
    C, H, W = input_dims
    h1, w1 = _conv_out(H, 8, 4), _conv_out(W, 8, 4)
    h2, w2 = _conv_out(h1, 4, 2), _conv_out(w1, 4, 2)
    h3, w3 = _conv_out(h2, 3, 1), _conv_out(w2, 3, 1)
    assert h3 >= 1 and w3 >= 1, "input spatial dims too small for the conv trunk"
    n_head = 1 + n_actions
    assert n_head <= LANE

    cv1_w, cv1_b = _banded_conv(params['cv1_w'], params['cv1_b'], W, 4, compute_dtype)
    cv2_w, cv2_b = _banded_conv(params['cv2_w'], params['cv2_b'], w1, 2, compute_dtype)
    cv3_w, cv3_b = _banded_conv(params['cv3_w'], params['cv3_b'], w2, 1, compute_dtype)

    # fc1: our feature order is NHWC-flat (oh, ow, c); PyTorch flattens NCHW (c, oh, ow).
    f = np.asarray(params['fc1_w'], np.float32)          # (512, 64*h3*w3)
    wf = np.zeros((h3 * w3 * 64, 512), np.float32)
    for oh in range(h3):
        for o in range(w3):
            for c in range(64):
                wf[(oh * w3 + o) * 64 + c, :] = f[:, c * h3 * w3 + oh * w3 + o]
    fc1_w = jnp.asarray(wf, compute_dtype)
    fc1_b = jnp.asarray(np.asarray(params['fc1_b'], np.float32).reshape(1, 512))

    # value + advantage heads fused into one lane-dense (512, 128) matmul.
    wh = np.concatenate([np.asarray(params['val_w'], np.float32).T,
                         np.asarray(params['adv_w'], np.float32).T], axis=1)
    head_w = jnp.asarray(np.pad(wh, ((0, 0), (0, LANE - n_head))), compute_dtype)
    bh = np.concatenate([np.asarray(params['val_b'], np.float32),
                         np.asarray(params['adv_b'], np.float32)])
    head_b = jnp.asarray(np.pad(bh, (0, LANE - n_head)).reshape(1, LANE))

    return dict(cv1_w=cv1_w, cv1_b=cv1_b, cv2_w=cv2_w, cv2_b=cv2_b,
                cv3_w=cv3_w, cv3_b=cv3_b, fc1_w=fc1_w, fc1_b=fc1_b,
                head_w=head_w, head_b=head_b)


# --------------------- deterministic parameter init ------------------------ #

def init_params(key, input_dims, n_actions):
    C, H, W = input_dims
    ks = jax.random.split(key, 12)

    def u(k, shape, fan_in):
        bound = 1.0 / np.sqrt(fan_in)
        return jax.random.uniform(k, shape, jnp.float32, -bound, bound)

    oh = _conv_out(_conv_out(_conv_out(H, 8, 4), 4, 2), 3, 1)
    ow = _conv_out(_conv_out(_conv_out(W, 8, 4), 4, 2), 3, 1)
    fc_in = 64 * oh * ow

    return {
        'cv1_w': u(ks[0], (32, C, 8, 8), C * 8 * 8),
        'cv1_b': u(ks[1], (32,), C * 8 * 8),
        'cv2_w': u(ks[2], (64, 32, 4, 4), 32 * 4 * 4),
        'cv2_b': u(ks[3], (64,), 32 * 4 * 4),
        'cv3_w': u(ks[4], (64, 64, 3, 3), 64 * 3 * 3),
        'cv3_b': u(ks[5], (64,), 64 * 3 * 3),
        'fc1_w': u(ks[6], (512, fc_in), fc_in),
        'fc1_b': u(ks[7], (512,), fc_in),
        'val_w': u(ks[8], (1, 512), 512),
        'val_b': u(ks[9], (1,), 512),
        'adv_w': u(ks[10], (n_actions, 512), 512),
        'adv_b': u(ks[11], (n_actions,), 512),
    }


# ----------------------------- pure-JAX reference --------------------------- #

def ref_forward(x_nchw, params):
    def conv(x, w, b, s):
        y = lax.conv_general_dilated(x, w, (s, s), 'VALID',
                                     dimension_numbers=('NCHW', 'OIHW', 'NCHW'))
        return jnp.maximum(y + b[None, :, None, None], 0.0)

    y = conv(x_nchw, params['cv1_w'], params['cv1_b'], 4)
    y = conv(y, params['cv2_w'], params['cv2_b'], 2)
    y = conv(y, params['cv3_w'], params['cv3_b'], 1)
    flat = y.reshape(y.shape[0], -1)
    h = jnp.maximum(flat @ params['fc1_w'].T + params['fc1_b'], 0.0)
    val = h @ params['val_w'].T + params['val_b']
    adv = h @ params['adv_w'].T + params['adv_b']
    return val, adv


if __name__ == "__main__":
    key = jax.random.PRNGKey(0)
    input_dims = (4, 36, 36)        # conv trunk: 36 -> 8 -> 3 -> 1  (fc_in = 64); 36 is the minimum
    n_actions = 6

    pkey, xkey, xkey2 = jax.random.split(key, 3)
    params = init_params(pkey, input_dims, n_actions)

    fwd = jax.jit(dqn_forward, static_argnums=(2,))

    # --- batch 2, fp32 operands (portable, tight tolerance) ---
    x = jax.random.normal(xkey, (2,) + input_dims, jnp.float32)
    rval, radv = ref_forward(x, params)
    kp32 = prepare_params(params, input_dims, n_actions, jnp.float32)
    val, adv = jax.block_until_ready(fwd(x, kp32, n_actions))
    np.testing.assert_allclose(np.asarray(val), np.asarray(rval), rtol=1e-4, atol=1e-4)
    np.testing.assert_allclose(np.asarray(adv), np.asarray(radv), rtol=1e-4, atol=1e-4)

    # --- batch 2, bf16 operands (MXU-native on v5e/v6e/v7x), fp32 accumulation ---
    kp16 = prepare_params(params, input_dims, n_actions, jnp.bfloat16)
    val16, adv16 = jax.block_until_ready(fwd(x, kp16, n_actions))
    np.testing.assert_allclose(np.asarray(val16), np.asarray(rval), rtol=5e-2, atol=5e-2)
    np.testing.assert_allclose(np.asarray(adv16), np.asarray(radv), rtol=5e-2, atol=5e-2)

    # --- batch 34, fp32: exercises a 2-tile "parallel" grid with a masked partial block ---
    xb = jax.random.normal(xkey2, (34,) + input_dims, jnp.float32)
    rvalb, radvb = ref_forward(xb, params)
    valb, advb = jax.block_until_ready(fwd(xb, kp32, n_actions))
    np.testing.assert_allclose(np.asarray(valb), np.asarray(rvalb), rtol=1e-4, atol=1e-4)
    np.testing.assert_allclose(np.asarray(advb), np.asarray(radvb), rtol=1e-4, atol=1e-4)

    print("KERNEL_OK")
</pallas_src>

<mosaic_0001>
module attributes {stable_mosaic.version = 11 : i64} {
  func.func @kernel(%arg0: i32, %arg1: memref<2x5184xf32, #tpu.memory_space<vmem>>, %arg2: memref<1152x256xf32, #tpu.memory_space<vmem>>, %arg3: memref<1x256xf32, #tpu.memory_space<vmem>>, %arg4: memref<1024x192xf32, #tpu.memory_space<vmem>>, %arg5: memref<1x192xf32, #tpu.memory_space<vmem>>, %arg6: memref<576x64xf32, #tpu.memory_space<vmem>>, %arg7: memref<1x64xf32, #tpu.memory_space<vmem>>, %arg8: memref<64x512xf32, #tpu.memory_space<vmem>>, %arg9: memref<1x512xf32, #tpu.memory_space<vmem>>, %arg10: memref<512x128xf32, #tpu.memory_space<vmem>>, %arg11: memref<1x128xf32, #tpu.memory_space<vmem>>, %arg12: memref<2x128xf32, #tpu.memory_space<vmem>>, %arg13: memref<2x2048xf32, #tpu.memory_space<vmem>>, %arg14: memref<2x576xf32, #tpu.memory_space<vmem>>, %arg15: memref<2x64xf32, #tpu.memory_space<vmem>>) attributes {dimension_semantics = [#tpu.dimension_semantics<parallel>], iteration_bounds = array<i64: 1>, scalar_prefetch = 0 : i64, scratch_operands = 3 : i64, tpu.core_type = #tpu.core_type<tc>, window_params = [{transform_indices = @transform_0, window_bounds = array<i64: 2, 5184>}, {pipeline_mode = #tpu.pipeline_mode<synchronous>, transform_indices = @transform_1, window_bounds = array<i64: 1152, 256>}, {pipeline_mode = #tpu.pipeline_mode<synchronous>, transform_indices = @transform_2, window_bounds = array<i64: 1, 256>}, {pipeline_mode = #tpu.pipeline_mode<synchronous>, transform_indices = @transform_3, window_bounds = array<i64: 1024, 192>}, {pipeline_mode = #tpu.pipeline_mode<synchronous>, transform_indices = @transform_4, window_bounds = array<i64: 1, 192>}, {pipeline_mode = #tpu.pipeline_mode<synchronous>, transform_indices = @transform_5, window_bounds = array<i64: 576, 64>}, {pipeline_mode = #tpu.pipeline_mode<synchronous>, transform_indices = @transform_6, window_bounds = array<i64: 1, 64>}, {pipeline_mode = #tpu.pipeline_mode<synchronous>, transform_indices = @transform_7, window_bounds = array<i64: 64, 512>}, {pipeline_mode = #tpu.pipeline_mode<synchronous>, transform_indices = @transform_8, window_bounds = array<i64: 1, 512>}, {pipeline_mode = #tpu.pipeline_mode<synchronous>, transform_indices = @transform_9, window_bounds = array<i64: 512, 128>}, {pipeline_mode = #tpu.pipeline_mode<synchronous>, transform_indices = @transform_10, window_bounds = array<i64: 1, 128>}, {transform_indices = @transform_11, window_bounds = array<i64: 2, 128>}]} {
    %c0 = arith.constant 0 : index
    %c0_0 = arith.constant 0 : index
    %0 = vector.load %arg1[%c0, %c0_0] : memref<2x5184xf32, #tpu.memory_space<vmem>>, vector<2x1152xf32>
    %c0_1 = arith.constant 0 : index
    %c0_2 = arith.constant 0 : index
    %1 = vector.load %arg2[%c0_1, %c0_2] : memref<1152x256xf32, #tpu.memory_space<vmem>>, vector<1152x256xf32>
    %cst = arith.constant dense<0.000000e+00> : vector<2x256xf32>
    %2 = tpu.matmul %0, %1, %cst {dimension_numbers = #tpu.dot_dimension_numbers<[1], [0], [0], [1], [0, 0, 1, 1], [], []>} : vector<2x1152xf32>, vector<1152x256xf32>, vector<2x256xf32> -> vector<2x256xf32>
    %c0_3 = arith.constant 0 : index
    %c0_4 = arith.constant 0 : index
    %3 = vector.load %arg3[%c0_3, %c0_4] : memref<1x256xf32, #tpu.memory_space<vmem>>, vector<1x256xf32>
    %4 = vector.broadcast %3 : vector<1x256xf32> to vector<2x256xf32>
    %5 = arith.addf %2, %4 : vector<2x256xf32>
    %cst_5 = arith.constant 0.000000e+00 : f32
    %6 = vector.broadcast %cst_5 : f32 to vector<2x256xf32>
    %7 = arith.maximumf %5, %6 : vector<2x256xf32>
    %c0_6 = arith.constant 0 : index
    %c0_7 = arith.constant 0 : index
    %8 = vector.load %arg13[%c0_6, %c0_7] : memref<2x2048xf32, #tpu.memory_space<vmem>>, vector<2x256xf32>
    tpu.vector_store %arg13[%c0_6, %c0_7], %7 {strides = array<i32>} : memref<2x2048xf32, #tpu.memory_space<vmem>>, vector<2x256xf32>,
    %c0_8 = arith.constant 0 : index
    %c576 = arith.constant 576 : index
    %9 = vector.load %arg1[%c0_8, %c576] : memref<2x5184xf32, #tpu.memory_space<vmem>>, vector<2x1152xf32>
    %c0_9 = arith.constant 0 : index
    %c0_10 = arith.constant 0 : index
    %10 = vector.load %arg2[%c0_9, %c0_10] : memref<1152x256xf32, #tpu.memory_space<vmem>>, vector<1152x256xf32>
    %cst_11 = arith.constant dense<0.000000e+00> : vector<2x256xf32>
    %11 = tpu.matmul %9, %10, %cst_11 {dimension_numbers = #tpu.dot_dimension_numbers<[1], [0], [0], [1], [0, 0, 1, 1], [], []>} : vector<2x1152xf32>, vector<1152x256xf32>, vector<2x256xf32> -> vector<2x256xf32>
    %c0_12 = arith.constant 0 : index
    %c0_13 = arith.constant 0 : index
    %12 = vector.load %arg3[%c0_12, %c0_13] : memref<1x256xf32, #tpu.memory_space<vmem>>, vector<1x256xf32>
    %13 = vector.broadcast %12 : vector<1x256xf32> to vector<2x256xf32>
    %14 = arith.addf %11, %13 : vector<2x256xf32>
    %cst_14 = arith.constant 0.000000e+00 : f32
    %15 = vector.broadcast %cst_14 : f32 to vector<2x256xf32>
    %16 = arith.maximumf %14, %15 : vector<2x256xf32>
    %c0_15 = arith.constant 0 : index
    %c256 = arith.constant 256 : index
    %17 = vector.load %arg13[%c0_15, %c256] : memref<2x2048xf32, #tpu.memory_space<vmem>>, vector<2x256xf32>
    tpu.vector_store %arg13[%c0_15, %c256], %16 {strides = array<i32>} : memref<2x2048xf32, #tpu.memory_space<vmem>>, vector<2x256xf32>,
    %c0_16 = arith.constant 0 : index
    %c1152 = arith.constant 1152 : index
    %18 = vector.load %arg1[%c0_16, %c1152] : memref<2x5184xf32, #tpu.memory_space<vmem>>, vector<2x1152xf32>
    %c0_17 = arith.constant 0 : index
    %c0_18 = arith.constant 0 : index
    %19 = vector.load %arg2[%c0_17, %c0_18] : memref<1152x256xf32, #tpu.memory_space<vmem>>, vector<1152x256xf32>
    %cst_19 = arith.constant dense<0.000000e+00> : vector<2x256xf32>
    %20 = tpu.matmul %18, %19, %cst_19 {dimension_numbers = #tpu.dot_dimension_numbers<[1], [0], [0], [1], [0, 0, 1, 1], [], []>} : vector<2x1152xf32>, vector<1152x256xf32>, vector<2x256xf32> -> vector<2x256xf32>
    %c0_20 = arith.constant 0 : index
    %c0_21 = arith.constant 0 : index
    %21 = vector.load %arg3[%c0_20, %c0_21] : memref<1x256xf32, #tpu.memory_space<vmem>>, vector<1x256xf32>
    %22 = vector.broadcast %21 : vector<1x256xf32> to vector<2x256xf32>
    %23 = arith.addf %20, %22 : vector<2x256xf32>
    %cst_22 = arith.constant 0.000000e+00 : f32
    %24 = vector.broadcast %cst_22 : f32 to vector<2x256xf32>
    %25 = arith.maximumf %23, %24 : vector<2x256xf32>
    %c0_23 = arith.constant 0 : index
    %c512 = arith.constant 512 : index
    %26 = vector.load %arg13[%c0_23, %c512] : memref<2x2048xf32, #tpu.memory_space<vmem>>, vector<2x256xf32>
    tpu.vector_store %arg13[%c0_23, %c512], %25 {strides = array<i32>} : memref<2x2048xf32, #tpu.memory_space<vmem>>, vector<2x256xf32>,
    %c0_24 = arith.constant 0 : index
    %c1728 = arith.constant 1728 : index
    %27 = vector.load %arg1[%c0_24, %c1728] : memref<2x5184xf32, #tpu.memory_space<vmem>>, vector<2x1152xf32>
    %c0_25 = arith.constant 0 : index
    %c0_26 = arith.constant 0 : index
    %28 = vector.load %arg2[%c0_25, %c0_26] : memref<1152x256xf32, #tpu.memory_space<vmem>>, vector<1152x256xf32>
    %cst_27 = arith.constant dense<0.000000e+00> : vector<2x256xf32>
    %29 = tpu.matmul %27, %28, %cst_27 {dimension_numbers = #tpu.dot_dimension_numbers<[1], [0], [0], [1], [0, 0, 1, 1], [], []>} : vector<2x1152xf32>, vector<1152x256xf32>, vector<2x256xf32> -> vector<2x256xf32>
    %c0_28 = arith.constant 0 : index
    %c0_29 = arith.constant 0 : index
    %30 = vector.load %arg3[%c0_28, %c0_29] : memref<1x256xf32, #tpu.memory_space<vmem>>, vector<1x256xf32>
    %31 = vector.broadcast %30 : vector<1x256xf32> to vector<2x256xf32>
    %32 = arith.addf %29, %31 : vector<2x256xf32>
    %cst_30 = arith.constant 0.000000e+00 : f32
    %33 = vector.broadcast %cst_30 : f32 to vector<2x256xf32>
    %34 = arith.maximumf %32, %33 : vector<2x256xf32>
    %c0_31 = arith.constant 0 : index
    %c768 = arith.constant 768 : index
    %35 = vector.load %arg13[%c0_31, %c768] : memref<2x2048xf32, #tpu.memory_space<vmem>>, vector<2x256xf32>
    tpu.vector_store %arg13[%c0_31, %c768], %34 {strides = array<i32>} : memref<2x2048xf32, #tpu.memory_space<vmem>>, vector<2x256xf32>,
    %c0_32 = arith.constant 0 : index
    %c2304 = arith.constant 2304 : index
    %36 = vector.load %arg1[%c0_32, %c2304] : memref<2x5184xf32, #tpu.memory_space<vmem>>, vector<2x1152xf32>
    %c0_33 = arith.constant 0 : index
    %c0_34 = arith.constant 0 : index
    %37 = vector.load %arg2[%c0_33, %c0_34] : memref<1152x256xf32, #tpu.memory_space<vmem>>, vector<1152x256xf32>
    %cst_35 = arith.constant dense<0.000000e+00> : vector<2x256xf32>
    %38 = tpu.matmul %36, %37, %cst_35 {dimension_numbers = #tpu.dot_dimension_numbers<[1], [0], [0], [1], [0, 0, 1, 1], [], []>} : vector<2x1152xf32>, vector<1152x256xf32>, vector<2x256xf32> -> vector<2x256xf32>
    %c0_36 = arith.constant 0 : index
    %c0_37 = arith.constant 0 : index
    %39 = vector.load %arg3[%c0_36, %c0_37] : memref<1x256xf32, #tpu.memory_space<vmem>>, vector<1x256xf32>
    %40 = vector.broadcast %39 : vector<1x256xf32> to vector<2x256xf32>
    %41 = arith.addf %38, %40 : vector<2x256xf32>
    %cst_38 = arith.constant 0.000000e+00 : f32
    %42 = vector.broadcast %cst_38 : f32 to vector<2x256xf32>
    %43 = arith.maximumf %41, %42 : vector<2x256xf32>
    %c0_39 = arith.constant 0 : index
    %c1024 = arith.constant 1024 : index
    %44 = vector.load %arg13[%c0_39, %c1024] : memref<2x2048xf32, #tpu.memory_space<vmem>>, vector<2x256xf32>
    tpu.vector_store %arg13[%c0_39, %c1024], %43 {strides = array<i32>} : memref<2x2048xf32, #tpu.memory_space<vmem>>, vector<2x256xf32>,
    %c0_40 = arith.constant 0 : index
    %c2880 = arith.constant 2880 : index
    %45 = vector.load %arg1[%c0_40, %c2880] : memref<2x5184xf32, #tpu.memory_space<vmem>>, vector<2x1152xf32>
    %c0_41 = arith.constant 0 : index
    %c0_42 = arith.constant 0 : index
    %46 = vector.load %arg2[%c0_41, %c0_42] : memref<1152x256xf32, #tpu.memory_space<vmem>>, vector<1152x256xf32>
    %cst_43 = arith.constant dense<0.000000e+00> : vector<2x256xf32>
    %47 = tpu.matmul %45, %46, %cst_43 {dimension_numbers = #tpu.dot_dimension_numbers<[1], [0], [0], [1], [0, 0, 1, 1], [], []>} : vector<2x1152xf32>, vector<1152x256xf32>, vector<2x256xf32> -> vector<2x256xf32>
    %c0_44 = arith.constant 0 : index
    %c0_45 = arith.constant 0 : index
    %48 = vector.load %arg3[%c0_44, %c0_45] : memref<1x256xf32, #tpu.memory_space<vmem>>, vector<1x256xf32>
    %49 = vector.broadcast %48 : vector<1x256xf32> to vector<2x256xf32>
    %50 = arith.addf %47, %49 : vector<2x256xf32>
    %cst_46 = arith.constant 0.000000e+00 : f32
    %51 = vector.broadcast %cst_46 : f32 to vector<2x256xf32>
    %52 = arith.maximumf %50, %51 : vector<2x256xf32>
    %c0_47 = arith.constant 0 : index
    %c1280 = arith.constant 1280 : index
    %53 = vector.load %arg13[%c0_47, %c1280] : memref<2x2048xf32, #tpu.memory_space<vmem>>, vector<2x256xf32>
    tpu.vector_store %arg13[%c0_47, %c1280], %52 {strides = array<i32>} : memref<2x2048xf32, #tpu.memory_space<vmem>>, vector<2x256xf32>,
    %c0_48 = arith.constant 0 : index
    %c3456 = arith.constant 3456 : index
    %54 = vector.load %arg1[%c0_48, %c3456] : memref<2x5184xf32, #tpu.memory_space<vmem>>, vector<2x1152xf32>
    %c0_49 = arith.constant 0 : index
    %c0_50 = arith.constant 0 : index
    %55 = vector.load %arg2[%c0_49, %c0_50] : memref<1152x256xf32, #tpu.memory_space<vmem>>, vector<1152x256xf32>
    %cst_51 = arith.constant dense<0.000000e+00> : vector<2x256xf32>
    %56 = tpu.matmul %54, %55, %cst_51 {dimension_numbers = #tpu.dot_dimension_numbers<[1], [0], [0], [1], [0, 0, 1, 1], [], []>} : vector<2x1152xf32>, vector<1152x256xf32>, vector<2x256xf32> -> vector<2x256xf32>
    %c0_52 = arith.constant 0 : index
    %c0_53 = arith.constant 0 : index
    %57 = vector.load %arg3[%c0_52, %c0_53] : memref<1x256xf32, #tpu.memory_space<vmem>>, vector<1x256xf32>
    %58 = vector.broadcast %57 : vector<1x256xf32> to vector<2x256xf32>
    %59 = arith.addf %56, %58 : vector<2x256xf32>
    %cst_54 = arith.constant 0.000000e+00 : f32
    %60 = vector.broadcast %cst_54 : f32 to vector<2x256xf32>
    %61 = arith.maximumf %59, %60 : vector<2x256xf32>
    %c0_55 = arith.constant 0 : index
    %c1536 = arith.constant 1536 : index
    %62 = vector.load %arg13[%c0_55, %c1536] : memref<2x2048xf32, #tpu.memory_space<vmem>>, vector<2x256xf32>
    tpu.vector_store %arg13[%c0_55, %c1536], %61 {strides = array<i32>} : memref<2x2048xf32, #tpu.memory_space<vmem>>, vector<2x256xf32>,
    %c0_56 = arith.constant 0 : index
    %c4032 = arith.constant 4032 : index
    %63 = vector.load %arg1[%c0_56, %c4032] : memref<2x5184xf32, #tpu.memory_space<vmem>>, vector<2x1152xf32>
    %c0_57 = arith.constant 0 : index
    %c0_58 = arith.constant 0 : index
    %64 = vector.load %arg2[%c0_57, %c0_58] : memref<1152x256xf32, #tpu.memory_space<vmem>>, vector<1152x256xf32>
    %cst_59 = arith.constant dense<0.000000e+00> : vector<2x256xf32>
    %65 = tpu.matmul %63, %64, %cst_59 {dimension_numbers = #tpu.dot_dimension_numbers<[1], [0], [0], [1], [0, 0, 1, 1], [], []>} : vector<2x1152xf32>, vector<1152x256xf32>, vector<2x256xf32> -> vector<2x256xf32>
    %c0_60 = arith.constant 0 : index
    %c0_61 = arith.constant 0 : index
    %66 = vector.load %arg3[%c0_60, %c0_61] : memref<1x256xf32, #tpu.memory_space<vmem>>, vector<1x256xf32>
    %67 = vector.broadcast %66 : vector<1x256xf32> to vector<2x256xf32>
    %68 = arith.addf %65, %67 : vector<2x256xf32>
    %cst_62 = arith.constant 0.000000e+00 : f32
    %69 = vector.broadcast %cst_62 : f32 to vector<2x256xf32>
    %70 = arith.maximumf %68, %69 : vector<2x256xf32>
    %c0_63 = arith.constant 0 : index
    %c1792 = arith.constant 1792 : index
    %71 = vector.load %arg13[%c0_63, %c1792] : memref<2x2048xf32, #tpu.memory_space<vmem>>, vector<2x256xf32>
    tpu.vector_store %arg13[%c0_63, %c1792], %70 {strides = array<i32>} : memref<2x2048xf32, #tpu.memory_space<vmem>>, vector<2x256xf32>,
    %c0_64 = arith.constant 0 : index
    %c0_65 = arith.constant 0 : index
    %72 = vector.load %arg13[%c0_64, %c0_65] : memref<2x2048xf32, #tpu.memory_space<vmem>>, vector<2x1024xf32>
    %c0_66 = arith.constant 0 : index
    %c0_67 = arith.constant 0 : index
    %73 = vector.load %arg4[%c0_66, %c0_67] : memref<1024x192xf32, #tpu.memory_space<vmem>>, vector<1024x192xf32>
    %cst_68 = arith.constant dense<0.000000e+00> : vector<2x192xf32>
    %74 = tpu.matmul %72, %73, %cst_68 {dimension_numbers = #tpu.dot_dimension_numbers<[1], [0], [0], [1], [0, 0, 1, 1], [], []>} : vector<2x1024xf32>, vector<1024x192xf32>, vector<2x192xf32> -> vector<2x192xf32>
    %c0_69 = arith.constant 0 : index
    %c0_70 = arith.constant 0 : index
    %75 = vector.load %arg5[%c0_69, %c0_70] : memref<1x192xf32, #tpu.memory_space<vmem>>, vector<1x192xf32>
    %76 = vector.broadcast %75 : vector<1x192xf32> to vector<2x192xf32>
    %77 = arith.addf %74, %76 : vector<2x192xf32>
    %cst_71 = arith.constant 0.000000e+00 : f32
    %78 = vector.broadcast %cst_71 : f32 to vector<2x192xf32>
    %79 = arith.maximumf %77, %78 : vector<2x192xf32>
    %c0_72 = arith.constant 0 : index
    %c0_73 = arith.constant 0 : index
    %80 = vector.load %arg14[%c0_72, %c0_73] : memref<2x576xf32, #tpu.memory_space<vmem>>, vector<2x192xf32>
    tpu.vector_store %arg14[%c0_72, %c0_73], %79 {strides = array<i32>} : memref<2x576xf32, #tpu.memory_space<vmem>>, vector<2x192xf32>,
    %c0_74 = arith.constant 0 : index
    %c512_75 = arith.constant 512 : index
    %81 = vector.load %arg13[%c0_74, %c512_75] : memref<2x2048xf32, #tpu.memory_space<vmem>>, vector<2x1024xf32>
    %c0_76 = arith.constant 0 : index
    %c0_77 = arith.constant 0 : index
    %82 = vector.load %arg4[%c0_76, %c0_77] : memref<1024x192xf32, #tpu.memory_space<vmem>>, vector<1024x192xf32>
    %cst_78 = arith.constant dense<0.000000e+00> : vector<2x192xf32>
    %83 = tpu.matmul %81, %82, %cst_78 {dimension_numbers = #tpu.dot_dimension_numbers<[1], [0], [0], [1], [0, 0, 1, 1], [], []>} : vector<2x1024xf32>, vector<1024x192xf32>, vector<2x192xf32> -> vector<2x192xf32>
    %c0_79 = arith.constant 0 : index
    %c0_80 = arith.constant 0 : index
    %84 = vector.load %arg5[%c0_79, %c0_80] : memref<1x192xf32, #tpu.memory_space<vmem>>, vector<1x192xf32>
    %85 = vector.broadcast %84 : vector<1x192xf32> to vector<2x192xf32>
    %86 = arith.addf %83, %85 : vector<2x192xf32>
    %cst_81 = arith.constant 0.000000e+00 : f32
    %87 = vector.broadcast %cst_81 : f32 to vector<2x192xf32>
    %88 = arith.maximumf %86, %87 : vector<2x192xf32>
    %c0_82 = arith.constant 0 : index
    %c192 = arith.constant 192 : index
    %89 = vector.load %arg14[%c0_82, %c192] : memref<2x576xf32, #tpu.memory_space<vmem>>, vector<2x192xf32>
    tpu.vector_store %arg14[%c0_82, %c192], %88 {strides = array<i32>} : memref<2x576xf32, #tpu.memory_space<vmem>>, vector<2x192xf32>,
    %c0_83 = arith.constant 0 : index
    %c1024_84 = arith.constant 1024 : index
    %90 = vector.load %arg13[%c0_83, %c1024_84] : memref<2x2048xf32, #tpu.memory_space<vmem>>, vector<2x1024xf32>
    %c0_85 = arith.constant 0 : index
    %c0_86 = arith.constant 0 : index
    %91 = vector.load %arg4[%c0_85, %c0_86] : memref<1024x192xf32, #tpu.memory_space<vmem>>, vector<1024x192xf32>
    %cst_87 = arith.constant dense<0.000000e+00> : vector<2x192xf32>
    %92 = tpu.matmul %90, %91, %cst_87 {dimension_numbers = #tpu.dot_dimension_numbers<[1], [0], [0], [1], [0, 0, 1, 1], [], []>} : vector<2x1024xf32>, vector<1024x192xf32>, vector<2x192xf32> -> vector<2x192xf32>
    %c0_88 = arith.constant 0 : index
    %c0_89 = arith.constant 0 : index
    %93 = vector.load %arg5[%c0_88, %c0_89] : memref<1x192xf32, #tpu.memory_space<vmem>>, vector<1x192xf32>
    %94 = vector.broadcast %93 : vector<1x192xf32> to vector<2x192xf32>
    %95 = arith.addf %92, %94 : vector<2x192xf32>
    %cst_90 = arith.constant 0.000000e+00 : f32
    %96 = vector.broadcast %cst_90 : f32 to vector<2x192xf32>
    %97 = arith.maximumf %95, %96 : vector<2x192xf32>
    %c0_91 = arith.constant 0 : index
    %c384 = arith.constant 384 : index
    %98 = vector.load %arg14[%c0_91, %c384] : memref<2x576xf32, #tpu.memory_space<vmem>>, vector<2x192xf32>
    tpu.vector_store %arg14[%c0_91, %c384], %97 {strides = array<i32>} : memref<2x576xf32, #tpu.memory_space<vmem>>, vector<2x192xf32>,
    %c0_92 = arith.constant 0 : index
    %c0_93 = arith.constant 0 : index
    %99 = vector.load %arg14[%c0_92, %c0_93] : memref<2x576xf32, #tpu.memory_space<vmem>>, vector<2x576xf32>
    %c0_94 = arith.constant 0 : index
    %c0_95 = arith.constant 0 : index
    %100 = vector.load %arg6[%c0_94, %c0_95] : memref<576x64xf32, #tpu.memory_space<vmem>>, vector<576x64xf32>
    %cst_96 = arith.constant dense<0.000000e+00> : vector<2x64xf32>
    %101 = tpu.matmul %99, %100, %cst_96 {dimension_numbers = #tpu.dot_dimension_numbers<[1], [0], [0], [1], [0, 0, 1, 1], [], []>} : vector<2x576xf32>, vector<576x64xf32>, vector<2x64xf32> -> vector<2x64xf32>
    %c0_97 = arith.constant 0 : index
    %c0_98 = arith.constant 0 : index
    %102 = vector.load %arg7[%c0_97, %c0_98] : memref<1x64xf32, #tpu.memory_space<vmem>>, vector<1x64xf32>
    %103 = vector.broadcast %102 : vector<1x64xf32> to vector<2x64xf32>
    %104 = arith.addf %101, %103 : vector<2x64xf32>
    %cst_99 = arith.constant 0.000000e+00 : f32
    %105 = vector.broadcast %cst_99 : f32 to vector<2x64xf32>
    %106 = arith.maximumf %104, %105 : vector<2x64xf32>
    %c0_100 = arith.constant 0 : index
    %c0_101 = arith.constant 0 : index
    %107 = vector.load %arg15[%c0_100, %c0_101] : memref<2x64xf32, #tpu.memory_space<vmem>>, vector<2x64xf32>
    tpu.vector_store %arg15[%c0_100, %c0_101], %106 {strides = array<i32>} : memref<2x64xf32, #tpu.memory_space<vmem>>, vector<2x64xf32>,
    %c0_102 = arith.constant 0 : index
    %c0_103 = arith.constant 0 : index
    %108 = vector.load %arg15[%c0_102, %c0_103] : memref<2x64xf32, #tpu.memory_space<vmem>>, vector<2x64xf32>
    %c0_104 = arith.constant 0 : index
    %c0_105 = arith.constant 0 : index
    %109 = vector.load %arg8[%c0_104, %c0_105] : memref<64x512xf32, #tpu.memory_space<vmem>>, vector<64x512xf32>
    %cst_106 = arith.constant dense<0.000000e+00> : vector<2x512xf32>
    %110 = tpu.matmul %108, %109, %cst_106 {dimension_numbers = #tpu.dot_dimension_numbers<[1], [0], [0], [1], [0, 0, 1, 1], [], []>} : vector<2x64xf32>, vector<64x512xf32>, vector<2x512xf32> -> vector<2x512xf32>
    %c0_107 = arith.constant 0 : index
    %c0_108 = arith.constant 0 : index
    %111 = vector.load %arg9[%c0_107, %c0_108] : memref<1x512xf32, #tpu.memory_space<vmem>>, vector<1x512xf32>
    %112 = vector.broadcast %111 : vector<1x512xf32> to vector<2x512xf32>
    %113 = arith.addf %110, %112 : vector<2x512xf32>
    %cst_109 = arith.constant 0.000000e+00 : f32
    %114 = vector.broadcast %cst_109 : f32 to vector<2x512xf32>
    %115 = arith.maximumf %113, %114 : vector<2x512xf32>
    %c0_110 = arith.constant 0 : index
    %c0_111 = arith.constant 0 : index
    %116 = vector.load %arg10[%c0_110, %c0_111] : memref<512x128xf32, #tpu.memory_space<vmem>>, vector<512x128xf32>
    %cst_112 = arith.constant dense<0.000000e+00> : vector<2x128xf32>
    %117 = tpu.matmul %115, %116, %cst_112 {dimension_numbers = #tpu.dot_dimension_numbers<[1], [0], [0], [1], [0, 0, 1, 1], [], []>} : vector<2x512xf32>, vector<512x128xf32>, vector<2x128xf32> -> vector<2x128xf32>
    %c0_113 = arith.constant 0 : index
    %c0_114 = arith.constant 0 : index
    %118 = vector.load %arg11[%c0_113, %c0_114] : memref<1x128xf32, #tpu.memory_space<vmem>>, vector<1x128xf32>
    %119 = vector.broadcast %118 : vector<1x128xf32> to vector<2x128xf32>
    %120 = arith.addf %117, %119 : vector<2x128xf32>
    %c0_115 = arith.constant 0 : index
    %c0_116 = arith.constant 0 : index
    %121 = vector.load %arg12[%c0_115, %c0_116] : memref<2x128xf32, #tpu.memory_space<vmem>>, vector<2x128xf32>
    tpu.vector_store %arg12[%c0_115, %c0_116], %120 {strides = array<i32>} : memref<2x128xf32, #tpu.memory_space<vmem>>, vector<2x128xf32>,
    return
  }
  func.func @transform_0(%arg0: i32) -> (i32, i32) {
    %c0_i32 = arith.constant 0 : i32
    %c0_i32_0 = arith.constant 0 : i32
    return %arg0, %c0_i32 : i32, i32
  }
  func.func @transform_1(%arg0: i32) -> (i32, i32) {
    %c0_i32 = arith.constant 0 : i32
    %c0_i32_0 = arith.constant 0 : i32
    %c0_i32_1 = arith.constant 0 : i32
    return %c0_i32, %c0_i32_0 : i32, i32
  }
  func.func @transform_2(%arg0: i32) -> (i32, i32) {
    %c0_i32 = arith.constant 0 : i32
    %c0_i32_0 = arith.constant 0 : i32
    %c0_i32_1 = arith.constant 0 : i32
    return %c0_i32, %c0_i32_0 : i32, i32
  }
  func.func @transform_3(%arg0: i32) -> (i32, i32) {
    %c0_i32 = arith.constant 0 : i32
    %c0_i32_0 = arith.constant 0 : i32
    %c0_i32_1 = arith.constant 0 : i32
    return %c0_i32, %c0_i32_0 : i32, i32
  }
  func.func @transform_4(%arg0: i32) -> (i32, i32) {
    %c0_i32 = arith.constant 0 : i32
    %c0_i32_0 = arith.constant 0 : i32
    %c0_i32_1 = arith.constant 0 : i32
    return %c0_i32, %c0_i32_0 : i32, i32
  }
  func.func @transform_5(%arg0: i32) -> (i32, i32) {
    %c0_i32 = arith.constant 0 : i32
    %c0_i32_0 = arith.constant 0 : i32
    %c0_i32_1 = arith.constant 0 : i32
    return %c0_i32, %c0_i32_0 : i32, i32
  }
  func.func @transform_6(%arg0: i32) -> (i32, i32) {
    %c0_i32 = arith.constant 0 : i32
    %c0_i32_0 = arith.constant 0 : i32
    %c0_i32_1 = arith.constant 0 : i32
    return %c0_i32, %c0_i32_0 : i32, i32
  }
  func.func @transform_7(%arg0: i32) -> (i32, i32) {
    %c0_i32 = arith.constant 0 : i32
    %c0_i32_0 = arith.constant 0 : i32
    %c0_i32_1 = arith.constant 0 : i32
    return %c0_i32, %c0_i32_0 : i32, i32
  }
  func.func @transform_8(%arg0: i32) -> (i32, i32) {
    %c0_i32 = arith.constant 0 : i32
    %c0_i32_0 = arith.constant 0 : i32
    %c0_i32_1 = arith.constant 0 : i32
    return %c0_i32, %c0_i32_0 : i32, i32
  }
  func.func @transform_9(%arg0: i32) -> (i32, i32) {
    %c0_i32 = arith.constant 0 : i32
    %c0_i32_0 = arith.constant 0 : i32
    %c0_i32_1 = arith.constant 0 : i32
    return %c0_i32, %c0_i32_0 : i32, i32
  }
  func.func @transform_10(%arg0: i32) -> (i32, i32) {
    %c0_i32 = arith.constant 0 : i32
    %c0_i32_0 = arith.constant 0 : i32
    %c0_i32_1 = arith.constant 0 : i32
    return %c0_i32, %c0_i32_0 : i32, i32
  }
  func.func @transform_11(%arg0: i32) -> (i32, i32) {
    %c0_i32 = arith.constant 0 : i32
    %c0_i32_0 = arith.constant 0 : i32
    return %arg0, %c0_i32 : i32, i32
  }
}

</mosaic_0001>

<llo_original>
// kernel: dqn_forward.1
$region0: #{dqn_forward.1}
  #allocation0 [shape = 'u32[]', space=smem, size = 0x4, offset = 0x4, fixed_abs, tag = 'smem constant byte address 0x4 - core index']
  #allocation1 [shape = 'u32[144,128]{1,0:T(1,128)}', space=vmem, size = 0x12000, scoped, tag = 'internal scratch']
  #allocation2 [shape = 'f32[2,2048]{1,0:T(2,128)}', space=vmem, size = 0x4000, scoped, tag = 'scratch operand']
  #allocation3 [shape = 'f32[2,576]{1,0:T(2,128)}', space=vmem, size = 0x1400, scoped, tag = 'scratch operand']
  #allocation4 [shape = 'f32[2,64]{1,0:T(2,128)}', space=vmem, size = 0x400, scoped, tag = 'scratch operand']
  %s0 = inlined_call_operand.vmem [shape: f32[2,5184], index: 0, kind: input, shape index: {}]
  %s1 = inlined_call_operand.vmem [shape: f32[1152,256], index: 1, kind: input, shape index: {}]
  %s2 = inlined_call_operand.vmem [shape: f32[1,256], index: 2, kind: input, shape index: {}]
  %s3 = inlined_call_operand.vmem [shape: f32[1024,192], index: 3, kind: input, shape index: {}]
  %s4 = inlined_call_operand.vmem [shape: f32[1,192], index: 4, kind: input, shape index: {}]
  %s5 = inlined_call_operand.vmem [shape: f32[576,64], index: 5, kind: input, shape index: {}]
  %s6 = inlined_call_operand.vmem [shape: f32[1,64], index: 6, kind: input, shape index: {}]
  %s7 = inlined_call_operand.vmem [shape: f32[64,512], index: 7, kind: input, shape index: {}]
  %s8 = inlined_call_operand.vmem [shape: f32[1,512], index: 8, kind: input, shape index: {}]
  %s9 = inlined_call_operand.vmem [shape: f32[512,128], index: 9, kind: input, shape index: {}]
  %s10 = inlined_call_operand.vmem [shape: f32[1,128], index: 10, kind: input, shape index: {}]
  %s11 = inlined_call_operand.vmem [shape: f32[2,128], index: 11, kind: output, shape index: {}]
  %s12 = sld [smem:[#allocation0]]
  $region54: #{dqn_forward.1} parent=0
    _
  %s14 = ssub.s32 1, %s12
  %s15 = scalar_select 0, %s14, %s12
  // Predicated region
  $region2: #{dqn_forward.1} parent=0 // pred_check
    _
  $region3: #{dqn_forward.1} parent=0 // pred_check_branch
    %17 = sbr.rel (0) target = $region5
  $region4: #{dqn_forward.1} parent=0 // pred_region
    _
  $region5: #{dqn_forward.1} parent=0 // pred_fallthru
    _
  // Predicated region
  $region6: #{dqn_forward.1} parent=0 // pred_check
    _
  $region7: #{dqn_forward.1} parent=0 // pred_check_branch
    %19 = sbr.rel (0) target = $region9
  $region8: #{dqn_forward.1} parent=0 // pred_region
    _
  $region9: #{dqn_forward.1} parent=0 // pred_fallthru
    _
  // Predicated region
  $region10: #{dqn_forward.1} parent=0 // pred_check
    _
  $region11: #{dqn_forward.1} parent=0 // pred_check_branch
    %21 = sbr.rel (0) target = $region13
  $region12: #{dqn_forward.1} parent=0 // pred_region
    _
  $region13: #{dqn_forward.1} parent=0 // pred_fallthru
    _
  // Predicated region
  $region14: #{dqn_forward.1} parent=0 // pred_check
    _
  $region15: #{dqn_forward.1} parent=0 // pred_check_branch
    %23 = sbr.rel (0) target = $region17
  $region16: #{dqn_forward.1} parent=0 // pred_region
    _
  $region17: #{dqn_forward.1} parent=0 // pred_fallthru
    _
  // Predicated region
  $region18: #{dqn_forward.1} parent=0 // pred_check
    _
  $region19: #{dqn_forward.1} parent=0 // pred_check_branch
    %25 = sbr.rel (0) target = $region21
  $region20: #{dqn_forward.1} parent=0 // pred_region
    _
  $region21: #{dqn_forward.1} parent=0 // pred_fallthru
    _
  // Predicated region
  $region22: #{dqn_forward.1} parent=0 // pred_check
    _
  $region23: #{dqn_forward.1} parent=0 // pred_check_branch
    %27 = sbr.rel (0) target = $region25
  $region24: #{dqn_forward.1} parent=0 // pred_region
    _
  $region25: #{dqn_forward.1} parent=0 // pred_fallthru
    _
  // Predicated region
  $region26: #{dqn_forward.1} parent=0 // pred_check
    _
  $region27: #{dqn_forward.1} parent=0 // pred_check_branch
    %29 = sbr.rel (0) target = $region29
  $region28: #{dqn_forward.1} parent=0 // pred_region
    _
  $region29: #{dqn_forward.1} parent=0 // pred_fallthru
    _
  // Predicated region
  $region30: #{dqn_forward.1} parent=0 // pred_check
    _
  $region31: #{dqn_forward.1} parent=0 // pred_check_branch
    %31 = sbr.rel (0) target = $region33
  $region32: #{dqn_forward.1} parent=0 // pred_region
    _
  $region33: #{dqn_forward.1} parent=0 // pred_fallthru
    _
  // Predicated region
  $region34: #{dqn_forward.1} parent=0 // pred_check
    _
  $region35: #{dqn_forward.1} parent=0 // pred_check_branch
    %33 = sbr.rel (0) target = $region37
  $region36: #{dqn_forward.1} parent=0 // pred_region
    _
  $region37: #{dqn_forward.1} parent=0 // pred_fallthru
    _
  // Predicated region
  $region38: #{dqn_forward.1} parent=0 // pred_check
    _
  $region39: #{dqn_forward.1} parent=0 // pred_check_branch
    %35 = sbr.rel (0) target = $region41
  $region40: #{dqn_forward.1} parent=0 // pred_region
    _
  $region41: #{dqn_forward.1} parent=0 // pred_fallthru
    _
  // Predicated region
  $region42: #{dqn_forward.1} parent=0 // pred_check
    _
  $region43: #{dqn_forward.1} parent=0 // pred_check_branch
    %37 = sbr.rel (0) target = $region45
  $region44: #{dqn_forward.1} parent=0 // pred_region
    _
  $region45: #{dqn_forward.1} parent=0 // pred_fallthru
    _
  %v38 = vld [vmem:[%s0] sm:$0xff]
  %v39 = vld [vmem:[%s0 + $0x8] sm:$0xff]
  %v40 = vld [vmem:[%s0 + $0x10] sm:$0x3]
  %v41 = vld [vmem:[%s1] sm:$0xff]
  %v42 = vld [vmem:[%s1 + $0x8] sm:$0xff]
  %v43 = vld [vmem:[%s1 + $0x10] sm:$0xff]
  %v44 = vld [vmem:[%s1 + $0x18] sm:$0xff]
  %v45 = vld [vmem:[%s1 + $0x20] sm:$0xff]
  %v46 = vld [vmem:[%s1 + $0x28] sm:$0xff]
  %v47 = vld [vmem:[%s1 + $0x30] sm:$0xff]
  %v48 = vld [vmem:[%s1 + $0x38] sm:$0xff]
  %v49 = vld [vmem:[%s1 + $0x40] sm:$0xff]
  %v50 = vld [vmem:[%s1 + $0x48] sm:$0xff]
  %v51 = vld [vmem:[%s1 + $0x50] sm:$0xff]
  %v52 = vld [vmem:[%s1 + $0x58] sm:$0xff]
  %v53 = vld [vmem:[%s1 + $0x60] sm:$0xff]
  %v54 = vld [vmem:[%s1 + $0x68] sm:$0xff]
  %v55 = vld [vmem:[%s1 + $0x70] sm:$0xff]
  %v56 = vld [vmem:[%s1 + $0x78] sm:$0xff]
  %v57 = vld [vmem:[%s1 + $0x80] sm:$0xff]
  %v58 = vld [vmem:[%s1 + $0x88] sm:$0xff]
  %v59 = vld [vmem:[%s1 + $0x90] sm:$0xff]
  %v60 = vld [vmem:[%s1 + $0x98] sm:$0xff]
  %v61 = vld [vmem:[%s1 + $0xa0] sm:$0xff]
  %v62 = vld [vmem:[%s1 + $0xa8] sm:$0xff]
  %v63 = vld [vmem:[%s1 + $0xb0] sm:$0xff]
  %v64 = vld [vmem:[%s1 + $0xb8] sm:$0xff]
  %v65 = vld [vmem:[%s1 + $0xc0] sm:$0xff]
  %v66 = vld [vmem:[%s1 + $0xc8] sm:$0xff]
  %v67 = vld [vmem:[%s1 + $0xd0] sm:$0xff]
  %v68 = vld [vmem:[%s1 + $0xd8] sm:$0xff]
  %v69 = vld [vmem:[%s1 + $0xe0] sm:$0xff]
  %v70 = vld [vmem:[%s1 + $0xe8] sm:$0xff]
  %v71 = vld [vmem:[%s1 + $0xf0] sm:$0xff]
  %v72 = vld [vmem:[%s1 + $0xf8] sm:$0xff]
  %v73 = vld [vmem:[%s1 + $0x100] sm:$0xff]
  %v74 = vld [vmem:[%s1 + $0x108] sm:$0xff]
  %v75 = vld [vmem:[%s1 + $0x110] sm:$0xff]
  %v76 = vld [vmem:[%s1 + $0x118] sm:$0xff]
  %v77 = vld [vmem:[%s1 + $0x120] sm:$0xff]
  %v78 = vld [vmem:[%s1 + $0x128] sm:$0xff]
  %v79 = vld [vmem:[%s1 + $0x130] sm:$0xff]
  %v80 = vld [vmem:[%s1 + $0x138] sm:$0xff]
  %v81 = vld [vmem:[%s1 + $0x140] sm:$0xff]
  %v82 = vld [vmem:[%s1 + $0x148] sm:$0xff]
  %v83 = vld [vmem:[%s1 + $0x150] sm:$0xff]
  %v84 = vld [vmem:[%s1 + $0x158] sm:$0xff]
  %v85 = vld [vmem:[%s1 + $0x160] sm:$0xff]
  %v86 = vld [vmem:[%s1 + $0x168] sm:$0xff]
  %v87 = vld [vmem:[%s1 + $0x170] sm:$0xff]
  %v88 = vld [vmem:[%s1 + $0x178] sm:$0xff]
  %v89 = vld [vmem:[%s1 + $0x180] sm:$0xff]
  %v90 = vld [vmem:[%s1 + $0x188] sm:$0xff]
  %v91 = vld [vmem:[%s1 + $0x190] sm:$0xff]
  %v92 = vld [vmem:[%s1 + $0x198] sm:$0xff]
  %v93 = vld [vmem:[%s1 + $0x1a0] sm:$0xff]
  %v94 = vld [vmem:[%s1 + $0x1a8] sm:$0xff]
  %v95 = vld [vmem:[%s1 + $0x1b0] sm:$0xff]
  %v96 = vld [vmem:[%s1 + $0x1b8] sm:$0xff]
  %v97 = vld [vmem:[%s1 + $0x1c0] sm:$0xff]
  %v98 = vld [vmem:[%s1 + $0x1c8] sm:$0xff]
  %v99 = vld [vmem:[%s1 + $0x1d0] sm:$0xff]
  %v100 = vld [vmem:[%s1 + $0x1d8] sm:$0xff]
  %v101 = vld [vmem:[%s1 + $0x1e0] sm:$0xff]
  %v102 = vld [vmem:[%s1 + $0x1e8] sm:$0xff]
  %v103 = vld [vmem:[%s1 + $0x1f0] sm:$0xff]
  %v104 = vld [vmem:[%s1 + $0x1f8] sm:$0xff]
  %v105 = vld [vmem:[%s1 + $0x200] sm:$0xff]
  %v106 = vld [vmem:[%s1 + $0x208] sm:$0xff]
  %v107 = vld [vmem:[%s1 + $0x210] sm:$0xff]
  %v108 = vld [vmem:[%s1 + $0x218] sm:$0xff]
  %v109 = vld [vmem:[%s1 + $0x220] sm:$0xff]
  %v110 = vld [vmem:[%s1 + $0x228] sm:$0xff]
  %v111 = vld [vmem:[%s1 + $0x230] sm:$0xff]
  %v112 = vld [vmem:[%s1 + $0x238] sm:$0xff]
  %v113 = vld [vmem:[%s1 + $0x240] sm:$0xff]
  %v114 = vld [vmem:[%s1 + $0x248] sm:$0xff]
  %v115 = vld [vmem:[%s1 + $0x250] sm:$0xff]
  %v116 = vld [vmem:[%s1 + $0x258] sm:$0xff]
  %v117 = vld [vmem:[%s1 + $0x260] sm:$0xff]
  %v118 = vld [vmem:[%s1 + $0x268] sm:$0xff]
  %v119 = vld [vmem:[%s1 + $0x270] sm:$0xff]
  %v120 = vld [vmem:[%s1 + $0x278] sm:$0xff]
  %v121 = vld [vmem:[%s1 + $0x280] sm:$0xff]
  %v122 = vld [vmem:[%s1 + $0x288] sm:$0xff]
  %v123 = vld [vmem:[%s1 + $0x290] sm:$0xff]
  %v124 = vld [vmem:[%s1 + $0x298] sm:$0xff]
  %v125 = vld [vmem:[%s1 + $0x2a0] sm:$0xff]
  %v126 = vld [vmem:[%s1 + $0x2a8] sm:$0xff]
  %v127 = vld [vmem:[%s1 + $0x2b0] sm:$0xff]
  %v128 = vld [vmem:[%s1 + $0x2b8] sm:$0xff]
  %v129 = vld [vmem:[%s1 + $0x2c0] sm:$0xff]
  %v130 = vld [vmem:[%s1 + $0x2c8] sm:$0xff]
  %v131 = vld [vmem:[%s1 + $0x2d0] sm:$0xff]
  %v132 = vld [vmem:[%s1 + $0x2d8] sm:$0xff]
  %v133 = vld [vmem:[%s1 + $0x2e0] sm:$0xff]
  %v134 = vld [vmem:[%s1 + $0x2e8] sm:$0xff]
  %v135 = vld [vmem:[%s1 + $0x2f0] sm:$0xff]
  %v136 = vld [vmem:[%s1 + $0x2f8] sm:$0xff]
  %v137 = vld [vmem:[%s1 + $0x300] sm:$0xff]
  %v138 = vld [vmem:[%s1 + $0x308] sm:$0xff]
  %v139 = vld [vmem:[%s1 + $0x310] sm:$0xff]
  %v140 = vld [vmem:[%s1 + $0x318] sm:$0xff]
  %v141 = vld [vmem:[%s1 + $0x320] sm:$0xff]
  %v142 = vld [vmem:[%s1 + $0x328] sm:$0xff]
  %v143 = vld [vmem:[%s1 + $0x330] sm:$0xff]
  %v144 = vld [vmem:[%s1 + $0x338] sm:$0xff]
  %v145 = vld [vmem:[%s1 + $0x340] sm:$0xff]
  %v146 = vld [vmem:[%s1 + $0x348] sm:$0xff]
  %v147 = vld [vmem:[%s1 + $0x350] sm:$0xff]
  %v148 = vld [vmem:[%s1 + $0x358] sm:$0xff]
  %v149 = vld [vmem:[%s1 + $0x360] sm:$0xff]
  %v150 = vld [vmem:[%s1 + $0x368] sm:$0xff]
  %v151 = vld [vmem:[%s1 + $0x370] sm:$0xff]
  %v152 = vld [vmem:[%s1 + $0x378] sm:$0xff]
  %v153 = vld [vmem:[%s1 + $0x380] sm:$0xff]
  %v154 = vld [vmem:[%s1 + $0x388] sm:$0xff]
  %v155 = vld [vmem:[%s1 + $0x390] sm:$0xff]
  %v156 = vld [vmem:[%s1 + $0x398] sm:$0xff]
  %v157 = vld [vmem:[%s1 + $0x3a0] sm:$0xff]
  %v158 = vld [vmem:[%s1 + $0x3a8] sm:$0xff]
  %v159 = vld [vmem:[%s1 + $0x3b0] sm:$0xff]
  %v160 = vld [vmem:[%s1 + $0x3b8] sm:$0xff]
  %v161 = vld [vmem:[%s1 + $0x3c0] sm:$0xff]
  %v162 = vld [vmem:[%s1 + $0x3c8] sm:$0xff]
  %v163 = vld [vmem:[%s1 + $0x3d0] sm:$0xff]
  %v164 = vld [vmem:[%s1 + $0x3d8] sm:$0xff]
  %v165 = vld [vmem:[%s1 + $0x3e0] sm:$0xff]
  %v166 = vld [vmem:[%s1 + $0x3e8] sm:$0xff]
  %v167 = vld [vmem:[%s1 + $0x3f0] sm:$0xff]
  %v168 = vld [vmem:[%s1 + $0x3f8] sm:$0xff]
  %v169 = vld [vmem:[%s1 + $0x400] sm:$0xff]
  %v170 = vld [vmem:[%s1 + $0x408] sm:$0xff]
  %v171 = vld [vmem:[%s1 + $0x410] sm:$0xff]
  %v172 = vld [vmem:[%s1 + $0x418] sm:$0xff]
  %v173 = vld [vmem:[%s1 + $0x420] sm:$0xff]
  %v174 = vld [vmem:[%s1 + $0x428] sm:$0xff]
  %v175 = vld [vmem:[%s1 + $0x430] sm:$0xff]
  %v176 = vld [vmem:[%s1 + $0x438] sm:$0xff]
  %v177 = vld [vmem:[%s1 + $0x440] sm:$0xff]
  %v178 = vld [vmem:[%s1 + $0x448] sm:$0xff]
  %v179 = vld [vmem:[%s1 + $0x450] sm:$0xff]
  %v180 = vld [vmem:[%s1 + $0x458] sm:$0xff]
  %v181 = vld [vmem:[%s1 + $0x460] sm:$0xff]
  %v182 = vld [vmem:[%s1 + $0x468] sm:$0xff]
  %v183 = vld [vmem:[%s1 + $0x470] sm:$0xff]
  %v184 = vld [vmem:[%s1 + $0x478] sm:$0xff]
  %v185 = vld [vmem:[%s1 + $0x480] sm:$0xff]
  %v186 = vld [vmem:[%s1 + $0x488] sm:$0xff]
  %v187 = vld [vmem:[%s1 + $0x490] sm:$0xff]
  %v188 = vld [vmem:[%s1 + $0x498] sm:$0xff]
  %v189 = vld [vmem:[%s1 + $0x4a0] sm:$0xff]
  %v190 = vld [vmem:[%s1 + $0x4a8] sm:$0xff]
  %v191 = vld [vmem:[%s1 + $0x4b0] sm:$0xff]
  %v192 = vld [vmem:[%s1 + $0x4b8] sm:$0xff]
  %v193 = vld [vmem:[%s1 + $0x4c0] sm:$0xff]
  %v194 = vld [vmem:[%s1 + $0x4c8] sm:$0xff]
  %v195 = vld [vmem:[%s1 + $0x4d0] sm:$0xff]
  %v196 = vld [vmem:[%s1 + $0x4d8] sm:$0xff]
  %v197 = vld [vmem:[%s1 + $0x4e0] sm:$0xff]
  %v198 = vld [vmem:[%s1 + $0x4e8] sm:$0xff]
  %v199 = vld [vmem:[%s1 + $0x4f0] sm:$0xff]
  %v200 = vld [vmem:[%s1 + $0x4f8] sm:$0xff]
  %v201 = vld [vmem:[%s1 + $0x500] sm:$0xff]
  %v202 = vld [vmem:[%s1 + $0x508] sm:$0xff]
  %v203 = vld [vmem:[%s1 + $0x510] sm:$0xff]
  %v204 = vld [vmem:[%s1 + $0x518] sm:$0xff]
  %v205 = vld [vmem:[%s1 + $0x520] sm:$0xff]
  %v206 = vld [vmem:[%s1 + $0x528] sm:$0xff]
  %v207 = vld [vmem:[%s1 + $0x530] sm:$0xff]
  %v208 = vld [vmem:[%s1 + $0x538] sm:$0xff]
  %v209 = vld [vmem:[%s1 + $0x540] sm:$0xff]
  %v210 = vld [vmem:[%s1 + $0x548] sm:$0xff]
  %v211 = vld [vmem:[%s1 + $0x550] sm:$0xff]
  %v212 = vld [vmem:[%s1 + $0x558] sm:$0xff]
  %v213 = vld [vmem:[%s1 + $0x560] sm:$0xff]
  %v214 = vld [vmem:[%s1 + $0x568] sm:$0xff]
  %v215 = vld [vmem:[%s1 + $0x570] sm:$0xff]
  %v216 = vld [vmem:[%s1 + $0x578] sm:$0xff]
  %v217 = vld [vmem:[%s1 + $0x580] sm:$0xff]
  %v218 = vld [vmem:[%s1 + $0x588] sm:$0xff]
  %v219 = vld [vmem:[%s1 + $0x590] sm:$0xff]
  %v220 = vld [vmem:[%s1 + $0x598] sm:$0xff]
  %v221 = vld [vmem:[%s1 + $0x5a0] sm:$0xff]
  %v222 = vld [vmem:[%s1 + $0x5a8] sm:$0xff]
  %v223 = vld [vmem:[%s1 + $0x5b0] sm:$0xff]
  %v224 = vld [vmem:[%s1 + $0x5b8] sm:$0xff]
  %v225 = vld [vmem:[%s1 + $0x5c0] sm:$0xff]
  %v226 = vld [vmem:[%s1 + $0x5c8] sm:$0xff]
  %v227 = vld [vmem:[%s1 + $0x5d0] sm:$0xff]
  %v228 = vld [vmem:[%s1 + $0x5d8] sm:$0xff]
  %v229 = vld [vmem:[%s1 + $0x5e0] sm:$0xff]
  %v230 = vld [vmem:[%s1 + $0x5e8] sm:$0xff]
  %v231 = vld [vmem:[%s1 + $0x5f0] sm:$0xff]
  %v232 = vld [vmem:[%s1 + $0x5f8] sm:$0xff]
  %v233 = vld [vmem:[%s1 + $0x600] sm:$0xff]
  %v234 = vld [vmem:[%s1 + $0x608] sm:$0xff]
  %v235 = vld [vmem:[%s1 + $0x610] sm:$0xff]
  %v236 = vld [vmem:[%s1 + $0x618] sm:$0xff]
  %v237 = vld [vmem:[%s1 + $0x620] sm:$0xff]
  %v238 = vld [vmem:[%s1 + $0x628] sm:$0xff]
  %v239 = vld [vmem:[%s1 + $0x630] sm:$0xff]
  %v240 = vld [vmem:[%s1 + $0x638] sm:$0xff]
  %v241 = vld [vmem:[%s1 + $0x640] sm:$0xff]
  %v242 = vld [vmem:[%s1 + $0x648] sm:$0xff]
  %v243 = vld [vmem:[%s1 + $0x650] sm:$0xff]
  %v244 = vld [vmem:[%s1 + $0x658] sm:$0xff]
  %v245 = vld [vmem:[%s1 + $0x660] sm:$0xff]
  %v246 = vld [vmem:[%s1 + $0x668] sm:$0xff]
  %v247 = vld [vmem:[%s1 + $0x670] sm:$0xff]
  %v248 = vld [vmem:[%s1 + $0x678] sm:$0xff]
  %v249 = vld [vmem:[%s1 + $0x680] sm:$0xff]
  %v250 = vld [vmem:[%s1 + $0x688] sm:$0xff]
  %v251 = vld [vmem:[%s1 + $0x690] sm:$0xff]
  %v252 = vld [vmem:[%s1 + $0x698] sm:$0xff]
  %v253 = vld [vmem:[%s1 + $0x6a0] sm:$0xff]
  %v254 = vld [vmem:[%s1 + $0x6a8] sm:$0xff]
  %v255 = vld [vmem:[%s1 + $0x6b0] sm:$0xff]
  %v256 = vld [vmem:[%s1 + $0x6b8] sm:$0xff]
  %v257 = vld [vmem:[%s1 + $0x6c0] sm:$0xff]
  %v258 = vld [vmem:[%s1 + $0x6c8] sm:$0xff]
  %v259 = vld [vmem:[%s1 + $0x6d0] sm:$0xff]
  %v260 = vld [vmem:[%s1 + $0x6d8] sm:$0xff]
  %v261 = vld [vmem:[%s1 + $0x6e0] sm:$0xff]
  %v262 = vld [vmem:[%s1 + $0x6e8] sm:$0xff]
  %v263 = vld [vmem:[%s1 + $0x6f0] sm:$0xff]
  %v264 = vld [vmem:[%s1 + $0x6f8] sm:$0xff]
  %v265 = vld [vmem:[%s1 + $0x700] sm:$0xff]
  %v266 = vld [vmem:[%s1 + $0x708] sm:$0xff]
  %v267 = vld [vmem:[%s1 + $0x710] sm:$0xff]
  %v268 = vld [vmem:[%s1 + $0x718] sm:$0xff]
  %v269 = vld [vmem:[%s1 + $0x720] sm:$0xff]
  %v270 = vld [vmem:[%s1 + $0x728] sm:$0xff]
  %v271 = vld [vmem:[%s1 + $0x730] sm:$0xff]
  %v272 = vld [vmem:[%s1 + $0x738] sm:$0xff]
  %v273 = vld [vmem:[%s1 + $0x740] sm:$0xff]
  %v274 = vld [vmem:[%s1 + $0x748] sm:$0xff]
  %v275 = vld [vmem:[%s1 + $0x750] sm:$0xff]
  %v276 = vld [vmem:[%s1 + $0x758] sm:$0xff]
  %v277 = vld [vmem:[%s1 + $0x760] sm:$0xff]
  %v278 = vld [vmem:[%s1 + $0x768] sm:$0xff]
  %v279 = vld [vmem:[%s1 + $0x770] sm:$0xff]
  %v280 = vld [vmem:[%s1 + $0x778] sm:$0xff]
  %v281 = vld [vmem:[%s1 + $0x780] sm:$0xff]
  %v282 = vld [vmem:[%s1 + $0x788] sm:$0xff]
  %v283 = vld [vmem:[%s1 + $0x790] sm:$0xff]
  %v284 = vld [vmem:[%s1 + $0x798] sm:$0xff]
  %v285 = vld [vmem:[%s1 + $0x7a0] sm:$0xff]
  %v286 = vld [vmem:[%s1 + $0x7a8] sm:$0xff]
  %v287 = vld [vmem:[%s1 + $0x7b0] sm:$0xff]
  %v288 = vld [vmem:[%s1 + $0x7b8] sm:$0xff]
  %v289 = vld [vmem:[%s1 + $0x7c0] sm:$0xff]
  %v290 = vld [vmem:[%s1 + $0x7c8] sm:$0xff]
  %v291 = vld [vmem:[%s1 + $0x7d0] sm:$0xff]
  %v292 = vld [vmem:[%s1 + $0x7d8] sm:$0xff]
  %v293 = vld [vmem:[%s1 + $0x7e0] sm:$0xff]
  %v294 = vld [vmem:[%s1 + $0x7e8] sm:$0xff]
  %v295 = vld [vmem:[%s1 + $0x7f0] sm:$0xff]
  %v296 = vld [vmem:[%s1 + $0x7f8] sm:$0xff]
  %v297 = vld [vmem:[%s1 + $0x800] sm:$0xff]
  %v298 = vld [vmem:[%s1 + $0x808] sm:$0xff]
  %v299 = vld [vmem:[%s1 + $0x810] sm:$0xff]
  %v300 = vld [vmem:[%s1 + $0x818] sm:$0xff]
  %v301 = vld [vmem:[%s1 + $0x820] sm:$0xff]
  %v302 = vld [vmem:[%s1 + $0x828] sm:$0xff]
  %v303 = vld [vmem:[%s1 + $0x830] sm:$0xff]
  %v304 = vld [vmem:[%s1 + $0x838] sm:$0xff]
  %v305 = vld [vmem:[%s1 + $0x840] sm:$0xff]
  %v306 = vld [vmem:[%s1 + $0x848] sm:$0xff]
  %v307 = vld [vmem:[%s1 + $0x850] sm:$0xff]
  %v308 = vld [vmem:[%s1 + $0x858] sm:$0xff]
  %v309 = vld [vmem:[%s1 + $0x860] sm:$0xff]
  %v310 = vld [vmem:[%s1 + $0x868] sm:$0xff]
  %v311 = vld [vmem:[%s1 + $0x870] sm:$0xff]
  %v312 = vld [vmem:[%s1 + $0x878] sm:$0xff]
  %v313 = vld [vmem:[%s1 + $0x880] sm:$0xff]
  %v314 = vld [vmem:[%s1 + $0x888] sm:$0xff]
  %v315 = vld [vmem:[%s1 + $0x890] sm:$0xff]
  %v316 = vld [vmem:[%s1 + $0x898] sm:$0xff]
  %v317 = vld [vmem:[%s1 + $0x8a0] sm:$0xff]
  %v318 = vld [vmem:[%s1 + $0x8a8] sm:$0xff]
  %v319 = vld [vmem:[%s1 + $0x8b0] sm:$0xff]
  %v320 = vld [vmem:[%s1 + $0x8b8] sm:$0xff]
  %v321 = vld [vmem:[%s1 + $0x8c0] sm:$0xff]
  %v322 = vld [vmem:[%s1 + $0x8c8] sm:$0xff]
  %v323 = vld [vmem:[%s1 + $0x8d0] sm:$0xff]
  %v324 = vld [vmem:[%s1 + $0x8d8] sm:$0xff]
  %v325 = vld [vmem:[%s1 + $0x8e0] sm:$0xff]
  %v326 = vld [vmem:[%s1 + $0x8e8] sm:$0xff]
  %v327 = vld [vmem:[%s1 + $0x8f0] sm:$0xff]
  %v328 = vld [vmem:[%s1 + $0x8f8] sm:$0xff]
  %v329 = vld [vmem:[%s2] sm:$0x3]
  %v331 = vlaneseq
  %v332 = vshrl.u32 %v331, 7
  %v333 = vsub.s32 0, %v332
  %v334 = vrot.slane %v329, %v333
  %v335 = vlaneseq
  %v336 = vshrl.u32 %v335, 7
  %v337 = vsub.s32 1, %v336
  %v338 = vrot.slane %v329, %v337
  %v344 = vcombine.high %v38, %v38
  %v346 = vunpack.c.l.s4 1983009808
  %v347 = vunpack.c.0.s8 %v346
  %v348 = vlaneseq
  %v349 = vshrl.u32 %v348, 7
  %v350 = vsub.s32 %v347, %v349
  %v351 = vrot.slane %v38, %v350
  %v353 = vunpack.c.l.s4 1983009808
  %v354 = vunpack.c.0.s8 %v353
  %v355 = vlaneseq
  %v356 = vshrl.u32 %v355, 7
  %v357 = vsub.s32 %v354, %v356
  %v358 = vrot.slane %v344, %v357
  %v359 = vcombine.high %v351, %v351
  %v360 = vcombine.high %v358, %v358
  %v361 = vcombine.high %v39, %v39
  %v363 = vunpack.c.l.s4 1983009808
  %v364 = vunpack.c.0.s8 %v363
  %v365 = vlaneseq
  %v366 = vshrl.u32 %v365, 7
  %v367 = vsub.s32 %v364, %v366
  %v368 = vrot.slane %v39, %v367
  %v370 = vunpack.c.l.s4 1983009808
  %v371 = vunpack.c.0.s8 %v370
  %v372 = vlaneseq
  %v373 = vshrl.u32 %v372, 7
  %v374 = vsub.s32 %v371, %v373
  %v375 = vrot.slane %v361, %v374
  %v376 = vcombine.high %v368, %v368
  %v377 = vcombine.high %v375, %v375
  %v379 = vunpack.c.l.s4 1983009808
  %v380 = vunpack.c.0.s8 %v379
  %v381 = vlaneseq
  %v382 = vshrl.u32 %v381, 7
  %v383 = vsub.s32 %v380, %v382
  %v384 = vrot.slane %v40, %v383
  %394 = vmatprep.subr.mxu0 %v42
  %395 = vmatpush1.msra.mxu0 %v41
  %396 = vmatprep.subr.mxu0 %v44
  %397 = vmatpush1.msra.mxu0 %v43
  %398 = vmatprep.subr.mxu0 %v46
  %399 = vmatpush1.msra.mxu0 %v45
  %400 = vmatprep.subr.mxu0 %v48
  %401 = vmatpush1.msra.mxu0 %v47
  %402 = vmatprep.subr.mxu0 %v50
  %403 = vmatpush1.msra.mxu0 %v49
  %404 = vmatprep.subr.mxu0 %v52
  %405 = vmatpush1.msra.mxu0 %v51
  %406 = vmatprep.subr.mxu0 %v54
  %407 = vmatpush1.msra.mxu0 %v53
  %408 = vmatprep.subr.mxu0 %v56
  %409 = vmatpush1.msra.mxu0 %v55
  %410 = vmatprep.subr.mxu0 %v58
  %411 = vmatpush1.msra.mxu0 %v57
  %412 = vmatprep.subr.mxu0 %v60
  %413 = vmatpush1.msra.mxu0 %v59
  %414 = vmatprep.subr.mxu0 %v62
  %415 = vmatpush1.msra.mxu0 %v61
  %416 = vmatprep.subr.mxu0 %v64
  %417 = vmatpush1.msra.mxu0 %v63
  %418 = vmatprep.subr.mxu0 %v66
  %419 = vmatpush1.msra.mxu0 %v65
  %420 = vmatprep.subr.mxu0 %v68
  %421 = vmatpush1.msra.mxu0 %v67
  %422 = vmatprep.subr.mxu0 %v70
  %423 = vmatpush1.msra.mxu0 %v69
  %424 = vmatprep.subr.mxu0 %v72
  %425 = vmatpush1.msra.mxu0 %v71
  %426 = vmatprep.subr.mxu0 %v74
  %427 = vmatpush1.msra.mxu0 %v73
  %428 = vmatprep.subr.mxu0 %v76
  %429 = vmatpush1.msra.mxu0 %v75
  %430 = vmatprep.subr.mxu0 %v78
  %431 = vmatpush1.msra.mxu0 %v77
  %432 = vmatprep.subr.mxu0 %v80
  %433 = vmatpush1.msra.mxu0 %v79
  %434 = vmatprep.subr.mxu0 %v82
  %435 = vmatpush1.msra.mxu0 %v81
  %436 = vmatprep.subr.mxu0 %v84
  %437 = vmatpush1.msra.mxu0 %v83
  %438 = vmatprep.subr.mxu0 %v86
  %439 = vmatpush1.msra.mxu0 %v85
  %440 = vmatprep.subr.mxu0 %v88
  %441 = vmatpush1.msra.mxu0 %v87
  %442 = vmatprep.subr.mxu0 %v90
  %443 = vmatpush1.msra.mxu0 %v89
  %444 = vmatprep.subr.mxu0 %v92
  %445 = vmatpush1.msra.mxu0 %v91
  %446 = vmatprep.subr.mxu0 %v94
  %447 = vmatpush1.msra.mxu0 %v93
  %448 = vmatprep.subr.mxu0 %v96
  %449 = vmatpush1.msra.mxu0 %v95
  %450 = vmatprep.subr.mxu0 %v98
  %451 = vmatpush1.msra.mxu0 %v97
  %452 = vmatprep.subr.mxu0 %v100
  %453 = vmatpush1.msra.mxu0 %v99
  %454 = vmatprep.subr.mxu0 %v102
  %455 = vmatpush1.msra.mxu0 %v101
  %456 = vmatprep.subr.mxu0 %v104
  %457 = vmatpush1.msra.mxu0 %v103
  %458 = vmatprep.mubr.f32.mxu0 %v359
  %459 = vmatmul.mubr.f32.gmra.mrb[0].mxu0 %v351
  %v460 = vpop.f32.mrb[0].mxu0
  %v461 = vadd.f32 %v334, %v460
  %v462 = vpop.f32.mrb[0].mxu0
  %v463 = vadd.f32 %v338, %v462
  %464 = vdwg.mxu0
  %465 = vmatprep.subr.mxu0 %v106
  %466 = vmatpush1.msra.mxu0 %v105
  %467 = vmatprep.subr.mxu0 %v108
  %468 = vmatpush1.msra.mxu0 %v107
  %469 = vmatprep.subr.mxu0 %v110
  %470 = vmatpush1.msra.mxu0 %v109
  %471 = vmatprep.subr.mxu0 %v112
  %472 = vmatpush1.msra.mxu0 %v111
  %473 = vmatprep.subr.mxu0 %v114
  %474 = vmatpush1.msra.mxu0 %v113
  %475 = vmatprep.subr.mxu0 %v116
  %476 = vmatpush1.msra.mxu0 %v115
  %477 = vmatprep.subr.mxu0 %v118
  %478 = vmatpush1.msra.mxu0 %v117
  %479 = vmatprep.subr.mxu0 %v120
  %480 = vmatpush1.msra.mxu0 %v119
  %481 = vmatprep.subr.mxu0 %v122
  %482 = vmatpush1.msra.mxu0 %v121
  %483 = vmatprep.subr.mxu0 %v124
  %484 = vmatpush1.msra.mxu0 %v123
  %485 = vmatprep.subr.mxu0 %v126
  %486 = vmatpush1.msra.mxu0 %v125
  %487 = vmatprep.subr.mxu0 %v128
  %488 = vmatpush1.msra.mxu0 %v127
  %489 = vmatprep.subr.mxu0 %v130
  %490 = vmatpush1.msra.mxu0 %v129
  %491 = vmatprep.subr.mxu0 %v132
  %492 = vmatpush1.msra.mxu0 %v131
  %493 = vmatprep.subr.mxu0 %v134
  %494 = vmatpush1.msra.mxu0 %v133
  %495 = vmatprep.subr.mxu0 %v136
  %496 = vmatpush1.msra.mxu0 %v135
  %497 = vmatprep.subr.mxu0 %v138
  %498 = vmatpush1.msra.mxu0 %v137
  %499 = vmatprep.subr.mxu0 %v140
  %500 = vmatpush1.msra.mxu0 %v139
  %501 = vmatprep.subr.mxu0 %v142
  %502 = vmatpush1.msra.mxu0 %v141
  %503 = vmatprep.subr.mxu0 %v144
  %504 = vmatpush1.msra.mxu0 %v143
  %505 = vmatprep.subr.mxu0 %v146
  %506 = vmatpush1.msra.mxu0 %v145
  %507 = vmatprep.subr.mxu0 %v148
  %508 = vmatpush1.msra.mxu0 %v147
  %509 = vmatprep.subr.mxu0 %v150
  %510 = vmatpush1.msra.mxu0 %v149
  %511 = vmatprep.subr.mxu0 %v152
  %512 = vmatpush1.msra.mxu0 %v151
  %513 = vmatprep.subr.mxu0 %v154
  %514 = vmatpush1.msra.mxu0 %v153
  %515 = vmatprep.subr.mxu0 %v156
  %516 = vmatpush1.msra.mxu0 %v155
  %517 = vmatprep.subr.mxu0 %v158
  %518 = vmatpush1.msra.mxu0 %v157
  %519 = vmatprep.subr.mxu0 %v160
  %520 = vmatpush1.msra.mxu0 %v159
  %521 = vmatprep.subr.mxu0 %v162
  %522 = vmatpush1.msra.mxu0 %v161
  %523 = vmatprep.subr.mxu0 %v164
  %524 = vmatpush1.msra.mxu0 %v163
  %525 = vmatprep.subr.mxu0 %v166
  %526 = vmatpush1.msra.mxu0 %v165
  %527 = vmatprep.subr.mxu0 %v168
  %528 = vmatpush1.msra.mxu0 %v167
  %529 = vmatprep.mubr.f32.mxu0 %v360
  %530 = vmatmul.mubr.f32.gmra.mrb[0].mxu0 %v358
  %v531 = vpop.f32.mrb[0].mxu0
  %v532 = vadd.f32 %v461, %v531
  %v533 = vpop.f32.mrb[0].mxu0
  %v534 = vadd.f32 %v463, %v533
  %535 = vdwg.mxu0
  %536 = vmatprep.subr.mxu0 %v170
  %537 = vmatpush1.msra.mxu0 %v169
  %538 = vmatprep.subr.mxu0 %v172
  %539 = vmatpush1.msra.mxu0 %v171
  %540 = vmatprep.subr.mxu0 %v174
  %541 = vmatpush1.msra.mxu0 %v173
  %542 = vmatprep.subr.mxu0 %v176
  %543 = vmatpush1.msra.mxu0 %v175
  %544 = vmatprep.subr.mxu0 %v178
  %545 = vmatpush1.msra.mxu0 %v177
  %546 = vmatprep.subr.mxu0 %v180
  %547 = vmatpush1.msra.mxu0 %v179
  %548 = vmatprep.subr.mxu0 %v182
  %549 = vmatpush1.msra.mxu0 %v181
  %550 = vmatprep.subr.mxu0 %v184
  %551 = vmatpush1.msra.mxu0 %v183
  %552 = vmatprep.subr.mxu0 %v186
  %553 = vmatpush1.msra.mxu0 %v185
  %554 = vmatprep.subr.mxu0 %v188
  %555 = vmatpush1.msra.mxu0 %v187
  %556 = vmatprep.subr.mxu0 %v190
  %557 = vmatpush1.msra.mxu0 %v189
  %558 = vmatprep.subr.mxu0 %v192
  %559 = vmatpush1.msra.mxu0 %v191
  %560 = vmatprep.subr.mxu0 %v194
  %561 = vmatpush1.msra.mxu0 %v193
  %562 = vmatprep.subr.mxu0 %v196
  %563 = vmatpush1.msra.mxu0 %v195
  %564 = vmatprep.subr.mxu0 %v198
  %565 = vmatpush1.msra.mxu0 %v197
  %566 = vmatprep.subr.mxu0 %v200
  %567 = vmatpush1.msra.mxu0 %v199
  %568 = vmatprep.subr.mxu0 %v202
  %569 = vmatpush1.msra.mxu0 %v201
  %570 = vmatprep.subr.mxu0 %v204
  %571 = vmatpush1.msra.mxu0 %v203
  %572 = vmatprep.subr.mxu0 %v206
  %573 = vmatpush1.msra.mxu0 %v205
  %574 = vmatprep.subr.mxu0 %v208
  %575 = vmatpush1.msra.mxu0 %v207
  %576 = vmatprep.subr.mxu0 %v210
  %577 = vmatpush1.msra.mxu0 %v209
  %578 = vmatprep.subr.mxu0 %v212
  %579 = vmatpush1.msra.mxu0 %v211
  %580 = vmatprep.subr.mxu0 %v214
  %581 = vmatpush1.msra.mxu0 %v213
  %582 = vmatprep.subr.mxu0 %v216
  %583 = vmatpush1.msra.mxu0 %v215
  %584 = vmatprep.subr.mxu0 %v218
  %585 = vmatpush1.msra.mxu0 %v217
  %586 = vmatprep.subr.mxu0 %v220
  %587 = vmatpush1.msra.mxu0 %v219
  %588 = vmatprep.subr.mxu0 %v222
  %589 = vmatpush1.msra.mxu0 %v221
  %590 = vmatprep.subr.mxu0 %v224
  %591 = vmatpush1.msra.mxu0 %v223
  %592 = vmatprep.subr.mxu0 %v226
  %593 = vmatpush1.msra.mxu0 %v225
  %594 = vmatprep.subr.mxu0 %v228
  %595 = vmatpush1.msra.mxu0 %v227
  %596 = vmatprep.subr.mxu0 %v230
  %597 = vmatpush1.msra.mxu0 %v229
  %598 = vmatprep.subr.mxu0 %v232
  %599 = vmatpush1.msra.mxu0 %v231
  %600 = vmatprep.mubr.f32.mxu0 %v376
  %601 = vmatmul.mubr.f32.gmra.mrb[0].mxu0 %v368
  %v602 = vpop.f32.mrb[0].mxu0
  %v603 = vadd.f32 %v532, %v602
  %v604 = vpop.f32.mrb[0].mxu0
  %v605 = vadd.f32 %v534, %v604
  %606 = vdwg.mxu0
  %607 = vmatprep.subr.mxu0 %v234
  %608 = vmatpush1.msra.mxu0 %v233
  %609 = vmatprep.subr.mxu0 %v236
  %610 = vmatpush1.msra.mxu0 %v235
  %611 = vmatprep.subr.mxu0 %v238
  %612 = vmatpush1.msra.mxu0 %v237
  %613 = vmatprep.subr.mxu0 %v240
  %614 = vmatpush1.msra.mxu0 %v239
  %615 = vmatprep.subr.mxu0 %v242
  %616 = vmatpush1.msra.mxu0 %v241
  %617 = vmatprep.subr.mxu0 %v244
  %618 = vmatpush1.msra.mxu0 %v243
  %619 = vmatprep.subr.mxu0 %v246
  %620 = vmatpush1.msra.mxu0 %v245
  %621 = vmatprep.subr.mxu0 %v248
  %622 = vmatpush1.msra.mxu0 %v247
  %623 = vmatprep.subr.mxu0 %v250
  %624 = vmatpush1.msra.mxu0 %v249
  %625 = vmatprep.subr.mxu0 %v252
  %626 = vmatpush1.msra.mxu0 %v251
  %627 = vmatprep.subr.mxu0 %v254
  %628 = vmatpush1.msra.mxu0 %v253
  %629 = vmatprep.subr.mxu0 %v256
  %630 = vmatpush1.msra.mxu0 %v255
  %631 = vmatprep.subr.mxu0 %v258
  %632 = vmatpush1.msra.mxu0 %v257
  %633 = vmatprep.subr.mxu0 %v260
  %634 = vmatpush1.msra.mxu0 %v259
  %635 = vmatprep.subr.mxu0 %v262
  %636 = vmatpush1.msra.mxu0 %v261
  %637 = vmatprep.subr.mxu0 %v264
  %638 = vmatpush1.msra.mxu0 %v263
  %639 = vmatprep.subr.mxu0 %v266
  %640 = vmatpush1.msra.mxu0 %v265
  %641 = vmatprep.subr.mxu0 %v268
  %642 = vmatpush1.msra.mxu0 %v267
  %643 = vmatprep.subr.mxu0 %v270
  %644 = vmatpush1.msra.mxu0 %v269
  %645 = vmatprep.subr.mxu0 %v272
  %646 = vmatpush1.msra.mxu0 %v271
  %647 = vmatprep.subr.mxu0 %v274
  %648 = vmatpush1.msra.mxu0 %v273
  %649 = vmatprep.subr.mxu0 %v276
  %650 = vmatpush1.msra.mxu0 %v275
  %651 = vmatprep.subr.mxu0 %v278
  %652 = vmatpush1.msra.mxu0 %v277
  %653 = vmatprep.subr.mxu0 %v280
  %654 = vmatpush1.msra.mxu0 %v279
  %655 = vmatprep.subr.mxu0 %v282
  %656 = vmatpush1.msra.mxu0 %v281
  %657 = vmatprep.subr.mxu0 %v284
  %658 = vmatpush1.msra.mxu0 %v283
  %659 = vmatprep.subr.mxu0 %v286
  %660 = vmatpush1.msra.mxu0 %v285
  %661 = vmatprep.subr.mxu0 %v288
  %662 = vmatpush1.msra.mxu0 %v287
  %663 = vmatprep.subr.mxu0 %v290
  %664 = vmatpush1.msra.mxu0 %v289
  %665 = vmatprep.subr.mxu0 %v292
  %666 = vmatpush1.msra.mxu0 %v291
  %667 = vmatprep.subr.mxu0 %v294
  %668 = vmatpush1.msra.mxu0 %v293
  %669 = vmatprep.subr.mxu0 %v296
  %670 = vmatpush1.msra.mxu0 %v295
  %671 = vmatprep.mubr.f32.mxu0 %v377
  %672 = vmatmul.mubr.f32.gmra.mrb[0].mxu0 %v375
  %v673 = vpop.f32.mrb[0].mxu0
  %v674 = vadd.f32 %v603, %v673
  %v675 = vpop.f32.mrb[0].mxu0
  %v676 = vadd.f32 %v605, %v675
  %677 = vdwg.mxu0
  %678 = vmatprep.subr.mxu0 %v298
  %679 = vmatpush1.msra.mxu0 %v297
  %680 = vmatprep.subr.mxu0 %v300
  %681 = vmatpush1.msra.mxu0 %v299
  %682 = vmatprep.subr.mxu0 %v302
  %683 = vmatpush1.msra.mxu0 %v301
  %684 = vmatprep.subr.mxu0 %v304
  %685 = vmatpush1.msra.mxu0 %v303
  %686 = vmatprep.subr.mxu0 %v306
  %687 = vmatpush1.msra.mxu0 %v305
  %688 = vmatprep.subr.mxu0 %v308
  %689 = vmatpush1.msra.mxu0 %v307
  %690 = vmatprep.subr.mxu0 %v310
  %691 = vmatpush1.msra.mxu0 %v309
  %692 = vmatprep.subr.mxu0 %v312
  %693 = vmatpush1.msra.mxu0 %v311
  %694 = vmatprep.subr.mxu0 %v314
  %695 = vmatpush1.msra.mxu0 %v313
  %696 = vmatprep.subr.mxu0 %v316
  %697 = vmatpush1.msra.mxu0 %v315
  %698 = vmatprep.subr.mxu0 %v318
  %699 = vmatpush1.msra.mxu0 %v317
  %700 = vmatprep.subr.mxu0 %v320
  %701 = vmatpush1.msra.mxu0 %v319
  %702 = vmatprep.subr.mxu0 %v322
  %703 = vmatpush1.msra.mxu0 %v321
  %704 = vmatprep.subr.mxu0 %v324
  %705 = vmatpush1.msra.mxu0 %v323
  %706 = vmatprep.subr.mxu0 %v326
  %707 = vmatpush1.msra.mxu0 %v325
  %708 = vmatprep.subr.mxu0 %v328
  %709 = vmatpush1.msra.mxu0 %v327
  %710 = vmatprep.subr.mxu0 0.0
  %711 = vmatpush1.msra.mxu0 0.0
  %712 = vmatprep.subr.mxu0 0.0
  %713 = vmatpush1.msra.mxu0 0.0
  %714 = vmatprep.subr.mxu0 0.0
  %715 = vmatpush1.msra.mxu0 0.0
  %716 = vmatprep.subr.mxu0 0.0
  %717 = vmatpush1.msra.mxu0 0.0
  %718 = vmatprep.subr.mxu0 0.0
  %719 = vmatpush1.msra.mxu0 0.0
  %720 = vmatprep.subr.mxu0 0.0
  %721 = vmatpush1.msra.mxu0 0.0
  %722 = vmatprep.subr.mxu0 0.0
  %723 = vmatpush1.msra.mxu0 0.0
  %724 = vmatprep.subr.mxu0 0.0
  %725 = vmatpush1.msra.mxu0 0.0
  %726 = vmatprep.subr.mxu0 0.0
  %727 = vmatpush1.msra.mxu0 0.0
  %728 = vmatprep.subr.mxu0 0.0
  %729 = vmatpush1.msra.mxu0 0.0
  %730 = vmatprep.subr.mxu0 0.0
  %731 = vmatpush1.msra.mxu0 0.0
  %732 = vmatprep.subr.mxu0 0.0
  %733 = vmatpush1.msra.mxu0 0.0
  %734 = vmatprep.subr.mxu0 0.0
  %735 = vmatpush1.msra.mxu0 0.0
  %736 = vmatprep.subr.mxu0 0.0
  %737 = vmatpush1.msra.mxu0 0.0
  %738 = vmatprep.subr.mxu0 0.0
  %739 = vmatpush1.msra.mxu0 0.0
  %740 = vmatprep.subr.mxu0 0.0
  %741 = vmatpush1.msra.mxu0 0.0
  %742 = vmatprep.mubr.f32.mxu0 0.0
  %743 = vmatmul.mubr.f32.gmra.mrb[0].mxu0 %v384
  %v744 = vpop.f32.mrb[0].mxu0
  %v745 = vadd.f32 %v674, %v744
  %v746 = vpop.f32.mrb[0].mxu0
  %v747 = vadd.f32 %v676, %v746
  %748 = vdwg.mxu0
  %v749 = vmax.f32 %v745, 0.0
  %v750 = vmax.f32 %v747, 0.0
  %v753 = vcombine.low %v749, %v750
  %v755 = vunpack.c.l.s4 1983009808
  %v756 = vunpack.c.0.s8 %v755
  %v757 = vlaneseq
  %v758 = vshrl.u32 %v757, 7
  %v759 = vsub.s32 %v756, %v758
  %v760 = vrot.slane %v753, %v759
  %762 = vst [vmem:[#allocation2] sm:$0xf] %v760
  %v763 = vld [vmem:[%s0 + $0x8] sm:$0xff]
  %v764 = vld [vmem:[%s0 + $0x10] sm:$0xff]
  %v765 = vld [vmem:[%s0 + $0x18] sm:$0xf]
  %v766 = vld [vmem:[%s1] sm:$0xff]
  %v767 = vld [vmem:[%s1 + $0x8] sm:$0xff]
  %v768 = vld [vmem:[%s1 + $0x10] sm:$0xff]
  %v769 = vld [vmem:[%s1 + $0x18] sm:$0xff]
  %v770 = vld [vmem:[%s1 + $0x20] sm:$0xff]
  %v771 = vld [vmem:[%s1 + $0x28] sm:$0xff]
  %v772 = vld [vmem:[%s1 + $0x30] sm:$0xff]
  %v773 = vld [vmem:[%s1 + $0x38] sm:$0xff]
  %v774 = vld [vmem:[%s1 + $0x40] sm:$0xff]
  %v775 = vld [vmem:[%s1 + $0x48] sm:$0xff]
  %v776 = vld [vmem:[%s1 + $0x50] sm:$0xff]
  %v777 = vld [vmem:[%s1 + $0x58] sm:$0xff]
  %v778 = vld [vmem:[%s1 + $0x60] sm:$0xff]
  %v779 = vld [vmem:[%s1 + $0x68] sm:$0xff]
  %v780 = vld [vmem:[%s1 + $0x70] sm:$0xff]
  %v781 = vld [vmem:[%s1 + $0x78] sm:$0xff]
  %v782 = vld [vmem:[%s1 + $0x80] sm:$0xff]
  %v783 = vld [vmem:[%s1 + $0x88] sm:$0xff]
  %v784 = vld [vmem:[%s1 + $0x90] sm:$0xff]
  %v785 = vld [vmem:[%s1 + $0x98] sm:$0xff]
  %v786 = vld [vmem:[%s1 + $0xa0] sm:$0xff]
  %v787 = vld [vmem:[%s1 + $0xa8] sm:$0xff]
  %v788 = vld [vmem:[%s1 + $0xb0] sm:$0xff]
  %v789 = vld [vmem:[%s1 + $0xb8] sm:$0xff]
  %v790 = vld [vmem:[%s1 + $0xc0] sm:$0xff]
  %v791 = vld [vmem:[%s1 + $0xc8] sm:$0xff]
  %v792 = vld [vmem:[%s1 + $0xd0] sm:$0xff]
  %v793 = vld [vmem:[%s1 + $0xd8] sm:$0xff]
  %v794 = vld [vmem:[%s1 + $0xe0] sm:$0xff]
  %v795 = vld [vmem:[%s1 + $0xe8] sm:$0xff]
  %v796 = vld [vmem:[%s1 + $0xf0] sm:$0xff]
  %v797 = vld [vmem:[%s1 + $0xf8] sm:$0xff]
  %v798 = vld [vmem:[%s1 + $0x100] sm:$0xff]
  %v799 = vld [vmem:[%s1 + $0x108] sm:$0xff]
  %v800 = vld [vmem:[%s1 + $0x110] sm:$0xff]
  %v801 = vld [vmem:[%s1 + $0x118] sm:$0xff]
  %v802 = vld [vmem:[%s1 + $0x120] sm:$0xff]
  %v803 = vld [vmem:[%s1 + $0x128] sm:$0xff]
  %v804 = vld [vmem:[%s1 + $0x130] sm:$0xff]
  %v805 = vld [vmem:[%s1 + $0x138] sm:$0xff]
  %v806 = vld [vmem:[%s1 + $0x140] sm:$0xff]
  %v807 = vld [vmem:[%s1 + $0x148] sm:$0xff]
  %v808 = vld [vmem:[%s1 + $0x150] sm:$0xff]
  %v809 = vld [vmem:[%s1 + $0x158] sm:$0xff]
  %v810 = vld [vmem:[%s1 + $0x160] sm:$0xff]
  %v811 = vld [vmem:[%s1 + $0x168] sm:$0xff]
  %v812 = vld [vmem:[%s1 + $0x170] sm:$0xff]
  %v813 = vld [vmem:[%s1 + $0x178] sm:$0xff]
  %v814 = vld [vmem:[%s1 + $0x180] sm:$0xff]
  %v815 = vld [vmem:[%s1 + $0x188] sm:$0xff]
  %v816 = vld [vmem:[%s1 + $0x190] sm:$0xff]
  %v817 = vld [vmem:[%s1 + $0x198] sm:$0xff]
  %v818 = vld [vmem:[%s1 + $0x1a0] sm:$0xff]
  %v819 = vld [vmem:[%s1 + $0x1a8] sm:$0xff]
  %v820 = vld [vmem:[%s1 + $0x1b0] sm:$0xff]
  %v821 = vld [vmem:[%s1 + $0x1b8] sm:$0xff]
  %v822 = vld [vmem:[%s1 + $0x1c0] sm:$0xff]
  %v823 = vld [vmem:[%s1 + $0x1c8] sm:$0xff]
  %v824 = vld [vmem:[%s1 + $0x1d0] sm:$0xff]
  %v825 = vld [vmem:[%s1 + $0x1d8] sm:$0xff]
  %v826 = vld [vmem:[%s1 + $0x1e0] sm:$0xff]
  %v827 = vld [vmem:[%s1 + $0x1e8] sm:$0xff]
  %v828 = vld [vmem:[%s1 + $0x1f0] sm:$0xff]
  %v829 = vld [vmem:[%s1 + $0x1f8] sm:$0xff]
  %v830 = vld [vmem:[%s1 + $0x200] sm:$0xff]
  %v831 = vld [vmem:[%s1 + $0x208] sm:$0xff]
  %v832 = vld [vmem:[%s1 + $0x210] sm:$0xff]
  %v833 = vld [vmem:[%s1 + $0x218] sm:$0xff]
  %v834 = vld [vmem:[%s1 + $0x220] sm:$0xff]
  %v835 = vld [vmem:[%s1 + $0x228] sm:$0xff]
  %v836 = vld [vmem:[%s1 + $0x230] sm:$0xff]
  %v837 = vld [vmem:[%s1 + $0x238] sm:$0xff]
  %v838 = vld [vmem:[%s1 + $0x240] sm:$0xff]
  %v839 = vld [vmem:[%s1 + $0x248] sm:$0xff]
  %v840 = vld [vmem:[%s1 + $0x250] sm:$0xff]
  %v841 = vld [vmem:[%s1 + $0x258] sm:$0xff]
  %v842 = vld [vmem:[%s1 + $0x260] sm:$0xff]
  %v843 = vld [vmem:[%s1 + $0x268] sm:$0xff]
  %v844 = vld [vmem:[%s1 + $0x270] sm:$0xff]
  %v845 = vld [vmem:[%s1 + $0x278] sm:$0xff]
  %v846 = vld [vmem:[%s1 + $0x280] sm:$0xff]
  %v847 = vld [vmem:[%s1 + $0x288] sm:$0xff]
  %v848 = vld [vmem:[%s1 + $0x290] sm:$0xff]
  %v849 = vld [vmem:[%s1 + $0x298] sm:$0xff]
  %v850 = vld [vmem:[%s1 + $0x2a0] sm:$0xff]
  %v851 = vld [vmem:[%s1 + $0x2a8] sm:$0xff]
  %v852 = vld [vmem:[%s1 + $0x2b0] sm:$0xff]
  %v853 = vld [vmem:[%s1 + $0x2b8] sm:$0xff]
  %v854 = vld [vmem:[%s1 + $0x2c0] sm:$0xff]
  %v855 = vld [vmem:[%s1 + $0x2c8] sm:$0xff]
  %v856 = vld [vmem:[%s1 + $0x2d0] sm:$0xff]
  %v857 = vld [vmem:[%s1 + $0x2d8] sm:$0xff]
  %v858 = vld [vmem:[%s1 + $0x2e0] sm:$0xff]
  %v859 = vld [vmem:[%s1 + $0x2e8] sm:$0xff]
  %v860 = vld [vmem:[%s1 + $0x2f0] sm:$0xff]
  %v861 = vld [vmem:[%s1 + $0x2f8] sm:$0xff]
  %v862 = vld [vmem:[%s1 + $0x300] sm:$0xff]
  %v863 = vld [vmem:[%s1 + $0x308] sm:$0xff]
  %v864 = vld [vmem:[%s1 + $0x310] sm:$0xff]
  %v865 = vld [vmem:[%s1 + $0x318] sm:$0xff]
  %v866 = vld [vmem:[%s1 + $0x320] sm:$0xff]
  %v867 = vld [vmem:[%s1 + $0x328] sm:$0xff]
  %v868 = vld [vmem:[%s1 + $0x330] sm:$0xff]
  %v869 = vld [vmem:[%s1 + $0x338] sm:$0xff]
  %v870 = vld [vmem:[%s1 + $0x340] sm:$0xff]
  %v871 = vld [vmem:[%s1 + $0x348] sm:$0xff]
  %v872 = vld [vmem:[%s1 + $0x350] sm:$0xff]
  %v873 = vld [vmem:[%s1 + $0x358] sm:$0xff]
  %v874 = vld [vmem:[%s1 + $0x360] sm:$0xff]
  %v875 = vld [vmem:[%s1 + $0x368] sm:$0xff]
  %v876 = vld [vmem:[%s1 + $0x370] sm:$0xff]
  %v877 = vld [vmem:[%s1 + $0x378] sm:$0xff]
  %v878 = vld [vmem:[%s1 + $0x380] sm:$0xff]
  %v879 = vld [vmem:[%s1 + $0x388] sm:$0xff]
  %v880 = vld [vmem:[%s1 + $0x390] sm:$0xff]
  %v881 = vld [vmem:[%s1 + $0x398] sm:$0xff]
  %v882 = vld [vmem:[%s1 + $0x3a0] sm:$0xff]
  %v883 = vld [vmem:[%s1 + $0x3a8] sm:$0xff]
  %v884 = vld [vmem:[%s1 + $0x3b0] sm:$0xff]
  %v885 = vld [vmem:[%s1 + $0x3b8] sm:$0xff]
  %v886 = vld [vmem:[%s1 + $0x3c0] sm:$0xff]
  %v887 = vld [vmem:[%s1 + $0x3c8] sm:$0xff]
  %v888 = vld [vmem:[%s1 + $0x3d0] sm:$0xff]
  %v889 = vld [vmem:[%s1 + $0x3d8] sm:$0xff]
  %v890 = vld [vmem:[%s1 + $0x3e0] sm:$0xff]
  %v891 = vld [vmem:[%s1 + $0x3e8] sm:$0xff]
  %v892 = vld [vmem:[%s1 + $0x3f0] sm:$0xff]
  %v893 = vld [vmem:[%s1 + $0x3f8] sm:$0xff]
  %v894 = vld [vmem:[%s1 + $0x400] sm:$0xff]
  %v895 = vld [vmem:[%s1 + $0x408] sm:$0xff]
  %v896 = vld [vmem:[%s1 + $0x410] sm:$0xff]
  %v897 = vld [vmem:[%s1 + $0x418] sm:$0xff]
  %v898 = vld [vmem:[%s1 + $0x420] sm:$0xff]
  %v899 = vld [vmem:[%s1 + $0x428] sm:$0xff]
  %v900 = vld [vmem:[%s1 + $0x430] sm:$0xff]
  %v901 = vld [vmem:[%s1 + $0x438] sm:$0xff]
  %v902 = vld [vmem:[%s1 + $0x440] sm:$0xff]
  %v903 = vld [vmem:[%s1 + $0x448] sm:$0xff]
  %v904 = vld [vmem:[%s1 + $0x450] sm:$0xff]
  %v905 = vld [vmem:[%s1 + $0x458] sm:$0xff]
  %v906 = vld [vmem:[%s1 + $0x460] sm:$0xff]
  %v907 = vld [vmem:[%s1 + $0x468] sm:$0xff]
  %v908 = vld [vmem:[%s1 + $0x470] sm:$0xff]
  %v909 = vld [vmem:[%s1 + $0x478] sm:$0xff]
  %v910 = vld [vmem:[%s1 + $0x480] sm:$0xff]
  %v911 = vld [vmem:[%s1 + $0x488] sm:$0xff]
  %v912 = vld [vmem:[%s1 + $0x490] sm:$0xff]
  %v913 = vld [vmem:[%s1 + $0x498] sm:$0xff]
  %v914 = vld [vmem:[%s1 + $0x4a0] sm:$0xff]
  %v915 = vld [vmem:[%s1 + $0x4a8] sm:$0xff]
  %v916 = vld [vmem:[%s1 + $0x4b0] sm:$0xff]
  %v917 = vld [vmem:[%s1 + $0x4b8] sm:$0xff]
  %v918 = vld [vmem:[%s1 + $0x4c0] sm:$0xff]
  %v919 = vld [vmem:[%s1 + $0x4c8] sm:$0xff]
  %v920 = vld [vmem:[%s1 + $0x4d0] sm:$0xff]
  %v921 = vld [vmem:[%s1 + $0x4d8] sm:$0xff]
  %v922 = vld [vmem:[%s1 + $0x4e0] sm:$0xff]
  %v923 = vld [vmem:[%s1 + $0x4e8] sm:$0xff]
  %v924 = vld [vmem:[%s1 + $0x4f0] sm:$0xff]
  %v925 = vld [vmem:[%s1 + $0x4f8] sm:$0xff]
  %v926 = vld [vmem:[%s1 + $0x500] sm:$0xff]
  %v927 = vld [vmem:[%s1 + $0x508] sm:$0xff]
  %v928 = vld [vmem:[%s1 + $0x510] sm:$0xff]
  %v929 = vld [vmem:[%s1 + $0x518] sm:$0xff]
  %v930 = vld [vmem:[%s1 + $0x520] sm:$0xff]
  %v931 = vld [vmem:[%s1 + $0x528] sm:$0xff]
  %v932 = vld [vmem:[%s1 + $0x530] sm:$0xff]
  %v933 = vld [vmem:[%s1 + $0x538] sm:$0xff]
  %v934 = vld [vmem:[%s1 + $0x540] sm:$0xff]
  %v935 = vld [vmem:[%s1 + $0x548] sm:$0xff]
  %v936 = vld [vmem:[%s1 + $0x550] sm:$0xff]
  %v937 = vld [vmem:[%s1 + $0x558] sm:$0xff]
  %v938 = vld [vmem:[%s1 + $0x560] sm:$0xff]
  %v939 = vld [vmem:[%s1 + $0x568] sm:$0xff]
  %v940 = vld [vmem:[%s1 + $0x570] sm:$0xff]
  %v941 = vld [vmem:[%s1 + $0x578] sm:$0xff]
  %v942 = vld [vmem:[%s1 + $0x580] sm:$0xff]
  %v943 = vld [vmem:[%s1 + $0x588] sm:$0xff]
  %v944 = vld [vmem:[%s1 + $0x590] sm:$0xff]
  %v945 = vld [vmem:[%s1 + $0x598] sm:$0xff]
  %v946 = vld [vmem:[%s1 + $0x5a0] sm:$0xff]
  %v947 = vld [vmem:[%s1 + $0x5a8] sm:$0xff]
  %v948 = vld [vmem:[%s1 + $0x5b0] sm:$0xff]
  %v949 = vld [vmem:[%s1 + $0x5b8] sm:$0xff]
  %v950 = vld [vmem:[%s1 + $0x5c0] sm:$0xff]
  %v951 = vld [vmem:[%s1 + $0x5c8] sm:$0xff]
  %v952 = vld [vmem:[%s1 + $0x5d0] sm:$0xff]
  %v953 = vld [vmem:[%s1 + $0x5d8] sm:$0xff]
  %v954 = vld [vmem:[%s1 + $0x5e0] sm:$0xff]
  %v955 = vld [vmem:[%s1 + $0x5e8] sm:$0xff]
  %v956 = vld [vmem:[%s1 + $0x5f0] sm:$0xff]
  %v957 = vld [vmem:[%s1 + $0x5f8] sm:$0xff]
  %v958 = vld [vmem:[%s1 + $0x600] sm:$0xff]
  %v959 = vld [vmem:[%s1 + $0x608] sm:$0xff]
  %v960 = vld [vmem:[%s1 + $0x610] sm:$0xff]
  %v961 = vld [vmem:[%s1 + $0x618] sm:$0xff]
  %v962 = vld [vmem:[%s1 + $0x620] sm:$0xff]
  %v963 = vld [vmem:[%s1 + $0x628] sm:$0xff]
  %v964 = vld [vmem:[%s1 + $0x630] sm:$0xff]
  %v965 = vld [vmem:[%s1 + $0x638] sm:$0xff]
  %v966 = vld [vmem:[%s1 + $0x640] sm:$0xff]
  %v967 = vld [vmem:[%s1 + $0x648] sm:$0xff]
  %v968 = vld [vmem:[%s1 + $0x650] sm:$0xff]
  %v969 = vld [vmem:[%s1 + $0x658] sm:$0xff]
  %v970 = vld [vmem:[%s1 + $0x660] sm:$0xff]
  %v971 = vld [vmem:[%s1 + $0x668] sm:$0xff]
  %v972 = vld [vmem:[%s1 + $0x670] sm:$0xff]
  %v973 = vld [vmem:[%s1 + $0x678] sm:$0xff]
  %v974 = vld [vmem:[%s1 + $0x680] sm:$0xff]
  %v975 = vld [vmem:[%s1 + $0x688] sm:$0xff]
  %v976 = vld [vmem:[%s1 + $0x690] sm:$0xff]
  %v977 = vld [vmem:[%s1 + $0x698] sm:$0xff]
  %v978 = vld [vmem:[%s1 + $0x6a0] sm:$0xff]
  %v979 = vld [vmem:[%s1 + $0x6a8] sm:$0xff]
  %v980 = vld [vmem:[%s1 + $0x6b0] sm:$0xff]
  %v981 = vld [vmem:[%s1 + $0x6b8] sm:$0xff]
  %v982 = vld [vmem:[%s1 + $0x6c0] sm:$0xff]
  %v983 = vld [vmem:[%s1 + $0x6c8] sm:$0xff]
  %v984 = vld [vmem:[%s1 + $0x6d0] sm:$0xff]
  %v985 = vld [vmem:[%s1 + $0x6d8] sm:$0xff]
  %v986 = vld [vmem:[%s1 + $0x6e0] sm:$0xff]
  %v987 = vld [vmem:[%s1 + $0x6e8] sm:$0xff]
  %v988 = vld [vmem:[%s1 + $0x6f0] sm:$0xff]
  %v989 = vld [vmem:[%s1 + $0x6f8] sm:$0xff]
  %v990 = vld [vmem:[%s1 + $0x700] sm:$0xff]
  %v991 = vld [vmem:[%s1 + $0x708] sm:$0xff]
  %v992 = vld [vmem:[%s1 + $0x710] sm:$0xff]
  %v993 = vld [vmem:[%s1 + $0x718] sm:$0xff]
  %v994 = vld [vmem:[%s1 + $0x720] sm:$0xff]
  %v995 = vld [vmem:[%s1 + $0x728] sm:$0xff]
  %v996 = vld [vmem:[%s1 + $0x730] sm:$0xff]
  %v997 = vld [vmem:[%s1 + $0x738] sm:$0xff]
  %v998 = vld [vmem:[%s1 + $0x740] sm:$0xff]
  %v999 = vld [vmem:[%s1 + $0x748] sm:$0xff]
  %v1000 = vld [vmem:[%s1 + $0x750] sm:$0xff]
  %v1001 = vld [vmem:[%s1 + $0x758] sm:$0xff]
  %v1002 = vld [vmem:[%s1 + $0x760] sm:$0xff]
  %v1003 = vld [vmem:[%s1 + $0x768] sm:$0xff]
  %v1004 = vld [vmem:[%s1 + $0x770] sm:$0xff]
  %v1005 = vld [vmem:[%s1 + $0x778] sm:$0xff]
  %v1006 = vld [vmem:[%s1 + $0x780] sm:$0xff]
  %v1007 = vld [vmem:[%s1 + $0x788] sm:$0xff]
  %v1008 = vld [vmem:[%s1 + $0x790] sm:$0xff]
  %v1009 = vld [vmem:[%s1 + $0x798] sm:$0xff]
  %v1010 = vld [vmem:[%s1 + $0x7a0] sm:$0xff]
  %v1011 = vld [vmem:[%s1 + $0x7a8] sm:$0xff]
  %v1012 = vld [vmem:[%s1 + $0x7b0] sm:$0xff]
  %v1013 = vld [vmem:[%s1 + $0x7b8] sm:$0xff]
  %v1014 = vld [vmem:[%s1 + $0x7c0] sm:$0xff]
  %v1015 = vld [vmem:[%s1 + $0x7c8] sm:$0xff]
  %v1016 = vld [vmem:[%s1 + $0x7d0] sm:$0xff]
  %v1017 = vld [vmem:[%s1 + $0x7d8] sm:$0xff]
  %v1018 = vld [vmem:[%s1 + $0x7e0] sm:$0xff]
  %v1019 = vld [vmem:[%s1 + $0x7e8] sm:$0xff]
  %v1020 = vld [vmem:[%s1 + $0x7f0] sm:$0xff]
  %v1021 = vld [vmem:[%s1 + $0x7f8] sm:$0xff]
  %v1022 = vld [vmem:[%s1 + $0x800] sm:$0xff]
  %v1023 = vld [vmem:[%s1 + $0x808] sm:$0xff]
  %v1024 = vld [vmem:[%s1 + $0x810] sm:$0xff]
  %v1025 = vld [vmem:[%s1 + $0x818] sm:$0xff]
  %v1026 = vld [vmem:[%s1 + $0x820] sm:$0xff]
  %v1027 = vld [vmem:[%s1 + $0x828] sm:$0xff]
  %v1028 = vld [vmem:[%s1 + $0x830] sm:$0xff]
  %v1029 = vld [vmem:[%s1 + $0x838] sm:$0xff]
  %v1030 = vld [vmem:[%s1 + $0x840] sm:$0xff]
  %v1031 = vld [vmem:[%s1 + $0x848] sm:$0xff]
  %v1032 = vld [vmem:[%s1 + $0x850] sm:$0xff]
  %v1033 = vld [vmem:[%s1 + $0x858] sm:$0xff]
  %v1034 = vld [vmem:[%s1 + $0x860] sm:$0xff]
  %v1035 = vld [vmem:[%s1 + $0x868] sm:$0xff]
  %v1036 = vld [vmem:[%s1 + $0x870] sm:$0xff]
  %v1037 = vld [vmem:[%s1 + $0x878] sm:$0xff]
  %v1038 = vld [vmem:[%s1 + $0x880] sm:$0xff]
  %v1039 = vld [vmem:[%s1 + $0x888] sm:$0xff]
  %v1040 = vld [vmem:[%s1 + $0x890] sm:$0xff]
  %v1041 = vld [vmem:[%s1 + $0x898] sm:$0xff]
  %v1042 = vld [vmem:[%s1 + $0x8a0] sm:$0xff]
  %v1043 = vld [vmem:[%s1 + $0x8a8] sm:$0xff]
  %v1044 = vld [vmem:[%s1 + $0x8b0] sm:$0xff]
  %v1045 = vld [vmem:[%s1 + $0x8b8] sm:$0xff]
  %v1046 = vld [vmem:[%s1 + $0x8c0] sm:$0xff]
  %v1047 = vld [vmem:[%s1 + $0x8c8] sm:$0xff]
  %v1048 = vld [vmem:[%s1 + $0x8d0] sm:$0xff]
  %v1049 = vld [vmem:[%s1 + $0x8d8] sm:$0xff]
  %v1050 = vld [vmem:[%s1 + $0x8e0] sm:$0xff]
  %v1051 = vld [vmem:[%s1 + $0x8e8] sm:$0xff]
  %v1052 = vld [vmem:[%s1 + $0x8f0] sm:$0xff]
  %v1053 = vld [vmem:[%s1 + $0x8f8] sm:$0xff]
  %v1054 = vld [vmem:[%s2] sm:$0x3]
  %v1056 = vlaneseq
  %v1057 = vshrl.u32 %v1056, 7
  %v1058 = vsub.s32 0, %v1057
  %v1059 = vrot.slane %v1054, %v1058
  %v1060 = vlaneseq
  %v1061 = vshrl.u32 %v1060, 7
  %v1062 = vsub.s32 1, %v1061
  %v1063 = vrot.slane %v1054, %v1062
  %v1069 = vcombine.high %v763, %v763
  %v1071 = vunpack.c.l.s4 1983009808
  %v1072 = vunpack.c.0.s8 %v1071
  %v1073 = vlaneseq
  %v1074 = vshrl.u32 %v1073, 7
  %v1075 = vsub.s32 %v1072, %v1074
  %v1076 = vrot.slane %v763, %v1075
  %v1078 = vunpack.c.l.s4 1983009808
  %v1079 = vunpack.c.0.s8 %v1078
  %v1080 = vlaneseq
  %v1081 = vshrl.u32 %v1080, 7
  %v1082 = vsub.s32 %v1079, %v1081
  %v1083 = vrot.slane %v1069, %v1082
  %v1084 = vcombine.high %v1076, %v1076
  %v1085 = vcombine.high %v1083, %v1083
  %v1086 = vcombine.high %v764, %v764
  %v1088 = vunpack.c.l.s4 1983009808
  %v1089 = vunpack.c.0.s8 %v1088
  %v1090 = vlaneseq
  %v1091 = vshrl.u32 %v1090, 7
  %v1092 = vsub.s32 %v1089, %v1091
  %v1093 = vrot.slane %v764, %v1092
  %v1095 = vunpack.c.l.s4 1983009808
  %v1096 = vunpack.c.0.s8 %v1095
  %v1097 = vlaneseq
  %v1098 = vshrl.u32 %v1097, 7
  %v1099 = vsub.s32 %v1096, %v1098
  %v1100 = vrot.slane %v1086, %v1099
  %v1101 = vcombine.high %v1093, %v1093
  %v1102 = vcombine.high %v1100, %v1100
  %v1104 = vunpack.c.l.s4 1983009808
  %v1105 = vunpack.c.0.s8 %v1104
  %v1106 = vlaneseq
  %v1107 = vshrl.u32 %v1106, 7
  %v1108 = vsub.s32 %v1105, %v1107
  %v1109 = vrot.slane %v765, %v1108
  %v1110 = vcombine.high %v1109, %v1109
  %1111 = vrot.lane.b32.xlu0 %v1076, 64
  %v1112 = vpop.permute.xlu0 %1111
  %1113 = vrot.lane.b32.xlu0 %v1084, 64
  %v1114 = vpop.permute.xlu0 %1113
  %1115 = vrot.lane.b32.xlu0 %v1083, 64
  %v1116 = vpop.permute.xlu0 %1115
  %1117 = vrot.lane.b32.xlu0 %v1085, 64
  %v1118 = vpop.permute.xlu0 %1117
  %1119 = vrot.lane.b32.xlu0 %v1093, 64
  %v1120 = vpop.permute.xlu0 %1119
  %1121 = vrot.lane.b32.xlu0 %v1101, 64
  %v1122 = vpop.permute.xlu0 %1121
  %1123 = vrot.lane.b32.xlu0 %v1100, 64
  %v1124 = vpop.permute.xlu0 %1123
  %1125 = vrot.lane.b32.xlu0 %v1102, 64
  %v1126 = vpop.permute.xlu0 %1125
  %1127 = vrot.lane.b32.xlu0 %v1109, 64
  %v1128 = vpop.permute.xlu0 %1127
  %1129 = vrot.lane.b32.xlu0 %v1110, 64
  %v1130 = vpop.permute.xlu0 %1129
  %vm1131 = vcmask 523264
  %v1132 = vsel %vm1131, %v1112, %v1114
  %v1133 = vsel %vm1131, %v1114, %v1116
  %v1134 = vsel %vm1131, %v1116, %v1118
  %v1135 = vsel %vm1131, %v1118, %v1120
  %v1136 = vsel %vm1131, %v1120, %v1122
  %v1137 = vsel %vm1131, %v1122, %v1124
  %v1138 = vsel %vm1131, %v1124, %v1126
  %v1139 = vsel %vm1131, %v1126, %v1128
  %v1140 = vsel %vm1131, %v1128, %v1130
  %1150 = vmatprep.subr.mxu0 %v767
  %1151 = vmatpush1.msra.mxu0 %v766
  %1152 = vmatprep.subr.mxu0 %v769
  %1153 = vmatpush1.msra.mxu0 %v768
  %1154 = vmatprep.subr.mxu0 %v771
  %1155 = vmatpush1.msra.mxu0 %v770
  %1156 = vmatprep.subr.mxu0 %v773
  %1157 = vmatpush1.msra.mxu0 %v772
  %1158 = vmatprep.subr.mxu0 %v775
  %1159 = vmatpush1.msra.mxu0 %v774
  %1160 = vmatprep.subr.mxu0 %v777
  %1161 = vmatpush1.msra.mxu0 %v776
  %1162 = vmatprep.subr.mxu0 %v779
  %1163 = vmatpush1.msra.mxu0 %v778
  %1164 = vmatprep.subr.mxu0 %v781
  %1165 = vmatpush1.msra.mxu0 %v780
  %1166 = vmatprep.subr.mxu0 %v783
  %1167 = vmatpush1.msra.mxu0 %v782
  %1168 = vmatprep.subr.mxu0 %v785
  %1169 = vmatpush1.msra.mxu0 %v784
  %1170 = vmatprep.subr.mxu0 %v787
  %1171 = vmatpush1.msra.mxu0 %v786
  %1172 = vmatprep.subr.mxu0 %v789
  %1173 = vmatpush1.msra.mxu0 %v788
  %1174 = vmatprep.subr.mxu0 %v791
  %1175 = vmatpush1.msra.mxu0 %v790
  %1176 = vmatprep.subr.mxu0 %v793
  %1177 = vmatpush1.msra.mxu0 %v792
  %1178 = vmatprep.subr.mxu0 %v795
  %1179 = vmatpush1.msra.mxu0 %v794
  %1180 = vmatprep.subr.mxu0 %v797
  %1181 = vmatpush1.msra.mxu0 %v796
  %1182 = vmatprep.subr.mxu0 %v799
  %1183 = vmatpush1.msra.mxu0 %v798
  %1184 = vmatprep.subr.mxu0 %v801
  %1185 = vmatpush1.msra.mxu0 %v800
  %1186 = vmatprep.subr.mxu0 %v803
  %1187 = vmatpush1.msra.mxu0 %v802
  %1188 = vmatprep.subr.mxu0 %v805
  %1189 = vmatpush1.msra.mxu0 %v804
  %1190 = vmatprep.subr.mxu0 %v807
  %1191 = vmatpush1.msra.mxu0 %v806
  %1192 = vmatprep.subr.mxu0 %v809
  %1193 = vmatpush1.msra.mxu0 %v808
  %1194 = vmatprep.subr.mxu0 %v811
  %1195 = vmatpush1.msra.mxu0 %v810
  %1196 = vmatprep.subr.mxu0 %v813
  %1197 = vmatpush1.msra.mxu0 %v812
  %1198 = vmatprep.subr.mxu0 %v815
  %1199 = vmatpush1.msra.mxu0 %v814
  %1200 = vmatprep.subr.mxu0 %v817
  %1201 = vmatpush1.msra.mxu0 %v816
  %1202 = vmatprep.subr.mxu0 %v819
  %1203 = vmatpush1.msra.mxu0 %v818
  %1204 = vmatprep.subr.mxu0 %v821
  %1205 = vmatpush1.msra.mxu0 %v820
  %1206 = vmatprep.subr.mxu0 %v823
  %1207 = vmatpush1.msra.mxu0 %v822
  %1208 = vmatprep.subr.mxu0 %v825
  %1209 = vmatpush1.msra.mxu0 %v824
  %1210 = vmatprep.subr.mxu0 %v827
  %1211 = vmatpush1.msra.mxu0 %v826
  %1212 = vmatprep.subr.mxu0 %v829
  %1213 = vmatpush1.msra.mxu0 %v828
  %1214 = vmatprep.mubr.f32.mxu0 %v1133
  %1215 = vmatmul.mubr.f32.gmra.mrb[0].mxu0 %v1132
  %v1216 = vpop.f32.mrb[0].mxu0
  %v1217 = vadd.f32 %v1059, %v1216
  %v1218 = vpop.f32.mrb[0].mxu0
  %v1219 = vadd.f32 %v1063, %v1218
  %1220 = vdwg.mxu0
  %1221 = vmatprep.subr.mxu0 %v831
  %1222 = vmatpush1.msra.mxu0 %v830
  %1223 = vmatprep.subr.mxu0 %v833
  %1224 = vmatpush1.msra.mxu0 %v832
  %1225 = vmatprep.subr.mxu0 %v835
  %1226 = vmatpush1.msra.mxu0 %v834
  %1227 = vmatprep.subr.mxu0 %v837
  %1228 = vmatpush1.msra.mxu0 %v836
  %1229 = vmatprep.subr.mxu0 %v839
  %1230 = vmatpush1.msra.mxu0 %v838
  %1231 = vmatprep.subr.mxu0 %v841
  %1232 = vmatpush1.msra.mxu0 %v840
  %1233 = vmatprep.subr.mxu0 %v843
  %1234 = vmatpush1.msra.mxu0 %v842
  %1235 = vmatprep.subr.mxu0 %v845
  %1236 = vmatpush1.msra.mxu0 %v844
  %1237 = vmatprep.subr.mxu0 %v847
  %1238 = vmatpush1.msra.mxu0 %v846
  %1239 = vmatprep.subr.mxu0 %v849
  %1240 = vmatpush1.msra.mxu0 %v848
  %1241 = vmatprep.subr.mxu0 %v851
  %1242 = vmatpush1.msra.mxu0 %v850
  %1243 = vmatprep.subr.mxu0 %v853
  %1244 = vmatpush1.msra.mxu0 %v852
  %1245 = vmatprep.subr.mxu0 %v855
  %1246 = vmatpush1.msra.mxu0 %v854
  %1247 = vmatprep.subr.mxu0 %v857
  %1248 = vmatpush1.msra.mxu0 %v856
  %1249 = vmatprep.subr.mxu0 %v859
  %1250 = vmatpush1.msra.mxu0 %v858
  %1251 = vmatprep.subr.mxu0 %v861
  %1252 = vmatpush1.msra.mxu0 %v860
  %1253 = vmatprep.subr.mxu0 %v863
  %1254 = vmatpush1.msra.mxu0 %v862
  %1255 = vmatprep.subr.mxu0 %v865
  %1256 = vmatpush1.msra.mxu0 %v864
  %1257 = vmatprep.subr.mxu0 %v867
  %1258 = vmatpush1.msra.mxu0 %v866
  %1259 = vmatprep.subr.mxu0 %v869
  %1260 = vmatpush1.msra.mxu0 %v868
  %1261 = vmatprep.subr.mxu0 %v871
  %1262 = vmatpush1.msra.mxu0 %v870
  %1263 = vmatprep.subr.mxu0 %v873
  %1264 = vmatpush1.msra.mxu0 %v872
  %1265 = vmatprep.subr.mxu0 %v875
  %1266 = vmatpush1.msra.mxu0 %v874
  %1267 = vmatprep.subr.mxu0 %v877
  %1268 = vmatpush1.msra.mxu0 %v876
  %1269 = vmatprep.subr.mxu0 %v879
  %1270 = vmatpush1.msra.mxu0 %v878
  %1271 = vmatprep.subr.mxu0 %v881
  %1272 = vmatpush1.msra.mxu0 %v880
  %1273 = vmatprep.subr.mxu0 %v883
  %1274 = vmatpush1.msra.mxu0 %v882
  %1275 = vmatprep.subr.mxu0 %v885
  %1276 = vmatpush1.msra.mxu0 %v884
  %1277 = vmatprep.subr.mxu0 %v887
  %1278 = vmatpush1.msra.mxu0 %v886
  %1279 = vmatprep.subr.mxu0 %v889
  %1280 = vmatpush1.msra.mxu0 %v888
  %1281 = vmatprep.subr.mxu0 %v891
  %1282 = vmatpush1.msra.mxu0 %v890
  %1283 = vmatprep.subr.mxu0 %v893
  %1284 = vmatpush1.msra.mxu0 %v892
  %1285 = vmatprep.mubr.f32.mxu0 %v1135
  %1286 = vmatmul.mubr.f32.gmra.mrb[0].mxu0 %v1134
  %v1287 = vpop.f32.mrb[0].mxu0
  %v1288 = vadd.f32 %v1217, %v1287
  %v1289 = vpop.f32.mrb[0].mxu0
  %v1290 = vadd.f32 %v1219, %v1289
  %1291 = vdwg.mxu0
  %1292 = vmatprep.subr.mxu0 %v895
  %1293 = vmatpush1.msra.mxu0 %v894
  %1294 = vmatprep.subr.mxu0 %v897
  %1295 = vmatpush1.msra.mxu0 %v896
  %1296 = vmatprep.subr.mxu0 %v899
  %1297 = vmatpush1.msra.mxu0 %v898
  %1298 = vmatprep.subr.mxu0 %v901
  %1299 = vmatpush1.msra.mxu0 %v900
  %1300 = vmatprep.subr.mxu0 %v903
  %1301 = vmatpush1.msra.mxu0 %v902
  %1302 = vmatprep.subr.mxu0 %v905
  %1303 = vmatpush1.msra.mxu0 %v904
  %1304 = vmatprep.subr.mxu0 %v907
  %1305 = vmatpush1.msra.mxu0 %v906
  %1306 = vmatprep.subr.mxu0 %v909
  %1307 = vmatpush1.msra.mxu0 %v908
  %1308 = vmatprep.subr.mxu0 %v911
  %1309 = vmatpush1.msra.mxu0 %v910
  %1310 = vmatprep.subr.mxu0 %v913
  %1311 = vmatpush1.msra.mxu0 %v912
  %1312 = vmatprep.subr.mxu0 %v915
  %1313 = vmatpush1.msra.mxu0 %v914
  %1314 = vmatprep.subr.mxu0 %v917
  %1315 = vmatpush1.msra.mxu0 %v916
  %1316 = vmatprep.subr.mxu0 %v919
  %1317 = vmatpush1.msra.mxu0 %v918
  %1318 = vmatprep.subr.mxu0 %v921
  %1319 = vmatpush1.msra.mxu0 %v920
  %1320 = vmatprep.subr.mxu0 %v923
  %1321 = vmatpush1.msra.mxu0 %v922
  %1322 = vmatprep.subr.mxu0 %v925
  %1323 = vmatpush1.msra.mxu0 %v924
  %1324 = vmatprep.subr.mxu0 %v927
  %1325 = vmatpush1.msra.mxu0 %v926
  %1326 = vmatprep.subr.mxu0 %v929
  %1327 = vmatpush1.msra.mxu0 %v928
  %1328 = vmatprep.subr.mxu0 %v931
  %1329 = vmatpush1.msra.mxu0 %v930
  %1330 = vmatprep.subr.mxu0 %v933
  %1331 = vmatpush1.msra.mxu0 %v932
  %1332 = vmatprep.subr.mxu0 %v935
  %1333 = vmatpush1.msra.mxu0 %v934
  %1334 = vmatprep.subr.mxu0 %v937
  %1335 = vmatpush1.msra.mxu0 %v936
  %1336 = vmatprep.subr.mxu0 %v939
  %1337 = vmatpush1.msra.mxu0 %v938
  %1338 = vmatprep.subr.mxu0 %v941
  %1339 = vmatpush1.msra.mxu0 %v940
  %1340 = vmatprep.subr.mxu0 %v943
  %1341 = vmatpush1.msra.mxu0 %v942
  %1342 = vmatprep.subr.mxu0 %v945
  %1343 = vmatpush1.msra.mxu0 %v944
  %1344 = vmatprep.subr.mxu0 %v947
  %1345 = vmatpush1.msra.mxu0 %v946
  %1346 = vmatprep.subr.mxu0 %v949
  %1347 = vmatpush1.msra.mxu0 %v948
  %1348 = vmatprep.subr.mxu0 %v951
  %1349 = vmatpush1.msra.mxu0 %v950
  %1350 = vmatprep.subr.mxu0 %v953
  %1351 = vmatpush1.msra.mxu0 %v952
  %1352 = vmatprep.subr.mxu0 %v955
  %1353 = vmatpush1.msra.mxu0 %v954
  %1354 = vmatprep.subr.mxu0 %v957
  %1355 = vmatpush1.msra.mxu0 %v956
  %1356 = vmatprep.mubr.f32.mxu0 %v1137
  %1357 = vmatmul.mubr.f32.gmra.mrb[0].mxu0 %v1136
  %v1358 = vpop.f32.mrb[0].mxu0
  %v1359 = vadd.f32 %v1288, %v1358
  %v1360 = vpop.f32.mrb[0].mxu0
  %v1361 = vadd.f32 %v1290, %v1360
  %1362 = vdwg.mxu0
  %1363 = vmatprep.subr.mxu0 %v959
  %1364 = vmatpush1.msra.mxu0 %v958
  %1365 = vmatprep.subr.mxu0 %v961
  %1366 = vmatpush1.msra.mxu0 %v960
  %1367 = vmatprep.subr.mxu0 %v963
  %1368 = vmatpush1.msra.mxu0 %v962
  %1369 = vmatprep.subr.mxu0 %v965
  %1370 = vmatpush1.msra.mxu0 %v964
  %1371 = vmatprep.subr.mxu0 %v967
  %1372 = vmatpush1.msra.mxu0 %v966
  %1373 = vmatprep.subr.mxu0 %v969
  %1374 = vmatpush1.msra.mxu0 %v968
  %1375 = vmatprep.subr.mxu0 %v971
  %1376 = vmatpush1.msra.mxu0 %v970
  %1377 = vmatprep.subr.mxu0 %v973
  %1378 = vmatpush1.msra.mxu0 %v972
  %1379 = vmatprep.subr.mxu0 %v975
  %1380 = vmatpush1.msra.mxu0 %v974
  %1381 = vmatprep.subr.mxu0 %v977
  %1382 = vmatpush1.msra.mxu0 %v976
  %1383 = vmatprep.subr.mxu0 %v979
  %1384 = vmatpush1.msra.mxu0 %v978
  %1385 = vmatprep.subr.mxu0 %v981
  %1386 = vmatpush1.msra.mxu0 %v980
  %1387 = vmatprep.subr.mxu0 %v983
  %1388 = vmatpush1.msra.mxu0 %v982
  %1389 = vmatprep.subr.mxu0 %v985
  %1390 = vmatpush1.msra.mxu0 %v984
  %1391 = vmatprep.subr.mxu0 %v987
  %1392 = vmatpush1.msra.mxu0 %v986
  %1393 = vmatprep.subr.mxu0 %v989
  %1394 = vmatpush1.msra.mxu0 %v988
  %1395 = vmatprep.subr.mxu0 %v991
  %1396 = vmatpush1.msra.mxu0 %v990
  %1397 = vmatprep.subr.mxu0 %v993
  %1398 = vmatpush1.msra.mxu0 %v992
  %1399 = vmatprep.subr.mxu0 %v995
  %1400 = vmatpush1.msra.mxu0 %v994
  %1401 = vmatprep.subr.mxu0 %v997
  %1402 = vmatpush1.msra.mxu0 %v996
  %1403 = vmatprep.subr.mxu0 %v999
  %1404 = vmatpush1.msra.mxu0 %v998
  %1405 = vmatprep.subr.mxu0 %v1001
  %1406 = vmatpush1.msra.mxu0 %v1000
  %1407 = vmatprep.subr.mxu0 %v1003
  %1408 = vmatpush1.msra.mxu0 %v1002
  %1409 = vmatprep.subr.mxu0 %v1005
  %1410 = vmatpush1.msra.mxu0 %v1004
  %1411 = vmatprep.subr.mxu0 %v1007
  %1412 = vmatpush1.msra.mxu0 %v1006
  %1413 = vmatprep.subr.mxu0 %v1009
  %1414 = vmatpush1.msra.mxu0 %v1008
  %1415 = vmatprep.subr.mxu0 %v1011
  %1416 = vmatpush1.msra.mxu0 %v1010
  %1417 = vmatprep.subr.mxu0 %v1013
  %1418 = vmatpush1.msra.mxu0 %v1012
  %1419 = vmatprep.subr.mxu0 %v1015
  %1420 = vmatpush1.msra.mxu0 %v1014
  %1421 = vmatprep.subr.mxu0 %v1017
  %1422 = vmatpush1.msra.mxu0 %v1016
  %1423 = vmatprep.subr.mxu0 %v1019
  %1424 = vmatpush1.msra.mxu0 %v1018
  %1425 = vmatprep.subr.mxu0 %v1021
  %1426 = vmatpush1.msra.mxu0 %v1020
  %1427 = vmatprep.mubr.f32.mxu0 %v1139
  %1428 = vmatmul.mubr.f32.gmra.mrb[0].mxu0 %v1138
  %v1429 = vpop.f32.mrb[0].mxu0
  %v1430 = vadd.f32 %v1359, %v1429
  %v1431 = vpop.f32.mrb[0].mxu0
  %v1432 = vadd.f32 %v1361, %v1431
  %1433 = vdwg.mxu0
  %1434 = vmatprep.subr.mxu0 %v1023
  %1435 = vmatpush1.msra.mxu0 %v1022
  %1436 = vmatprep.subr.mxu0 %v1025
  %1437 = vmatpush1.msra.mxu0 %v1024
  %1438 = vmatprep.subr.mxu0 %v1027
  %1439 = vmatpush1.msra.mxu0 %v1026
  %1440 = vmatprep.subr.mxu0 %v1029
  %1441 = vmatpush1.msra.mxu0 %v1028
  %1442 = vmatprep.subr.mxu0 %v1031
  %1443 = vmatpush1.msra.mxu0 %v1030
  %1444 = vmatprep.subr.mxu0 %v1033
  %1445 = vmatpush1.msra.mxu0 %v1032
  %1446 = vmatprep.subr.mxu0 %v1035
  %1447 = vmatpush1.msra.mxu0 %v1034
  %1448 = vmatprep.subr.mxu0 %v1037
  %1449 = vmatpush1.msra.mxu0 %v1036
  %1450 = vmatprep.subr.mxu0 %v1039
  %1451 = vmatpush1.msra.mxu0 %v1038
  %1452 = vmatprep.subr.mxu0 %v1041
  %1453 = vmatpush1.msra.mxu0 %v1040
  %1454 = vmatprep.subr.mxu0 %v1043
  %1455 = vmatpush1.msra.mxu0 %v1042
  %1456 = vmatprep.subr.mxu0 %v1045
  %1457 = vmatpush1.msra.mxu0 %v1044
  %1458 = vmatprep.subr.mxu0 %v1047
  %1459 = vmatpush1.msra.mxu0 %v1046
  %1460 = vmatprep.subr.mxu0 %v1049
  %1461 = vmatpush1.msra.mxu0 %v1048
  %1462 = vmatprep.subr.mxu0 %v1051
  %1463 = vmatpush1.msra.mxu0 %v1050
  %1464 = vmatprep.subr.mxu0 %v1053
  %1465 = vmatpush1.msra.mxu0 %v1052
  %1466 = vmatprep.subr.mxu0 0.0
  %1467 = vmatpush1.msra.mxu0 0.0
  %1468 = vmatprep.subr.mxu0 0.0
  %1469 = vmatpush1.msra.mxu0 0.0
  %1470 = vmatprep.subr.mxu0 0.0
  %1471 = vmatpush1.msra.mxu0 0.0
  %1472 = vmatprep.subr.mxu0 0.0
  %1473 = vmatpush1.msra.mxu0 0.0
  %1474 = vmatprep.subr.mxu0 0.0
  %1475 = vmatpush1.msra.mxu0 0.0
  %1476 = vmatprep.subr.mxu0 0.0
  %1477 = vmatpush1.msra.mxu0 0.0
  %1478 = vmatprep.subr.mxu0 0.0
  %1479 = vmatpush1.msra.mxu0 0.0
  %1480 = vmatprep.subr.mxu0 0.0
  %1481 = vmatpush1.msra.mxu0 0.0
  %1482 = vmatprep.subr.mxu0 0.0
  %1483 = vmatpush1.msra.mxu0 0.0
  %1484 = vmatprep.subr.mxu0 0.0
  %1485 = vmatpush1.msra.mxu0 0.0
  %1486 = vmatprep.subr.mxu0 0.0
  %1487 = vmatpush1.msra.mxu0 0.0
  %1488 = vmatprep.subr.mxu0 0.0
  %1489 = vmatpush1.msra.mxu0 0.0
  %1490 = vmatprep.subr.mxu0 0.0
  %1491 = vmatpush1.msra.mxu0 0.0
  %1492 = vmatprep.subr.mxu0 0.0
  %1493 = vmatpush1.msra.mxu0 0.0
  %1494 = vmatprep.subr.mxu0 0.0
  %1495 = vmatpush1.msra.mxu0 0.0
  %1496 = vmatprep.subr.mxu0 0.0
  %1497 = vmatpush1.msra.mxu0 0.0
  %1498 = vmatprep.mubr.f32.mxu0 0.0
  %1499 = vmatmul.mubr.f32.gmra.mrb[0].mxu0 %v1140
  %v1500 = vpop.f32.mrb[0].mxu0
  %v1501 = vadd.f32 %v1430, %v1500
  %v1502 = vpop.f32.mrb[0].mxu0
  %v1503 = vadd.f32 %v1432, %v1502
  %1504 = vdwg.mxu0
  %v1505 = vmax.f32 %v1501, 0.0
  %v1506 = vmax.f32 %v1503, 0.0
  %v1509 = vcombine.low %v1505, %v1506
  %v1511 = vunpack.c.l.s4 1983009808
  %v1512 = vunpack.c.0.s8 %v1511
  %v1513 = vlaneseq
  %v1514 = vshrl.u32 %v1513, 7
  %v1515 = vsub.s32 %v1512, %v1514
  %v1516 = vrot.slane %v1509, %v1515
  %1518 = vst [vmem:[#allocation2 + $0x4] sm:$0xf] %v1516
  %v1519 = vld [vmem:[%s0 + $0x12] sm:$0xff]
  %v1520 = vld [vmem:[%s0 + $0x1a] sm:$0xff]
  %v1521 = vld [vmem:[%s0 + $0x22] sm:$0x3]
  %v1522 = vld [vmem:[%s1] sm:$0xff]
  %v1523 = vld [vmem:[%s1 + $0x8] sm:$0xff]
  %v1524 = vld [vmem:[%s1 + $0x10] sm:$0xff]
  %v1525 = vld [vmem:[%s1 + $0x18] sm:$0xff]
  %v1526 = vld [vmem:[%s1 + $0x20] sm:$0xff]
  %v1527 = vld [vmem:[%s1 + $0x28] sm:$0xff]
  %v1528 = vld [vmem:[%s1 + $0x30] sm:$0xff]
  %v1529 = vld [vmem:[%s1 + $0x38] sm:$0xff]
  %v1530 = vld [vmem:[%s1 + $0x40] sm:$0xff]
  %v1531 = vld [vmem:[%s1 + $0x48] sm:$0xff]
  %v1532 = vld [vmem:[%s1 + $0x50] sm:$0xff]
  %v1533 = vld [vmem:[%s1 + $0x58] sm:$0xff]
  %v1534 = vld [vmem:[%s1 + $0x60] sm:$0xff]
  %v1535 = vld [vmem:[%s1 + $0x68] sm:$0xff]
  %v1536 = vld [vmem:[%s1 + $0x70] sm:$0xff]
  %v1537 = vld [vmem:[%s1 + $0x78] sm:$0xff]
  %v1538 = vld [vmem:[%s1 + $0x80] sm:$0xff]
  %v1539 = vld [vmem:[%s1 + $0x88] sm:$0xff]
  %v1540 = vld [vmem:[%s1 + $0x90] sm:$0xff]
  %v1541 = vld [vmem:[%s1 + $0x98] sm:$0xff]
  %v1542 = vld [vmem:[%s1 + $0xa0] sm:$0xff]
  %v1543 = vld [vmem:[%s1 + $0xa8] sm:$0xff]
  %v1544 = vld [vmem:[%s1 + $0xb0] sm:$0xff]
  %v1545 = vld [vmem:[%s1 + $0xb8] sm:$0xff]
  %v1546 = vld [vmem:[%s1 + $0xc0] sm:$0xff]
  %v1547 = vld [vmem:[%s1 + $0xc8] sm:$0xff]
  %v1548 = vld [vmem:[%s1 + $0xd0] sm:$0xff]
  %v1549 = vld [vmem:[%s1 + $0xd8] sm:$0xff]
  %v1550 = vld [vmem:[%s1 + $0xe0] sm:$0xff]
  %v1551 = vld [vmem:[%s1 + $0xe8] sm:$0xff]
  %v1552 = vld [vmem:[%s1 + $0xf0] sm:$0xff]
  %v1553 = vld [vmem:[%s1 + $0xf8] sm:$0xff]
  %v1554 = vld [vmem:[%s1 + $0x100] sm:$0xff]
  %v1555 = vld [vmem:[%s1 + $0x108] sm:$0xff]
  %v1556 = vld [vmem:[%s1 + $0x110] sm:$0xff]
  %v1557 = vld [vmem:[%s1 + $0x118] sm:$0xff]
  %v1558 = vld [vmem:[%s1 + $0x120] sm:$0xff]
  %v1559 = vld [vmem:[%s1 + $0x128] sm:$0xff]
  %v1560 = vld [vmem:[%s1 + $0x130] sm:$0xff]
  %v1561 = vld [vmem:[%s1 + $0x138] sm:$0xff]
  %v1562 = vld [vmem:[%s1 + $0x140] sm:$0xff]
  %v1563 = vld [vmem:[%s1 + $0x148] sm:$0xff]
  %v1564 = vld [vmem:[%s1 + $0x150] sm:$0xff]
  %v1565 = vld [vmem:[%s1 + $0x158] sm:$0xff]
  %v1566 = vld [vmem:[%s1 + $0x160] sm:$0xff]
  %v1567 = vld [vmem:[%s1 + $0x168] sm:$0xff]
  %v1568 = vld [vmem:[%s1 + $0x170] sm:$0xff]
  %v1569 = vld [vmem:[%s1 + $0x178] sm:$0xff]
  %v1570 = vld [vmem:[%s1 + $0x180] sm:$0xff]
  %v1571 = vld [vmem:[%s1 + $0x188] sm:$0xff]
  %v1572 = vld [vmem:[%s1 + $0x190] sm:$0xff]
  %v1573 = vld [vmem:[%s1 + $0x198] sm:$0xff]
  %v1574 = vld [vmem:[%s1 + $0x1a0] sm:$0xff]
  %v1575 = vld [vmem:[%s1 + $0x1a8] sm:$0xff]
  %v1576 = vld [vmem:[%s1 + $0x1b0] sm:$0xff]
  %v1577 = vld [vmem:[%s1 + $0x1b8] sm:$0xff]
  %v1578 = vld [vmem:[%s1 + $0x1c0] sm:$0xff]
  %v1579 = vld [vmem:[%s1 + $0x1c8] sm:$0xff]
  %v1580 = vld [vmem:[%s1 + $0x1d0] sm:$0xff]
  %v1581 = vld [vmem:[%s1 + $0x1d8] sm:$0xff]
  %v1582 = vld [vmem:[%s1 + $0x1e0] sm:$0xff]
  %v1583 = vld [vmem:[%s1 + $0x1e8] sm:$0xff]
  %v1584 = vld [vmem:[%s1 + $0x1f0] sm:$0xff]
  %v1585 = vld [vmem:[%s1 + $0x1f8] sm:$0xff]
  %v1586 = vld [vmem:[%s1 + $0x200] sm:$0xff]
  %v1587 = vld [vmem:[%s1 + $0x208] sm:$0xff]
  %v1588 = vld [vmem:[%s1 + $0x210] sm:$0xff]
  %v1589 = vld [vmem:[%s1 + $0x218] sm:$0xff]
  %v1590 = vld [vmem:[%s1 + $0x220] sm:$0xff]
  %v1591 = vld [vmem:[%s1 + $0x228] sm:$0xff]
  %v1592 = vld [vmem:[%s1 + $0x230] sm:$0xff]
  %v1593 = vld [vmem:[%s1 + $0x238] sm:$0xff]
  %v1594 = vld [vmem:[%s1 + $0x240] sm:$0xff]
  %v1595 = vld [vmem:[%s1 + $0x248] sm:$0xff]
  %v1596 = vld [vmem:[%s1 + $0x250] sm:$0xff]
  %v1597 = vld [vmem:[%s1 + $0x258] sm:$0xff]
  %v1598 = vld [vmem:[%s1 + $0x260] sm:$0xff]
  %v1599 = vld [vmem:[%s1 + $0x268] sm:$0xff]
  %v1600 = vld [vmem:[%s1 + $0x270] sm:$0xff]
  %v1601 = vld [vmem:[%s1 + $0x278] sm:$0xff]
  %v1602 = vld [vmem:[%s1 + $0x280] sm:$0xff]
  %v1603 = vld [vmem:[%s1 + $0x288] sm:$0xff]
  %v1604 = vld [vmem:[%s1 + $0x290] sm:$0xff]
  %v1605 = vld [vmem:[%s1 + $0x298] sm:$0xff]
  %v1606 = vld [vmem:[%s1 + $0x2a0] sm:$0xff]
  %v1607 = vld [vmem:[%s1 + $0x2a8] sm:$0xff]
  %v1608 = vld [vmem:[%s1 + $0x2b0] sm:$0xff]
  %v1609 = vld [vmem:[%s1 + $0x2b8] sm:$0xff]
  %v1610 = vld [vmem:[%s1 + $0x2c0] sm:$0xff]
  %v1611 = vld [vmem:[%s1 + $0x2c8] sm:$0xff]
  %v1612 = vld [vmem:[%s1 + $0x2d0] sm:$0xff]
  %v1613 = vld [vmem:[%s1 + $0x2d8] sm:$0xff]
  %v1614 = vld [vmem:[%s1 + $0x2e0] sm:$0xff]
  %v1615 = vld [vmem:[%s1 + $0x2e8] sm:$0xff]
  %v1616 = vld [vmem:[%s1 + $0x2f0] sm:$0xff]
  %v1617 = vld [vmem:[%s1 + $0x2f8] sm:$0xff]
  %v1618 = vld [vmem:[%s1 + $0x300] sm:$0xff]
  %v1619 = vld [vmem:[%s1 + $0x308] sm:$0xff]
  %v1620 = vld [vmem:[%s1 + $0x310] sm:$0xff]
  %v1621 = vld [vmem:[%s1 + $0x318] sm:$0xff]
  %v1622 = vld [vmem:[%s1 + $0x320] sm:$0xff]
  %v1623 = vld [vmem:[%s1 + $0x328] sm:$0xff]
  %v1624 = vld [vmem:[%s1 + $0x330] sm:$0xff]
  %v1625 = vld [vmem:[%s1 + $0x338] sm:$0xff]
  %v1626 = vld [vmem:[%s1 + $0x340] sm:$0xff]
  %v1627 = vld [vmem:[%s1 + $0x348] sm:$0xff]
  %v1628 = vld [vmem:[%s1 + $0x350] sm:$0xff]
  %v1629 = vld [vmem:[%s1 + $0x358] sm:$0xff]
  %v1630 = vld [vmem:[%s1 + $0x360] sm:$0xff]
  %v1631 = vld [vmem:[%s1 + $0x368] sm:$0xff]
  %v1632 = vld [vmem:[%s1 + $0x370] sm:$0xff]
  %v1633 = vld [vmem:[%s1 + $0x378] sm:$0xff]
  %v1634 = vld [vmem:[%s1 + $0x380] sm:$0xff]
  %v1635 = vld [vmem:[%s1 + $0x388] sm:$0xff]
  %v1636 = vld [vmem:[%s1 + $0x390] sm:$0xff]
  %v1637 = vld [vmem:[%s1 + $0x398] sm:$0xff]
  %v1638 = vld [vmem:[%s1 + $0x3a0] sm:$0xff]
  %v1639 = vld [vmem:[%s1 + $0x3a8] sm:$0xff]
  %v1640 = vld [vmem:[%s1 + $0x3b0] sm:$0xff]
  %v1641 = vld [vmem:[%s1 + $0x3b8] sm:$0xff]
  %v1642 = vld [vmem:[%s1 + $0x3c0] sm:$0xff]
  %v1643 = vld [vmem:[%s1 + $0x3c8] sm:$0xff]
  %v1644 = vld [vmem:[%s1 + $0x3d0] sm:$0xff]
  %v1645 = vld [vmem:[%s1 + $0x3d8] sm:$0xff]
  %v1646 = vld [vmem:[%s1 + $0x3e0] sm:$0xff]
  %v1647 = vld [vmem:[%s1 + $0x3e8] sm:$0xff]
  %v1648 = vld [vmem:[%s1 + $0x3f0] sm:$0xff]
  %v1649 = vld [vmem:[%s1 + $0x3f8] sm:$0xff]
  %v1650 = vld [vmem:[%s1 + $0x400] sm:$0xff]
  %v1651 = vld [vmem:[%s1 + $0x408] sm:$0xff]
  %v1652 = vld [vmem:[%s1 + $0x410] sm:$0xff]
  %v1653 = vld [vmem:[%s1 + $0x418] sm:$0xff]
  %v1654 = vld [vmem:[%s1 + $0x420] sm:$0xff]
  %v1655 = vld [vmem:[%s1 + $0x428] sm:$0xff]
  %v1656 = vld [vmem:[%s1 + $0x430] sm:$0xff]
  %v1657 = vld [vmem:[%s1 + $0x438] sm:$0xff]
  %v1658 = vld [vmem:[%s1 + $0x440] sm:$0xff]
  %v1659 = vld [vmem:[%s1 + $0x448] sm:$0xff]
  %v1660 = vld [vmem:[%s1 + $0x450] sm:$0xff]
  %v1661 = vld [vmem:[%s1 + $0x458] sm:$0xff]
  %v1662 = vld [vmem:[%s1 + $0x460] sm:$0xff]
  %v1663 = vld [vmem:[%s1 + $0x468] sm:$0xff]
  %v1664 = vld [vmem:[%s1 + $0x470] sm:$0xff]
  %v1665 = vld [vmem:[%s1 + $0x478] sm:$0xff]
  %v1666 = vld [vmem:[%s1 + $0x480] sm:$0xff]
  %v1667 = vld [vmem:[%s1 + $0x488] sm:$0xff]
  %v1668 = vld [vmem:[%s1 + $0x490] sm:$0xff]
  %v1669 = vld [vmem:[%s1 + $0x498] sm:$0xff]
  %v1670 = vld [vmem:[%s1 + $0x4a0] sm:$0xff]
  %v1671 = vld [vmem:[%s1 + $0x4a8] sm:$0xff]
  %v1672 = vld [vmem:[%s1 + $0x4b0] sm:$0xff]
  %v1673 = vld [vmem:[%s1 + $0x4b8] sm:$0xff]
  %v1674 = vld [vmem:[%s1 + $0x4c0] sm:$0xff]
  %v1675 = vld [vmem:[%s1 + $0x4c8] sm:$0xff]
  %v1676 = vld [vmem:[%s1 + $0x4d0] sm:$0xff]
  %v1677 = vld [vmem:[%s1 + $0x4d8] sm:$0xff]
  %v1678 = vld [vmem:[%s1 + $0x4e0] sm:$0xff]
  %v1679 = vld [vmem:[%s1 + $0x4e8] sm:$0xff]
  %v1680 = vld [vmem:[%s1 + $0x4f0] sm:$0xff]
  %v1681 = vld [vmem:[%s1 + $0x4f8] sm:$0xff]
  %v1682 = vld [vmem:[%s1 + $0x500] sm:$0xff]
  %v1683 = vld [vmem:[%s1 + $0x508] sm:$0xff]
  %v1684 = vld [vmem:[%s1 + $0x510] sm:$0xff]
  %v1685 = vld [vmem:[%s1 + $0x518] sm:$0xff]
  %v1686 = vld [vmem:[%s1 + $0x520] sm:$0xff]
  %v1687 = vld [vmem:[%s1 + $0x528] sm:$0xff]
  %v1688 = vld [vmem:[%s1 + $0x530] sm:$0xff]
  %v1689 = vld [vmem:[%s1 + $0x538] sm:$0xff]
  %v1690 = vld [vmem:[%s1 + $0x540] sm:$0xff]
  %v1691 = vld [vmem:[%s1 + $0x548] sm:$0xff]
  %v1692 = vld [vmem:[%s1 + $0x550] sm:$0xff]
  %v1693 = vld [vmem:[%s1 + $0x558] sm:$0xff]
  %v1694 = vld [vmem:[%s1 + $0x560] sm:$0xff]
  %v1695 = vld [vmem:[%s1 + $0x568] sm:$0xff]
  %v1696 = vld [vmem:[%s1 + $0x570] sm:$0xff]
  %v1697 = vld [vmem:[%s1 + $0x578] sm:$0xff]
  %v1698 = vld [vmem:[%s1 + $0x580] sm:$0xff]
  %v1699 = vld [vmem:[%s1 + $0x588] sm:$0xff]
  %v1700 = vld [vmem:[%s1 + $0x590] sm:$0xff]
  %v1701 = vld [vmem:[%s1 + $0x598] sm:$0xff]
  %v1702 = vld [vmem:[%s1 + $0x5a0] sm:$0xff]
  %v1703 = vld [vmem:[%s1 + $0x5a8] sm:$0xff]
  %v1704 = vld [vmem:[%s1 + $0x5b0] sm:$0xff]
  %v1705 = vld [vmem:[%s1 + $0x5b8] sm:$0xff]
  %v1706 = vld [vmem:[%s1 + $0x5c0] sm:$0xff]
  %v1707 = vld [vmem:[%s1 + $0x5c8] sm:$0xff]
  %v1708 = vld [vmem:[%s1 + $0x5d0] sm:$0xff]
  %v1709 = vld [vmem:[%s1 + $0x5d8] sm:$0xff]
  %v1710 = vld [vmem:[%s1 + $0x5e0] sm:$0xff]
  %v1711 = vld [vmem:[%s1 + $0x5e8] sm:$0xff]
  %v1712 = vld [vmem:[%s1 + $0x5f0] sm:$0xff]
  %v1713 = vld [vmem:[%s1 + $0x5f8] sm:$0xff]
  %v1714 = vld [vmem:[%s1 + $0x600] sm:$0xff]
  %v1715 = vld [vmem:[%s1 + $0x608] sm:$0xff]
  %v1716 = vld [vmem:[%s1 + $0x610] sm:$0xff]
  %v1717 = vld [vmem:[%s1 + $0x618] sm:$0xff]
  %v1718 = vld [vmem:[%s1 + $0x620] sm:$0xff]
  %v1719 = vld [vmem:[%s1 + $0x628] sm:$0xff]
  %v1720 = vld [vmem:[%s1 + $0x630] sm:$0xff]
  %v1721 = vld [vmem:[%s1 + $0x638] sm:$0xff]
  %v1722 = vld [vmem:[%s1 + $0x640] sm:$0xff]
  %v1723 = vld [vmem:[%s1 + $0x648] sm:$0xff]
  %v1724 = vld [vmem:[%s1 + $0x650] sm:$0xff]
  %v1725 = vld [vmem:[%s1 + $0x658] sm:$0xff]
  %v1726 = vld [vmem:[%s1 + $0x660] sm:$0xff]
  %v1727 = vld [vmem:[%s1 + $0x668] sm:$0xff]
  %v1728 = vld [vmem:[%s1 + $0x670] sm:$0xff]
  %v1729 = vld [vmem:[%s1 + $0x678] sm:$0xff]
  %v1730 = vld [vmem:[%s1 + $0x680] sm:$0xff]
  %v1731 = vld [vmem:[%s1 + $0x688] sm:$0xff]
  %v1732 = vld [vmem:[%s1 + $0x690] sm:$0xff]
  %v1733 = vld [vmem:[%s1 + $0x698] sm:$0xff]
  %v1734 = vld [vmem:[%s1 + $0x6a0] sm:$0xff]
  %v1735 = vld [vmem:[%s1 + $0x6a8] sm:$0xff]
  %v1736 = vld [vmem:[%s1 + $0x6b0] sm:$0xff]
  %v1737 = vld [vmem:[%s1 + $0x6b8] sm:$0xff]
  %v1738 = vld [vmem:[%s1 + $0x6c0] sm:$0xff]
  %v1739 = vld [vmem:[%s1 + $0x6c8] sm:$0xff]
  %v1740 = vld [vmem:[%s1 + $0x6d0] sm:$0xff]
  %v1741 = vld [vmem:[%s1 + $0x6d8] sm:$0xff]
  %v1742 = vld [vmem:[%s1 + $0x6e0] sm:$0xff]
  %v1743 = vld [vmem:[%s1 + $0x6e8] sm:$0xff]
  %v1744 = vld [vmem:[%s1 + $0x6f0] sm:$0xff]
  %v1745 = vld [vmem:[%s1 + $0x6f8] sm:$0xff]
  %v1746 = vld [vmem:[%s1 + $0x700] sm:$0xff]
  %v1747 = vld [vmem:[%s1 + $0x708] sm:$0xff]
  %v1748 = vld [vmem:[%s1 + $0x710] sm:$0xff]
  %v1749 = vld [vmem:[%s1 + $0x718] sm:$0xff]
  %v1750 = vld [vmem:[%s1 + $0x720] sm:$0xff]
  %v1751 = vld [vmem:[%s1 + $0x728] sm:$0xff]
  %v1752 = vld [vmem:[%s1 + $0x730] sm:$0xff]
  %v1753 = vld [vmem:[%s1 + $0x738] sm:$0xff]
  %v1754 = vld [vmem:[%s1 + $0x740] sm:$0xff]
  %v1755 = vld [vmem:[%s1 + $0x748] sm:$0xff]
  %v1756 = vld [vmem:[%s1 + $0x750] sm:$0xff]
  %v1757 = vld [vmem:[%s1 + $0x758] sm:$0xff]
  %v1758 = vld [vmem:[%s1 + $0x760] sm:$0xff]
  %v1759 = vld [vmem:[%s1 + $0x768] sm:$0xff]
  %v1760 = vld [vmem:[%s1 + $0x770] sm:$0xff]
  %v1761 = vld [vmem:[%s1 + $0x778] sm:$0xff]
  %v1762 = vld [vmem:[%s1 + $0x780] sm:$0xff]
  %v1763 = vld [vmem:[%s1 + $0x788] sm:$0xff]
  %v1764 = vld [vmem:[%s1 + $0x790] sm:$0xff]
  %v1765 = vld [vmem:[%s1 + $0x798] sm:$0xff]
  %v1766 = vld [vmem:[%s1 + $0x7a0] sm:$0xff]
  %v1767 = vld [vmem:[%s1 + $0x7a8] sm:$0xff]
  %v1768 = vld [vmem:[%s1 + $0x7b0] sm:$0xff]
  %v1769 = vld [vmem:[%s1 + $0x7b8] sm:$0xff]
  %v1770 = vld [vmem:[%s1 + $0x7c0] sm:$0xff]
  %v1771 = vld [vmem:[%s1 + $0x7c8] sm:$0xff]
  %v1772 = vld [vmem:[%s1 + $0x7d0] sm:$0xff]
  %v1773 = vld [vmem:[%s1 + $0x7d8] sm:$0xff]
  %v1774 = vld [vmem:[%s1 + $0x7e0] sm:$0xff]
  %v1775 = vld [vmem:[%s1 + $0x7e8] sm:$0xff]
  %v1776 = vld [vmem:[%s1 + $0x7f0] sm:$0xff]
  %v1777 = vld [vmem:[%s1 + $0x7f8] sm:$0xff]
  %v1778 = vld [vmem:[%s1 + $0x800] sm:$0xff]
  %v1779 = vld [vmem:[%s1 + $0x808] sm:$0xff]
  %v1780 = vld [vmem:[%s1 + $0x810] sm:$0xff]
  %v1781 = vld [vmem:[%s1 + $0x818] sm:$0xff]
  %v1782 = vld [vmem:[%s1 + $0x820] sm:$0xff]
  %v1783 = vld [vmem:[%s1 + $0x828] sm:$0xff]
  %v1784 = vld [vmem:[%s1 + $0x830] sm:$0xff]
  %v1785 = vld [vmem:[%s1 + $0x838] sm:$0xff]
  %v1786 = vld [vmem:[%s1 + $0x840] sm:$0xff]
  %v1787 = vld [vmem:[%s1 + $0x848] sm:$0xff]
  %v1788 = vld [vmem:[%s1 + $0x850] sm:$0xff]
  %v1789 = vld [vmem:[%s1 + $0x858] sm:$0xff]
  %v1790 = vld [vmem:[%s1 + $0x860] sm:$0xff]
  %v1791 = vld [vmem:[%s1 + $0x868] sm:$0xff]
  %v1792 = vld [vmem:[%s1 + $0x870] sm:$0xff]
  %v1793 = vld [vmem:[%s1 + $0x878] sm:$0xff]
  %v1794 = vld [vmem:[%s1 + $0x880] sm:$0xff]
  %v1795 = vld [vmem:[%s1 + $0x888] sm:$0xff]
  %v1796 = vld [vmem:[%s1 + $0x890] sm:$0xff]
  %v1797 = vld [vmem:[%s1 + $0x898] sm:$0xff]
  %v1798 = vld [vmem:[%s1 + $0x8a0] sm:$0xff]
  %v1799 = vld [vmem:[%s1 + $0x8a8] sm:$0xff]
  %v1800 = vld [vmem:[%s1 + $0x8b0] sm:$0xff]
  %v1801 = vld [vmem:[%s1 + $0x8b8] sm:$0xff]
  %v1802 = vld [vmem:[%s1 + $0x8c0] sm:$0xff]
  %v1803 = vld [vmem:[%s1 + $0x8c8] sm:$0xff]
  %v1804 = vld [vmem:[%s1 + $0x8d0] sm:$0xff]
  %v1805 = vld [vmem:[%s1 + $0x8d8] sm:$0xff]
  %v1806 = vld [vmem:[%s1 + $0x8e0] sm:$0xff]
  %v1807 = vld [vmem:[%s1 + $0x8e8] sm:$0xff]
  %v1808 = vld [vmem:[%s1 + $0x8f0] sm:$0xff]
  %v1809 = vld [vmem:[%s1 + $0x8f8] sm:$0xff]
  %v1810 = vld [vmem:[%s2] sm:$0x3]
  %v1812 = vlaneseq
  %v1813 = vshrl.u32 %v1812, 7
  %v1814 = vsub.s32 0, %v1813
  %v1815 = vrot.slane %v1810, %v1814
  %v1816 = vlaneseq
  %v1817 = vshrl.u32 %v1816, 7
  %v1818 = vsub.s32 1, %v1817
  %v1819 = vrot.slane %v1810, %v1818
  %v1825 = vcombine.high %v1519, %v1519
  %v1827 = vunpack.c.l.s4 1983009808
  %v1828 = vunpack.c.0.s8 %v1827
  %v1829 = vlaneseq
  %v1830 = vshrl.u32 %v1829, 7
  %v1831 = vsub.s32 %v1828, %v1830
  %v1832 = vrot.slane %v1519, %v1831
  %v1834 = vunpack.c.l.s4 1983009808
  %v1835 = vunpack.c.0.s8 %v1834
  %v1836 = vlaneseq
  %v1837 = vshrl.u32 %v1836, 7
  %v1838 = vsub.s32 %v1835, %v1837
  %v1839 = vrot.slane %v1825, %v1838
  %v1840 = vcombine.high %v1832, %v1832
  %v1841 = vcombine.high %v1839, %v1839
  %v1842 = vcombine.high %v1520, %v1520
  %v1844 = vunpack.c.l.s4 1983009808
  %v1845 = vunpack.c.0.s8 %v1844
  %v1846 = vlaneseq
  %v1847 = vshrl.u32 %v1846, 7
  %v1848 = vsub.s32 %v1845, %v1847
  %v1849 = vrot.slane %v1520, %v1848
  %v1851 = vunpack.c.l.s4 1983009808
  %v1852 = vunpack.c.0.s8 %v1851
  %v1853 = vlaneseq
  %v1854 = vshrl.u32 %v1853, 7
  %v1855 = vsub.s32 %v1852, %v1854
  %v1856 = vrot.slane %v1842, %v1855
  %v1857 = vcombine.high %v1849, %v1849
  %v1858 = vcombine.high %v1856, %v1856
  %v1860 = vunpack.c.l.s4 1983009808
  %v1861 = vunpack.c.0.s8 %v1860
  %v1862 = vlaneseq
  %v1863 = vshrl.u32 %v1862, 7
  %v1864 = vsub.s32 %v1861, %v1863
  %v1865 = vrot.slane %v1521, %v1864
  %1875 = vmatprep.subr.mxu0 %v1523
  %1876 = vmatpush1.msra.mxu0 %v1522
  %1877 = vmatprep.subr.mxu0 %v1525
  %1878 = vmatpush1.msra.mxu0 %v1524
  %1879 = vmatprep.subr.mxu0 %v1527
  %1880 = vmatpush1.msra.mxu0 %v1526
  %1881 = vmatprep.subr.mxu0 %v1529
  %1882 = vmatpush1.msra.mxu0 %v1528
  %1883 = vmatprep.subr.mxu0 %v1531
  %1884 = vmatpush1.msra.mxu0 %v1530
  %1885 = vmatprep.subr.mxu0 %v1533
  %1886 = vmatpush1.msra.mxu0 %v1532
  %1887 = vmatprep.subr.mxu0 %v1535
  %1888 = vmatpush1.msra.mxu0 %v1534
  %1889 = vmatprep.subr.mxu0 %v1537
  %1890 = vmatpush1.msra.mxu0 %v1536
  %1891 = vmatprep.subr.mxu0 %v1539
  %1892 = vmatpush1.msra.mxu0 %v1538
  %1893 = vmatprep.subr.mxu0 %v1541
  %1894 = vmatpush1.msra.mxu0 %v1540
  %1895 = vmatprep.subr.mxu0 %v1543
  %1896 = vmatpush1.msra.mxu0 %v1542
  %1897 = vmatprep.subr.mxu0 %v1545
  %1898 = vmatpush1.msra.mxu0 %v1544
  %1899 = vmatprep.subr.mxu0 %v1547
  %1900 = vmatpush1.msra.mxu0 %v1546
  %1901 = vmatprep.subr.mxu0 %v1549
  %1902 = vmatpush1.msra.mxu0 %v1548
  %1903 = vmatprep.subr.mxu0 %v1551
  %1904 = vmatpush1.msra.mxu0 %v1550
  %1905 = vmatprep.subr.mxu0 %v1553
  %1906 = vmatpush1.msra.mxu0 %v1552
  %1907 = vmatprep.subr.mxu0 %v1555
  %1908 = vmatpush1.msra.mxu0 %v1554
  %1909 = vmatprep.subr.mxu0 %v1557
  %1910 = vmatpush1.msra.mxu0 %v1556
  %1911 = vmatprep.subr.mxu0 %v1559
  %1912 = vmatpush1.msra.mxu0 %v1558
  %1913 = vmatprep.subr.mxu0 %v1561
  %1914 = vmatpush1.msra.mxu0 %v1560
  %1915 = vmatprep.subr.mxu0 %v1563
  %1916 = vmatpush1.msra.mxu0 %v1562
  %1917 = vmatprep.subr.mxu0 %v1565
  %1918 = vmatpush1.msra.mxu0 %v1564
  %1919 = vmatprep.subr.mxu0 %v1567
  %1920 = vmatpush1.msra.mxu0 %v1566
  %1921 = vmatprep.subr.mxu0 %v1569
  %1922 = vmatpush1.msra.mxu0 %v1568
  %1923 = vmatprep.subr.mxu0 %v1571
  %1924 = vmatpush1.msra.mxu0 %v1570
  %1925 = vmatprep.subr.mxu0 %v1573
  %1926 = vmatpush1.msra.mxu0 %v1572
  %1927 = vmatprep.subr.mxu0 %v1575
  %1928 = vmatpush1.msra.mxu0 %v1574
  %1929 = vmatprep.subr.mxu0 %v1577
  %1930 = vmatpush1.msra.mxu0 %v1576
  %1931 = vmatprep.subr.mxu0 %v1579
  %1932 = vmatpush1.msra.mxu0 %v1578
  %1933 = vmatprep.subr.mxu0 %v1581
  %1934 = vmatpush1.msra.mxu0 %v1580
  %1935 = vmatprep.subr.mxu0 %v1583
  %1936 = vmatpush1.msra.mxu0 %v1582
  %1937 = vmatprep.subr.mxu0 %v1585
  %1938 = vmatpush1.msra.mxu0 %v1584
  %1939 = vmatprep.mubr.f32.mxu0 %v1840
  %1940 = vmatmul.mubr.f32.gmra.mrb[0].mxu0 %v1832
  %v1941 = vpop.f32.mrb[0].mxu0
  %v1942 = vadd.f32 %v1815, %v1941
  %v1943 = vpop.f32.mrb[0].mxu0
  %v1944 = vadd.f32 %v1819, %v1943
  %1945 = vdwg.mxu0
  %1946 = vmatprep.subr.mxu0 %v1587
  %1947 = vmatpush1.msra.mxu0 %v1586
  %1948 = vmatprep.subr.mxu0 %v1589
  %1949 = vmatpush1.msra.mxu0 %v1588
  %1950 = vmatprep.subr.mxu0 %v1591
  %1951 = vmatpush1.msra.mxu0 %v1590
  %1952 = vmatprep.subr.mxu0 %v1593
  %1953 = vmatpush1.msra.mxu0 %v1592
  %1954 = vmatprep.subr.mxu0 %v1595
  %1955 = vmatpush1.msra.mxu0 %v1594
  %1956 = vmatprep.subr.mxu0 %v1597
  %1957 = vmatpush1.msra.mxu0 %v1596
  %1958 = vmatprep.subr.mxu0 %v1599
  %1959 = vmatpush1.msra.mxu0 %v1598
  %1960 = vmatprep.subr.mxu0 %v1601
  %1961 = vmatpush1.msra.mxu0 %v1600
  %1962 = vmatprep.subr.mxu0 %v1603
  %1963 = vmatpush1.msra.mxu0 %v1602
  %1964 = vmatprep.subr.mxu0 %v1605
  %1965 = vmatpush1.msra.mxu0 %v1604
  %1966 = vmatprep.subr.mxu0 %v1607
  %1967 = vmatpush1.msra.mxu0 %v1606
  %1968 = vmatprep.subr.mxu0 %v1609
  %1969 = vmatpush1.msra.mxu0 %v1608
  %1970 = vmatprep.subr.mxu0 %v1611
  %1971 = vmatpush1.msra.mxu0 %v1610
  %1972 = vmatprep.subr.mxu0 %v1613
  %1973 = vmatpush1.msra.mxu0 %v1612
  %1974 = vmatprep.subr.mxu0 %v1615
  %1975 = vmatpush1.msra.mxu0 %v1614
  %1976 = vmatprep.subr.mxu0 %v1617
  %1977 = vmatpush1.msra.mxu0 %v1616
  %1978 = vmatprep.subr.mxu0 %v1619
  %1979 = vmatpush1.msra.mxu0 %v1618
  %1980 = vmatprep.subr.mxu0 %v1621
  %1981 = vmatpush1.msra.mxu0 %v1620
  %1982 = vmatprep.subr.mxu0 %v1623
  %1983 = vmatpush1.msra.mxu0 %v1622
  %1984 = vmatprep.subr.mxu0 %v1625
  %1985 = vmatpush1.msra.mxu0 %v1624
  %1986 = vmatprep.subr.mxu0 %v1627
  %1987 = vmatpush1.msra.mxu0 %v1626
  %1988 = vmatprep.subr.mxu0 %v1629
  %1989 = vmatpush1.msra.mxu0 %v1628
  %1990 = vmatprep.subr.mxu0 %v1631
  %1991 = vmatpush1.msra.mxu0 %v1630
  %1992 = vmatprep.subr.mxu0 %v1633
  %1993 = vmatpush1.msra.mxu0 %v1632
  %1994 = vmatprep.subr.mxu0 %v1635
  %1995 = vmatpush1.msra.mxu0 %v1634
  %1996 = vmatprep.subr.mxu0 %v1637
  %1997 = vmatpush1.msra.mxu0 %v1636
  %1998 = vmatprep.subr.mxu0 %v1639
  %1999 = vmatpush1.msra.mxu0 %v1638
  %2000 = vmatprep.subr.mxu0 %v1641
  %2001 = vmatpush1.msra.mxu0 %v1640
  %2002 = vmatprep.subr.mxu0 %v1643
  %2003 = vmatpush1.msra.mxu0 %v1642
  %2004 = vmatprep.subr.mxu0 %v1645
  %2005 = vmatpush1.msra.mxu0 %v1644
  %2006 = vmatprep.subr.mxu0 %v1647
  %2007 = vmatpush1.msra.mxu0 %v1646
  %2008 = vmatprep.subr.mxu0 %v1649
  %2009 = vmatpush1.msra.mxu0 %v1648
  %2010 = vmatprep.mubr.f32.mxu0 %v1841
  %2011 = vmatmul.mubr.f32.gmra.mrb[0].mxu0 %v1839
  %v2012 = vpop.f32.mrb[0].mxu0
  %v2013 = vadd.f32 %v1942, %v2012
  %v2014 = vpop.f32.mrb[0].mxu0
  %v2015 = vadd.f32 %v1944, %v2014
  %2016 = vdwg.mxu0
  %2017 = vmatprep.subr.mxu0 %v1651
  %2018 = vmatpush1.msra.mxu0 %v1650
  %2019 = vmatprep.subr.mxu0 %v1653
  %2020 = vmatpush1.msra.mxu0 %v1652
  %2021 = vmatprep.subr.mxu0 %v1655
  %2022 = vmatpush1.msra.mxu0 %v1654
  %2023 = vmatprep.subr.mxu0 %v1657
  %2024 = vmatpush1.msra.mxu0 %v1656
  %2025 = vmatprep.subr.mxu0 %v1659
  %2026 = vmatpush1.msra.mxu0 %v1658
  %2027 = vmatprep.subr.mxu0 %v1661
  %2028 = vmatpush1.msra.mxu0 %v1660
  %2029 = vmatprep.subr.mxu0 %v1663
  %2030 = vmatpush1.msra.mxu0 %v1662
  %2031 = vmatprep.subr.mxu0 %v1665
  %2032 = vmatpush1.msra.mxu0 %v1664
  %2033 = vmatprep.subr.mxu0 %v1667
  %2034 = vmatpush1.msra.mxu0 %v1666
  %2035 = vmatprep.subr.mxu0 %v1669
  %2036 = vmatpush1.msra.mxu0 %v1668
  %2037 = vmatprep.subr.mxu0 %v1671
  %2038 = vmatpush1.msra.mxu0 %v1670
  %2039 = vmatprep.subr.mxu0 %v1673
  %2040 = vmatpush1.msra.mxu0 %v1672
  %2041 = vmatprep.subr.mxu0 %v1675
  %2042 = vmatpush1.msra.mxu0 %v1674
  %2043 = vmatprep.subr.mxu0 %v1677
  %2044 = vmatpush1.msra.mxu0 %v1676
  %2045 = vmatprep.subr.mxu0 %v1679
  %2046 = vmatpush1.msra.mxu0 %v1678
  %2047 = vmatprep.subr.mxu0 %v1681
  %2048 = vmatpush1.msra.mxu0 %v1680
  %2049 = vmatprep.subr.mxu0 %v1683
  %2050 = vmatpush1.msra.mxu0 %v1682
  %2051 = vmatprep.subr.mxu0 %v1685
  %2052 = vmatpush1.msra.mxu0 %v1684
  %2053 = vmatprep.subr.mxu0 %v1687
  %2054 = vmatpush1.msra.mxu0 %v1686
  %2055 = vmatprep.subr.mxu0 %v1689
  %2056 = vmatpush1.msra.mxu0 %v1688
  %2057 = vmatprep.subr.mxu0 %v1691
  %2058 = vmatpush1.msra.mxu0 %v1690
  %2059 = vmatprep.subr.mxu0 %v1693
  %2060 = vmatpush1.msra.mxu0 %v1692
  %2061 = vmatprep.subr.mxu0 %v1695
  %2062 = vmatpush1.msra.mxu0 %v1694
  %2063 = vmatprep.subr.mxu0 %v1697
  %2064 = vmatpush1.msra.mxu0 %v1696
  %2065 = vmatprep.subr.mxu0 %v1699
  %2066 = vmatpush1.msra.mxu0 %v1698
  %2067 = vmatprep.subr.mxu0 %v1701
  %2068 = vmatpush1.msra.mxu0 %v1700
  %2069 = vmatprep.subr.mxu0 %v1703
  %2070 = vmatpush1.msra.mxu0 %v1702
  %2071 = vmatprep.subr.mxu0 %v1705
  %2072 = vmatpush1.msra.mxu0 %v1704
  %2073 = vmatprep.subr.mxu0 %v1707
  %2074 = vmatpush1.msra.mxu0 %v1706
  %2075 = vmatprep.subr.mxu0 %v1709
  %2076 = vmatpush1.msra.mxu0 %v1708
  %2077 = vmatprep.subr.mxu0 %v1711
  %2078 = vmatpush1.msra.mxu0 %v1710
  %2079 = vmatprep.subr.mxu0 %v1713
  %2080 = vmatpush1.msra.mxu0 %v1712
  %2081 = vmatprep.mubr.f32.mxu0 %v1857
  %2082 = vmatmul.mubr.f32.gmra.mrb[0].mxu0 %v1849
  %v2083 = vpop.f32.mrb[0].mxu0
  %v2084 = vadd.f32 %v2013, %v2083
  %v2085 = vpop.f32.mrb[0].mxu0
  %v2086 = vadd.f32 %v2015, %v2085
  %2087 = vdwg.mxu0
  %2088 = vmatprep.subr.mxu0 %v1715
  %2089 = vmatpush1.msra.mxu0 %v1714
  %2090 = vmatprep.subr.mxu0 %v1717
  %2091 = vmatpush1.msra.mxu0 %v1716
  %2092 = vmatprep.subr.mxu0 %v1719
  %2093 = vmatpush1.msra.mxu0 %v1718
  %2094 = vmatprep.subr.mxu0 %v1721
  %2095 = vmatpush1.msra.mxu0 %v1720
  %2096 = vmatprep.subr.mxu0 %v1723
  %2097 = vmatpush1.msra.mxu0 %v1722
  %2098 = vmatprep.subr.mxu0 %v1725
  %2099 = vmatpush1.msra.mxu0 %v1724
  %2100 = vmatprep.subr.mxu0 %v1727
  %2101 = vmatpush1.msra.mxu0 %v1726
  %2102 = vmatprep.subr.mxu0 %v1729
  %2103 = vmatpush1.msra.mxu0 %v1728
  %2104 = vmatprep.subr.mxu0 %v1731
  %2105 = vmatpush1.msra.mxu0 %v1730
  %2106 = vmatprep.subr.mxu0 %v1733
  %2107 = vmatpush1.msra.mxu0 %v1732
  %2108 = vmatprep.subr.mxu0 %v1735
  %2109 = vmatpush1.msra.mxu0 %v1734
  %2110 = vmatprep.subr.mxu0 %v1737
  %2111 = vmatpush1.msra.mxu0 %v1736
  %2112 = vmatprep.subr.mxu0 %v1739
  %2113 = vmatpush1.msra.mxu0 %v1738
  %2114 = vmatprep.subr.mxu0 %v1741
  %2115 = vmatpush1.msra.mxu0 %v1740
  %2116 = vmatprep.subr.mxu0 %v1743
  %2117 = vmatpush1.msra.mxu0 %v1742
  %2118 = vmatprep.subr.mxu0 %v1745
  %2119 = vmatpush1.msra.mxu0 %v1744
  %2120 = vmatprep.subr.mxu0 %v1747
  %2121 = vmatpush1.msra.mxu0 %v1746
  %2122 = vmatprep.subr.mxu0 %v1749
  %2123 = vmatpush1.msra.mxu0 %v1748
  %2124 = vmatprep.subr.mxu0 %v1751
  %2125 = vmatpush1.msra.mxu0 %v1750
  %2126 = vmatprep.subr.mxu0 %v1753
  %2127 = vmatpush1.msra.mxu0 %v1752
  %2128 = vmatprep.subr.mxu0 %v1755
  %2129 = vmatpush1.msra.mxu0 %v1754
  %2130 = vmatprep.subr.mxu0 %v1757
  %2131 = vmatpush1.msra.mxu0 %v1756
  %2132 = vmatprep.subr.mxu0 %v1759
  %2133 = vmatpush1.msra.mxu0 %v1758
  %2134 = vmatprep.subr.mxu0 %v1761
  %2135 = vmatpush1.msra.mxu0 %v1760
  %2136 = vmatprep.subr.mxu0 %v1763
  %2137 = vmatpush1.msra.mxu0 %v1762
  %2138 = vmatprep.subr.mxu0 %v1765
  %2139 = vmatpush1.msra.mxu0 %v1764
  %2140 = vmatprep.subr.mxu0 %v1767
  %2141 = vmatpush1.msra.mxu0 %v1766
  %2142 = vmatprep.subr.mxu0 %v1769
  %2143 = vmatpush1.msra.mxu0 %v1768
  %2144 = vmatprep.subr.mxu0 %v1771
  %2145 = vmatpush1.msra.mxu0 %v1770
  %2146 = vmatprep.subr.mxu0 %v1773
  %2147 = vmatpush1.msra.mxu0 %v1772
  %2148 = vmatprep.subr.mxu0 %v1775
  %2149 = vmatpush1.msra.mxu0 %v1774
  %2150 = vmatprep.subr.mxu0 %v1777
  %2151 = vmatpush1.msra.mxu0 %v1776
  %2152 = vmatprep.mubr.f32.mxu0 %v1858
  %2153 = vmatmul.mubr.f32.gmra.mrb[0].mxu0 %v1856
  %v2154 = vpop.f32.mrb[0].mxu0
  %v2155 = vadd.f32 %v2084, %v2154
  %v2156 = vpop.f32.mrb[0].mxu0
  %v2157 = vadd.f32 %v2086, %v2156
  %2158 = vdwg.mxu0
  %2159 = vmatprep.subr.mxu0 %v1779
  %2160 = vmatpush1.msra.mxu0 %v1778
  %2161 = vmatprep.subr.mxu0 %v1781
  %2162 = vmatpush1.msra.mxu0 %v1780
  %2163 = vmatprep.subr.mxu0 %v1783
  %2164 = vmatpush1.msra.mxu0 %v1782
  %2165 = vmatprep.subr.mxu0 %v1785
  %2166 = vmatpush1.msra.mxu0 %v1784
  %2167 = vmatprep.subr.mxu0 %v1787
  %2168 = vmatpush1.msra.mxu0 %v1786
  %2169 = vmatprep.subr.mxu0 %v1789
  %2170 = vmatpush1.msra.mxu0 %v1788
  %2171 = vmatprep.subr.mxu0 %v1791
  %2172 = vmatpush1.msra.mxu0 %v1790
  %2173 = vmatprep.subr.mxu0 %v1793
  %2174 = vmatpush1.msra.mxu0 %v1792
  %2175 = vmatprep.subr.mxu0 %v1795
  %2176 = vmatpush1.msra.mxu0 %v1794
  %2177 = vmatprep.subr.mxu0 %v1797
  %2178 = vmatpush1.msra.mxu0 %v1796
  %2179 = vmatprep.subr.mxu0 %v1799
  %2180 = vmatpush1.msra.mxu0 %v1798
  %2181 = vmatprep.subr.mxu0 %v1801
  %2182 = vmatpush1.msra.mxu0 %v1800
  %2183 = vmatprep.subr.mxu0 %v1803
  %2184 = vmatpush1.msra.mxu0 %v1802
  %2185 = vmatprep.subr.mxu0 %v1805
  %2186 = vmatpush1.msra.mxu0 %v1804
  %2187 = vmatprep.subr.mxu0 %v1807
  %2188 = vmatpush1.msra.mxu0 %v1806
  %2189 = vmatprep.subr.mxu0 %v1809
  %2190 = vmatpush1.msra.mxu0 %v1808
  %2191 = vmatprep.subr.mxu0 0.0
  %2192 = vmatpush1.msra.mxu0 0.0
  %2193 = vmatprep.subr.mxu0 0.0
  %2194 = vmatpush1.msra.mxu0 0.0
  %2195 = vmatprep.subr.mxu0 0.0
  %2196 = vmatpush1.msra.mxu0 0.0
  %2197 = vmatprep.subr.mxu0 0.0
  %2198 = vmatpush1.msra.mxu0 0.0
  %2199 = vmatprep.subr.mxu0 0.0
  %2200 = vmatpush1.msra.mxu0 0.0
  %2201 = vmatprep.subr.mxu0 0.0
  %2202 = vmatpush1.msra.mxu0 0.0
  %2203 = vmatprep.subr.mxu0 0.0
  %2204 = vmatpush1.msra.mxu0 0.0
  %2205 = vmatprep.subr.mxu0 0.0
  %2206 = vmatpush1.msra.mxu0 0.0
  %2207 = vmatprep.subr.mxu0 0.0
  %2208 = vmatpush1.msra.mxu0 0.0
  %2209 = vmatprep.subr.mxu0 0.0
  %2210 = vmatpush1.msra.mxu0 0.0
  %2211 = vmatprep.subr.mxu0 0.0
  %2212 = vmatpush1.msra.mxu0 0.0
  %2213 = vmatprep.subr.mxu0 0.0
  %2214 = vmatpush1.msra.mxu0 0.0
  %2215 = vmatprep.subr.mxu0 0.0
  %2216 = vmatpush1.msra.mxu0 0.0
  %2217 = vmatprep.subr.mxu0 0.0
  %2218 = vmatpush1.msra.mxu0 0.0
  %2219 = vmatprep.subr.mxu0 0.0
  %2220 = vmatpush1.msra.mxu0 0.0
  %2221 = vmatprep.subr.mxu0 0.0
  %2222 = vmatpush1.msra.mxu0 0.0
  %2223 = vmatprep.mubr.f32.mxu0 0.0
  %2224 = vmatmul.mubr.f32.gmra.mrb[0].mxu0 %v1865
  %v2225 = vpop.f32.mrb[0].mxu0
  %v2226 = vadd.f32 %v2155, %v2225
  %v2227 = vpop.f32.mrb[0].mxu0
  %v2228 = vadd.f32 %v2157, %v2227
  %2229 = vdwg.mxu0
  %v2230 = vmax.f32 %v2226, 0.0
  %v2231 = vmax.f32 %v2228, 0.0
  %v2234 = vcombine.low %v2230, %v2231
  %v2236 = vunpack.c.l.s4 1983009808
  %v2237 = vunpack.c.0.s8 %v2236
  %v2238 = vlaneseq
  %v2239 = vshrl.u32 %v2238, 7
  %v2240 = vsub.s32 %v2237, %v2239
  %v2241 = vrot.slane %v2234, %v2240
  %2243 = vst [vmem:[#allocation2 + $0x8] sm:$0xf] %v2241
  %v2244 = vld [vmem:[%s0 + $0x1a] sm:$0xff]
  %v2245 = vld [vmem:[%s0 + $0x22] sm:$0xff]
  %v2246 = vld [vmem:[%s0 + $0x2a] sm:$0xf]
  %v2247 = vld [vmem:[%s1] sm:$0xff]
  %v2248 = vld [vmem:[%s1 + $0x8] sm:$0xff]
  %v2249 = vld [vmem:[%s1 + $0x10] sm:$0xff]
  %v2250 = vld [vmem:[%s1 + $0x18] sm:$0xff]
  %v2251 = vld [vmem:[%s1 + $0x20] sm:$0xff]
  %v2252 = vld [vmem:[%s1 + $0x28] sm:$0xff]
  %v2253 = vld [vmem:[%s1 + $0x30] sm:$0xff]
  %v2254 = vld [vmem:[%s1 + $0x38] sm:$0xff]
  %v2255 = vld [vmem:[%s1 + $0x40] sm:$0xff]
  %v2256 = vld [vmem:[%s1 + $0x48] sm:$0xff]
  %v2257 = vld [vmem:[%s1 + $0x50] sm:$0xff]
  %v2258 = vld [vmem:[%s1 + $0x58] sm:$0xff]
  %v2259 = vld [vmem:[%s1 + $0x60] sm:$0xff]
  %v2260 = vld [vmem:[%s1 + $0x68] sm:$0xff]
  %v2261 = vld [vmem:[%s1 + $0x70] sm:$0xff]
  %v2262 = vld [vmem:[%s1 + $0x78] sm:$0xff]
  %v2263 = vld [vmem:[%s1 + $0x80] sm:$0xff]
  %v2264 = vld [vmem:[%s1 + $0x88] sm:$0xff]
  %v2265 = vld [vmem:[%s1 + $0x90] sm:$0xff]
  %v2266 = vld [vmem:[%s1 + $0x98] sm:$0xff]
  %v2267 = vld [vmem:[%s1 + $0xa0] sm:$0xff]
  %v2268 = vld [vmem:[%s1 + $0xa8] sm:$0xff]
  %v2269 = vld [vmem:[%s1 + $0xb0] sm:$0xff]
  %v2270 = vld [vmem:[%s1 + $0xb8] sm:$0xff]
  %v2271 = vld [vmem:[%s1 + $0xc0] sm:$0xff]
  %v2272 = vld [vmem:[%s1 + $0xc8] sm:$0xff]
  %v2273 = vld [vmem:[%s1 + $0xd0] sm:$0xff]
  %v2274 = vld [vmem:[%s1 + $0xd8] sm:$0xff]
  %v2275 = vld [vmem:[%s1 + $0xe0] sm:$0xff]
  %v2276 = vld [vmem:[%s1 + $0xe8] sm:$0xff]
  %v2277 = vld [vmem:[%s1 + $0xf0] sm:$0xff]
  %v2278 = vld [vmem:[%s1 + $0xf8] sm:$0xff]
  %v2279 = vld [vmem:[%s1 + $0x100] sm:$0xff]
  %v2280 = vld [vmem:[%s1 + $0x108] sm:$0xff]
  %v2281 = vld [vmem:[%s1 + $0x110] sm:$0xff]
  %v2282 = vld [vmem:[%s1 + $0x118] sm:$0xff]
  %v2283 = vld [vmem:[%s1 + $0x120] sm:$0xff]
  %v2284 = vld [vmem:[%s1 + $0x128] sm:$0xff]
  %v2285 = vld [vmem:[%s1 + $0x130] sm:$0xff]
  %v2286 = vld [vmem:[%s1 + $0x138] sm:$0xff]
  %v2287 = vld [vmem:[%s1 + $0x140] sm:$0xff]
  %v2288 = vld [vmem:[%s1 + $0x148] sm:$0xff]
  %v2289 = vld [vmem:[%s1 + $0x150] sm:$0xff]
  %v2290 = vld [vmem:[%s1 + $0x158] sm:$0xff]
  %v2291 = vld [vmem:[%s1 + $0x160] sm:$0xff]
  %v2292 = vld [vmem:[%s1 + $0x168] sm:$0xff]
  %v2293 = vld [vmem:[%s1 + $0x170] sm:$0xff]
  %v2294 = vld [vmem:[%s1 + $0x178] sm:$0xff]
  %v2295 = vld [vmem:[%s1 + $0x180] sm:$0xff]
  %v2296 = vld [vmem:[%s1 + $0x188] sm:$0xff]
  %v2297 = vld [vmem:[%s1 + $0x190] sm:$0xff]
  %v2298 = vld [vmem:[%s1 + $0x198] sm:$0xff]
  %v2299 = vld [vmem:[%s1 + $0x1a0] sm:$0xff]
  %v2300 = vld [vmem:[%s1 + $0x1a8] sm:$0xff]
  %v2301 = vld [vmem:[%s1 + $0x1b0] sm:$0xff]
  %v2302 = vld [vmem:[%s1 + $0x1b8] sm:$0xff]
  %v2303 = vld [vmem:[%s1 + $0x1c0] sm:$0xff]
  %v2304 = vld [vmem:[%s1 + $0x1c8] sm:$0xff]
  %v2305 = vld [vmem:[%s1 + $0x1d0] sm:$0xff]
  %v2306 = vld [vmem:[%s1 + $0x1d8] sm:$0xff]
  %v2307 = vld [vmem:[%s1 + $0x1e0] sm:$0xff]
  %v2308 = vld [vmem:[%s1 + $0x1e8] sm:$0xff]
  %v2309 = vld [vmem:[%s1 + $0x1f0] sm:$0xff]
  %v2310 = vld [vmem:[%s1 + $0x1f8] sm:$0xff]
  %v2311 = vld [vmem:[%s1 + $0x200] sm:$0xff]
  %v2312 = vld [vmem:[%s1 + $0x208] sm:$0xff]
  %v2313 = vld [vmem:[%s1 + $0x210] sm:$0xff]
  %v2314 = vld [vmem:[%s1 + $0x218] sm:$0xff]
  %v2315 = vld [vmem:[%s1 + $0x220] sm:$0xff]
  %v2316 = vld [vmem:[%s1 + $0x228] sm:$0xff]
  %v2317 = vld [vmem:[%s1 + $0x230] sm:$0xff]
  %v2318 = vld [vmem:[%s1 + $0x238] sm:$0xff]
  %v2319 = vld [vmem:[%s1 + $0x240] sm:$0xff]
  %v2320 = vld [vmem:[%s1 + $0x248] sm:$0xff]
  %v2321 = vld [vmem:[%s1 + $0x250] sm:$0xff]
  %v2322 = vld [vmem:[%s1 + $0x258] sm:$0xff]
  %v2323 = vld [vmem:[%s1 + $0x260] sm:$0xff]
  %v2324 = vld [vmem:[%s1 + $0x268] sm:$0xff]
  %v2325 = vld [vmem:[%s1 + $0x270] sm:$0xff]
  %v2326 = vld [vmem:[%s1 + $0x278] sm:$0xff]
  %v2327 = vld [vmem:[%s1 + $0x280] sm:$0xff]
  %v2328 = vld [vmem:[%s1 + $0x288] sm:$0xff]
  %v2329 = vld [vmem:[%s1 + $0x290] sm:$0xff]
  %v2330 = vld [vmem:[%s1 + $0x298] sm:$0xff]
  %v2331 = vld [vmem:[%s1 + $0x2a0] sm:$0xff]
  %v2332 = vld [vmem:[%s1 + $0x2a8] sm:$0xff]
  %v2333 = vld [vmem:[%s1 + $0x2b0] sm:$0xff]
  %v2334 = vld [vmem:[%s1 + $0x2b8] sm:$0xff]
  %v2335 = vld [vmem:[%s1 + $0x2c0] sm:$0xff]
  %v2336 = vld [vmem:[%s1 + $0x2c8] sm:$0xff]
  %v2337 = vld [vmem:[%s1 + $0x2d0] sm:$0xff]
  %v2338 = vld [vmem:[%s1 + $0x2d8] sm:$0xff]
  %v2339 = vld [vmem:[%s1 + $0x2e0] sm:$0xff]
  %v2340 = vld [vmem:[%s1 + $0x2e8] sm:$0xff]
  %v2341 = vld [vmem:[%s1 + $0x2f0] sm:$0xff]
  %v2342 = vld [vmem:[%s1 + $0x2f8] sm:$0xff]
  %v2343 = vld [vmem:[%s1 + $0x300] sm:$0xff]
  %v2344 = vld [vmem:[%s1 + $0x308] sm:$0xff]
  %v2345 = vld [vmem:[%s1 + $0x310] sm:$0xff]
  %v2346 = vld [vmem:[%s1 + $0x318] sm:$0xff]
  %v2347 = vld [vmem:[%s1 + $0x320] sm:$0xff]
  %v2348 = vld [vmem:[%s1 + $0x328] sm:$0xff]
  %v2349 = vld [vmem:[%s1 + $0x330] sm:$0xff]
  %v2350 = vld [vmem:[%s1 + $0x338] sm:$0xff]
  %v2351 = vld [vmem:[%s1 + $0x340] sm:$0xff]
  %v2352 = vld [vmem:[%s1 + $0x348] sm:$0xff]
  %v2353 = vld [vmem:[%s1 + $0x350] sm:$0xff]
  %v2354 = vld [vmem:[%s1 + $0x358] sm:$0xff]
  %v2355 = vld [vmem:[%s1 + $0x360] sm:$0xff]
  %v2356 = vld [vmem:[%s1 + $0x368] sm:$0xff]
  %v2357 = vld [vmem:[%s1 + $0x370] sm:$0xff]
  %v2358 = vld [vmem:[%s1 + $0x378] sm:$0xff]
  %v2359 = vld [vmem:[%s1 + $0x380] sm:$0xff]
  %v2360 = vld [vmem:[%s1 + $0x388] sm:$0xff]
  %v2361 = vld [vmem:[%s1 + $0x390] sm:$0xff]
  %v2362 = vld [vmem:[%s1 + $0x398] sm:$0xff]
  %v2363 = vld [vmem:[%s1 + $0x3a0] sm:$0xff]
  %v2364 = vld [vmem:[%s1 + $0x3a8] sm:$0xff]
  %v2365 = vld [vmem:[%s1 + $0x3b0] sm:$0xff]
  %v2366 = vld [vmem:[%s1 + $0x3b8] sm:$0xff]
  %v2367 = vld [vmem:[%s1 + $0x3c0] sm:$0xff]
  %v2368 = vld [vmem:[%s1 + $0x3c8] sm:$0xff]
  %v2369 = vld [vmem:[%s1 + $0x3d0] sm:$0xff]
  %v2370 = vld [vmem:[%s1 + $0x3d8] sm:$0xff]
  %v2371 = vld [vmem:[%s1 + $0x3e0] sm:$0xff]
  %v2372 = vld [vmem:[%s1 + $0x3e8] sm:$0xff]
  %v2373 = vld [vmem:[%s1 + $0x3f0] sm:$0xff]
  %v2374 = vld [vmem:[%s1 + $0x3f8] sm:$0xff]
  %v2375 = vld [vmem:[%s1 + $0x400] sm:$0xff]
  %v2376 = vld [vmem:[%s1 + $0x408] sm:$0xff]
  %v2377 = vld [vmem:[%s1 + $0x410] sm:$0xff]
  %v2378 = vld [vmem:[%s1 + $0x418] sm:$0xff]
  %v2379 = vld [vmem:[%s1 + $0x420] sm:$0xff]
  %v2380 = vld [vmem:[%s1 + $0x428] sm:$0xff]
  %v2381 = vld [vmem:[%s1 + $0x430] sm:$0xff]
  %v2382 = vld [vmem:[%s1 + $0x438] sm:$0xff]
  %v2383 = vld [vmem:[%s1 + $0x440] sm:$0xff]
  %v2384 = vld [vmem:[%s1 + $0x448] sm:$0xff]
  %v2385 = vld [vmem:[%s1 + $0x450] sm:$0xff]
  %v2386 = vld [vmem:[%s1 + $0x458] sm:$0xff]
  %v2387 = vld [vmem:[%s1 + $0x460] sm:$0xff]
  %v2388 = vld [vmem:[%s1 + $0x468] sm:$0xff]
  %v2389 = vld [vmem:[%s1 + $0x470] sm:$0xff]
  %v2390 = vld [vmem:[%s1 + $0x478] sm:$0xff]
  %v2391 = vld [vmem:[%s1 + $0x480] sm:$0xff]
  %v2392 = vld [vmem:[%s1 + $0x488] sm:$0xff]
  %v2393 = vld [vmem:[%s1 + $0x490] sm:$0xff]
  %v2394 = vld [vmem:[%s1 + $0x498] sm:$0xff]
  %v2395 = vld [vmem:[%s1 + $0x4a0] sm:$0xff]
  %v2396 = vld [vmem:[%s1 + $0x4a8] sm:$0xff]
  %v2397 = vld [vmem:[%s1 + $0x4b0] sm:$0xff]
  %v2398 = vld [vmem:[%s1 + $0x4b8] sm:$0xff]
  %v2399 = vld [vmem:[%s1 + $0x4c0] sm:$0xff]
  %v2400 = vld [vmem:[%s1 + $0x4c8] sm:$0xff]
  %v2401 = vld [vmem:[%s1 + $0x4d0] sm:$0xff]
  %v2402 = vld [vmem:[%s1 + $0x4d8] sm:$0xff]
  %v2403 = vld [vmem:[%s1 + $0x4e0] sm:$0xff]
  %v2404 = vld [vmem:[%s1 + $0x4e8] sm:$0xff]
  %v2405 = vld [vmem:[%s1 + $0x4f0] sm:$0xff]
  %v2406 = vld [vmem:[%s1 + $0x4f8] sm:$0xff]
  %v2407 = vld [vmem:[%s1 + $0x500] sm:$0xff]
  %v2408 = vld [vmem:[%s1 + $0x508] sm:$0xff]
  %v2409 = vld [vmem:[%s1 + $0x510] sm:$0xff]
  %v2410 = vld [vmem:[%s1 + $0x518] sm:$0xff]
  %v2411 = vld [vmem:[%s1 + $0x520] sm:$0xff]
  %v2412 = vld [vmem:[%s1 + $0x528] sm:$0xff]
  %v2413 = vld [vmem:[%s1 + $0x530] sm:$0xff]
  %v2414 = vld [vmem:[%s1 + $0x538] sm:$0xff]
  %v2415 = vld [vmem:[%s1 + $0x540] sm:$0xff]
  %v2416 = vld [vmem:[%s1 + $0x548] sm:$0xff]
  %v2417 = vld [vmem:[%s1 + $0x550] sm:$0xff]
  %v2418 = vld [vmem:[%s1 + $0x558] sm:$0xff]
  %v2419 = vld [vmem:[%s1 + $0x560] sm:$0xff]
  %v2420 = vld [vmem:[%s1 + $0x568] sm:$0xff]
  %v2421 = vld [vmem:[%s1 + $0x570] sm:$0xff]
  %v2422 = vld [vmem:[%s1 + $0x578] sm:$0xff]
  %v2423 = vld [vmem:[%s1 + $0x580] sm:$0xff]
  %v2424 = vld [vmem:[%s1 + $0x588] sm:$0xff]
  %v2425 = vld [vmem:[%s1 + $0x590] sm:$0xff]
  %v2426 = vld [vmem:[%s1 + $0x598] sm:$0xff]
  %v2427 = vld [vmem:[%s1 + $0x5a0] sm:$0xff]
  %v2428 = vld [vmem:[%s1 + $0x5a8] sm:$0xff]
  %v2429 = vld [vmem:[%s1 + $0x5b0] sm:$0xff]
  %v2430 = vld [vmem:[%s1 + $0x5b8] sm:$0xff]
  %v2431 = vld [vmem:[%s1 + $0x5c0] sm:$0xff]
  %v2432 = vld [vmem:[%s1 + $0x5c8] sm:$0xff]
  %v2433 = vld [vmem:[%s1 + $0x5d0] sm:$0xff]
  %v2434 = vld [vmem:[%s1 + $0x5d8] sm:$0xff]
  %v2435 = vld [vmem:[%s1 + $0x5e0] sm:$0xff]
  %v2436 = vld [vmem:[%s1 + $0x5e8] sm:$0xff]
  %v2437 = vld [vmem:[%s1 + $0x5f0] sm:$0xff]
  %v2438 = vld [vmem:[%s1 + $0x5f8] sm:$0xff]
  %v2439 = vld [vmem:[%s1 + $0x600] sm:$0xff]
  %v2440 = vld [vmem:[%s1 + $0x608] sm:$0xff]
  %v2441 = vld [vmem:[%s1 + $0x610] sm:$0xff]
  %v2442 = vld [vmem:[%s1 + $0x618] sm:$0xff]
  %v2443 = vld [vmem:[%s1 + $0x620] sm:$0xff]
  %v2444 = vld [vmem:[%s1 + $0x628] sm:$0xff]
  %v2445 = vld [vmem:[%s1 + $0x630] sm:$0xff]
  %v2446 = vld [vmem:[%s1 + $0x638] sm:$0xff]
  %v2447 = vld [vmem:[%s1 + $0x640] sm:$0xff]
  %v2448 = vld [vmem:[%s1 + $0x648] sm:$0xff]
  %v2449 = vld [vmem:[%s1 + $0x650] sm:$0xff]
  %v2450 = vld [vmem:[%s1 + $0x658] sm:$0xff]
  %v2451 = vld [vmem:[%s1 + $0x660] sm:$0xff]
  %v2452 = vld [vmem:[%s1 + $0x668] sm:$0xff]
  %v2453 = vld [vmem:[%s1 + $0x670] sm:$0xff]
  %v2454 = vld [vmem:[%s1 + $0x678] sm:$0xff]
  %v2455 = vld [vmem:[%s1 + $0x680] sm:$0xff]
  %v2456 = vld [vmem:[%s1 + $0x688] sm:$0xff]
  %v2457 = vld [vmem:[%s1 + $0x690] sm:$0xff]
  %v2458 = vld [vmem:[%s1 + $0x698] sm:$0xff]
  %v2459 = vld [vmem:[%s1 + $0x6a0] sm:$0xff]
  %v2460 = vld [vmem:[%s1 + $0x6a8] sm:$0xff]
  %v2461 = vld [vmem:[%s1 + $0x6b0] sm:$0xff]
  %v2462 = vld [vmem:[%s1 + $0x6b8] sm:$0xff]
  %v2463 = vld [vmem:[%s1 + $0x6c0] sm:$0xff]
  %v2464 = vld [vmem:[%s1 + $0x6c8] sm:$0xff]
  %v2465 = vld [vmem:[%s1 + $0x6d0] sm:$0xff]
  %v2466 = vld [vmem:[%s1 + $0x6d8] sm:$0xff]
  %v2467 = vld [vmem:[%s1 + $0x6e0] sm:$0xff]
  %v2468 = vld [vmem:[%s1 + $0x6e8] sm:$0xff]
  %v2469 = vld [vmem:[%s1 + $0x6f0] sm:$0xff]
  %v2470 = vld [vmem:[%s1 + $0x6f8] sm:$0xff]
  %v2471 = vld [vmem:[%s1 + $0x700] sm:$0xff]
  %v2472 = vld [vmem:[%s1 + $0x708] sm:$0xff]
  %v2473 = vld [vmem:[%s1 + $0x710] sm:$0xff]
  %v2474 = vld [vmem:[%s1 + $0x718] sm:$0xff]
  %v2475 = vld [vmem:[%s1 + $0x720] sm:$0xff]
  %v2476 = vld [vmem:[%s1 + $0x728] sm:$0xff]
  %v2477 = vld [vmem:[%s1 + $0x730] sm:$0xff]
  %v2478 = vld [vmem:[%s1 + $0x738] sm:$0xff]
  %v2479 = vld [vmem:[%s1 + $0x740] sm:$0xff]
  %v2480 = vld [vmem:[%s1 + $0x748] sm:$0xff]
  %v2481 = vld [vmem:[%s1 + $0x750] sm:$0xff]
  %v2482 = vld [vmem:[%s1 + $0x758] sm:$0xff]
  %v2483 = vld [vmem:[%s1 + $0x760] sm:$0xff]
  %v2484 = vld [vmem:[%s1 + $0x768] sm:$0xff]
  %v2485 = vld [vmem:[%s1 + $0x770] sm:$0xff]
  %v2486 = vld [vmem:[%s1 + $0x778] sm:$0xff]
  %v2487 = vld [vmem:[%s1 + $0x780] sm:$0xff]
  %v2488 = vld [vmem:[%s1 + $0x788] sm:$0xff]
  %v2489 = vld [vmem:[%s1 + $0x790] sm:$0xff]
  %v2490 = vld [vmem:[%s1 + $0x798] sm:$0xff]
  %v2491 = vld [vmem:[%s1 + $0x7a0] sm:$0xff]
  %v2492 = vld [vmem:[%s1 + $0x7a8] sm:$0xff]
  %v2493 = vld [vmem:[%s1 + $0x7b0] sm:$0xff]
  %v2494 = vld [vmem:[%s1 + $0x7b8] sm:$0xff]
  %v2495 = vld [vmem:[%s1 + $0x7c0] sm:$0xff]
  %v2496 = vld [vmem:[%s1 + $0x7c8] sm:$0xff]
  %v2497 = vld [vmem:[%s1 + $0x7d0] sm:$0xff]
  %v2498 = vld [vmem:[%s1 + $0x7d8] sm:$0xff]
  %v2499 = vld [vmem:[%s1 + $0x7e0] sm:$0xff]
  %v2500 = vld [vmem:[%s1 + $0x7e8] sm:$0xff]
  %v2501 = vld [vmem:[%s1 + $0x7f0] sm:$0xff]
  %v2502 = vld [vmem:[%s1 + $0x7f8] sm:$0xff]
  %v2503 = vld [vmem:[%s1 + $0x800] sm:$0xff]
  %v2504 = vld [vmem:[%s1 + $0x808] sm:$0xff]
  %v2505 = vld [vmem:[%s1 + $0x810] sm:$0xff]
  %v2506 = vld [vmem:[%s1 + $0x818] sm:$0xff]
  %v2507 = vld [vmem:[%s1 + $0x820] sm:$0xff]
  %v2508 = vld [vmem:[%s1 + $0x828] sm:$0xff]
  %v2509 = vld [vmem:[%s1 + $0x830] sm:$0xff]
  %v2510 = vld [vmem:[%s1 + $0x838] sm:$0xff]
  %v2511 = vld [vmem:[%s1 + $0x840] sm:$0xff]
  %v2512 = vld [vmem:[%s1 + $0x848] sm:$0xff]
  %v2513 = vld [vmem:[%s1 + $0x850] sm:$0xff]
  %v2514 = vld [vmem:[%s1 + $0x858] sm:$0xff]
  %v2515 = vld [vmem:[%s1 + $0x860] sm:$0xff]
  %v2516 = vld [vmem:[%s1 + $0x868] sm:$0xff]
  %v2517 = vld [vmem:[%s1 + $0x870] sm:$0xff]
  %v2518 = vld [vmem:[%s1 + $0x878] sm:$0xff]
  %v2519 = vld [vmem:[%s1 + $0x880] sm:$0xff]
  %v2520 = vld [vmem:[%s1 + $0x888] sm:$0xff]
  %v2521 = vld [vmem:[%s1 + $0x890] sm:$0xff]
  %v2522 = vld [vmem:[%s1 + $0x898] sm:$0xff]
  %v2523 = vld [vmem:[%s1 + $0x8a0] sm:$0xff]
  %v2524 = vld [vmem:[%s1 + $0x8a8] sm:$0xff]
  %v2525 = vld [vmem:[%s1 + $0x8b0] sm:$0xff]
  %v2526 = vld [vmem:[%s1 + $0x8b8] sm:$0xff]
  %v2527 = vld [vmem:[%s1 + $0x8c0] sm:$0xff]
  %v2528 = vld [vmem:[%s1 + $0x8c8] sm:$0xff]
  %v2529 = vld [vmem:[%s1 + $0x8d0] sm:$0xff]
  %v2530 = vld [vmem:[%s1 + $0x8d8] sm:$0xff]
  %v2531 = vld [vmem:[%s1 + $0x8e0] sm:$0xff]
  %v2532 = vld [vmem:[%s1 + $0x8e8] sm:$0xff]
  %v2533 = vld [vmem:[%s1 + $0x8f0] sm:$0xff]
  %v2534 = vld [vmem:[%s1 + $0x8f8] sm:$0xff]
  %v2535 = vld [vmem:[%s2] sm:$0x3]
  %v2537 = vlaneseq
  %v2538 = vshrl.u32 %v2537, 7
  %v2539 = vsub.s32 0, %v2538
  %v2540 = vrot.slane %v2535, %v2539
  %v2541 = vlaneseq
  %v2542 = vshrl.u32 %v2541, 7
  %v2543 = vsub.s32 1, %v2542
  %v2544 = vrot.slane %v2535, %v2543
  %v2550 = vcombine.high %v2244, %v2244
  %v2552 = vunpack.c.l.s4 1983009808
  %v2553 = vunpack.c.0.s8 %v2552
  %v2554 = vlaneseq
  %v2555 = vshrl.u32 %v2554, 7
  %v2556 = vsub.s32 %v2553, %v2555
  %v2557 = vrot.slane %v2244, %v2556
  %v2559 = vunpack.c.l.s4 1983009808
  %v2560 = vunpack.c.0.s8 %v2559
  %v2561 = vlaneseq
  %v2562 = vshrl.u32 %v2561, 7
  %v2563 = vsub.s32 %v2560, %v2562
  %v2564 = vrot.slane %v2550, %v2563
  %v2565 = vcombine.high %v2557, %v2557
  %v2566 = vcombine.high %v2564, %v2564
  %v2567 = vcombine.high %v2245, %v2245
  %v2569 = vunpack.c.l.s4 1983009808
  %v2570 = vunpack.c.0.s8 %v2569
  %v2571 = vlaneseq
  %v2572 = vshrl.u32 %v2571, 7
  %v2573 = vsub.s32 %v2570, %v2572
  %v2574 = vrot.slane %v2245, %v2573
  %v2576 = vunpack.c.l.s4 1983009808
  %v2577 = vunpack.c.0.s8 %v2576
  %v2578 = vlaneseq
  %v2579 = vshrl.u32 %v2578, 7
  %v2580 = vsub.s32 %v2577, %v2579
  %v2581 = vrot.slane %v2567, %v2580
  %v2582 = vcombine.high %v2574, %v2574
  %v2583 = vcombine.high %v2581, %v2581
  %v2585 = vunpack.c.l.s4 1983009808
  %v2586 = vunpack.c.0.s8 %v2585
  %v2587 = vlaneseq
  %v2588 = vshrl.u32 %v2587, 7
  %v2589 = vsub.s32 %v2586, %v2588
  %v2590 = vrot.slane %v2246, %v2589
  %v2591 = vcombine.high %v2590, %v2590
  %2592 = vrot.lane.b32.xlu0 %v2557, 64
  %v2593 = vpop.permute.xlu0 %2592
  %2594 = vrot.lane.b32.xlu0 %v2565, 64
  %v2595 = vpop.permute.xlu0 %2594
  %2596 = vrot.lane.b32.xlu0 %v2564, 64
  %v2597 = vpop.permute.xlu0 %2596
  %2598 = vrot.lane.b32.xlu0 %v2566, 64
  %v2599 = vpop.permute.xlu0 %2598
  %2600 = vrot.lane.b32.xlu0 %v2574, 64
  %v2601 = vpop.permute.xlu0 %2600
  %2602 = vrot.lane.b32.xlu0 %v2582, 64
  %v2603 = vpop.permute.xlu0 %2602
  %2604 = vrot.lane.b32.xlu0 %v2581, 64
  %v2605 = vpop.permute.xlu0 %2604
  %2606 = vrot.lane.b32.xlu0 %v2583, 64
  %v2607 = vpop.permute.xlu0 %2606
  %2608 = vrot.lane.b32.xlu0 %v2590, 64
  %v2609 = vpop.permute.xlu0 %2608
  %2610 = vrot.lane.b32.xlu0 %v2591, 64
  %v2611 = vpop.permute.xlu0 %2610
  %v2612 = vsel %vm1131, %v2593, %v2595
  %v2613 = vsel %vm1131, %v2595, %v2597
  %v2614 = vsel %vm1131, %v2597, %v2599
  %v2615 = vsel %vm1131, %v2599, %v2601
  %v2616 = vsel %vm1131, %v2601, %v2603
  %v2617 = vsel %vm1131, %v2603, %v2605
  %v2618 = vsel %vm1131, %v2605, %v2607
  %v2619 = vsel %vm1131, %v2607, %v2609
  %v2620 = vsel %vm1131, %v2609, %v2611
  %2630 = vmatprep.subr.mxu0 %v2248
  %2631 = vmatpush1.msra.mxu0 %v2247
  %2632 = vmatprep.subr.mxu0 %v2250
  %2633 = vmatpush1.msra.mxu0 %v2249
  %2634 = vmatprep.subr.mxu0 %v2252
  %2635 = vmatpush1.msra.mxu0 %v2251
  %2636 = vmatprep.subr.mxu0 %v2254
  %2637 = vmatpush1.msra.mxu0 %v2253
  %2638 = vmatprep.subr.mxu0 %v2256
  %2639 = vmatpush1.msra.mxu0 %v2255
  %2640 = vmatprep.subr.mxu0 %v2258
  %2641 = vmatpush1.msra.mxu0 %v2257
  %2642 = vmatprep.subr.mxu0 %v2260
  %2643 = vmatpush1.msra.mxu0 %v2259
  %2644 = vmatprep.subr.mxu0 %v2262
  %2645 = vmatpush1.msra.mxu0 %v2261
  %2646 = vmatprep.subr.mxu0 %v2264
  %2647 = vmatpush1.msra.mxu0 %v2263
  %2648 = vmatprep.subr.mxu0 %v2266
  %2649 = vmatpush1.msra.mxu0 %v2265
  %2650 = vmatprep.subr.mxu0 %v2268
  %2651 = vmatpush1.msra.mxu0 %v2267
  %2652 = vmatprep.subr.mxu0 %v2270
  %2653 = vmatpush1.msra.mxu0 %v2269
  %2654 = vmatprep.subr.mxu0 %v2272
  %2655 = vmatpush1.msra.mxu0 %v2271
  %2656 = vmatprep.subr.mxu0 %v2274
  %2657 = vmatpush1.msra.mxu0 %v2273
  %2658 = vmatprep.subr.mxu0 %v2276
  %2659 = vmatpush1.msra.mxu0 %v2275
  %2660 = vmatprep.subr.mxu0 %v2278
  %2661 = vmatpush1.msra.mxu0 %v2277
  %2662 = vmatprep.subr.mxu0 %v2280
  %2663 = vmatpush1.msra.mxu0 %v2279
  %2664 = vmatprep.subr.mxu0 %v2282
  %2665 = vmatpush1.msra.mxu0 %v2281
  %2666 = vmatprep.subr.mxu0 %v2284
  %2667 = vmatpush1.msra.mxu0 %v2283
  %2668 = vmatprep.subr.mxu0 %v2286
  %2669 = vmatpush1.msra.mxu0 %v2285
  %2670 = vmatprep.subr.mxu0 %v2288
  %2671 = vmatpush1.msra.mxu0 %v2287
  %2672 = vmatprep.subr.mxu0 %v2290
  %2673 = vmatpush1.msra.mxu0 %v2289
  %2674 = vmatprep.subr.mxu0 %v2292
  %2675 = vmatpush1.msra.mxu0 %v2291
  %2676 = vmatprep.subr.mxu0 %v2294
  %2677 = vmatpush1.msra.mxu0 %v2293
  %2678 = vmatprep.subr.mxu0 %v2296
  %2679 = vmatpush1.msra.mxu0 %v2295
  %2680 = vmatprep.subr.mxu0 %v2298
  %2681 = vmatpush1.msra.mxu0 %v2297
  %2682 = vmatprep.subr.mxu0 %v2300
  %2683 = vmatpush1.msra.mxu0 %v2299
  %2684 = vmatprep.subr.mxu0 %v2302
  %2685 = vmatpush1.msra.mxu0 %v2301
  %2686 = vmatprep.subr.mxu0 %v2304
  %2687 = vmatpush1.msra.mxu0 %v2303
  %2688 = vmatprep.subr.mxu0 %v2306
  %2689 = vmatpush1.msra.mxu0 %v2305
  %2690 = vmatprep.subr.mxu0 %v2308
  %2691 = vmatpush1.msra.mxu0 %v2307
  %2692 = vmatprep.subr.mxu0 %v2310
  %2693 = vmatpush1.msra.mxu0 %v2309
  %2694 = vmatprep.mubr.f32.mxu0 %v2613
  %2695 = vmatmul.mubr.f32.gmra.mrb[0].mxu0 %v2612
  %v2696 = vpop.f32.mrb[0].mxu0
  %v2697 = vadd.f32 %v2540, %v2696
  %v2698 = vpop.f32.mrb[0].mxu0
  %v2699 = vadd.f32 %v2544, %v2698
  %2700 = vdwg.mxu0
  %2701 = vmatprep.subr.mxu0 %v2312
  %2702 = vmatpush1.msra.mxu0 %v2311
  %2703 = vmatprep.subr.mxu0 %v2314
  %2704 = vmatpush1.msra.mxu0 %v2313
  %2705 = vmatprep.subr.mxu0 %v2316
  %2706 = vmatpush1.msra.mxu0 %v2315
  %2707 = vmatprep.subr.mxu0 %v2318
  %2708 = vmatpush1.msra.mxu0 %v2317
  %2709 = vmatprep.subr.mxu0 %v2320
  %2710 = vmatpush1.msra.mxu0 %v2319
  %2711 = vmatprep.subr.mxu0 %v2322
  %2712 = vmatpush1.msra.mxu0 %v2321
  %2713 = vmatprep.subr.mxu0 %v2324
  %2714 = vmatpush1.msra.mxu0 %v2323
  %2715 = vmatprep.subr.mxu0 %v2326
  %2716 = vmatpush1.msra.mxu0 %v2325
  %2717 = vmatprep.subr.mxu0 %v2328
  %2718 = vmatpush1.msra.mxu0 %v2327
  %2719 = vmatprep.subr.mxu0 %v2330
  %2720 = vmatpush1.msra.mxu0 %v2329
  %2721 = vmatprep.subr.mxu0 %v2332
  %2722 = vmatpush1.msra.mxu0 %v2331
  %2723 = vmatprep.subr.mxu0 %v2334
  %2724 = vmatpush1.msra.mxu0 %v2333
  %2725 = vmatprep.subr.mxu0 %v2336
  %2726 = vmatpush1.msra.mxu0 %v2335
  %2727 = vmatprep.subr.mxu0 %v2338
  %2728 = vmatpush1.msra.mxu0 %v2337
  %2729 = vmatprep.subr.mxu0 %v2340
  %2730 = vmatpush1.msra.mxu0 %v2339
  %2731 = vmatprep.subr.mxu0 %v2342
  %2732 = vmatpush1.msra.mxu0 %v2341
  %2733 = vmatprep.subr.mxu0 %v2344
  %2734 = vmatpush1.msra.mxu0 %v2343
  %2735 = vmatprep.subr.mxu0 %v2346
  %2736 = vmatpush1.msra.mxu0 %v2345
  %2737 = vmatprep.subr.mxu0 %v2348
  %2738 = vmatpush1.msra.mxu0 %v2347
  %2739 = vmatprep.subr.mxu0 %v2350
  %2740 = vmatpush1.msra.mxu0 %v2349
  %2741 = vmatprep.subr.mxu0 %v2352
  %2742 = vmatpush1.msra.mxu0 %v2351
  %2743 = vmatprep.subr.mxu0 %v2354
  %2744 = vmatpush1.msra.mxu0 %v2353
  %2745 = vmatprep.subr.mxu0 %v2356
  %2746 = vmatpush1.msra.mxu0 %v2355
  %2747 = vmatprep.subr.mxu0 %v2358
  %2748 = vmatpush1.msra.mxu0 %v2357
  %2749 = vmatprep.subr.mxu0 %v2360
  %2750 = vmatpush1.msra.mxu0 %v2359
  %2751 = vmatprep.subr.mxu0 %v2362
  %2752 = vmatpush1.msra.mxu0 %v2361
  %2753 = vmatprep.subr.mxu0 %v2364
  %2754 = vmatpush1.msra.mxu0 %v2363
  %2755 = vmatprep.subr.mxu0 %v2366
  %2756 = vmatpush1.msra.mxu0 %v2365
  %2757 = vmatprep.subr.mxu0 %v2368
  %2758 = vmatpush1.msra.mxu0 %v2367
  %2759 = vmatprep.subr.mxu0 %v2370
  %2760 = vmatpush1.msra.mxu0 %v2369
  %2761 = vmatprep.subr.mxu0 %v2372
  %2762 = vmatpush1.msra.mxu0 %v2371
  %2763 = vmatprep.subr.mxu0 %v2374
  %2764 = vmatpush1.msra.mxu0 %v2373
  %2765 = vmatprep.mubr.f32.mxu0 %v2615
  %2766 = vmatmul.mubr.f32.gmra.mrb[0].mxu0 %v2614
  %v2767 = vpop.f32.mrb[0].mxu0
  %v2768 = vadd.f32 %v2697, %v2767
  %v2769 = vpop.f32.mrb[0].mxu0
  %v2770 = vadd.f32 %v2699, %v2769
  %2771 = vdwg.mxu0
  %2772 = vmatprep.subr.mxu0 %v2376
  %2773 = vmatpush1.msra.mxu0 %v2375
  %2774 = vmatprep.subr.mxu0 %v2378
  %2775 = vmatpush1.msra.mxu0 %v2377
  %2776 = vmatprep.subr.mxu0 %v2380
  %2777 = vmatpush1.msra.mxu0 %v2379
  %2778 = vmatprep.subr.mxu0 %v2382
  %2779 = vmatpush1.msra.mxu0 %v2381
  %2780 = vmatprep.subr.mxu0 %v2384
  %2781 = vmatpush1.msra.mxu0 %v2383
  %2782 = vmatprep.subr.mxu0 %v2386
  %2783 = vmatpush1.msra.mxu0 %v2385
  %2784 = vmatprep.subr.mxu0 %v2388
  %2785 = vmatpush1.msra.mxu0 %v2387
  %2786 = vmatprep.subr.mxu0 %v2390
  %2787 = vmatpush1.msra.mxu0 %v2389
  %2788 = vmatprep.subr.mxu0 %v2392
  %2789 = vmatpush1.msra.mxu0 %v2391
  %2790 = vmatprep.subr.mxu0 %v2394
  %2791 = vmatpush1.msra.mxu0 %v2393
  %2792 = vmatprep.subr.mxu0 %v2396
  %2793 = vmatpush1.msra.mxu0 %v2395
  %2794 = vmatprep.subr.mxu0 %v2398
  %2795 = vmatpush1.msra.mxu0 %v2397
  %2796 = vmatprep.subr.mxu0 %v2400
  %2797 = vmatpush1.msra.mxu0 %v2399
  %2798 = vmatprep.subr.mxu0 %v2402
  %2799 = vmatpush1.msra.mxu0 %v2401
  %2800 = vmatprep.subr.mxu0 %v2404
  %2801 = vmatpush1.msra.mxu0 %v2403
  %2802 = vmatprep.subr.mxu0 %v2406
  %2803 = vmatpush1.msra.mxu0 %v2405
  %2804 = vmatprep.subr.mxu0 %v2408
  %2805 = vmatpush1.msra.mxu0 %v2407
  %2806 = vmatprep.subr.mxu0 %v2410
  %2807 = vmatpush1.msra.mxu0 %v2409
  %2808 = vmatprep.subr.mxu0 %v2412
  %2809 = vmatpush1.msra.mxu0 %v2411
  %2810 = vmatprep.subr.mxu0 %v2414
  %2811 = vmatpush1.msra.mxu0 %v2413
  %2812 = vmatprep.subr.mxu0 %v2416
  %2813 = vmatpush1.msra.mxu0 %v2415
  %2814 = vmatprep.subr.mxu0 %v2418
  %2815 = vmatpush1.msra.mxu0 %v2417
  %2816 = vmatprep.subr.mxu0 %v2420
  %2817 = vmatpush1.msra.mxu0 %v2419
  %2818 = vmatprep.subr.mxu0 %v2422
  %2819 = vmatpush1.msra.mxu0 %v2421
  %2820 = vmatprep.subr.mxu0 %v2424
  %2821 = vmatpush1.msra.mxu0 %v2423
  %2822 = vmatprep.subr.mxu0 %v2426
  %2823 = vmatpush1.msra.mxu0 %v2425
  %2824 = vmatprep.subr.mxu0 %v2428
  %2825 = vmatpush1.msra.mxu0 %v2427
  %2826 = vmatprep.subr.mxu0 %v2430
  %2827 = vmatpush1.msra.mxu0 %v2429
  %2828 = vmatprep.subr.mxu0 %v2432
  %2829 = vmatpush1.msra.mxu0 %v2431
  %2830 = vmatprep.subr.mxu0 %v2434
  %2831 = vmatpush1.msra.mxu0 %v2433
  %2832 = vmatprep.subr.mxu0 %v2436
  %2833 = vmatpush1.msra.mxu0 %v2435
  %2834 = vmatprep.subr.mxu0 %v2438
  %2835 = vmatpush1.msra.mxu0 %v2437
  %2836 = vmatprep.mubr.f32.mxu0 %v2617
  %2837 = vmatmul.mubr.f32.gmra.mrb[0].mxu0 %v2616
  %v2838 = vpop.f32.mrb[0].mxu0
  %v2839 = vadd.f32 %v2768, %v2838
  %v2840 = vpop.f32.mrb[0].mxu0
  %v2841 = vadd.f32 %v2770, %v2840
  %2842 = vdwg.mxu0
  %2843 = vmatprep.subr.mxu0 %v2440
  %2844 = vmatpush1.msra.mxu0 %v2439
  %2845 = vmatprep.subr.mxu0 %v2442
  %2846 = vmatpush1.msra.mxu0 %v2441
  %2847 = vmatprep.subr.mxu0 %v2444
  %2848 = vmatpush1.msra.mxu0 %v2443
  %2849 = vmatprep.subr.mxu0 %v2446
  %2850 = vmatpush1.msra.mxu0 %v2445
  %2851 = vmatprep.subr.mxu0 %v2448
  %2852 = vmatpush1.msra.mxu0 %v2447
  %2853 = vmatprep.subr.mxu0 %v2450
  %2854 = vmatpush1.msra.mxu0 %v2449
  %2855 = vmatprep.subr.mxu0 %v2452
  %2856 = vmatpush1.msra.mxu0 %v2451
  %2857 = vmatprep.subr.mxu0 %v2454
  %2858 = vmatpush1.msra.mxu0 %v2453
  %2859 = vmatprep.subr.mxu0 %v2456
  %2860 = vmatpush1.msra.mxu0 %v2455
  %2861 = vmatprep.subr.mxu0 %v2458
  %2862 = vmatpush1.msra.mxu0 %v2457
  %2863 = vmatprep.subr.mxu0 %v2460
  %2864 = vmatpush1.msra.mxu0 %v2459
  %2865 = vmatprep.subr.mxu0 %v2462
  %2866 = vmatpush1.msra.mxu0 %v2461
  %2867 = vmatprep.subr.mxu0 %v2464
  %2868 = vmatpush1.msra.mxu0 %v2463
  %2869 = vmatprep.subr.mxu0 %v2466
  %2870 = vmatpush1.msra.mxu0 %v2465
  %2871 = vmatprep.subr.mxu0 %v2468
  %2872 = vmatpush1.msra.mxu0 %v2467
  %2873 = vmatprep.subr.mxu0 %v2470
  %2874 = vmatpush1.msra.mxu0 %v2469
  %2875 = vmatprep.subr.mxu0 %v2472
  %2876 = vmatpush1.msra.mxu0 %v2471
  %2877 = vmatprep.subr.mxu0 %v2474
  %2878 = vmatpush1.msra.mxu0 %v2473
  %2879 = vmatprep.subr.mxu0 %v2476
  %2880 = vmatpush1.msra.mxu0 %v2475
  %2881 = vmatprep.subr.mxu0 %v2478
  %2882 = vmatpush1.msra.mxu0 %v2477
  %2883 = vmatprep.subr.mxu0 %v2480
  %2884 = vmatpush1.msra.mxu0 %v2479
  %2885 = vmatprep.subr.mxu0 %v2482
  %2886 = vmatpush1.msra.mxu0 %v2481
  %2887 = vmatprep.subr.mxu0 %v2484
  %2888 = vmatpush1.msra.mxu0 %v2483
  %2889 = vmatprep.subr.mxu0 %v2486
  %2890 = vmatpush1.msra.mxu0 %v2485
  %2891 = vmatprep.subr.mxu0 %v2488
  %2892 = vmatpush1.msra.mxu0 %v2487
  %2893 = vmatprep.subr.mxu0 %v2490
  %2894 = vmatpush1.msra.mxu0 %v2489
  %2895 = vmatprep.subr.mxu0 %v2492
  %2896 = vmatpush1.msra.mxu0 %v2491
  %2897 = vmatprep.subr.mxu0 %v2494
  %2898 = vmatpush1.msra.mxu0 %v2493
  %2899 = vmatprep.subr.mxu0 %v2496
  %2900 = vmatpush1.msra.mxu0 %v2495
  %2901 = vmatprep.subr.mxu0 %v2498
  %2902 = vmatpush1.msra.mxu0 %v2497
  %2903 = vmatprep.subr.mxu0 %v2500
  %2904 = vmatpush1.msra.mxu0 %v2499
  %2905 = vmatprep.subr.mxu0 %v2502
  %2906 = vmatpush1.msra.mxu0 %v2501
  %2907 = vmatprep.mubr.f32.mxu0 %v2619
  %2908 = vmatmul.mubr.f32.gmra.mrb[0].mxu0 %v2618
  %v2909 = vpop.f32.mrb[0].mxu0
  %v2910 = vadd.f32 %v2839, %v2909
  %v2911 = vpop.f32.mrb[0].mxu0
  %v2912 = vadd.f32 %v2841, %v2911
  %2913 = vdwg.mxu0
  %2914 = vmatprep.subr.mxu0 %v2504
  %2915 = vmatpush1.msra.mxu0 %v2503
  %2916 = vmatprep.subr.mxu0 %v2506
  %2917 = vmatpush1.msra.mxu0 %v2505
  %2918 = vmatprep.subr.mxu0 %v2508
  %2919 = vmatpush1.msra.mxu0 %v2507
  %2920 = vmatprep.subr.mxu0 %v2510
  %2921 = vmatpush1.msra.mxu0 %v2509
  %2922 = vmatprep.subr.mxu0 %v2512
  %2923 = vmatpush1.msra.mxu0 %v2511
  %2924 = vmatprep.subr.mxu0 %v2514
  %2925 = vmatpush1.msra.mxu0 %v2513
  %2926 = vmatprep.subr.mxu0 %v2516
  %2927 = vmatpush1.msra.mxu0 %v2515
  %2928 = vmatprep.subr.mxu0 %v2518
  %2929 = vmatpush1.msra.mxu0 %v2517
  %2930 = vmatprep.subr.mxu0 %v2520
  %2931 = vmatpush1.msra.mxu0 %v2519
  %2932 = vmatprep.subr.mxu0 %v2522
  %2933 = vmatpush1.msra.mxu0 %v2521
  %2934 = vmatprep.subr.mxu0 %v2524
  %2935 = vmatpush1.msra.mxu0 %v2523
  %2936 = vmatprep.subr.mxu0 %v2526
  %2937 = vmatpush1.msra.mxu0 %v2525
  %2938 = vmatprep.subr.mxu0 %v2528
  %2939 = vmatpush1.msra.mxu0 %v2527
  %2940 = vmatprep.subr.mxu0 %v2530
  %2941 = vmatpush1.msra.mxu0 %v2529
  %2942 = vmatprep.subr.mxu0 %v2532
  %2943 = vmatpush1.msra.mxu0 %v2531
  %2944 = vmatprep.subr.mxu0 %v2534
  %2945 = vmatpush1.msra.mxu0 %v2533
  %2946 = vmatprep.subr.mxu0 0.0
  %2947 = vmatpush1.msra.mxu0 0.0
  %2948 = vmatprep.subr.mxu0 0.0
  %2949 = vmatpush1.msra.mxu0 0.0
  %2950 = vmatprep.subr.mxu0 0.0
  %2951 = vmatpush1.msra.mxu0 0.0
  %2952 = vmatprep.subr.mxu0 0.0
  %2953 = vmatpush1.msra.mxu0 0.0
  %2954 = vmatprep.subr.mxu0 0.0
  %2955 = vmatpush1.msra.mxu0 0.0
  %2956 = vmatprep.subr.mxu0 0.0
  %2957 = vmatpush1.msra.mxu0 0.0
  %2958 = vmatprep.subr.mxu0 0.0
  %2959 = vmatpush1.msra.mxu0 0.0
  %2960 = vmatprep.subr.mxu0 0.0
  %2961 = vmatpush1.msra.mxu0 0.0
  %2962 = vmatprep.subr.mxu0 0.0
  %2963 = vmatpush1.msra.mxu0 0.0
  %2964 = vmatprep.subr.mxu0 0.0
  %2965 = vmatpush1.msra.mxu0 0.0
  %2966 = vmatprep.subr.mxu0 0.0
  %2967 = vmatpush1.msra.mxu0 0.0
  %2968 = vmatprep.subr.mxu0 0.0
  %2969 = vmatpush1.msra.mxu0 0.0
  %2970 = vmatprep.subr.mxu0 0.0
  %2971 = vmatpush1.msra.mxu0 0.0
  %2972 = vmatprep.subr.mxu0 0.0
  %2973 = vmatpush1.msra.mxu0 0.0
  %2974 = vmatprep.subr.mxu0 0.0
  %2975 = vmatpush1.msra.mxu0 0.0
  %2976 = vmatprep.subr.mxu0 0.0
  %2977 = vmatpush1.msra.mxu0 0.0
  %2978 = vmatprep.mubr.f32.mxu0 0.0
  %2979 = vmatmul.mubr.f32.gmra.mrb[0].mxu0 %v2620
  %v2980 = vpop.f32.mrb[0].mxu0
  %v2981 = vadd.f32 %v2910, %v2980
  %v2982 = vpop.f32.mrb[0].mxu0
  %v2983 = vadd.f32 %v2912, %v2982
  %2984 = vdwg.mxu0
  %v2985 = vmax.f32 %v2981, 0.0
  %v2986 = vmax.f32 %v2983, 0.0
  %v2989 = vcombine.low %v2985, %v2986
  %v2991 = vunpack.c.l.s4 1983009808
  %v2992 = vunpack.c.0.s8 %v2991
  %v2993 = vlaneseq
  %v2994 = vshrl.u32 %v2993, 7
  %v2995 = vsub.s32 %v2992, %v2994
  %v2996 = vrot.slane %v2989, %v2995
  %2998 = vst [vmem:[#allocation2 + $0xc] sm:$0xf] %v2996
  %v2999 = vld [vmem:[%s0 + $0x24] sm:$0xff]
  %v3000 = vld [vmem:[%s0 + $0x2c] sm:$0xff]
  %v3001 = vld [vmem:[%s0 + $0x34] sm:$0x3]
  %v3002 = vld [vmem:[%s1] sm:$0xff]
  %v3003 = vld [vmem:[%s1 + $0x8] sm:$0xff]
  %v3004 = vld [vmem:[%s1 + $0x10] sm:$0xff]
  %v3005 = vld [vmem:[%s1 + $0x18] sm:$0xff]
  %v3006 = vld [vmem:[%s1 + $0x20] sm:$0xff]
  %v3007 = vld [vmem:[%s1 + $0x28] sm:$0xff]
  %v3008 = vld [vmem:[%s1 + $0x30] sm:$0xff]
  %v3009 = vld [vmem:[%s1 + $0x38] sm:$0xff]
  %v3010 = vld [vmem:[%s1 + $0x40] sm:$0xff]
  %v3011 = vld [vmem:[%s1 + $0x48] sm:$0xff]
  %v3012 = vld [vmem:[%s1 + $0x50] sm:$0xff]
  %v3013 = vld [vmem:[%s1 + $0x58] sm:$0xff]
  %v3014 = vld [vmem:[%s1 + $0x60] sm:$0xff]
  %v3015 = vld [vmem:[%s1 + $0x68] sm:$0xff]
  %v3016 = vld [vmem:[%s1 + $0x70] sm:$0xff]
  %v3017 = vld [vmem:[%s1 + $0x78] sm:$0xff]
  %v3018 = vld [vmem:[%s1 + $0x80] sm:$0xff]
  %v3019 = vld [vmem:[%s1 + $0x88] sm:$0xff]
  %v3020 = vld [vmem:[%s1 + $0x90] sm:$0xff]
  %v3021 = vld [vmem:[%s1 + $0x98] sm:$0xff]
  %v3022 = vld [vmem:[%s1 + $0xa0] sm:$0xff]
  %v3023 = vld [vmem:[%s1 + $0xa8] sm:$0xff]
  %v3024 = vld [vmem:[%s1 + $0xb0] sm:$0xff]
  %v3025 = vld [vmem:[%s1 + $0xb8] sm:$0xff]
  %v3026 = vld [vmem:[%s1 + $0xc0] sm:$0xff]
  %v3027 = vld [vmem:[%s1 + $0xc8] sm:$0xff]
  %v3028 = vld [vmem:[%s1 + $0xd0] sm:$0xff]
  %v3029 = vld [vmem:[%s1 + $0xd8] sm:$0xff]
  %v3030 = vld [vmem:[%s1 + $0xe0] sm:$0xff]
  %v3031 = vld [vmem:[%s1 + $0xe8] sm:$0xff]
  %v3032 = vld [vmem:[%s1 + $0xf0] sm:$0xff]
  %v3033 = vld [vmem:[%s1 + $0xf8] sm:$0xff]
  %v3034 = vld [vmem:[%s1 + $0x100] sm:$0xff]
  %v3035 = vld [vmem:[%s1 + $0x108] sm:$0xff]
  %v3036 = vld [vmem:[%s1 + $0x110] sm:$0xff]
  %v3037 = vld [vmem:[%s1 + $0x118] sm:$0xff]
  %v3038 = vld [vmem:[%s1 + $0x120] sm:$0xff]
  %v3039 = vld [vmem:[%s1 + $0x128] sm:$0xff]
  %v3040 = vld [vmem:[%s1 + $0x130] sm:$0xff]
  %v3041 = vld [vmem:[%s1 + $0x138] sm:$0xff]
  %v3042 = vld [vmem:[%s1 + $0x140] sm:$0xff]
  %v3043 = vld [vmem:[%s1 + $0x148] sm:$0xff]
  %v3044 = vld [vmem:[%s1 + $0x150] sm:$0xff]
  %v3045 = vld [vmem:[%s1 + $0x158] sm:$0xff]
  %v3046 = vld [vmem:[%s1 + $0x160] sm:$0xff]
  %v3047 = vld [vmem:[%s1 + $0x168] sm:$0xff]
  %v3048 = vld [vmem:[%s1 + $0x170] sm:$0xff]
  %v3049 = vld [vmem:[%s1 + $0x178] sm:$0xff]
  %v3050 = vld [vmem:[%s1 + $0x180] sm:$0xff]
  %v3051 = vld [vmem:[%s1 + $0x188] sm:$0xff]
  %v3052 = vld [vmem:[%s1 + $0x190] sm:$0xff]
  %v3053 = vld [vmem:[%s1 + $0x198] sm:$0xff]
  %v3054 = vld [vmem:[%s1 + $0x1a0] sm:$0xff]
  %v3055 = vld [vmem:[%s1 + $0x1a8] sm:$0xff]
  %v3056 = vld [vmem:[%s1 + $0x1b0] sm:$0xff]
  %v3057 = vld [vmem:[%s1 + $0x1b8] sm:$0xff]
  %v3058 = vld [vmem:[%s1 + $0x1c0] sm:$0xff]
  %v3059 = vld [vmem:[%s1 + $0x1c8] sm:$0xff]
  %v3060 = vld [vmem:[%s1 + $0x1d0] sm:$0xff]
  %v3061 = vld [vmem:[%s1 + $0x1d8] sm:$0xff]
  %v3062 = vld [vmem:[%s1 + $0x1e0] sm:$0xff]
  %v3063 = vld [vmem:[%s1 + $0x1e8] sm:$0xff]
  %v3064 = vld [vmem:[%s1 + $0x1f0] sm:$0xff]
  %v3065 = vld [vmem:[%s1 + $0x1f8] sm:$0xff]
  %v3066 = vld [vmem:[%s1 + $0x200] sm:$0xff]
  %v3067 = vld [vmem:[%s1 + $0x208] sm:$0xff]
  %v3068 = vld [vmem:[%s1 + $0x210] sm:$0xff]
  %v3069 = vld [vmem:[%s1 + $0x218] sm:$0xff]
  %v3070 = vld [vmem:[%s1 + $0x220] sm:$0xff]
  %v3071 = vld [vmem:[%s1 + $0x228] sm:$0xff]
  %v3072 = vld [vmem:[%s1 + $0x230] sm:$0xff]
  %v3073 = vld [vmem:[%s1 + $0x238] sm:$0xff]
  %v3074 = vld [vmem:[%s1 + $0x240] sm:$0xff]
  %v3075 = vld [vmem:[%s1 + $0x248] sm:$0xff]
  %v3076 = vld [vmem:[%s1 + $0x250] sm:$0xff]
  %v3077 = vld [vmem:[%s1 + $0x258] sm:$0xff]
  %v3078 = vld [vmem:[%s1 + $0x260] sm:$0xff]
  %v3079 = vld [vmem:[%s1 + $0x268] sm:$0xff]
  %v3080 = vld [vmem:[%s1 + $0x270] sm:$0xff]
  %v3081 = vld [vmem:[%s1 + $0x278] sm:$0xff]
  %v3082 = vld [vmem:[%s1 + $0x280] sm:$0xff]
  %v3083 = vld [vmem:[%s1 + $0x288] sm:$0xff]
  %v3084 = vld [vmem:[%s1 + $0x290] sm:$0xff]
  %v3085 = vld [vmem:[%s1 + $0x298] sm:$0xff]
  %v3086 = vld [vmem:[%s1 + $0x2a0] sm:$0xff]
  %v3087 = vld [vmem:[%s1 + $0x2a8] sm:$0xff]
  %v3088 = vld [vmem:[%s1 + $0x2b0] sm:$0xff]
  %v3089 = vld [vmem:[%s1 + $0x2b8] sm:$0xff]
  %v3090 = vld [vmem:[%s1 + $0x2c0] sm:$0xff]
  %v3091 = vld [vmem:[%s1 + $0x2c8] sm:$0xff]
  %v3092 = vld [vmem:[%s1 + $0x2d0] sm:$0xff]
  %v3093 = vld [vmem:[%s1 + $0x2d8] sm:$0xff]
  %v3094 = vld [vmem:[%s1 + $0x2e0] sm:$0xff]
  %v3095 = vld [vmem:[%s1 + $0x2e8] sm:$0xff]
  %v3096 = vld [vmem:[%s1 + $0x2f0] sm:$0xff]
  %v3097 = vld [vmem:[%s1 + $0x2f8] sm:$0xff]
  %v3098 = vld [vmem:[%s1 + $0x300] sm:$0xff]
  %v3099 = vld [vmem:[%s1 + $0x308] sm:$0xff]
  %v3100 = vld [vmem:[%s1 + $0x310] sm:$0xff]
  %v3101 = vld [vmem:[%s1 + $0x318] sm:$0xff]
  %v3102 = vld [vmem:[%s1 + $0x320] sm:$0xff]
  %v3103 = vld [vmem:[%s1 + $0x328] sm:$0xff]
  %v3104 = vld [vmem:[%s1 + $0x330] sm:$0xff]
  %v3105 = vld [vmem:[%s1 + $0x338] sm:$0xff]
  %v3106 = vld [vmem:[%s1 + $0x340] sm:$0xff]
  %v3107 = vld [vmem:[%s1 + $0x348] sm:$0xff]
  %v3108 = vld [vmem:[%s1 + $0x350] sm:$0xff]
  %v3109 = vld [vmem:[%s1 + $0x358] sm:$0xff]
  %v3110 = vld [vmem:[%s1 + $0x360] sm:$0xff]
  %v3111 = vld [vmem:[%s1 + $0x368] sm:$0xff]
  %v3112 = vld [vmem:[%s1 + $0x370] sm:$0xff]
  %v3113 = vld [vmem:[%s1 + $0x378] sm:$0xff]
  %v3114 = vld [vmem:[%s1 + $0x380] sm:$0xff]
  %v3115 = vld [vmem:[%s1 + $0x388] sm:$0xff]
  %v3116 = vld [vmem:[%s1 + $0x390] sm:$0xff]
  %v3117 = vld [vmem:[%s1 + $0x398] sm:$0xff]
  %v3118 = vld [vmem:[%s1 + $0x3a0] sm:$0xff]
  %v3119 = vld [vmem:[%s1 + $0x3a8] sm:$0xff]
  %v3120 = vld [vmem:[%s1 + $0x3b0] sm:$0xff]
  %v3121 = vld [vmem:[%s1 + $0x3b8] sm:$0xff]
  %v3122 = vld [vmem:[%s1 + $0x3c0] sm:$0xff]
  %v3123 = vld [vmem:[%s1 + $0x3c8] sm:$0xff]
  %v3124 = vld [vmem:[%s1 + $0x3d0] sm:$0xff]
  %v3125 = vld [vmem:[%s1 + $0x3d8] sm:$0xff]
  %v3126 = vld [vmem:[%s1 + $0x3e0] sm:$0xff]
  %v3127 = vld [vmem:[%s1 + $0x3e8] sm:$0xff]
  %v3128 = vld [vmem:[%s1 + $0x3f0] sm:$0xff]
  %v3129 = vld [vmem:[%s1 + $0x3f8] sm:$0xff]
  %v3130 = vld [vmem:[%s1 + $0x400] sm:$0xff]
  %v3131 = vld [vmem:[%s1 + $0x408] sm:$0xff]
  %v3132 = vld [vmem:[%s1 + $0x410] sm:$0xff]
  %v3133 = vld [vmem:[%s1 + $0x418] sm:$0xff]
  %v3134 = vld [vmem:[%s1 + $0x420] sm:$0xff]
  %v3135 = vld [vmem:[%s1 + $0x428] sm:$0xff]
  %v3136 = vld [vmem:[%s1 + $0x430] sm:$0xff]
  %v3137 = vld [vmem:[%s1 + $0x438] sm:$0xff]
  %v3138 = vld [vmem:[%s1 + $0x440] sm:$0xff]
  %v3139 = vld [vmem:[%s1 + $0x448] sm:$0xff]
  %v3140 = vld [vmem:[%s1 + $0x450] sm:$0xff]
  %v3141 = vld [vmem:[%s1 + $0x458] sm:$0xff]
  %v3142 = vld [vmem:[%s1 + $0x460] sm:$0xff]
  %v3143 = vld [vmem:[%s1 + $0x468] sm:$0xff]
  %v3144 = vld [vmem:[%s1 + $0x470] sm:$0xff]
  %v3145 = vld [vmem:[%s1 + $0x478] sm:$0xff]
  %v3146 = vld [vmem:[%s1 + $0x480] sm:$0xff]
  %v3147 = vld [vmem:[%s1 + $0x488] sm:$0xff]
  %v3148 = vld [vmem:[%s1 + $0x490] sm:$0xff]
  %v3149 = vld [vmem:[%s1 + $0x498] sm:$0xff]
  %v3150 = vld [vmem:[%s1 + $0x4a0] sm:$0xff]
  %v3151 = vld [vmem:[%s1 + $0x4a8] sm:$0xff]
  %v3152 = vld [vmem:[%s1 + $0x4b0] sm:$0xff]
  %v3153 = vld [vmem:[%s1 + $0x4b8] sm:$0xff]
  %v3154 = vld [vmem:[%s1 + $0x4c0] sm:$0xff]
  %v3155 = vld [vmem:[%s1 + $0x4c8] sm:$0xff]
  %v3156 = vld [vmem:[%s1 + $0x4d0] sm:$0xff]
  %v3157 = vld [vmem:[%s1 + $0x4d8] sm:$0xff]
  %v3158 = vld [vmem:[%s1 + $0x4e0] sm:$0xff]
  %v3159 = vld [vmem:[%s1 + $0x4e8] sm:$0xff]
  %v3160 = vld [vmem:[%s1 + $0x4f0] sm:$0xff]
  %v3161 = vld [vmem:[%s1 + $0x4f8] sm:$0xff]
  %v3162 = vld [vmem:[%s1 + $0x500] sm:$0xff]
  %v3163 = vld [vmem:[%s1 + $0x508] sm:$0xff]
  %v3164 = vld [vmem:[%s1 + $0x510] sm:$0xff]
  %v3165 = vld [vmem:[%s1 + $0x518] sm:$0xff]
  %v3166 = vld [vmem:[%s1 + $0x520] sm:$0xff]
  %v3167 = vld [vmem:[%s1 + $0x528] sm:$0xff]
  %v3168 = vld [vmem:[%s1 + $0x530] sm:$0xff]
  %v3169 = vld [vmem:[%s1 + $0x538] sm:$0xff]
  %v3170 = vld [vmem:[%s1 + $0x540] sm:$0xff]
  %v3171 = vld [vmem:[%s1 + $0x548] sm:$0xff]
  %v3172 = vld [vmem:[%s1 + $0x550] sm:$0xff]
  %v3173 = vld [vmem:[%s1 + $0x558] sm:$0xff]
  %v3174 = vld [vmem:[%s1 + $0x560] sm:$0xff]
  %v3175 = vld [vmem:[%s1 + $0x568] sm:$0xff]
  %v3176 = vld [vmem:[%s1 + $0x570] sm:$0xff]
  %v3177 = vld [vmem:[%s1 + $0x578] sm:$0xff]
  %v3178 = vld [vmem:[%s1 + $0x580] sm:$0xff]
  %v3179 = vld [vmem:[%s1 + $0x588] sm:$0xff]
  %v3180 = vld [vmem:[%s1 + $0x590] sm:$0xff]
  %v3181 = vld [vmem:[%s1 + $0x598] sm:$0xff]
  %v3182 = vld [vmem:[%s1 + $0x5a0] sm:$0xff]
  %v3183 = vld [vmem:[%s1 + $0x5a8] sm:$0xff]
  %v3184 = vld [vmem:[%s1 + $0x5b0] sm:$0xff]
  %v3185 = vld [vmem:[%s1 + $0x5b8] sm:$0xff]
  %v3186 = vld [vmem:[%s1 + $0x5c0] sm:$0xff]
  %v3187 = vld [vmem:[%s1 + $0x5c8] sm:$0xff]
  %v3188 = vld [vmem:[%s1 + $0x5d0] sm:$0xff]
  %v3189 = vld [vmem:[%s1 + $0x5d8] sm:$0xff]
  %v3190 = vld [vmem:[%s1 + $0x5e0] sm:$0xff]
  %v3191 = vld [vmem:[%s1 + $0x5e8] sm:$0xff]
  %v3192 = vld [vmem:[%s1 + $0x5f0] sm:$0xff]
  %v3193 = vld [vmem:[%s1 + $0x5f8] sm:$0xff]
  %v3194 = vld [vmem:[%s1 + $0x600] sm:$0xff]
  %v3195 = vld [vmem:[%s1 + $0x608] sm:$0xff]
  %v3196 = vld [vmem:[%s1 + $0x610] sm:$0xff]
  %v3197 = vld [vmem:[%s1 + $0x618] sm:$0xff]
  %v3198 = vld [vmem:[%s1 + $0x620] sm:$0xff]
  %v3199 = vld [vmem:[%s1 + $0x628] sm:$0xff]
  %v3200 = vld [vmem:[%s1 + $0x630] sm:$0xff]
  %v3201 = vld [vmem:[%s1 + $0x638] sm:$0xff]
  %v3202 = vld [vmem:[%s1 + $0x640] sm:$0xff]
  %v3203 = vld [vmem:[%s1 + $0x648] sm:$0xff]
  %v3204 = vld [vmem:[%s1 + $0x650] sm:$0xff]
  %v3205 = vld [vmem:[%s1 + $0x658] sm:$0xff]
  %v3206 = vld [vmem:[%s1 + $0x660] sm:$0xff]
  %v3207 = vld [vmem:[%s1 + $0x668] sm:$0xff]
  %v3208 = vld [vmem:[%s1 + $0x670] sm:$0xff]
  %v3209 = vld [vmem:[%s1 + $0x678] sm:$0xff]
  %v3210 = vld [vmem:[%s1 + $0x680] sm:$0xff]
  %v3211 = vld [vmem:[%s1 + $0x688] sm:$0xff]
  %v3212 = vld [vmem:[%s1 + $0x690] sm:$0xff]
  %v3213 = vld [vmem:[%s1 + $0x698] sm:$0xff]
  %v3214 = vld [vmem:[%s1 + $0x6a0] sm:$0xff]
  %v3215 = vld [vmem:[%s1 + $0x6a8] sm:$0xff]
  %v3216 = vld [vmem:[%s1 + $0x6b0] sm:$0xff]
  %v3217 = vld [vmem:[%s1 + $0x6b8] sm:$0xff]
  %v3218 = vld [vmem:[%s1 + $0x6c0] sm:$0xff]
  %v3219 = vld [vmem:[%s1 + $0x6c8] sm:$0xff]
  %v3220 = vld [vmem:[%s1 + $0x6d0] sm:$0xff]
  %v3221 = vld [vmem:[%s1 + $0x6d8] sm:$0xff]
  %v3222 = vld [vmem:[%s1 + $0x6e0] sm:$0xff]
  %v3223 = vld [vmem:[%s1 + $0x6e8] sm:$0xff]
  %v3224 = vld [vmem:[%s1 + $0x6f0] sm:$0xff]
  %v3225 = vld [vmem:[%s1 + $0x6f8] sm:$0xff]
  %v3226 = vld [vmem:[%s1 + $0x700] sm:$0xff]
  %v3227 = vld [vmem:[%s1 + $0x708] sm:$0xff]
  %v3228 = vld [vmem:[%s1 + $0x710] sm:$0xff]
  %v3229 = vld [vmem:[%s1 + $0x718] sm:$0xff]
  %v3230 = vld [vmem:[%s1 + $0x720] sm:$0xff]
  %v3231 = vld [vmem:[%s1 + $0x728] sm:$0xff]
  %v3232 = vld [vmem:[%s1 + $0x730] sm:$0xff]
  %v3233 = vld [vmem:[%s1 + $0x738] sm:$0xff]
  %v3234 = vld [vmem:[%s1 + $0x740] sm:$0xff]
  %v3235 = vld [vmem:[%s1 + $0x748] sm:$0xff]
  %v3236 = vld [vmem:[%s1 + $0x750] sm:$0xff]
  %v3237 = vld [vmem:[%s1 + $0x758] sm:$0xff]
  %v3238 = vld [vmem:[%s1 + $0x760] sm:$0xff]
  %v3239 = vld [vmem:[%s1 + $0x768] sm:$0xff]
  %v3240 = vld [vmem:[%s1 + $0x770] sm:$0xff]
  %v3241 = vld [vmem:[%s1 + $0x778] sm:$0xff]
  %v3242 = vld [vmem:[%s1 + $0x780] sm:$0xff]
  %v3243 = vld [vmem:[%s1 + $0x788] sm:$0xff]
  %v3244 = vld [vmem:[%s1 + $0x790] sm:$0xff]
  %v3245 = vld [vmem:[%s1 + $0x798] sm:$0xff]
  %v3246 = vld [vmem:[%s1 + $0x7a0] sm:$0xff]
  %v3247 = vld [vmem:[%s1 + $0x7a8] sm:$0xff]
  %v3248 = vld [vmem:[%s1 + $0x7b0] sm:$0xff]
  %v3249 = vld [vmem:[%s1 + $0x7b8] sm:$0xff]
  %v3250 = vld [vmem:[%s1 + $0x7c0] sm:$0xff]
  %v3251 = vld [vmem:[%s1 + $0x7c8] sm:$0xff]
  %v3252 = vld [vmem:[%s1 + $0x7d0] sm:$0xff]
  %v3253 = vld [vmem:[%s1 + $0x7d8] sm:$0xff]
  %v3254 = vld [vmem:[%s1 + $0x7e0] sm:$0xff]
  %v3255 = vld [vmem:[%s1 + $0x7e8] sm:$0xff]
  %v3256 = vld [vmem:[%s1 + $0x7f0] sm:$0xff]
  %v3257 = vld [vmem:[%s1 + $0x7f8] sm:$0xff]
  %v3258 = vld [vmem:[%s1 + $0x800] sm:$0xff]
  %v3259 = vld [vmem:[%s1 + $0x808] sm:$0xff]
  %v3260 = vld [vmem:[%s1 + $0x810] sm:$0xff]
  %v3261 = vld [vmem:[%s1 + $0x818] sm:$0xff]
  %v3262 = vld [vmem:[%s1 + $0x820] sm:$0xff]
  %v3263 = vld [vmem:[%s1 + $0x828] sm:$0xff]
  %v3264 = vld [vmem:[%s1 + $0x830] sm:$0xff]
  %v3265 = vld [vmem:[%s1 + $0x838] sm:$0xff]
  %v3266 = vld [vmem:[%s1 + $0x840] sm:$0xff]
  %v3267 = vld [vmem:[%s1 + $0x848] sm:$0xff]
  %v3268 = vld [vmem:[%s1 + $0x850] sm:$0xff]
  %v3269 = vld [vmem:[%s1 + $0x858] sm:$0xff]
  %v3270 = vld [vmem:[%s1 + $0x860] sm:$0xff]
  %v3271 = vld [vmem:[%s1 + $0x868] sm:$0xff]
  %v3272 = vld [vmem:[%s1 + $0x870] sm:$0xff]
  %v3273 = vld [vmem:[%s1 + $0x878] sm:$0xff]
  %v3274 = vld [vmem:[%s1 + $0x880] sm:$0xff]
  %v3275 = vld [vmem:[%s1 + $0x888] sm:$0xff]
  %v3276 = vld [vmem:[%s1 + $0x890] sm:$0xff]
  %v3277 = vld [vmem:[%s1 + $0x898] sm:$0xff]
  %v3278 = vld [vmem:[%s1 + $0x8a0] sm:$0xff]
  %v3279 = vld [vmem:[%s1 + $0x8a8] sm:$0xff]
  %v3280 = vld [vmem:[%s1 + $0x8b0] sm:$0xff]
  %v3281 = vld [vmem:[%s1 + $0x8b8] sm:$0xff]
  %v3282 = vld [vmem:[%s1 + $0x8c0] sm:$0xff]
  %v3283 = vld [vmem:[%s1 + $0x8c8] sm:$0xff]
  %v3284 = vld [vmem:[%s1 + $0x8d0] sm:$0xff]
  %v3285 = vld [vmem:[%s1 + $0x8d8] sm:$0xff]
  %v3286 = vld [vmem:[%s1 + $0x8e0] sm:$0xff]
  %v3287 = vld [vmem:[%s1 + $0x8e8] sm:$0xff]
  %v3288 = vld [vmem:[%s1 + $0x8f0] sm:$0xff]
  %v3289 = vld [vmem:[%s1 + $0x8f8] sm:$0xff]
  %v3290 = vld [vmem:[%s2] sm:$0x3]
  %v3292 = vlaneseq
  %v3293 = vshrl.u32 %v3292, 7
  %v3294 = vsub.s32 0, %v3293
  %v3295 = vrot.slane %v3290, %v3294
  %v3296 = vlaneseq
  %v3297 = vshrl.u32 %v3296, 7
  %v3298 = vsub.s32 1, %v3297
  %v3299 = vrot.slane %v3290, %v3298
  %v3305 = vcombine.high %v2999, %v2999
  %v3307 = vunpack.c.l.s4 1983009808
  %v3308 = vunpack.c.0.s8 %v3307
  %v3309 = vlaneseq
  %v3310 = vshrl.u32 %v3309, 7
  %v3311 = vsub.s32 %v3308, %v3310
  %v3312 = vrot.slane %v2999, %v3311
  %v3314 = vunpack.c.l.s4 1983009808
  %v3315 = vunpack.c.0.s8 %v3314
  %v3316 = vlaneseq
  %v3317 = vshrl.u32 %v3316, 7
  %v3318 = vsub.s32 %v3315, %v3317
  %v3319 = vrot.slane %v3305, %v3318
  %v3320 = vcombine.high %v3312, %v3312
  %v3321 = vcombine.high %v3319, %v3319
  %v3322 = vcombine.high %v3000, %v3000
  %v3324 = vunpack.c.l.s4 1983009808
  %v3325 = vunpack.c.0.s8 %v3324
  %v3326 = vlaneseq
  %v3327 = vshrl.u32 %v3326, 7
  %v3328 = vsub.s32 %v3325, %v3327
  %v3329 = vrot.slane %v3000, %v3328
  %v3331 = vunpack.c.l.s4 1983009808
  %v3332 = vunpack.c.0.s8 %v3331
  %v3333 = vlaneseq
  %v3334 = vshrl.u32 %v3333, 7
  %v3335 = vsub.s32 %v3332, %v3334
  %v3336 = vrot.slane %v3322, %v3335
  %v3337 = vcombine.high %v3329, %v3329
  %v3338 = vcombine.high %v3336, %v3336
  %v3340 = vunpack.c.l.s4 1983009808
  %v3341 = vunpack.c.0.s8 %v3340
  %v3342 = vlaneseq
  %v3343 = vshrl.u32 %v3342, 7
  %v3344 = vsub.s32 %v3341, %v3343
  %v3345 = vrot.slane %v3001, %v3344
  %3355 = vmatprep.subr.mxu0 %v3003
  %3356 = vmatpush1.msra.mxu0 %v3002
  %3357 = vmatprep.subr.mxu0 %v3005
  %3358 = vmatpush1.msra.mxu0 %v3004
  %3359 = vmatprep.subr.mxu0 %v3007
  %3360 = vmatpush1.msra.mxu0 %v3006
  %3361 = vmatprep.subr.mxu0 %v3009
  %3362 = vmatpush1.msra.mxu0 %v3008
  %3363 = vmatprep.subr.mxu0 %v3011
  %3364 = vmatpush1.msra.mxu0 %v3010
  %3365 = vmatprep.subr.mxu0 %v3013
  %3366 = vmatpush1.msra.mxu0 %v3012
  %3367 = vmatprep.subr.mxu0 %v3015
  %3368 = vmatpush1.msra.mxu0 %v3014
  %3369 = vmatprep.subr.mxu0 %v3017
  %3370 = vmatpush1.msra.mxu0 %v3016
  %3371 = vmatprep.subr.mxu0 %v3019
  %3372 = vmatpush1.msra.mxu0 %v3018
  %3373 = vmatprep.subr.mxu0 %v3021
  %3374 = vmatpush1.msra.mxu0 %v3020
  %3375 = vmatprep.subr.mxu0 %v3023
  %3376 = vmatpush1.msra.mxu0 %v3022
  %3377 = vmatprep.subr.mxu0 %v3025
  %3378 = vmatpush1.msra.mxu0 %v3024
  %3379 = vmatprep.subr.mxu0 %v3027
  %3380 = vmatpush1.msra.mxu0 %v3026
  %3381 = vmatprep.subr.mxu0 %v3029
  %3382 = vmatpush1.msra.mxu0 %v3028
  %3383 = vmatprep.subr.mxu0 %v3031
  %3384 = vmatpush1.msra.mxu0 %v3030
  %3385 = vmatprep.subr.mxu0 %v3033
  %3386 = vmatpush1.msra.mxu0 %v3032
  %3387 = vmatprep.subr.mxu0 %v3035
  %3388 = vmatpush1.msra.mxu0 %v3034
  %3389 = vmatprep.subr.mxu0 %v3037
  %3390 = vmatpush1.msra.mxu0 %v3036
  %3391 = vmatprep.subr.mxu0 %v3039
  %3392 = vmatpush1.msra.mxu0 %v3038
  %3393 = vmatprep.subr.mxu0 %v3041
  %3394 = vmatpush1.msra.mxu0 %v3040
  %3395 = vmatprep.subr.mxu0 %v3043
  %3396 = vmatpush1.msra.mxu0 %v3042
  %3397 = vmatprep.subr.mxu0 %v3045
  %3398 = vmatpush1.msra.mxu0 %v3044
  %3399 = vmatprep.subr.mxu0 %v3047
  %3400 = vmatpush1.msra.mxu0 %v3046
  %3401 = vmatprep.subr.mxu0 %v3049
  %3402 = vmatpush1.msra.mxu0 %v3048
  %3403 = vmatprep.subr.mxu0 %v3051
  %3404 = vmatpush1.msra.mxu0 %v3050
  %3405 = vmatprep.subr.mxu0 %v3053
  %3406 = vmatpush1.msra.mxu0 %v3052
  %3407 = vmatprep.subr.mxu0 %v3055
  %3408 = vmatpush1.msra.mxu0 %v3054
  %3409 = vmatprep.subr.mxu0 %v3057
  %3410 = vmatpush1.msra.mxu0 %v3056
  %3411 = vmatprep.subr.mxu0 %v3059
  %3412 = vmatpush1.msra.mxu0 %v3058
  %3413 = vmatprep.subr.mxu0 %v3061
  %3414 = vmatpush1.msra.mxu0 %v3060
  %3415 = vmatprep.subr.mxu0 %v3063
  %3416 = vmatpush1.msra.mxu0 %v3062
  %3417 = vmatprep.subr.mxu0 %v3065
  %3418 = vmatpush1.msra.mxu0 %v3064
  %3419 = vmatprep.mubr.f32.mxu0 %v3320
  %3420 = vmatmul.mubr.f32.gmra.mrb[0].mxu0 %v3312
  %v3421 = vpop.f32.mrb[0].mxu0
  %v3422 = vadd.f32 %v3295, %v3421
  %v3423 = vpop.f32.mrb[0].mxu0
  %v3424 = vadd.f32 %v3299, %v3423
  %3425 = vdwg.mxu0
  %3426 = vmatprep.subr.mxu0 %v3067
  %3427 = vmatpush1.msra.mxu0 %v3066
  %3428 = vmatprep.subr.mxu0 %v3069
  %3429 = vmatpush1.msra.mxu0 %v3068
  %3430 = vmatprep.subr.mxu0 %v3071
  %3431 = vmatpush1.msra.mxu0 %v3070
  %3432 = vmatprep.subr.mxu0 %v3073
  %3433 = vmatpush1.msra.mxu0 %v3072
  %3434 = vmatprep.subr.mxu0 %v3075
  %3435 = vmatpush1.msra.mxu0 %v3074
  %3436 = vmatprep.subr.mxu0 %v3077
  %3437 = vmatpush1.msra.mxu0 %v3076
  %3438 = vmatprep.subr.mxu0 %v3079
  %3439 = vmatpush1.msra.mxu0 %v3078
  %3440 = vmatprep.subr.mxu0 %v3081
  %3441 = vmatpush1.msra.mxu0 %v3080
  %3442 = vmatprep.subr.mxu0 %v3083
  %3443 = vmatpush1.msra.mxu0 %v3082
  %3444 = vmatprep.subr.mxu0 %v3085
  %3445 = vmatpush1.msra.mxu0 %v3084
  %3446 = vmatprep.subr.mxu0 %v3087
  %3447 = vmatpush1.msra.mxu0 %v3086
  %3448 = vmatprep.subr.mxu0 %v3089
  %3449 = vmatpush1.msra.mxu0 %v3088
  %3450 = vmatprep.subr.mxu0 %v3091
  %3451 = vmatpush1.msra.mxu0 %v3090
  %3452 = vmatprep.subr.mxu0 %v3093
  %3453 = vmatpush1.msra.mxu0 %v3092
  %3454 = vmatprep.subr.mxu0 %v3095
  %3455 = vmatpush1.msra.mxu0 %v3094
  %3456 = vmatprep.subr.mxu0 %v3097
  %3457 = vmatpush1.msra.mxu0 %v3096
  %3458 = vmatprep.subr.mxu0 %v3099
  %3459 = vmatpush1.msra.mxu0 %v3098
  %3460 = vmatprep.subr.mxu0 %v3101
  %3461 = vmatpush1.msra.mxu0 %v3100
  %3462 = vmatprep.subr.mxu0 %v3103
  %3463 = vmatpush1.msra.mxu0 %v3102
  %3464 = vmatprep.subr.mxu0 %v3105
  %3465 = vmatpush1.msra.mxu0 %v3104
  %3466 = vmatprep.subr.mxu0 %v3107
  %3467 = vmatpush1.msra.mxu0 %v3106
  %3468 = vmatprep.subr.mxu0 %v3109
  %3469 = vmatpush1.msra.mxu0 %v3108
  %3470 = vmatprep.subr.mxu0 %v3111
  %3471 = vmatpush1.msra.mxu0 %v3110
  %3472 = vmatprep.subr.mxu0 %v3113
  %3473 = vmatpush1.msra.mxu0 %v3112
  %3474 = vmatprep.subr.mxu0 %v3115
  %3475 = vmatpush1.msra.mxu0 %v3114
  %3476 = vmatprep.subr.mxu0 %v3117
  %3477 = vmatpush1.msra.mxu0 %v3116
  %3478 = vmatprep.subr.mxu0 %v3119
  %3479 = vmatpush1.msra.mxu0 %v3118
  %3480 = vmatprep.subr.mxu0 %v3121
  %3481 = vmatpush1.msra.mxu0 %v3120
  %3482 = vmatprep.subr.mxu0 %v3123
  %3483 = vmatpush1.msra.mxu0 %v3122
  %3484 = vmatprep.subr.mxu0 %v3125
  %3485 = vmatpush1.msra.mxu0 %v3124
  %3486 = vmatprep.subr.mxu0 %v3127
  %3487 = vmatpush1.msra.mxu0 %v3126
  %3488 = vmatprep.subr.mxu0 %v3129
  %3489 = vmatpush1.msra.mxu0 %v3128
  %3490 = vmatprep.mubr.f32.mxu0 %v3321
  %3491 = vmatmul.mubr.f32.gmra.mrb[0].mxu0 %v3319
  %v3492 = vpop.f32.mrb[0].mxu0
  %v3493 = vadd.f32 %v3422, %v3492
  %v3494 = vpop.f32.mrb[0].mxu0
  %v3495 = vadd.f32 %v3424, %v3494
  %3496 = vdwg.mxu0
  %3497 = vmatprep.subr.mxu0 %v3131
  %3498 = vmatpush1.msra.mxu0 %v3130
  %3499 = vmatprep.subr.mxu0 %v3133
  %3500 = vmatpush1.msra.mxu0 %v3132
  %3501 = vmatprep.subr.mxu0 %v3135
  %3502 = vmatpush1.msra.mxu0 %v3134
  %3503 = vmatprep.subr.mxu0 %v3137
  %3504 = vmatpush1.msra.mxu0 %v3136
  %3505 = vmatprep.subr.mxu0 %v3139
  %3506 = vmatpush1.msra.mxu0 %v3138
  %3507 = vmatprep.subr.mxu0 %v3141
  %3508 = vmatpush1.msra.mxu0 %v3140
  %3509 = vmatprep.subr.mxu0 %v3143
  %3510 = vmatpush1.msra.mxu0 %v3142
  %3511 = vmatprep.subr.mxu0 %v3145
  %3512 = vmatpush1.msra.mxu0 %v3144
  %3513 = vmatprep.subr.mxu0 %v3147
  %3514 = vmatpush1.msra.mxu0 %v3146
  %3515 = vmatprep.subr.mxu0 %v3149
  %3516 = vmatpush1.msra.mxu0 %v3148
  %3517 = vmatprep.subr.mxu0 %v3151
  %3518 = vmatpush1.msra.mxu0 %v3150
  %3519 = vmatprep.subr.mxu0 %v3153
  %3520 = vmatpush1.msra.mxu0 %v3152
  %3521 = vmatprep.subr.mxu0 %v3155
  %3522 = vmatpush1.msra.mxu0 %v3154
  %3523 = vmatprep.subr.mxu0 %v3157
  %3524 = vmatpush1.msra.mxu0 %v3156
  %3525 = vmatprep.subr.mxu0 %v3159
  %3526 = vmatpush1.msra.mxu0 %v3158
  %3527 = vmatprep.subr.mxu0 %v3161
  %3528 = vmatpush1.msra.mxu0 %v3160
  %3529 = vmatprep.subr.mxu0 %v3163
  %3530 = vmatpush1.msra.mxu0 %v3162
  %3531 = vmatprep.subr.mxu0 %v3165
  %3532 = vmatpush1.msra.mxu0 %v3164
  %3533 = vmatprep.subr.mxu0 %v3167
  %3534 = vmatpush1.msra.mxu0 %v3166
  %3535 = vmatprep.subr.mxu0 %v3169
  %3536 = vmatpush1.msra.mxu0 %v3168
  %3537 = vmatprep.subr.mxu0 %v3171
  %3538 = vmatpush1.msra.mxu0 %v3170
  %3539 = vmatprep.subr.mxu0 %v3173
  %3540 = vmatpush1.msra.mxu0 %v3172
  %3541 = vmatprep.subr.mxu0 %v3175
  %3542 = vmatpush1.msra.mxu0 %v3174
  %3543 = vmatprep.subr.mxu0 %v3177
  %3544 = vmatpush1.msra.mxu0 %v3176
  %3545 = vmatprep.subr.mxu0 %v3179
  %3546 = vmatpush1.msra.mxu0 %v3178
  %3547 = vmatprep.subr.mxu0 %v3181
  %3548 = vmatpush1.msra.mxu0 %v3180
  %3549 = vmatprep.subr.mxu0 %v3183
  %3550 = vmatpush1.msra.mxu0 %v3182
  %3551 = vmatprep.subr.mxu0 %v3185
  %3552 = vmatpush1.msra.mxu0 %v3184
  %3553 = vmatprep.subr.mxu0 %v3187
  %3554 = vmatpush1.msra.mxu0 %v3186
  %3555 = vmatprep.subr.mxu0 %v3189
  %3556 = vmatpush1.msra.mxu0 %v3188
  %3557 = vmatprep.subr.mxu0 %v3191
  %3558 = vmatpush1.msra.mxu0 %v3190
  %3559 = vmatprep.subr.mxu0 %v3193
  %3560 = vmatpush1.msra.mxu0 %v3192
  %3561 = vmatprep.mubr.f32.mxu0 %v3337
  %3562 = vmatmul.mubr.f32.gmra.mrb[0].mxu0 %v3329
  %v3563 = vpop.f32.mrb[0].mxu0
  %v3564 = vadd.f32 %v3493, %v3563
  %v3565 = vpop.f32.mrb[0].mxu0
  %v3566 = vadd.f32 %v3495, %v3565
  %3567 = vdwg.mxu0
  %3568 = vmatprep.subr.mxu0 %v3195
  %3569 = vmatpush1.msra.mxu0 %v3194
  %3570 = vmatprep.subr.mxu0 %v3197
  %3571 = vmatpush1.msra.mxu0 %v3196
  %3572 = vmatprep.subr.mxu0 %v3199
  %3573 = vmatpush1.msra.mxu0 %v3198
  %3574 = vmatprep.subr.mxu0 %v3201
  %3575 = vmatpush1.msra.mxu0 %v3200
  %3576 = vmatprep.subr.mxu0 %v3203
  %3577 = vmatpush1.msra.mxu0 %v3202
  %3578 = vmatprep.subr.mxu0 %v3205
  %3579 = vmatpush1.msra.mxu0 %v3204
  %3580 = vmatprep.subr.mxu0 %v3207
  %3581 = vmatpush1.msra.mxu0 %v3206
  %3582 = vmatprep.subr.mxu0 %v3209
  %3583 = vmatpush1.msra.mxu0 %v3208
  %3584 = vmatprep.subr.mxu0 %v3211
  %3585 = vmatpush1.msra.mxu0 %v3210
  %3586 = vmatprep.subr.mxu0 %v3213
  %3587 = vmatpush1.msra.mxu0 %v3212
  %3588 = vmatprep.subr.mxu0 %v3215
  %3589 = vmatpush1.msra.mxu0 %v3214
  %3590 = vmatprep.subr.mxu0 %v3217
  %3591 = vmatpush1.msra.mxu0 %v3216
  %3592 = vmatprep.subr.mxu0 %v3219
  %3593 = vmatpush1.msra.mxu0 %v3218
  %3594 = vmatprep.subr.mxu0 %v3221
  %3595 = vmatpush1.msra.mxu0 %v3220
  %3596 = vmatprep.subr.mxu0 %v3223
  %3597 = vmatpush1.msra.mxu0 %v3222
  %3598 = vmatprep.subr.mxu0 %v3225
  %3599 = vmatpush1.msra.mxu0 %v3224
  %3600 = vmatprep.subr.mxu0 %v3227
  %3601 = vmatpush1.msra.mxu0 %v3226
  %3602 = vmatprep.subr.mxu0 %v3229
  %3603 = vmatpush1.msra.mxu0 %v3228
  %3604 = vmatprep.subr.mxu0 %v3231
  %3605 = vmatpush1.msra.mxu0 %v3230
  %3606 = vmatprep.subr.mxu0 %v3233
  %3607 = vmatpush1.msra.mxu0 %v3232
  %3608 = vmatprep.subr.mxu0 %v3235
  %3609 = vmatpush1.msra.mxu0 %v3234
  %3610 = vmatprep.subr.mxu0 %v3237
  %3611 = vmatpush1.msra.mxu0 %v3236
  %3612 = vmatprep.subr.mxu0 %v3239
  %3613 = vmatpush1.msra.mxu0 %v3238
  %3614 = vmatprep.subr.mxu0 %v3241
  %3615 = vmatpush1.msra.mxu0 %v3240
  %3616 = vmatprep.subr.mxu0 %v3243
  %3617 = vmatpush1.msra.mxu0 %v3242
  %3618 = vmatprep.subr.mxu0 %v3245
  %3619 = vmatpush1.msra.mxu0 %v3244
  %3620 = vmatprep.subr.mxu0 %v3247
  %3621 = vmatpush1.msra.mxu0 %v3246
  %3622 = vmatprep.subr.mxu0 %v3249
  %3623 = vmatpush1.msra.mxu0 %v3248
  %3624 = vmatprep.subr.mxu0 %v3251
  %3625 = vmatpush1.msra.mxu0 %v3250
  %3626 = vmatprep.subr.mxu0 %v3253
  %3627 = vmatpush1.msra.mxu0 %v3252
  %3628 = vmatprep.subr.mxu0 %v3255
  %3629 = vmatpush1.msra.mxu0 %v3254
  %3630 = vmatprep.subr.mxu0 %v3257
  %3631 = vmatpush1.msra.mxu0 %v3256
  %3632 = vmatprep.mubr.f32.mxu0 %v3338
  %3633 = vmatmul.mubr.f32.gmra.mrb[0].mxu0 %v3336
  %v3634 = vpop.f32.mrb[0].mxu0
  %v3635 = vadd.f32 %v3564, %v3634
  %v3636 = vpop.f32.mrb[0].mxu0
  %v3637 = vadd.f32 %v3566, %v3636
  %3638 = vdwg.mxu0
  %3639 = vmatprep.subr.mxu0 %v3259
  %3640 = vmatpush1.msra.mxu0 %v3258
  %3641 = vmatprep.subr.mxu0 %v3261
  %3642 = vmatpush1.msra.mxu0 %v3260
  %3643 = vmatprep.subr.mxu0 %v3263
  %3644 = vmatpush1.msra.mxu0 %v3262
  %3645 = vmatprep.subr.mxu0 %v3265
  %3646 = vmatpush1.msra.mxu0 %v3264
  %3647 = vmatprep.subr.mxu0 %v3267
  %3648 = vmatpush1.msra.mxu0 %v3266
  %3649 = vmatprep.subr.mxu0 %v3269
  %3650 = vmatpush1.msra.mxu0 %v3268
  %3651 = vmatprep.subr.mxu0 %v3271
  %3652 = vmatpush1.msra.mxu0 %v3270
  %3653 = vmatprep.subr.mxu0 %v3273
  %3654 = vmatpush1.msra.mxu0 %v3272
  %3655 = vmatprep.subr.mxu0 %v3275
  %3656 = vmatpush1.msra.mxu0 %v3274
  %3657 = vmatprep.subr.mxu0 %v3277
  %3658 = vmatpush1.msra.mxu0 %v3276
  %3659 = vmatprep.subr.mxu0 %v3279
  %3660 = vmatpush1.msra.mxu0 %v3278
  %3661 = vmatprep.subr.mxu0 %v3281
  %3662 = vmatpush1.msra.mxu0 %v3280
  %3663 = vmatprep.subr.mxu0 %v3283
  %3664 = vmatpush1.msra.mxu0 %v3282
  %3665 = vmatprep.subr.mxu0 %v3285
  %3666 = vmatpush1.msra.mxu0 %v3284
  %3667 = vmatprep.subr.mxu0 %v3287
  %3668 = vmatpush1.msra.mxu0 %v3286
  %3669 = vmatprep.subr.mxu0 %v3289
  %3670 = vmatpush1.msra.mxu0 %v3288
  %3671 = vmatprep.subr.mxu0 0.0
  %3672 = vmatpush1.msra.mxu0 0.0
  %3673 = vmatprep.subr.mxu0 0.0
  %3674 = vmatpush1.msra.mxu0 0.0
  %3675 = vmatprep.subr.mxu0 0.0
  %3676 = vmatpush1.msra.mxu0 0.0
  %3677 = vmatprep.subr.mxu0 0.0
  %3678 = vmatpush1.msra.mxu0 0.0
  %3679 = vmatprep.subr.mxu0 0.0
  %3680 = vmatpush1.msra.mxu0 0.0
  %3681 = vmatprep.subr.mxu0 0.0
  %3682 = vmatpush1.msra.mxu0 0.0
  %3683 = vmatprep.subr.mxu0 0.0
  %3684 = vmatpush1.msra.mxu0 0.0
  %3685 = vmatprep.subr.mxu0 0.0
  %3686 = vmatpush1.msra.mxu0 0.0
  %3687 = vmatprep.subr.mxu0 0.0
  %3688 = vmatpush1.msra.mxu0 0.0
  %3689 = vmatprep.subr.mxu0 0.0
  %3690 = vmatpush1.msra.mxu0 0.0
  %3691 = vmatprep.subr.mxu0 0.0
  %3692 = vmatpush1.msra.mxu0 0.0
  %3693 = vmatprep.subr.mxu0 0.0
  %3694 = vmatpush1.msra.mxu0 0.0
  %3695 = vmatprep.subr.mxu0 0.0
  %3696 = vmatpush1.msra.mxu0 0.0
  %3697 = vmatprep.subr.mxu0 0.0
  %3698 = vmatpush1.msra.mxu0 0.0
  %3699 = vmatprep.subr.mxu0 0.0
  %3700 = vmatpush1.msra.mxu0 0.0
  %3701 = vmatprep.subr.mxu0 0.0
  %3702 = vmatpush1.msra.mxu0 0.0
  %3703 = vmatprep.mubr.f32.mxu0 0.0
  %3704 = vmatmul.mubr.f32.gmra.mrb[0].mxu0 %v3345
  %v3705 = vpop.f32.mrb[0].mxu0
  %v3706 = vadd.f32 %v3635, %v3705
  %v3707 = vpop.f32.mrb[0].mxu0
  %v3708 = vadd.f32 %v3637, %v3707
  %3709 = vdwg.mxu0
  %v3710 = vmax.f32 %v3706, 0.0
  %v3711 = vmax.f32 %v3708, 0.0
  %v3714 = vcombine.low %v3710, %v3711
  %v3716 = vunpack.c.l.s4 1983009808
  %v3717 = vunpack.c.0.s8 %v3716
  %v3718 = vlaneseq
  %v3719 = vshrl.u32 %v3718, 7
  %v3720 = vsub.s32 %v3717, %v3719
  %v3721 = vrot.slane %v3714, %v3720
  %3723 = vst [vmem:[#allocation2 + $0x10] sm:$0xf] %v3721
  %v3724 = vld [vmem:[%s0 + $0x2c] sm:$0xff]
  %v3725 = vld [vmem:[%s0 + $0x34] sm:$0xff]
  %v3726 = vld [vmem:[%s0 + $0x3c] sm:$0xf]
  %v3727 = vld [vmem:[%s1] sm:$0xff]
  %v3728 = vld [vmem:[%s1 + $0x8] sm:$0xff]
  %v3729 = vld [vmem:[%s1 + $0x10] sm:$0xff]
  %v3730 = vld [vmem:[%s1 + $0x18] sm:$0xff]
  %v3731 = vld [vmem:[%s1 + $0x20] sm:$0xff]
  %v3732 = vld [vmem:[%s1 + $0x28] sm:$0xff]
  %v3733 = vld [vmem:[%s1 + $0x30] sm:$0xff]
  %v3734 = vld [vmem:[%s1 + $0x38] sm:$0xff]
  %v3735 = vld [vmem:[%s1 + $0x40] sm:$0xff]
  %v3736 = vld [vmem:[%s1 + $0x48] sm:$0xff]
  %v3737 = vld [vmem:[%s1 + $0x50] sm:$0xff]
  %v3738 = vld [vmem:[%s1 + $0x58] sm:$0xff]
  %v3739 = vld [vmem:[%s1 + $0x60] sm:$0xff]
  %v3740 = vld [vmem:[%s1 + $0x68] sm:$0xff]
  %v3741 = vld [vmem:[%s1 + $0x70] sm:$0xff]
  %v3742 = vld [vmem:[%s1 + $0x78] sm:$0xff]
  %v3743 = vld [vmem:[%s1 + $0x80] sm:$0xff]
  %v3744 = vld [vmem:[%s1 + $0x88] sm:$0xff]
  %v3745 = vld [vmem:[%s1 + $0x90] sm:$0xff]
  %v3746 = vld [vmem:[%s1 + $0x98] sm:$0xff]
  %v3747 = vld [vmem:[%s1 + $0xa0] sm:$0xff]
  %v3748 = vld [vmem:[%s1 + $0xa8] sm:$0xff]
  %v3749 = vld [vmem:[%s1 + $0xb0] sm:$0xff]
  %v3750 = vld [vmem:[%s1 + $0xb8] sm:$0xff]
  %v3751 = vld [vmem:[%s1 + $0xc0] sm:$0xff]
  %v3752 = vld [vmem:[%s1 + $0xc8] sm:$0xff]
  %v3753 = vld [vmem:[%s1 + $0xd0] sm:$0xff]
  %v3754 = vld [vmem:[%s1 + $0xd8] sm:$0xff]
  %v3755 = vld [vmem:[%s1 + $0xe0] sm:$0xff]
  %v3756 = vld [vmem:[%s1 + $0xe8] sm:$0xff]
  %v3757 = vld [vmem:[%s1 + $0xf0] sm:$0xff]
  %v3758 = vld [vmem:[%s1 + $0xf8] sm:$0xff]
  %v3759 = vld [vmem:[%s1 + $0x100] sm:$0xff]
  %v3760 = vld [vmem:[%s1 + $0x108] sm:$0xff]
  %v3761 = vld [vmem:[%s1 + $0x110] sm:$0xff]
  %v3762 = vld [vmem:[%s1 + $0x118] sm:$0xff]
  %v3763 = vld [vmem:[%s1 + $0x120] sm:$0xff]
  %v3764 = vld [vmem:[%s1 + $0x128] sm:$0xff]
  %v3765 = vld [vmem:[%s1 + $0x130] sm:$0xff]
  %v3766 = vld [vmem:[%s1 + $0x138] sm:$0xff]
  %v3767 = vld [vmem:[%s1 + $0x140] sm:$0xff]
  %v3768 = vld [vmem:[%s1 + $0x148] sm:$0xff]
  %v3769 = vld [vmem:[%s1 + $0x150] sm:$0xff]
  %v3770 = vld [vmem:[%s1 + $0x158] sm:$0xff]
  %v3771 = vld [vmem:[%s1 + $0x160] sm:$0xff]
  %v3772 = vld [vmem:[%s1 + $0x168] sm:$0xff]
  %v3773 = vld [vmem:[%s1 + $0x170] sm:$0xff]
  %v3774 = vld [vmem:[%s1 + $0x178] sm:$0xff]
  %v3775 = vld [vmem:[%s1 + $0x180] sm:$0xff]
  %v3776 = vld [vmem:[%s1 + $0x188] sm:$0xff]
  %v3777 = vld [vmem:[%s1 + $0x190] sm:$0xff]
  %v3778 = vld [vmem:[%s1 + $0x198] sm:$0xff]
  %v3779 = vld [vmem:[%s1 + $0x1a0] sm:$0xff]
  %v3780 = vld [vmem:[%s1 + $0x1a8] sm:$0xff]
  %v3781 = vld [vmem:[%s1 + $0x1b0] sm:$0xff]
  %v3782 = vld [vmem:[%s1 + $0x1b8] sm:$0xff]
  %v3783 = vld [vmem:[%s1 + $0x1c0] sm:$0xff]
  %v3784 = vld [vmem:[%s1 + $0x1c8] sm:$0xff]
  %v3785 = vld [vmem:[%s1 + $0x1d0] sm:$0xff]
  %v3786 = vld [vmem:[%s1 + $0x1d8] sm:$0xff]
  %v3787 = vld [vmem:[%s1 + $0x1e0] sm:$0xff]
  %v3788 = vld [vmem:[%s1 + $0x1e8] sm:$0xff]
  %v3789 = vld [vmem:[%s1 + $0x1f0] sm:$0xff]
  %v3790 = vld [vmem:[%s1 + $0x1f8] sm:$0xff]
  %v3791 = vld [vmem:[%s1 + $0x200] sm:$0xff]
  %v3792 = vld [vmem:[%s1 + $0x208] sm:$0xff]
  %v3793 = vld [vmem:[%s1 + $0x210] sm:$0xff]
  %v3794 = vld [vmem:[%s1 + $0x218] sm:$0xff]
  %v3795 = vld [vmem:[%s1 + $0x220] sm:$0xff]
  %v3796 = vld [vmem:[%s1 + $0x228] sm:$0xff]
  %v3797 = vld [vmem:[%s1 + $0x230] sm:$0xff]
  %v3798 = vld [vmem:[%s1 + $0x238] sm:$0xff]
  %v3799 = vld [vmem:[%s1 + $0x240] sm:$0xff]
  %v3800 = vld [vmem:[%s1 + $0x248] sm:$0xff]
  %v3801 = vld [vmem:[%s1 + $0x250] sm:$0xff]
  %v3802 = vld [vmem:[%s1 + $0x258] sm:$0xff]
  %v3803 = vld [vmem:[%s1 + $0x260] sm:$0xff]
  %v3804 = vld [vmem:[%s1 + $0x268] sm:$0xff]
  %v3805 = vld [vmem:[%s1 + $0x270] sm:$0xff]
  %v3806 = vld [vmem:[%s1 + $0x278] sm:$0xff]
  %v3807 = vld [vmem:[%s1 + $0x280] sm:$0xff]
  %v3808 = vld [vmem:[%s1 + $0x288] sm:$0xff]
  %v3809 = vld [vmem:[%s1 + $0x290] sm:$0xff]
  %v3810 = vld [vmem:[%s1 + $0x298] sm:$0xff]
  %v3811 = vld [vmem:[%s1 + $0x2a0] sm:$0xff]
  %v3812 = vld [vmem:[%s1 + $0x2a8] sm:$0xff]
  %v3813 = vld [vmem:[%s1 + $0x2b0] sm:$0xff]
  %v3814 = vld [vmem:[%s1 + $0x2b8] sm:$0xff]
  %v3815 = vld [vmem:[%s1 + $0x2c0] sm:$0xff]
  %v3816 = vld [vmem:[%s1 + $0x2c8] sm:$0xff]
  %v3817 = vld [vmem:[%s1 + $0x2d0] sm:$0xff]
  %v3818 = vld [vmem:[%s1 + $0x2d8] sm:$0xff]
  %v3819 = vld [vmem:[%s1 + $0x2e0] sm:$0xff]
  %v3820 = vld [vmem:[%s1 + $0x2e8] sm:$0xff]
  %v3821 = vld [vmem:[%s1 + $0x2f0] sm:$0xff]
  %v3822 = vld [vmem:[%s1 + $0x2f8] sm:$0xff]
  %v3823 = vld [vmem:[%s1 + $0x300] sm:$0xff]
  %v3824 = vld [vmem:[%s1 + $0x308] sm:$0xff]
  %v3825 = vld [vmem:[%s1 + $0x310] sm:$0xff]
  %v3826 = vld [vmem:[%s1 + $0x318] sm:$0xff]
  %v3827 = vld [vmem:[%s1 + $0x320] sm:$0xff]
  %v3828 = vld [vmem:[%s1 + $0x328] sm:$0xff]
  %v3829 = vld [vmem:[%s1 + $0x330] sm:$0xff]
  %v3830 = vld [vmem:[%s1 + $0x338] sm:$0xff]
  %v3831 = vld [vmem:[%s1 + $0x340] sm:$0xff]
  %v3832 = vld [vmem:[%s1 + $0x348] sm:$0xff]
  %v3833 = vld [vmem:[%s1 + $0x350] sm:$0xff]
  %v3834 = vld [vmem:[%s1 + $0x358] sm:$0xff]
  %v3835 = vld [vmem:[%s1 + $0x360] sm:$0xff]
  %v3836 = vld [vmem:[%s1 + $0x368] sm:$0xff]
  %v3837 = vld [vmem:[%s1 + $0x370] sm:$0xff]
  %v3838 = vld [vmem:[%s1 + $0x378] sm:$0xff]
  %v3839 = vld [vmem:[%s1 + $0x380] sm:$0xff]
  %v3840 = vld [vmem:[%s1 + $0x388] sm:$0xff]
  %v3841 = vld [vmem:[%s1 + $0x390] sm:$0xff]
  %v3842 = vld [vmem:[%s1 + $0x398] sm:$0xff]
  %v3843 = vld [vmem:[%s1 + $0x3a0] sm:$0xff]
  %v3844 = vld [vmem:[%s1 + $0x3a8] sm:$0xff]
  %v3845 = vld [vmem:[%s1 + $0x3b0] sm:$0xff]
  %v3846 = vld [vmem:[%s1 + $0x3b8] sm:$0xff]
  %v3847 = vld [vmem:[%s1 + $0x3c0] sm:$0xff]
  %v3848 = vld [vmem:[%s1 + $0x3c8] sm:$0xff]
  %v3849 = vld [vmem:[%s1 + $0x3d0] sm:$0xff]
  %v3850 = vld [vmem:[%s1 + $0x3d8] sm:$0xff]
  %v3851 = vld [vmem:[%s1 + $0x3e0] sm:$0xff]
  %v3852 = vld [vmem:[%s1 + $0x3e8] sm:$0xff]
  %v3853 = vld [vmem:[%s1 + $0x3f0] sm:$0xff]
  %v3854 = vld [vmem:[%s1 + $0x3f8] sm:$0xff]
  %v3855 = vld [vmem:[%s1 + $0x400] sm:$0xff]
  %v3856 = vld [vmem:[%s1 + $0x408] sm:$0xff]
  %v3857 = vld [vmem:[%s1 + $0x410] sm:$0xff]
  %v3858 = vld [vmem:[%s1 + $0x418] sm:$0xff]
  %v3859 = vld [vmem:[%s1 + $0x420] sm:$0xff]
  %v3860 = vld [vmem:[%s1 + $0x428] sm:$0xff]
  %v3861 = vld [vmem:[%s1 + $0x430] sm:$0xff]
  %v3862 = vld [vmem:[%s1 + $0x438] sm:$0xff]
  %v3863 = vld [vmem:[%s1 + $0x440] sm:$0xff]
  %v3864 = vld [vmem:[%s1 + $0x448] sm:$0xff]
  %v3865 = vld [vmem:[%s1 + $0x450] sm:$0xff]
  %v3866 = vld [vmem:[%s1 + $0x458] sm:$0xff]
  %v3867 = vld [vmem:[%s1 + $0x460] sm:$0xff]
  %v3868 = vld [vmem:[%s1 + $0x468] sm:$0xff]
  %v3869 = vld [vmem:[%s1 + $0x470] sm:$0xff]
  %v3870 = vld [vmem:[%s1 + $0x478] sm:$0xff]
  %v3871 = vld [vmem:[%s1 + $0x480] sm:$0xff]
  %v3872 = vld [vmem:[%s1 + $0x488] sm:$0xff]
  %v3873 = vld [vmem:[%s1 + $0x490] sm:$0xff]
  %v3874 = vld [vmem:[%s1 + $0x498] sm:$0xff]
  %v3875 = vld [vmem:[%s1 + $0x4a0] sm:$0xff]
  %v3876 = vld [vmem:[%s1 + $0x4a8] sm:$0xff]
  %v3877 = vld [vmem:[%s1 + $0x4b0] sm:$0xff]
  %v3878 = vld [vmem:[%s1 + $0x4b8] sm:$0xff]
  %v3879 = vld [vmem:[%s1 + $0x4c0] sm:$0xff]
  %v3880 = vld [vmem:[%s1 + $0x4c8] sm:$0xff]
  %v3881 = vld [vmem:[%s1 + $0x4d0] sm:$0xff]
  %v3882 = vld [vmem:[%s1 + $0x4d8] sm:$0xff]
  %v3883 = vld [vmem:[%s1 + $0x4e0] sm:$0xff]
  %v3884 = vld [vmem:[%s1 + $0x4e8] sm:$0xff]
  %v3885 = vld [vmem:[%s1 + $0x4f0] sm:$0xff]
  %v3886 = vld [vmem:[%s1 + $0x4f8] sm:$0xff]
  %v3887 = vld [vmem:[%s1 + $0x500] sm:$0xff]
  %v3888 = vld [vmem:[%s1 + $0x508] sm:$0xff]
  %v3889 = vld [vmem:[%s1 + $0x510] sm:$0xff]
  %v3890 = vld [vmem:[%s1 + $0x518] sm:$0xff]
  %v3891 = vld [vmem:[%s1 + $0x520] sm:$0xff]
  %v3892 = vld [vmem:[%s1 + $0x528] sm:$0xff]
  %v3893 = vld [vmem:[%s1 + $0x530] sm:$0xff]
  %v3894 = vld [vmem:[%s1 + $0x538] sm:$0xff]
  %v3895 = vld [vmem:[%s1 + $0x540] sm:$0xff]
  %v3896 = vld [vmem:[%s1 + $0x548] sm:$0xff]
  %v3897 = vld [vmem:[%s1 + $0x550] sm:$0xff]
  %v3898 = vld [vmem:[%s1 + $0x558] sm:$0xff]
  %v3899 = vld [vmem:[%s1 + $0x560] sm:$0xff]
  %v3900 = vld [vmem:[%s1 + $0x568] sm:$0xff]
  %v3901 = vld [vmem:[%s1 + $0x570] sm:$0xff]
  %v3902 = vld [vmem:[%s1 + $0x578] sm:$0xff]
  %v3903 = vld [vmem:[%s1 + $0x580] sm:$0xff]
  %v3904 = vld [vmem:[%s1 + $0x588] sm:$0xff]
  %v3905 = vld [vmem:[%s1 + $0x590] sm:$0xff]
  %v3906 = vld [vmem:[%s1 + $0x598] sm:$0xff]
  %v3907 = vld [vmem:[%s1 + $0x5a0] sm:$0xff]
  %v3908 = vld [vmem:[%s1 + $0x5a8] sm:$0xff]
  %v3909 = vld [vmem:[%s1 + $0x5b0] sm:$0xff]
  %v3910 = vld [vmem:[%s1 + $0x5b8] sm:$0xff]
  %v3911 = vld [vmem:[%s1 + $0x5c0] sm:$0xff]
  %v3912 = vld [vmem:[%s1 + $0x5c8] sm:$0xff]
  %v3913 = vld [vmem:[%s1 + $0x5d0] sm:$0xff]
  %v3914 = vld [vmem:[%s1 + $0x5d8] sm:$0xff]
  %v3915 = vld [vmem:[%s1 + $0x5e0] sm:$0xff]
  %v3916 = vld [vmem:[%s1 + $0x5e8] sm:$0xff]
  %v3917 = vld [vmem:[%s1 + $0x5f0] sm:$0xff]
  %v3918 = vld [vmem:[%s1 + $0x5f8] sm:$0xff]
  %v3919 = vld [vmem:[%s1 + $0x600] sm:$0xff]
  %v3920 = vld [vmem:[%s1 + $0x608] sm:$0xff]
  %v3921 = vld [vmem:[%s1 + $0x610] sm:$0xff]
  %v3922 = vld [vmem:[%s1 + $0x618] sm:$0xff]
  %v3923 = vld [vmem:[%s1 + $0x620] sm:$0xff]
  %v3924 = vld [vmem:[%s1 + $0x628] sm:$0xff]
  %v3925 = vld [vmem:[%s1 + $0x630] sm:$0xff]
  %v3926 = vld [vmem:[%s1 + $0x638] sm:$0xff]
  %v3927 = vld [vmem:[%s1 + $0x640] sm:$0xff]
  %v3928 = vld [vmem:[%s1 + $0x648] sm:$0xff]
  %v3929 = vld [vmem:[%s1 + $0x650] sm:$0xff]
  %v3930 = vld [vmem:[%s1 + $0x658] sm:$0xff]
  %v3931 = vld [vmem:[%s1 + $0x660] sm:$0xff]
  %v3932 = vld [vmem:[%s1 + $0x668] sm:$0xff]
  %v3933 = vld [vmem:[%s1 + $0x670] sm:$0xff]
  %v3934 = vld [vmem:[%s1 + $0x678] sm:$0xff]
  %v3935 = vld [vmem:[%s1 + $0x680] sm:$0xff]
  %v3936 = vld [vmem:[%s1 + $0x688] sm:$0xff]
  %v3937 = vld [vmem:[%s1 + $0x690] sm:$0xff]
  %v3938 = vld [vmem:[%s1 + $0x698] sm:$0xff]
  %v3939 = vld [vmem:[%s1 + $0x6a0] sm:$0xff]
  %v3940 = vld [vmem:[%s1 + $0x6a8] sm:$0xff]
  %v3941 = vld [vmem:[%s1 + $0x6b0] sm:$0xff]
  %v3942 = vld [vmem:[%s1 + $0x6b8] sm:$0xff]
  %v3943 = vld [vmem:[%s1 + $0x6c0] sm:$0xff]
  %v3944 = vld [vmem:[%s1 + $0x6c8] sm:$0xff]
  %v3945 = vld [vmem:[%s1 + $0x6d0] sm:$0xff]
  %v3946 = vld [vmem:[%s1 + $0x6d8] sm:$0xff]
  %v3947 = vld [vmem:[%s1 + $0x6e0] sm:$0xff]
  %v3948 = vld [vmem:[%s1 + $0x6e8] sm:$0xff]
  %v3949 = vld [vmem:[%s1 + $0x6f0] sm:$0xff]
  %v3950 = vld [vmem:[%s1 + $0x6f8] sm:$0xff]
  %v3951 = vld [vmem:[%s1 + $0x700] sm:$0xff]
  %v3952 = vld [vmem:[%s1 + $0x708] sm:$0xff]
  %v3953 = vld [vmem:[%s1 + $0x710] sm:$0xff]
  %v3954 = vld [vmem:[%s1 + $0x718] sm:$0xff]
  %v3955 = vld [vmem:[%s1 + $0x720] sm:$0xff]
  %v3956 = vld [vmem:[%s1 + $0x728] sm:$0xff]
  %v3957 = vld [vmem:[%s1 + $0x730] sm:$0xff]
  %v3958 = vld [vmem:[%s1 + $0x738] sm:$0xff]
  %v3959 = vld [vmem:[%s1 + $0x740] sm:$0xff]
  %v3960 = vld [vmem:[%s1 + $0x748] sm:$0xff]
  %v3961 = vld [vmem:[%s1 + $0x750] sm:$0xff]
  %v3962 = vld [vmem:[%s1 + $0x758] sm:$0xff]
  %v3963 = vld [vmem:[%s1 + $0x760] sm:$0xff]
  %v3964 = vld [vmem:[%s1 + $0x768] sm:$0xff]
  %v3965 = vld [vmem:[%s1 + $0x770] sm:$0xff]
  %v3966 = vld [vmem:[%s1 + $0x778] sm:$0xff]
  %v3967 = vld [vmem:[%s1 + $0x780] sm:$0xff]
  %v3968 = vld [vmem:[%s1 + $0x788] sm:$0xff]
  %v3969 = vld [vmem:[%s1 + $0x790] sm:$0xff]
  %v3970 = vld [vmem:[%s1 + $0x798] sm:$0xff]
  %v3971 = vld [vmem:[%s1 + $0x7a0] sm:$0xff]
  %v3972 = vld [vmem:[%s1 + $0x7a8] sm:$0xff]
  %v3973 = vld [vmem:[%s1 + $0x7b0] sm:$0xff]
  %v3974 = vld [vmem:[%s1 + $0x7b8] sm:$0xff]
  %v3975 = vld [vmem:[%s1 + $0x7c0] sm:$0xff]
  %v3976 = vld [vmem:[%s1 + $0x7c8] sm:$0xff]
  %v3977 = vld [vmem:[%s1 + $0x7d0] sm:$0xff]
  %v3978 = vld [vmem:[%s1 + $0x7d8] sm:$0xff]
  %v3979 = vld [vmem:[%s1 + $0x7e0] sm:$0xff]
  %v3980 = vld [vmem:[%s1 + $0x7e8] sm:$0xff]
  %v3981 = vld [vmem:[%s1 + $0x7f0] sm:$0xff]
  %v3982 = vld [vmem:[%s1 + $0x7f8] sm:$0xff]
  %v3983 = vld [vmem:[%s1 + $0x800] sm:$0xff]
  %v3984 = vld [vmem:[%s1 + $0x808] sm:$0xff]
  %v3985 = vld [vmem:[%s1 + $0x810] sm:$0xff]
  %v3986 = vld [vmem:[%s1 + $0x818] sm:$0xff]
  %v3987 = vld [vmem:[%s1 + $0x820] sm:$0xff]
  %v3988 = vld [vmem:[%s1 + $0x828] sm:$0xff]
  %v3989 = vld [vmem:[%s1 + $0x830] sm:$0xff]
  %v3990 = vld [vmem:[%s1 + $0x838] sm:$0xff]
  %v3991 = vld [vmem:[%s1 + $0x840] sm:$0xff]
  %v3992 = vld [vmem:[%s1 + $0x848] sm:$0xff]
  %v3993 = vld [vmem:[%s1 + $0x850] sm:$0xff]
  %v3994 = vld [vmem:[%s1 + $0x858] sm:$0xff]
  %v3995 = vld [vmem:[%s1 + $0x860] sm:$0xff]
  %v3996 = vld [vmem:[%s1 + $0x868] sm:$0xff]
  %v3997 = vld [vmem:[%s1 + $0x870] sm:$0xff]
  %v3998 = vld [vmem:[%s1 + $0x878] sm:$0xff]
  %v3999 = vld [vmem:[%s1 + $0x880] sm:$0xff]
  %v4000 = vld [vmem:[%s1 + $0x888] sm:$0xff]
  %v4001 = vld [vmem:[%s1 + $0x890] sm:$0xff]
  %v4002 = vld [vmem:[%s1 + $0x898] sm:$0xff]
  %v4003 = vld [vmem:[%s1 + $0x8a0] sm:$0xff]
  %v4004 = vld [vmem:[%s1 + $0x8a8] sm:$0xff]
  %v4005 = vld [vmem:[%s1 + $0x8b0] sm:$0xff]
  %v4006 = vld [vmem:[%s1 + $0x8b8] sm:$0xff]
  %v4007 = vld [vmem:[%s1 + $0x8c0] sm:$0xff]
  %v4008 = vld [vmem:[%s1 + $0x8c8] sm:$0xff]
  %v4009 = vld [vmem:[%s1 + $0x8d0] sm:$0xff]
  %v4010 = vld [vmem:[%s1 + $0x8d8] sm:$0xff]
  %v4011 = vld [vmem:[%s1 + $0x8e0] sm:$0xff]
  %v4012 = vld [vmem:[%s1 + $0x8e8] sm:$0xff]
  %v4013 = vld [vmem:[%s1 + $0x8f0] sm:$0xff]
  %v4014 = vld [vmem:[%s1 + $0x8f8] sm:$0xff]
  %v4015 = vld [vmem:[%s2] sm:$0x3]
  %v4017 = vlaneseq
  %v4018 = vshrl.u32 %v4017, 7
  %v4019 = vsub.s32 0, %v4018
  %v4020 = vrot.slane %v4015, %v4019
  %v4021 = vlaneseq
  %v4022 = vshrl.u32 %v4021, 7
  %v4023 = vsub.s32 1, %v4022
  %v4024 = vrot.slane %v4015, %v4023
  %v4030 = vcombine.high %v3724, %v3724
  %v4032 = vunpack.c.l.s4 1983009808
  %v4033 = vunpack.c.0.s8 %v4032
  %v4034 = vlaneseq
  %v4035 = vshrl.u32 %v4034, 7
  %v4036 = vsub.s32 %v4033, %v4035
  %v4037 = vrot.slane %v3724, %v4036
  %v4039 = vunpack.c.l.s4 1983009808
  %v4040 = vunpack.c.0.s8 %v4039
  %v4041 = vlaneseq
  %v4042 = vshrl.u32 %v4041, 7
  %v4043 = vsub.s32 %v4040, %v4042
  %v4044 = vrot.slane %v4030, %v4043
  %v4045 = vcombine.high %v4037, %v4037
  %v4046 = vcombine.high %v4044, %v4044
  %v4047 = vcombine.high %v3725, %v3725
  %v4049 = vunpack.c.l.s4 1983009808
  %v4050 = vunpack.c.0.s8 %v4049
  %v4051 = vlaneseq
  %v4052 = vshrl.u32 %v4051, 7
  %v4053 = vsub.s32 %v4050, %v4052
  %v4054 = vrot.slane %v3725, %v4053
  %v4056 = vunpack.c.l.s4 1983009808
  %v4057 = vunpack.c.0.s8 %v4056
  %v4058 = vlaneseq
  %v4059 = vshrl.u32 %v4058, 7
  %v4060 = vsub.s32 %v4057, %v4059
  %v4061 = vrot.slane %v4047, %v4060
  %v4062 = vcombine.high %v4054, %v4054
  %v4063 = vcombine.high %v4061, %v4061
  %v4065 = vunpack.c.l.s4 1983009808
  %v4066 = vunpack.c.0.s8 %v4065
  %v4067 = vlaneseq
  %v4068 = vshrl.u32 %v4067, 7
  %v4069 = vsub.s32 %v4066, %v4068
  %v4070 = vrot.slane %v3726, %v4069
  %v4071 = vcombine.high %v4070, %v4070
  %4072 = vrot.lane.b32.xlu0 %v4037, 64
  %v4073 = vpop.permute.xlu0 %4072
  %4074 = vrot.lane.b32.xlu0 %v4045, 64
  %v4075 = vpop.permute.xlu0 %4074
  %4076 = vrot.lane.b32.xlu0 %v4044, 64
  %v4077 = vpop.permute.xlu0 %4076
  %4078 = vrot.lane.b32.xlu0 %v4046, 64
  %v4079 = vpop.permute.xlu0 %4078
  %4080 = vrot.lane.b32.xlu0 %v4054, 64
  %v4081 = vpop.permute.xlu0 %4080
  %4082 = vrot.lane.b32.xlu0 %v4062, 64
  %v4083 = vpop.permute.xlu0 %4082
  %4084 = vrot.lane.b32.xlu0 %v4061, 64
  %v4085 = vpop.permute.xlu0 %4084
  %4086 = vrot.lane.b32.xlu0 %v4063, 64
  %v4087 = vpop.permute.xlu0 %4086
  %4088 = vrot.lane.b32.xlu0 %v4070, 64
  %v4089 = vpop.permute.xlu0 %4088
  %4090 = vrot.lane.b32.xlu0 %v4071, 64
  %v4091 = vpop.permute.xlu0 %4090
  %v4092 = vsel %vm1131, %v4073, %v4075
  %v4093 = vsel %vm1131, %v4075, %v4077
  %v4094 = vsel %vm1131, %v4077, %v4079
  %v4095 = vsel %vm1131, %v4079, %v4081
  %v4096 = vsel %vm1131, %v4081, %v4083
  %v4097 = vsel %vm1131, %v4083, %v4085
  %v4098 = vsel %vm1131, %v4085, %v4087
  %v4099 = vsel %vm1131, %v4087, %v4089
  %v4100 = vsel %vm1131, %v4089, %v4091
  %4110 = vmatprep.subr.mxu0 %v3728
  %4111 = vmatpush1.msra.mxu0 %v3727
  %4112 = vmatprep.subr.mxu0 %v3730
  %4113 = vmatpush1.msra.mxu0 %v3729
  %4114 = vmatprep.subr.mxu0 %v3732
  %4115 = vmatpush1.msra.mxu0 %v3731
  %4116 = vmatprep.subr.mxu0 %v3734
  %4117 = vmatpush1.msra.mxu0 %v3733
  %4118 = vmatprep.subr.mxu0 %v3736
  %4119 = vmatpush1.msra.mxu0 %v3735
  %4120 = vmatprep.subr.mxu0 %v3738
  %4121 = vmatpush1.msra.mxu0 %v3737
  %4122 = vmatprep.subr.mxu0 %v3740
  %4123 = vmatpush1.msra.mxu0 %v3739
  %4124 = vmatprep.subr.mxu0 %v3742
  %4125 = vmatpush1.msra.mxu0 %v3741
  %4126 = vmatprep.subr.mxu0 %v3744
  %4127 = vmatpush1.msra.mxu0 %v3743
  %4128 = vmatprep.subr.mxu0 %v3746
  %4129 = vmatpush1.msra.mxu0 %v3745
  %4130 = vmatprep.subr.mxu0 %v3748
  %4131 = vmatpush1.msra.mxu0 %v3747
  %4132 = vmatprep.subr.mxu0 %v3750
  %4133 = vmatpush1.msra.mxu0 %v3749
  %4134 = vmatprep.subr.mxu0 %v3752
  %4135 = vmatpush1.msra.mxu0 %v3751
  %4136 = vmatprep.subr.mxu0 %v3754
  %4137 = vmatpush1.msra.mxu0 %v3753
  %4138 = vmatprep.subr.mxu0 %v3756
  %4139 = vmatpush1.msra.mxu0 %v3755
  %4140 = vmatprep.subr.mxu0 %v3758
  %4141 = vmatpush1.msra.mxu0 %v3757
  %4142 = vmatprep.subr.mxu0 %v3760
  %4143 = vmatpush1.msra.mxu0 %v3759
  %4144 = vmatprep.subr.mxu0 %v3762
  %4145 = vmatpush1.msra.mxu0 %v3761
  %4146 = vmatprep.subr.mxu0 %v3764
  %4147 = vmatpush1.msra.mxu0 %v3763
  %4148 = vmatprep.subr.mxu0 %v3766
  %4149 = vmatpush1.msra.mxu0 %v3765
  %4150 = vmatprep.subr.mxu0 %v3768
  %4151 = vmatpush1.msra.mxu0 %v3767
  %4152 = vmatprep.subr.mxu0 %v3770
  %4153 = vmatpush1.msra.mxu0 %v3769
  %4154 = vmatprep.subr.mxu0 %v3772
  %4155 = vmatpush1.msra.mxu0 %v3771
  %4156 = vmatprep.subr.mxu0 %v3774
  %4157 = vmatpush1.msra.mxu0 %v3773
  %4158 = vmatprep.subr.mxu0 %v3776
  %4159 = vmatpush1.msra.mxu0 %v3775
  %4160 = vmatprep.subr.mxu0 %v3778
  %4161 = vmatpush1.msra.mxu0 %v3777
  %4162 = vmatprep.subr.mxu0 %v3780
  %4163 = vmatpush1.msra.mxu0 %v3779
  %4164 = vmatprep.subr.mxu0 %v3782
  %4165 = vmatpush1.msra.mxu0 %v3781
  %4166 = vmatprep.subr.mxu0 %v3784
  %4167 = vmatpush1.msra.mxu0 %v3783
  %4168 = vmatprep.subr.mxu0 %v3786
  %4169 = vmatpush1.msra.mxu0 %v3785
  %4170 = vmatprep.subr.mxu0 %v3788
  %4171 = vmatpush1.msra.mxu0 %v3787
  %4172 = vmatprep.subr.mxu0 %v3790
  %4173 = vmatpush1.msra.mxu0 %v3789
  %4174 = vmatprep.mubr.f32.mxu0 %v4093
  %4175 = vmatmul.mubr.f32.gmra.mrb[0].mxu0 %v4092
  %v4176 = vpop.f32.mrb[0].mxu0
  %v4177 = vadd.f32 %v4020, %v4176
  %v4178 = vpop.f32.mrb[0].mxu0
  %v4179 = vadd.f32 %v4024, %v4178
  %4180 = vdwg.mxu0
  %4181 = vmatprep.subr.mxu0 %v3792
  %4182 = vmatpush1.msra.mxu0 %v3791
  %4183 = vmatprep.subr.mxu0 %v3794
  %4184 = vmatpush1.msra.mxu0 %v3793
  %4185 = vmatprep.subr.mxu0 %v3796
  %4186 = vmatpush1.msra.mxu0 %v3795
  %4187 = vmatprep.subr.mxu0 %v3798
  %4188 = vmatpush1.msra.mxu0 %v3797
  %4189 = vmatprep.subr.mxu0 %v3800
  %4190 = vmatpush1.msra.mxu0 %v3799
  %4191 = vmatprep.subr.mxu0 %v3802
  %4192 = vmatpush1.msra.mxu0 %v3801
  %4193 = vmatprep.subr.mxu0 %v3804
  %4194 = vmatpush1.msra.mxu0 %v3803
  %4195 = vmatprep.subr.mxu0 %v3806
  %4196 = vmatpush1.msra.mxu0 %v3805
  %4197 = vmatprep.subr.mxu0 %v3808
  %4198 = vmatpush1.msra.mxu0 %v3807
  %4199 = vmatprep.subr.mxu0 %v3810
  %4200 = vmatpush1.msra.mxu0 %v3809
  %4201 = vmatprep.subr.mxu0 %v3812
  %4202 = vmatpush1.msra.mxu0 %v3811
  %4203 = vmatprep.subr.mxu0 %v3814
  %4204 = vmatpush1.msra.mxu0 %v3813
  %4205 = vmatprep.subr.mxu0 %v3816
  %4206 = vmatpush1.msra.mxu0 %v3815
  %4207 = vmatprep.subr.mxu0 %v3818
  %4208 = vmatpush1.msra.mxu0 %v3817
  %4209 = vmatprep.subr.mxu0 %v3820
  %4210 = vmatpush1.msra.mxu0 %v3819
  %4211 = vmatprep.subr.mxu0 %v3822
  %4212 = vmatpush1.msra.mxu0 %v3821
  %4213 = vmatprep.subr.mxu0 %v3824
  %4214 = vmatpush1.msra.mxu0 %v3823
  %4215 = vmatprep.subr.mxu0 %v3826
  %4216 = vmatpush1.msra.mxu0 %v3825
  %4217 = vmatprep.subr.mxu0 %v3828
  %4218 = vmatpush1.msra.mxu0 %v3827
  %4219 = vmatprep.subr.mxu0 %v3830
  %4220 = vmatpush1.msra.mxu0 %v3829
  %4221 = vmatprep.subr.mxu0 %v3832
  %4222 = vmatpush1.msra.mxu0 %v3831
  %4223 = vmatprep.subr.mxu0 %v3834
  %4224 = vmatpush1.msra.mxu0 %v3833
  %4225 = vmatprep.subr.mxu0 %v3836
  %4226 = vmatpush1.msra.mxu0 %v3835
  %4227 = vmatprep.subr.mxu0 %v3838
  %4228 = vmatpush1.msra.mxu0 %v3837
  %4229 = vmatprep.subr.mxu0 %v3840
  %4230 = vmatpush1.msra.mxu0 %v3839
  %4231 = vmatprep.subr.mxu0 %v3842
  %4232 = vmatpush1.msra.mxu0 %v3841
  %4233 = vmatprep.subr.mxu0 %v3844
  %4234 = vmatpush1.msra.mxu0 %v3843
  %4235 = vmatprep.subr.mxu0 %v3846
  %4236 = vmatpush1.msra.mxu0 %v3845
  %4237 = vmatprep.subr.mxu0 %v3848
  %4238 = vmatpush1.msra.mxu0 %v3847
  %4239 = vmatprep.subr.mxu0 %v3850
  %4240 = vmatpush1.msra.mxu0 %v3849
  %4241 = vmatprep.subr.mxu0 %v3852
  %4242 = vmatpush1.msra.mxu0 %v3851
  %4243 = vmatprep.subr.mxu0 %v3854
  %4244 = vmatpush1.msra.mxu0 %v3853
  %4245 = vmatprep.mubr.f32.mxu0 %v4095
  %4246 = vmatmul.mubr.f32.gmra.mrb[0].mxu0 %v4094
  %v4247 = vpop.f32.mrb[0].mxu0
  %v4248 = vadd.f32 %v4177, %v4247
  %v4249 = vpop.f32.mrb[0].mxu0
  %v4250 = vadd.f32 %v4179, %v4249
  %4251 = vdwg.mxu0
  %4252 = vmatprep.subr.mxu0 %v3856
  %4253 = vmatpush1.msra.mxu0 %v3855
  %4254 = vmatprep.subr.mxu0 %v3858
  %4255 = vmatpush1.msra.mxu0 %v3857
  %4256 = vmatprep.subr.mxu0 %v3860
  %4257 = vmatpush1.msra.mxu0 %v3859
  %4258 = vmatprep.subr.mxu0 %v3862
  %4259 = vmatpush1.msra.mxu0 %v3861
  %4260 = vmatprep.subr.mxu0 %v3864
  %4261 = vmatpush1.msra.mxu0 %v3863
  %4262 = vmatprep.subr.mxu0 %v3866
  %4263 = vmatpush1.msra.mxu0 %v3865
  %4264 = vmatprep.subr.mxu0 %v3868
  %4265 = vmatpush1.msra.mxu0 %v3867
  %4266 = vmatprep.subr.mxu0 %v3870
  %4267 = vmatpush1.msra.mxu0 %v3869
  %4268 = vmatprep.subr.mxu0 %v3872
  %4269 = vmatpush1.msra.mxu0 %v3871
  %4270 = vmatprep.subr.mxu0 %v3874
  %4271 = vmatpush1.msra.mxu0 %v3873
  %4272 = vmatprep.subr.mxu0 %v3876
  %4273 = vmatpush1.msra.mxu0 %v3875
  %4274 = vmatprep.subr.mxu0 %v3878
  %4275 = vmatpush1.msra.mxu0 %v3877
  %4276 = vmatprep.subr.mxu0 %v3880
  %4277 = vmatpush1.msra.mxu0 %v3879
  %4278 = vmatprep.subr.mxu0 %v3882
  %4279 = vmatpush1.msra.mxu0 %v3881
  %4280 = vmatprep.subr.mxu0 %v3884
  %4281 = vmatpush1.msra.mxu0 %v3883
  %4282 = vmatprep.subr.mxu0 %v3886
  %4283 = vmatpush1.msra.mxu0 %v3885
  %4284 = vmatprep.subr.mxu0 %v3888
  %4285 = vmatpush1.msra.mxu0 %v3887
  %4286 = vmatprep.subr.mxu0 %v3890
  %4287 = vmatpush1.msra.mxu0 %v3889
  %4288 = vmatprep.subr.mxu0 %v3892
  %4289 = vmatpush1.msra.mxu0 %v3891
  %4290 = vmatprep.subr.mxu0 %v3894
  %4291 = vmatpush1.msra.mxu0 %v3893
  %4292 = vmatprep.subr.mxu0 %v3896
  %4293 = vmatpush1.msra.mxu0 %v3895
  %4294 = vmatprep.subr.mxu0 %v3898
  %4295 = vmatpush1.msra.mxu0 %v3897
  %4296 = vmatprep.subr.mxu0 %v3900
  %4297 = vmatpush1.msra.mxu0 %v3899
  %4298 = vmatprep.subr.mxu0 %v3902
  %4299 = vmatpush1.msra.mxu0 %v3901
  %4300 = vmatprep.subr.mxu0 %v3904
  %4301 = vmatpush1.msra.mxu0 %v3903
  %4302 = vmatprep.subr.mxu0 %v3906
  %4303 = vmatpush1.msra.mxu0 %v3905
  %4304 = vmatprep.subr.mxu0 %v3908
  %4305 = vmatpush1.msra.mxu0 %v3907
  %4306 = vmatprep.subr.mxu0 %v3910
  %4307 = vmatpush1.msra.mxu0 %v3909
  %4308 = vmatprep.subr.mxu0 %v3912
  %4309 = vmatpush1.msra.mxu0 %v3911
  %4310 = vmatprep.subr.mxu0 %v3914
  %4311 = vmatpush1.msra.mxu0 %v3913
  %4312 = vmatprep.subr.mxu0 %v3916
  %4313 = vmatpush1.msra.mxu0 %v3915
  %4314 = vmatprep.subr.mxu0 %v3918
  %4315 = vmatpush1.msra.mxu0 %v3917
  %4316 = vmatprep.mubr.f32.mxu0 %v4097
  %4317 = vmatmul.mubr.f32.gmra.mrb[0].mxu0 %v4096
  %v4318 = vpop.f32.mrb[0].mxu0
  %v4319 = vadd.f32 %v4248, %v4318
  %v4320 = vpop.f32.mrb[0].mxu0
  %v4321 = vadd.f32 %v4250, %v4320
  %4322 = vdwg.mxu0
  %4323 = vmatprep.subr.mxu0 %v3920
  %4324 = vmatpush1.msra.mxu0 %v3919
  %4325 = vmatprep.subr.mxu0 %v3922
  %4326 = vmatpush1.msra.mxu0 %v3921
  %4327 = vmatprep.subr.mxu0 %v3924
  %4328 = vmatpush1.msra.mxu0 %v3923
  %4329 = vmatprep.subr.mxu0 %v3926
  %4330 = vmatpush1.msra.mxu0 %v3925
  %4331 = vmatprep.subr.mxu0 %v3928
  %4332 = vmatpush1.msra.mxu0 %v3927
  %4333 = vmatprep.subr.mxu0 %v3930
  %4334 = vmatpush1.msra.mxu0 %v3929
  %4335 = vmatprep.subr.mxu0 %v3932
  %4336 = vmatpush1.msra.mxu0 %v3931
  %4337 = vmatprep.subr.mxu0 %v3934
  %4338 = vmatpush1.msra.mxu0 %v3933
  %4339 = vmatprep.subr.mxu0 %v3936
  %4340 = vmatpush1.msra.mxu0 %v3935
  %4341 = vmatprep.subr.mxu0 %v3938
  %4342 = vmatpush1.msra.mxu0 %v3937
  %4343 = vmatprep.subr.mxu0 %v3940
  %4344 = vmatpush1.msra.mxu0 %v3939
  %4345 = vmatprep.subr.mxu0 %v3942
  %4346 = vmatpush1.msra.mxu0 %v3941
  %4347 = vmatprep.subr.mxu0 %v3944
  %4348 = vmatpush1.msra.mxu0 %v3943
  %4349 = vmatprep.subr.mxu0 %v3946
  %4350 = vmatpush1.msra.mxu0 %v3945
  %4351 = vmatprep.subr.mxu0 %v3948
  %4352 = vmatpush1.msra.mxu0 %v3947
  %4353 = vmatprep.subr.mxu0 %v3950
  %4354 = vmatpush1.msra.mxu0 %v3949
  %4355 = vmatprep.subr.mxu0 %v3952
  %4356 = vmatpush1.msra.mxu0 %v3951
  %4357 = vmatprep.subr.mxu0 %v3954
  %4358 = vmatpush1.msra.mxu0 %v3953
  %4359 = vmatprep.subr.mxu0 %v3956
  %4360 = vmatpush1.msra.mxu0 %v3955
  %4361 = vmatprep.subr.mxu0 %v3958
  %4362 = vmatpush1.msra.mxu0 %v3957
  %4363 = vmatprep.subr.mxu0 %v3960
  %4364 = vmatpush1.msra.mxu0 %v3959
  %4365 = vmatprep.subr.mxu0 %v3962
  %4366 = vmatpush1.msra.mxu0 %v3961
  %4367 = vmatprep.subr.mxu0 %v3964
  %4368 = vmatpush1.msra.mxu0 %v3963
  %4369 = vmatprep.subr.mxu0 %v3966
  %4370 = vmatpush1.msra.mxu0 %v3965
  %4371 = vmatprep.subr.mxu0 %v3968
  %4372 = vmatpush1.msra.mxu0 %v3967
  %4373 = vmatprep.subr.mxu0 %v3970
  %4374 = vmatpush1.msra.mxu0 %v3969
  %4375 = vmatprep.subr.mxu0 %v3972
  %4376 = vmatpush1.msra.mxu0 %v3971
  %4377 = vmatprep.subr.mxu0 %v3974
  %4378 = vmatpush1.msra.mxu0 %v3973
  %4379 = vmatprep.subr.mxu0 %v3976
  %4380 = vmatpush1.msra.mxu0 %v3975
  %4381 = vmatprep.subr.mxu0 %v3978
  %4382 = vmatpush1.msra.mxu0 %v3977
  %4383 = vmatprep.subr.mxu0 %v3980
  %4384 = vmatpush1.msra.mxu0 %v3979
  %4385 = vmatprep.subr.mxu0 %v3982
  %4386 = vmatpush1.msra.mxu0 %v3981
  %4387 = vmatprep.mubr.f32.mxu0 %v4099
  %4388 = vmatmul.mubr.f32.gmra.mrb[0].mxu0 %v4098
  %v4389 = vpop.f32.mrb[0].mxu0
  %v4390 = vadd.f32 %v4319, %v4389
  %v4391 = vpop.f32.mrb[0].mxu0
  %v4392 = vadd.f32 %v4321, %v4391
  %4393 = vdwg.mxu0
  %4394 = vmatprep.subr.mxu0 %v3984
  %4395 = vmatpush1.msra.mxu0 %v3983
  %4396 = vmatprep.subr.mxu0 %v3986
  %4397 = vmatpush1.msra.mxu0 %v3985
  %4398 = vmatprep.subr.mxu0 %v3988
  %4399 = vmatpush1.msra.mxu0 %v3987
  %4400 = vmatprep.subr.mxu0 %v3990
  %4401 = vmatpush1.msra.mxu0 %v3989
  %4402 = vmatprep.subr.mxu0 %v3992
  %4403 = vmatpush1.msra.mxu0 %v3991
  %4404 = vmatprep.subr.mxu0 %v3994
  %4405 = vmatpush1.msra.mxu0 %v3993
  %4406 = vmatprep.subr.mxu0 %v3996
  %4407 = vmatpush1.msra.mxu0 %v3995
  %4408 = vmatprep.subr.mxu0 %v3998
  %4409 = vmatpush1.msra.mxu0 %v3997
  %4410 = vmatprep.subr.mxu0 %v4000
  %4411 = vmatpush1.msra.mxu0 %v3999
  %4412 = vmatprep.subr.mxu0 %v4002
  %4413 = vmatpush1.msra.mxu0 %v4001
  %4414 = vmatprep.subr.mxu0 %v4004
  %4415 = vmatpush1.msra.mxu0 %v4003
  %4416 = vmatprep.subr.mxu0 %v4006
  %4417 = vmatpush1.msra.mxu0 %v4005
  %4418 = vmatprep.subr.mxu0 %v4008
  %4419 = vmatpush1.msra.mxu0 %v4007
  %4420 = vmatprep.subr.mxu0 %v4010
  %4421 = vmatpush1.msra.mxu0 %v4009
  %4422 = vmatprep.subr.mxu0 %v4012
  %4423 = vmatpush1.msra.mxu0 %v4011
  %4424 = vmatprep.subr.mxu0 %v4014
  %4425 = vmatpush1.msra.mxu0 %v4013
  %4426 = vmatprep.subr.mxu0 0.0
  %4427 = vmatpush1.msra.mxu0 0.0
  %4428 = vmatprep.subr.mxu0 0.0
  %4429 = vmatpush1.msra.mxu0 0.0
  %4430 = vmatprep.subr.mxu0 0.0
  %4431 = vmatpush1.msra.mxu0 0.0
  %4432 = vmatprep.subr.mxu0 0.0
  %4433 = vmatpush1.msra.mxu0 0.0
  %4434 = vmatprep.subr.mxu0 0.0
  %4435 = vmatpush1.msra.mxu0 0.0
  %4436 = vmatprep.subr.mxu0 0.0
  %4437 = vmatpush1.msra.mxu0 0.0
  %4438 = vmatprep.subr.mxu0 0.0
  %4439 = vmatpush1.msra.mxu0 0.0
  %4440 = vmatprep.subr.mxu0 0.0
  %4441 = vmatpush1.msra.mxu0 0.0
  %4442 = vmatprep.subr.mxu0 0.0
  %4443 = vmatpush1.msra.mxu0 0.0
  %4444 = vmatprep.subr.mxu0 0.0
  %4445 = vmatpush1.msra.mxu0 0.0
  %4446 = vmatprep.subr.mxu0 0.0
  %4447 = vmatpush1.msra.mxu0 0.0
  %4448 = vmatprep.subr.mxu0 0.0
  %4449 = vmatpush1.msra.mxu0 0.0
  %4450 = vmatprep.subr.mxu0 0.0
  %4451 = vmatpush1.msra.mxu0 0.0
  %4452 = vmatprep.subr.mxu0 0.0
  %4453 = vmatpush1.msra.mxu0 0.0
  %4454 = vmatprep.subr.mxu0 0.0
  %4455 = vmatpush1.msra.mxu0 0.0
  %4456 = vmatprep.subr.mxu0 0.0
  %4457 = vmatpush1.msra.mxu0 0.0
  %4458 = vmatprep.mubr.f32.mxu0 0.0
  %4459 = vmatmul.mubr.f32.gmra.mrb[0].mxu0 %v4100
  %v4460 = vpop.f32.mrb[0].mxu0
  %v4461 = vadd.f32 %v4390, %v4460
  %v4462 = vpop.f32.mrb[0].mxu0
  %v4463 = vadd.f32 %v4392, %v4462
  %4464 = vdwg.mxu0
  %v4465 = vmax.f32 %v4461, 0.0
  %v4466 = vmax.f32 %v4463, 0.0
  %v4469 = vcombine.low %v4465, %v4466
  %v4471 = vunpack.c.l.s4 1983009808
  %v4472 = vunpack.c.0.s8 %v4471
  %v4473 = vlaneseq
  %v4474 = vshrl.u32 %v4473, 7
  %v4475 = vsub.s32 %v4472, %v4474
  %v4476 = vrot.slane %v4469, %v4475
  %4478 = vst [vmem:[#allocation2 + $0x14] sm:$0xf] %v4476
  %v4479 = vld [vmem:[%s0 + $0x36] sm:$0xff]
  %v4480 = vld [vmem:[%s0 + $0x3e] sm:$0xff]
  %v4481 = vld [vmem:[%s0 + $0x46] sm:$0x3]
  %v4482 = vld [vmem:[%s1] sm:$0xff]
  %v4483 = vld [vmem:[%s1 + $0x8] sm:$0xff]
  %v4484 = vld [vmem:[%s1 + $0x10] sm:$0xff]
  %v4485 = vld [vmem:[%s1 + $0x18] sm:$0xff]
  %v4486 = vld [vmem:[%s1 + $0x20] sm:$0xff]
  %v4487 = vld [vmem:[%s1 + $0x28] sm:$0xff]
  %v4488 = vld [vmem:[%s1 + $0x30] sm:$0xff]
  %v4489 = vld [vmem:[%s1 + $0x38] sm:$0xff]
  %v4490 = vld [vmem:[%s1 + $0x40] sm:$0xff]
  %v4491 = vld [vmem:[%s1 + $0x48] sm:$0xff]
  %v4492 = vld [vmem:[%s1 + $0x50] sm:$0xff]
  %v4493 = vld [vmem:[%s1 + $0x58] sm:$0xff]
  %v4494 = vld [vmem:[%s1 + $0x60] sm:$0xff]
  %v4495 = vld [vmem:[%s1 + $0x68] sm:$0xff]
  %v4496 = vld [vmem:[%s1 + $0x70] sm:$0xff]
  %v4497 = vld [vmem:[%s1 + $0x78] sm:$0xff]
  %v4498 = vld [vmem:[%s1 + $0x80] sm:$0xff]
  %v4499 = vld [vmem:[%s1 + $0x88] sm:$0xff]
  %v4500 = vld [vmem:[%s1 + $0x90] sm:$0xff]
  %v4501 = vld [vmem:[%s1 + $0x98] sm:$0xff]
  %v4502 = vld [vmem:[%s1 + $0xa0] sm:$0xff]
  %v4503 = vld [vmem:[%s1 + $0xa8] sm:$0xff]
  %v4504 = vld [vmem:[%s1 + $0xb0] sm:$0xff]
  %v4505 = vld [vmem:[%s1 + $0xb8] sm:$0xff]
  %v4506 = vld [vmem:[%s1 + $0xc0] sm:$0xff]
  %v4507 = vld [vmem:[%s1 + $0xc8] sm:$0xff]
  %v4508 = vld [vmem:[%s1 + $0xd0] sm:$0xff]
  %v4509 = vld [vmem:[%s1 + $0xd8] sm:$0xff]
  %v4510 = vld [vmem:[%s1 + $0xe0] sm:$0xff]
  %v4511 = vld [vmem:[%s1 + $0xe8] sm:$0xff]
  %v4512 = vld [vmem:[%s1 + $0xf0] sm:$0xff]
  %v4513 = vld [vmem:[%s1 + $0xf8] sm:$0xff]
  %v4514 = vld [vmem:[%s1 + $0x100] sm:$0xff]
  %v4515 = vld [vmem:[%s1 + $0x108] sm:$0xff]
  %v4516 = vld [vmem:[%s1 + $0x110] sm:$0xff]
  %v4517 = vld [vmem:[%s1 + $0x118] sm:$0xff]
  %v4518 = vld [vmem:[%s1 + $0x120] sm:$0xff]
  %v4519 = vld [vmem:[%s1 + $0x128] sm:$0xff]
  %v4520 = vld [vmem:[%s1 + $0x130] sm:$0xff]
  %v4521 = vld [vmem:[%s1 + $0x138] sm:$0xff]
  %v4522 = vld [vmem:[%s1 + $0x140] sm:$0xff]
  %v4523 = vld [vmem:[%s1 + $0x148] sm:$0xff]
  %v4524 = vld [vmem:[%s1 + $0x150] sm:$0xff]
  %v4525 = vld [vmem:[%s1 + $0x158] sm:$0xff]
  %v4526 = vld [vmem:[%s1 + $0x160] sm:$0xff]
  %v4527 = vld [vmem:[%s1 + $0x168] sm:$0xff]
  %v4528 = vld [vmem:[%s1 + $0x170] sm:$0xff]
  %v4529 = vld [vmem:[%s1 + $0x178] sm:$0xff]
  %v4530 = vld [vmem:[%s1 + $0x180] sm:$0xff]
  %v4531 = vld [vmem:[%s1 + $0x188] sm:$0xff]
  %v4532 = vld [vmem:[%s1 + $0x190] sm:$0xff]
  %v4533 = vld [vmem:[%s1 + $0x198] sm:$0xff]
  %v4534 = vld [vmem:[%s1 + $0x1a0] sm:$0xff]
  %v4535 = vld [vmem:[%s1 + $0x1a8] sm:$0xff]
  %v4536 = vld [vmem:[%s1 + $0x1b0] sm:$0xff]
  %v4537 = vld [vmem:[%s1 + $0x1b8] sm:$0xff]
  %v4538 = vld [vmem:[%s1 + $0x1c0] sm:$0xff]
  %v4539 = vld [vmem:[%s1 + $0x1c8] sm:$0xff]
  %v4540 = vld [vmem:[%s1 + $0x1d0] sm:$0xff]
  %v4541 = vld [vmem:[%s1 + $0x1d8] sm:$0xff]
  %v4542 = vld [vmem:[%s1 + $0x1e0] sm:$0xff]
  %v4543 = vld [vmem:[%s1 + $0x1e8] sm:$0xff]
  %v4544 = vld [vmem:[%s1 + $0x1f0] sm:$0xff]
  %v4545 = vld [vmem:[%s1 + $0x1f8] sm:$0xff]
  %v4546 = vld [vmem:[%s1 + $0x200] sm:$0xff]
  %v4547 = vld [vmem:[%s1 + $0x208] sm:$0xff]
  %v4548 = vld [vmem:[%s1 + $0x210] sm:$0xff]
  %v4549 = vld [vmem:[%s1 + $0x218] sm:$0xff]
  %v4550 = vld [vmem:[%s1 + $0x220] sm:$0xff]
  %v4551 = vld [vmem:[%s1 + $0x228] sm:$0xff]
  %v4552 = vld [vmem:[%s1 + $0x230] sm:$0xff]
  %v4553 = vld [vmem:[%s1 + $0x238] sm:$0xff]
  %v4554 = vld [vmem:[%s1 + $0x240] sm:$0xff]
  %v4555 = vld [vmem:[%s1 + $0x248] sm:$0xff]
  %v4556 = vld [vmem:[%s1 + $0x250] sm:$0xff]
  %v4557 = vld [vmem:[%s1 + $0x258] sm:$0xff]
  %v4558 = vld [vmem:[%s1 + $0x260] sm:$0xff]
  %v4559 = vld [vmem:[%s1 + $0x268] sm:$0xff]
  %v4560 = vld [vmem:[%s1 + $0x270] sm:$0xff]
  %v4561 = vld [vmem:[%s1 + $0x278] sm:$0xff]
  %v4562 = vld [vmem:[%s1 + $0x280] sm:$0xff]
  %v4563 = vld [vmem:[%s1 + $0x288] sm:$0xff]
  %v4564 = vld [vmem:[%s1 + $0x290] sm:$0xff]
  %v4565 = vld [vmem:[%s1 + $0x298] sm:$0xff]
  %v4566 = vld [vmem:[%s1 + $0x2a0] sm:$0xff]
  %v4567 = vld [vmem:[%s1 + $0x2a8] sm:$0xff]
  %v4568 = vld [vmem:[%s1 + $0x2b0] sm:$0xff]
  %v4569 = vld [vmem:[%s1 + $0x2b8] sm:$0xff]
  %v4570 = vld [vmem:[%s1 + $0x2c0] sm:$0xff]
  %v4571 = vld [vmem:[%s1 + $0x2c8] sm:$0xff]
  %v4572 = vld [vmem:[%s1 + $0x2d0] sm:$0xff]
  %v4573 = vld [vmem:[%s1 + $0x2d8] sm:$0xff]
  %v4574 = vld [vmem:[%s1 + $0x2e0] sm:$0xff]
  %v4575 = vld [vmem:[%s1 + $0x2e8] sm:$0xff]
  %v4576 = vld [vmem:[%s1 + $0x2f0] sm:$0xff]
  %v4577 = vld [vmem:[%s1 + $0x2f8] sm:$0xff]
  %v4578 = vld [vmem:[%s1 + $0x300] sm:$0xff]
  %v4579 = vld [vmem:[%s1 + $0x308] sm:$0xff]
  %v4580 = vld [vmem:[%s1 + $0x310] sm:$0xff]
  %v4581 = vld [vmem:[%s1 + $0x318] sm:$0xff]
  %v4582 = vld [vmem:[%s1 + $0x320] sm:$0xff]
  %v4583 = vld [vmem:[%s1 + $0x328] sm:$0xff]
  %v4584 = vld [vmem:[%s1 + $0x330] sm:$0xff]
  %v4585 = vld [vmem:[%s1 + $0x338] sm:$0xff]
  %v4586 = vld [vmem:[%s1 + $0x340] sm:$0xff]
  %v4587 = vld [vmem:[%s1 + $0x348] sm:$0xff]
  %v4588 = vld [vmem:[%s1 + $0x350] sm:$0xff]
  %v4589 = vld [vmem:[%s1 + $0x358] sm:$0xff]
  %v4590 = vld [vmem:[%s1 + $0x360] sm:$0xff]
  %v4591 = vld [vmem:[%s1 + $0x368] sm:$0xff]
  %v4592 = vld [vmem:[%s1 + $0x370] sm:$0xff]
  %v4593 = vld [vmem:[%s1 + $0x378] sm:$0xff]
  %v4594 = vld [vmem:[%s1 + $0x380] sm:$0xff]
  %v4595 = vld [vmem:[%s1 + $0x388] sm:$0xff]
  %v4596 = vld [vmem:[%s1 + $0x390] sm:$0xff]
  %v4597 = vld [vmem:[%s1 + $0x398] sm:$0xff]
  %v4598 = vld [vmem:[%s1 + $0x3a0] sm:$0xff]
  %v4599 = vld [vmem:[%s1 + $0x3a8] sm:$0xff]
  %v4600 = vld [vmem:[%s1 + $0x3b0] sm:$0xff]
  %v4601 = vld [vmem:[%s1 + $0x3b8] sm:$0xff]
  %v4602 = vld [vmem:[%s1 + $0x3c0] sm:$0xff]
  %v4603 = vld [vmem:[%s1 + $0x3c8] sm:$0xff]
  %v4604 = vld [vmem:[%s1 + $0x3d0] sm:$0xff]
  %v4605 = vld [vmem:[%s1 + $0x3d8] sm:$0xff]
  %v4606 = vld [vmem:[%s1 + $0x3e0] sm:$0xff]
  %v4607 = vld [vmem:[%s1 + $0x3e8] sm:$0xff]
  %v4608 = vld [vmem:[%s1 + $0x3f0] sm:$0xff]
  %v4609 = vld [vmem:[%s1 + $0x3f8] sm:$0xff]
  %v4610 = vld [vmem:[%s1 + $0x400] sm:$0xff]
  %v4611 = vld [vmem:[%s1 + $0x408] sm:$0xff]
  %v4612 = vld [vmem:[%s1 + $0x410] sm:$0xff]
  %v4613 = vld [vmem:[%s1 + $0x418] sm:$0xff]
  %v4614 = vld [vmem:[%s1 + $0x420] sm:$0xff]
  %v4615 = vld [vmem:[%s1 + $0x428] sm:$0xff]
  %v4616 = vld [vmem:[%s1 + $0x430] sm:$0xff]
  %v4617 = vld [vmem:[%s1 + $0x438] sm:$0xff]
  %v4618 = vld [vmem:[%s1 + $0x440] sm:$0xff]
  %v4619 = vld [vmem:[%s1 + $0x448] sm:$0xff]
  %v4620 = vld [vmem:[%s1 + $0x450] sm:$0xff]
  %v4621 = vld [vmem:[%s1 + $0x458] sm:$0xff]
  %v4622 = vld [vmem:[%s1 + $0x460] sm:$0xff]
  %v4623 = vld [vmem:[%s1 + $0x468] sm:$0xff]
  %v4624 = vld [vmem:[%s1 + $0x470] sm:$0xff]
  %v4625 = vld [vmem:[%s1 + $0x478] sm:$0xff]
  %v4626 = vld [vmem:[%s1 + $0x480] sm:$0xff]
  %v4627 = vld [vmem:[%s1 + $0x488] sm:$0xff]
  %v4628 = vld [vmem:[%s1 + $0x490] sm:$0xff]
  %v4629 = vld [vmem:[%s1 + $0x498] sm:$0xff]
  %v4630 = vld [vmem:[%s1 + $0x4a0] sm:$0xff]
  %v4631 = vld [vmem:[%s1 + $0x4a8] sm:$0xff]
  %v4632 = vld [vmem:[%s1 + $0x4b0] sm:$0xff]
  %v4633 = vld [vmem:[%s1 + $0x4b8] sm:$0xff]
  %v4634 = vld [vmem:[%s1 + $0x4c0] sm:$0xff]
  %v4635 = vld [vmem:[%s1 + $0x4c8] sm:$0xff]
  %v4636 = vld [vmem:[%s1 + $0x4d0] sm:$0xff]
  %v4637 = vld [vmem:[%s1 + $0x4d8] sm:$0xff]
  %v4638 = vld [vmem:[%s1 + $0x4e0] sm:$0xff]
  %v4639 = vld [vmem:[%s1 + $0x4e8] sm:$0xff]
  %v4640 = vld [vmem:[%s1 + $0x4f0] sm:$0xff]
  %v4641 = vld [vmem:[%s1 + $0x4f8] sm:$0xff]
  %v4642 = vld [vmem:[%s1 + $0x500] sm:$0xff]
  %v4643 = vld [vmem:[%s1 + $0x508] sm:$0xff]
  %v4644 = vld [vmem:[%s1 + $0x510] sm:$0xff]
  %v4645 = vld [vmem:[%s1 + $0x518] sm:$0xff]
  %v4646 = vld [vmem:[%s1 + $0x520] sm:$0xff]
  %v4647 = vld [vmem:[%s1 + $0x528] sm:$0xff]
  %v4648 = vld [vmem:[%s1 + $0x530] sm:$0xff]
  %v4649 = vld [vmem:[%s1 + $0x538] sm:$0xff]
  %v4650 = vld [vmem:[%s1 + $0x540] sm:$0xff]
  %v4651 = vld [vmem:[%s1 + $0x548] sm:$0xff]
  %v4652 = vld [vmem:[%s1 + $0x550] sm:$0xff]
  %v4653 = vld [vmem:[%s1 + $0x558] sm:$0xff]
  %v4654 = vld [vmem:[%s1 + $0x560] sm:$0xff]
  %v4655 = vld [vmem:[%s1 + $0x568] sm:$0xff]
  %v4656 = vld [vmem:[%s1 + $0x570] sm:$0xff]
  %v4657 = vld [vmem:[%s1 + $0x578] sm:$0xff]
  %v4658 = vld [vmem:[%s1 + $0x580] sm:$0xff]
  %v4659 = vld [vmem:[%s1 + $0x588] sm:$0xff]
  %v4660 = vld [vmem:[%s1 + $0x590] sm:$0xff]
  %v4661 = vld [vmem:[%s1 + $0x598] sm:$0xff]
  %v4662 = vld [vmem:[%s1 + $0x5a0] sm:$0xff]
  %v4663 = vld [vmem:[%s1 + $0x5a8] sm:$0xff]
  %v4664 = vld [vmem:[%s1 + $0x5b0] sm:$0xff]
  %v4665 = vld [vmem:[%s1 + $0x5b8] sm:$0xff]
  %v4666 = vld [vmem:[%s1 + $0x5c0] sm:$0xff]
  %v4667 = vld [vmem:[%s1 + $0x5c8] sm:$0xff]
  %v4668 = vld [vmem:[%s1 + $0x5d0] sm:$0xff]
  %v4669 = vld [vmem:[%s1 + $0x5d8] sm:$0xff]
  %v4670 = vld [vmem:[%s1 + $0x5e0] sm:$0xff]
  %v4671 = vld [vmem:[%s1 + $0x5e8] sm:$0xff]
  %v4672 = vld [vmem:[%s1 + $0x5f0] sm:$0xff]
  %v4673 = vld [vmem:[%s1 + $0x5f8] sm:$0xff]
  %v4674 = vld [vmem:[%s1 + $0x600] sm:$0xff]
  %v4675 = vld [vmem:[%s1 + $0x608] sm:$0xff]
  %v4676 = vld [vmem:[%s1 + $0x610] sm:$0xff]
  %v4677 = vld [vmem:[%s1 + $0x618] sm:$0xff]
  %v4678 = vld [vmem:[%s1 + $0x620] sm:$0xff]
  %v4679 = vld [vmem:[%s1 + $0x628] sm:$0xff]
  %v4680 = vld [vmem:[%s1 + $0x630] sm:$0xff]
  %v4681 = vld [vmem:[%s1 + $0x638] sm:$0xff]
  %v4682 = vld [vmem:[%s1 + $0x640] sm:$0xff]
  %v4683 = vld [vmem:[%s1 + $0x648] sm:$0xff]
  %v4684 = vld [vmem:[%s1 + $0x650] sm:$0xff]
  %v4685 = vld [vmem:[%s1 + $0x658] sm:$0xff]
  %v4686 = vld [vmem:[%s1 + $0x660] sm:$0xff]
  %v4687 = vld [vmem:[%s1 + $0x668] sm:$0xff]
  %v4688 = vld [vmem:[%s1 + $0x670] sm:$0xff]
  %v4689 = vld [vmem:[%s1 + $0x678] sm:$0xff]
  %v4690 = vld [vmem:[%s1 + $0x680] sm:$0xff]
  %v4691 = vld [vmem:[%s1 + $0x688] sm:$0xff]
  %v4692 = vld [vmem:[%s1 + $0x690] sm:$0xff]
  %v4693 = vld [vmem:[%s1 + $0x698] sm:$0xff]
  %v4694 = vld [vmem:[%s1 + $0x6a0] sm:$0xff]
  %v4695 = vld [vmem:[%s1 + $0x6a8] sm:$0xff]
  %v4696 = vld [vmem:[%s1 + $0x6b0] sm:$0xff]
  %v4697 = vld [vmem:[%s1 + $0x6b8] sm:$0xff]
  %v4698 = vld [vmem:[%s1 + $0x6c0] sm:$0xff]
  %v4699 = vld [vmem:[%s1 + $0x6c8] sm:$0xff]
  %v4700 = vld [vmem:[%s1 + $0x6d0] sm:$0xff]
  %v4701 = vld [vmem:[%s1 + $0x6d8] sm:$0xff]
  %v4702 = vld [vmem:[%s1 + $0x6e0] sm:$0xff]
  %v4703 = vld [vmem:[%s1 + $0x6e8] sm:$0xff]
  %v4704 = vld [vmem:[%s1 + $0x6f0] sm:$0xff]
  %v4705 = vld [vmem:[%s1 + $0x6f8] sm:$0xff]
  %v4706 = vld [vmem:[%s1 + $0x700] sm:$0xff]
  %v4707 = vld [vmem:[%s1 + $0x708] sm:$0xff]
  %v4708 = vld [vmem:[%s1 + $0x710] sm:$0xff]
  %v4709 = vld [vmem:[%s1 + $0x718] sm:$0xff]
  %v4710 = vld [vmem:[%s1 + $0x720] sm:$0xff]
  %v4711 = vld [vmem:[%s1 + $0x728] sm:$0xff]
  %v4712 = vld [vmem:[%s1 + $0x730] sm:$0xff]
  %v4713 = vld [vmem:[%s1 + $0x738] sm:$0xff]
  %v4714 = vld [vmem:[%s1 + $0x740] sm:$0xff]
  %v4715 = vld [vmem:[%s1 + $0x748] sm:$0xff]
  %v4716 = vld [vmem:[%s1 + $0x750] sm:$0xff]
  %v4717 = vld [vmem:[%s1 + $0x758] sm:$0xff]
  %v4718 = vld [vmem:[%s1 + $0x760] sm:$0xff]
  %v4719 = vld [vmem:[%s1 + $0x768] sm:$0xff]
  %v4720 = vld [vmem:[%s1 + $0x770] sm:$0xff]
  %v4721 = vld [vmem:[%s1 + $0x778] sm:$0xff]
  %v4722 = vld [vmem:[%s1 + $0x780] sm:$0xff]
  %v4723 = vld [vmem:[%s1 + $0x788] sm:$0xff]
  %v4724 = vld [vmem:[%s1 + $0x790] sm:$0xff]
  %v4725 = vld [vmem:[%s1 + $0x798] sm:$0xff]
  %v4726 = vld [vmem:[%s1 + $0x7a0] sm:$0xff]
  %v4727 = vld [vmem:[%s1 + $0x7a8] sm:$0xff]
  %v4728 = vld [vmem:[%s1 + $0x7b0] sm:$0xff]
  %v4729 = vld [vmem:[%s1 + $0x7b8] sm:$0xff]
  %v4730 = vld [vmem:[%s1 + $0x7c0] sm:$0xff]
  %v4731 = vld [vmem:[%s1 + $0x7c8] sm:$0xff]
  %v4732 = vld [vmem:[%s1 + $0x7d0] sm:$0xff]
  %v4733 = vld [vmem:[%s1 + $0x7d8] sm:$0xff]
  %v4734 = vld [vmem:[%s1 + $0x7e0] sm:$0xff]
  %v4735 = vld [vmem:[%s1 + $0x7e8] sm:$0xff]
  %v4736 = vld [vmem:[%s1 + $0x7f0] sm:$0xff]
  %v4737 = vld [vmem:[%s1 + $0x7f8] sm:$0xff]
  %v4738 = vld [vmem:[%s1 + $0x800] sm:$0xff]
  %v4739 = vld [vmem:[%s1 + $0x808] sm:$0xff]
  %v4740 = vld [vmem:[%s1 + $0x810] sm:$0xff]
  %v4741 = vld [vmem:[%s1 + $0x818] sm:$0xff]
  %v4742 = vld [vmem:[%s1 + $0x820] sm:$0xff]
  %v4743 = vld [vmem:[%s1 + $0x828] sm:$0xff]
  %v4744 = vld [vmem:[%s1 + $0x830] sm:$0xff]
  %v4745 = vld [vmem:[%s1 + $0x838] sm:$0xff]
  %v4746 = vld [vmem:[%s1 + $0x840] sm:$0xff]
  %v4747 = vld [vmem:[%s1 + $0x848] sm:$0xff]
  %v4748 = vld [vmem:[%s1 + $0x850] sm:$0xff]
  %v4749 = vld [vmem:[%s1 + $0x858] sm:$0xff]
  %v4750 = vld [vmem:[%s1 + $0x860] sm:$0xff]
  %v4751 = vld [vmem:[%s1 + $0x868] sm:$0xff]
  %v4752 = vld [vmem:[%s1 + $0x870] sm:$0xff]
  %v4753 = vld [vmem:[%s1 + $0x878] sm:$0xff]
  %v4754 = vld [vmem:[%s1 + $0x880] sm:$0xff]
  %v4755 = vld [vmem:[%s1 + $0x888] sm:$0xff]
  %v4756 = vld [vmem:[%s1 + $0x890] sm:$0xff]
  %v4757 = vld [vmem:[%s1 + $0x898] sm:$0xff]
  %v4758 = vld [vmem:[%s1 + $0x8a0] sm:$0xff]
  %v4759 = vld [vmem:[%s1 + $0x8a8] sm:$0xff]
  %v4760 = vld [vmem:[%s1 + $0x8b0] sm:$0xff]
  %v4761 = vld [vmem:[%s1 + $0x8b8] sm:$0xff]
  %v4762 = vld [vmem:[%s1 + $0x8c0] sm:$0xff]
  %v4763 = vld [vmem:[%s1 + $0x8c8] sm:$0xff]
  %v4764 = vld [vmem:[%s1 + $0x8d0] sm:$0xff]
  %v4765 = vld [vmem:[%s1 + $0x8d8] sm:$0xff]
  %v4766 = vld [vmem:[%s1 + $0x8e0] sm:$0xff]
  %v4767 = vld [vmem:[%s1 + $0x8e8] sm:$0xff]
  %v4768 = vld [vmem:[%s1 + $0x8f0] sm:$0xff]
  %v4769 = vld [vmem:[%s1 + $0x8f8] sm:$0xff]
  %v4770 = vld [vmem:[%s2] sm:$0x3]
  %v4772 = vlaneseq
  %v4773 = vshrl.u32 %v4772, 7
  %v4774 = vsub.s32 0, %v4773
  %v4775 = vrot.slane %v4770, %v4774
  %v4776 = vlaneseq
  %v4777 = vshrl.u32 %v4776, 7
  %v4778 = vsub.s32 1, %v4777
  %v4779 = vrot.slane %v4770, %v4778
  %v4785 = vcombine.high %v4479, %v4479
  %v4787 = vunpack.c.l.s4 1983009808
  %v4788 = vunpack.c.0.s8 %v4787
  %v4789 = vlaneseq
  %v4790 = vshrl.u32 %v4789, 7
  %v4791 = vsub.s32 %v4788, %v4790
  %v4792 = vrot.slane %v4479, %v4791
  %v4794 = vunpack.c.l.s4 1983009808
  %v4795 = vunpack.c.0.s8 %v4794
  %v4796 = vlaneseq
  %v4797 = vshrl.u32 %v4796, 7
  %v4798 = vsub.s32 %v4795, %v4797
  %v4799 = vrot.slane %v4785, %v4798
  %v4800 = vcombine.high %v4792, %v4792
  %v4801 = vcombine.high %v4799, %v4799
  %v4802 = vcombine.high %v4480, %v4480
  %v4804 = vunpack.c.l.s4 1983009808
  %v4805 = vunpack.c.0.s8 %v4804
  %v4806 = vlaneseq
  %v4807 = vshrl.u32 %v4806, 7
  %v4808 = vsub.s32 %v4805, %v4807
  %v4809 = vrot.slane %v4480, %v4808
  %v4811 = vunpack.c.l.s4 1983009808
  %v4812 = vunpack.c.0.s8 %v4811
  %v4813 = vlaneseq
  %v4814 = vshrl.u32 %v4813, 7
  %v4815 = vsub.s32 %v4812, %v4814
  %v4816 = vrot.slane %v4802, %v4815
  %v4817 = vcombine.high %v4809, %v4809
  %v4818 = vcombine.high %v4816, %v4816
  %v4820 = vunpack.c.l.s4 1983009808
  %v4821 = vunpack.c.0.s8 %v4820
  %v4822 = vlaneseq
  %v4823 = vshrl.u32 %v4822, 7
  %v4824 = vsub.s32 %v4821, %v4823
  %v4825 = vrot.slane %v4481, %v4824
  %4835 = vmatprep.subr.mxu0 %v4483
  %4836 = vmatpush1.msra.mxu0 %v4482
  %4837 = vmatprep.subr.mxu0 %v4485
  %4838 = vmatpush1.msra.mxu0 %v4484
  %4839 = vmatprep.subr.mxu0 %v4487
  %4840 = vmatpush1.msra.mxu0 %v4486
  %4841 = vmatprep.subr.mxu0 %v4489
  %4842 = vmatpush1.msra.mxu0 %v4488
  %4843 = vmatprep.subr.mxu0 %v4491
  %4844 = vmatpush1.msra.mxu0 %v4490
  %4845 = vmatprep.subr.mxu0 %v4493
  %4846 = vmatpush1.msra.mxu0 %v4492
  %4847 = vmatprep.subr.mxu0 %v4495
  %4848 = vmatpush1.msra.mxu0 %v4494
  %4849 = vmatprep.subr.mxu0 %v4497
  %4850 = vmatpush1.msra.mxu0 %v4496
  %4851 = vmatprep.subr.mxu0 %v4499
  %4852 = vmatpush1.msra.mxu0 %v4498
  %4853 = vmatprep.subr.mxu0 %v4501
  %4854 = vmatpush1.msra.mxu0 %v4500
  %4855 = vmatprep.subr.mxu0 %v4503
  %4856 = vmatpush1.msra.mxu0 %v4502
  %4857 = vmatprep.subr.mxu0 %v4505
  %4858 = vmatpush1.msra.mxu0 %v4504
  %4859 = vmatprep.subr.mxu0 %v4507
  %4860 = vmatpush1.msra.mxu0 %v4506
  %4861 = vmatprep.subr.mxu0 %v4509
  %4862 = vmatpush1.msra.mxu0 %v4508
  %4863 = vmatprep.subr.mxu0 %v4511
  %4864 = vmatpush1.msra.mxu0 %v4510
  %4865 = vmatprep.subr.mxu0 %v4513
  %4866 = vmatpush1.msra.mxu0 %v4512
  %4867 = vmatprep.subr.mxu0 %v4515
  %4868 = vmatpush1.msra.mxu0 %v4514
  %4869 = vmatprep.subr.mxu0 %v4517
  %4870 = vmatpush1.msra.mxu0 %v4516
  %4871 = vmatprep.subr.mxu0 %v4519
  %4872 = vmatpush1.msra.mxu0 %v4518
  %4873 = vmatprep.subr.mxu0 %v4521
  %4874 = vmatpush1.msra.mxu0 %v4520
  %4875 = vmatprep.subr.mxu0 %v4523
  %4876 = vmatpush1.msra.mxu0 %v4522
  %4877 = vmatprep.subr.mxu0 %v4525
  %4878 = vmatpush1.msra.mxu0 %v4524
  %4879 = vmatprep.subr.mxu0 %v4527
  %4880 = vmatpush1.msra.mxu0 %v4526
  %4881 = vmatprep.subr.mxu0 %v4529
  %4882 = vmatpush1.msra.mxu0 %v4528
  %4883 = vmatprep.subr.mxu0 %v4531
  %4884 = vmatpush1.msra.mxu0 %v4530
  %4885 = vmatprep.subr.mxu0 %v4533
  %4886 = vmatpush1.msra.mxu0 %v4532
  %4887 = vmatprep.subr.mxu0 %v4535
  %4888 = vmatpush1.msra.mxu0 %v4534
  %4889 = vmatprep.subr.mxu0 %v4537
  %4890 = vmatpush1.msra.mxu0 %v4536
  %4891 = vmatprep.subr.mxu0 %v4539
  %4892 = vmatpush1.msra.mxu0 %v4538
  %4893 = vmatprep.subr.mxu0 %v4541
  %4894 = vmatpush1.msra.mxu0 %v4540
  %4895 = vmatprep.subr.mxu0 %v4543
  %4896 = vmatpush1.msra.mxu0 %v4542
  %4897 = vmatprep.subr.mxu0 %v4545
  %4898 = vmatpush1.msra.mxu0 %v4544
  %4899 = vmatprep.mubr.f32.mxu0 %v4800
  %4900 = vmatmul.mubr.f32.gmra.mrb[0].mxu0 %v4792
  %v4901 = vpop.f32.mrb[0].mxu0
  %v4902 = vadd.f32 %v4775, %v4901
  %v4903 = vpop.f32.mrb[0].mxu0
  %v4904 = vadd.f32 %v4779, %v4903
  %4905 = vdwg.mxu0
  %4906 = vmatprep.subr.mxu0 %v4547
  %4907 = vmatpush1.msra.mxu0 %v4546
  %4908 = vmatprep.subr.mxu0 %v4549
  %4909 = vmatpush1.msra.mxu0 %v4548
  %4910 = vmatprep.subr.mxu0 %v4551
  %4911 = vmatpush1.msra.mxu0 %v4550
  %4912 = vmatprep.subr.mxu0 %v4553
  %4913 = vmatpush1.msra.mxu0 %v4552
  %4914 = vmatprep.subr.mxu0 %v4555
  %4915 = vmatpush1.msra.mxu0 %v4554
  %4916 = vmatprep.subr.mxu0 %v4557
  %4917 = vmatpush1.msra.mxu0 %v4556
  %4918 = vmatprep.subr.mxu0 %v4559
  %4919 = vmatpush1.msra.mxu0 %v4558
  %4920 = vmatprep.subr.mxu0 %v4561
  %4921 = vmatpush1.msra.mxu0 %v4560
  %4922 = vmatprep.subr.mxu0 %v4563
  %4923 = vmatpush1.msra.mxu0 %v4562
  %4924 = vmatprep.subr.mxu0 %v4565
  %4925 = vmatpush1.msra.mxu0 %v4564
  %4926 = vmatprep.subr.mxu0 %v4567
  %4927 = vmatpush1.msra.mxu0 %v4566
  %4928 = vmatprep.subr.mxu0 %v4569
  %4929 = vmatpush1.msra.mxu0 %v4568
  %4930 = vmatprep.subr.mxu0 %v4571
  %4931 = vmatpush1.msra.mxu0 %v4570
  %4932 = vmatprep.subr.mxu0 %v4573
  %4933 = vmatpush1.msra.mxu0 %v4572
  %4934 = vmatprep.subr.mxu0 %v4575
  %4935 = vmatpush1.msra.mxu0 %v4574
  %4936 = vmatprep.subr.mxu0 %v4577
  %4937 = vmatpush1.msra.mxu0 %v4576
  %4938 = vmatprep.subr.mxu0 %v4579
  %4939 = vmatpush1.msra.mxu0 %v4578
  %4940 = vmatprep.subr.mxu0 %v4581
  %4941 = vmatpush1.msra.mxu0 %v4580
  %4942 = vmatprep.subr.mxu0 %v4583
  %4943 = vmatpush1.msra.mxu0 %v4582
  %4944 = vmatprep.subr.mxu0 %v4585
  %4945 = vmatpush1.msra.mxu0 %v4584
  %4946 = vmatprep.subr.mxu0 %v4587
  %4947 = vmatpush1.msra.mxu0 %v4586
  %4948 = vmatprep.subr.mxu0 %v4589
  %4949 = vmatpush1.msra.mxu0 %v4588
  %4950 = vmatprep.subr.mxu0 %v4591
  %4951 = vmatpush1.msra.mxu0 %v4590
  %4952 = vmatprep.subr.mxu0 %v4593
  %4953 = vmatpush1.msra.mxu0 %v4592
  %4954 = vmatprep.subr.mxu0 %v4595
  %4955 = vmatpush1.msra.mxu0 %v4594
  %4956 = vmatprep.subr.mxu0 %v4597
  %4957 = vmatpush1.msra.mxu0 %v4596
  %4958 = vmatprep.subr.mxu0 %v4599
  %4959 = vmatpush1.msra.mxu0 %v4598
  %4960 = vmatprep.subr.mxu0 %v4601
  %4961 = vmatpush1.msra.mxu0 %v4600
  %4962 = vmatprep.subr.mxu0 %v4603
  %4963 = vmatpush1.msra.mxu0 %v4602
  %4964 = vmatprep.subr.mxu0 %v4605
  %4965 = vmatpush1.msra.mxu0 %v4604
  %4966 = vmatprep.subr.mxu0 %v4607
  %4967 = vmatpush1.msra.mxu0 %v4606
  %4968 = vmatprep.subr.mxu0 %v4609
  %4969 = vmatpush1.msra.mxu0 %v4608
  %4970 = vmatprep.mubr.f32.mxu0 %v4801
  %4971 = vmatmul.mubr.f32.gmra.mrb[0].mxu0 %v4799
  %v4972 = vpop.f32.mrb[0].mxu0
  %v4973 = vadd.f32 %v4902, %v4972
  %v4974 = vpop.f32.mrb[0].mxu0
  %v4975 = vadd.f32 %v4904, %v4974
  %4976 = vdwg.mxu0
  %4977 = vmatprep.subr.mxu0 %v4611
  %4978 = vmatpush1.msra.mxu0 %v4610
  %4979 = vmatprep.subr.mxu0 %v4613
  %4980 = vmatpush1.msra.mxu0 %v4612
  %4981 = vmatprep.subr.mxu0 %v4615
  %4982 = vmatpush1.msra.mxu0 %v4614
  %4983 = vmatprep.subr.mxu0 %v4617
  %4984 = vmatpush1.msra.mxu0 %v4616
  %4985 = vmatprep.subr.mxu0 %v4619
  %4986 = vmatpush1.msra.mxu0 %v4618
  %4987 = vmatprep.subr.mxu0 %v4621
  %4988 = vmatpush1.msra.mxu0 %v4620
  %4989 = vmatprep.subr.mxu0 %v4623
  %4990 = vmatpush1.msra.mxu0 %v4622
  %4991 = vmatprep.subr.mxu0 %v4625
  %4992 = vmatpush1.msra.mxu0 %v4624
  %4993 = vmatprep.subr.mxu0 %v4627
  %4994 = vmatpush1.msra.mxu0 %v4626
  %4995 = vmatprep.subr.mxu0 %v4629
  %4996 = vmatpush1.msra.mxu0 %v4628
  %4997 = vmatprep.subr.mxu0 %v4631
  %4998 = vmatpush1.msra.mxu0 %v4630
  %4999 = vmatprep.subr.mxu0 %v4633
  %5000 = vmatpush1.msra.mxu0 %v4632
  %5001 = vmatprep.subr.mxu0 %v4635
  %5002 = vmatpush1.msra.mxu0 %v4634
  %5003 = vmatprep.subr.mxu0 %v4637
  %5004 = vmatpush1.msra.mxu0 %v4636
  %5005 = vmatprep.subr.mxu0 %v4639
  %5006 = vmatpush1.msra.mxu0 %v4638
  %5007 = vmatprep.subr.mxu0 %v4641
  %5008 = vmatpush1.msra.mxu0 %v4640
  %5009 = vmatprep.subr.mxu0 %v4643
  %5010 = vmatpush1.msra.mxu0 %v4642
  %5011 = vmatprep.subr.mxu0 %v4645
  %5012 = vmatpush1.msra.mxu0 %v4644
  %5013 = vmatprep.subr.mxu0 %v4647
  %5014 = vmatpush1.msra.mxu0 %v4646
  %5015 = vmatprep.subr.mxu0 %v4649
  %5016 = vmatpush1.msra.mxu0 %v4648
  %5017 = vmatprep.subr.mxu0 %v4651
  %5018 = vmatpush1.msra.mxu0 %v4650
  %5019 = vmatprep.subr.mxu0 %v4653
  %5020 = vmatpush1.msra.mxu0 %v4652
  %5021 = vmatprep.subr.mxu0 %v4655
  %5022 = vmatpush1.msra.mxu0 %v4654
  %5023 = vmatprep.subr.mxu0 %v4657
  %5024 = vmatpush1.msra.mxu0 %v4656
  %5025 = vmatprep.subr.mxu0 %v4659
  %5026 = vmatpush1.msra.mxu0 %v4658
  %5027 = vmatprep.subr.mxu0 %v4661
  %5028 = vmatpush1.msra.mxu0 %v4660
  %5029 = vmatprep.subr.mxu0 %v4663
  %5030 = vmatpush1.msra.mxu0 %v4662
  %5031 = vmatprep.subr.mxu0 %v4665
  %5032 = vmatpush1.msra.mxu0 %v4664
  %5033 = vmatprep.subr.mxu0 %v4667
  %5034 = vmatpush1.msra.mxu0 %v4666
  %5035 = vmatprep.subr.mxu0 %v4669
  %5036 = vmatpush1.msra.mxu0 %v4668
  %5037 = vmatprep.subr.mxu0 %v4671
  %5038 = vmatpush1.msra.mxu0 %v4670
  %5039 = vmatprep.subr.mxu0 %v4673
  %5040 = vmatpush1.msra.mxu0 %v4672
  %5041 = vmatprep.mubr.f32.mxu0 %v4817
  %5042 = vmatmul.mubr.f32.gmra.mrb[0].mxu0 %v4809
  %v5043 = vpop.f32.mrb[0].mxu0
  %v5044 = vadd.f32 %v4973, %v5043
  %v5045 = vpop.f32.mrb[0].mxu0
  %v5046 = vadd.f32 %v4975, %v5045
  %5047 = vdwg.mxu0
  %5048 = vmatprep.subr.mxu0 %v4675
  %5049 = vmatpush1.msra.mxu0 %v4674
  %5050 = vmatprep.subr.mxu0 %v4677
  %5051 = vmatpush1.msra.mxu0 %v4676
  %5052 = vmatprep.subr.mxu0 %v4679
  %5053 = vmatpush1.msra.mxu0 %v4678
  %5054 = vmatprep.subr.mxu0 %v4681
  %5055 = vmatpush1.msra.mxu0 %v4680
  %5056 = vmatprep.subr.mxu0 %v4683
  %5057 = vmatpush1.msra.mxu0 %v4682
  %5058 = vmatprep.subr.mxu0 %v4685
  %5059 = vmatpush1.msra.mxu0 %v4684
  %5060 = vmatprep.subr.mxu0 %v4687
  %5061 = vmatpush1.msra.mxu0 %v4686
  %5062 = vmatprep.subr.mxu0 %v4689
  %5063 = vmatpush1.msra.mxu0 %v4688
  %5064 = vmatprep.subr.mxu0 %v4691
  %5065 = vmatpush1.msra.mxu0 %v4690
  %5066 = vmatprep.subr.mxu0 %v4693
  %5067 = vmatpush1.msra.mxu0 %v4692
  %5068 = vmatprep.subr.mxu0 %v4695
  %5069 = vmatpush1.msra.mxu0 %v4694
  %5070 = vmatprep.subr.mxu0 %v4697
  %5071 = vmatpush1.msra.mxu0 %v4696
  %5072 = vmatprep.subr.mxu0 %v4699
  %5073 = vmatpush1.msra.mxu0 %v4698
  %5074 = vmatprep.subr.mxu0 %v4701
  %5075 = vmatpush1.msra.mxu0 %v4700
  %5076 = vmatprep.subr.mxu0 %v4703
  %5077 = vmatpush1.msra.mxu0 %v4702
  %5078 = vmatprep.subr.mxu0 %v4705
  %5079 = vmatpush1.msra.mxu0 %v4704
  %5080 = vmatprep.subr.mxu0 %v4707
  %5081 = vmatpush1.msra.mxu0 %v4706
  %5082 = vmatprep.subr.mxu0 %v4709
  %5083 = vmatpush1.msra.mxu0 %v4708
  %5084 = vmatprep.subr.mxu0 %v4711
  %5085 = vmatpush1.msra.mxu0 %v4710
  %5086 = vmatprep.subr.mxu0 %v4713
  %5087 = vmatpush1.msra.mxu0 %v4712
  %5088 = vmatprep.subr.mxu0 %v4715
  %5089 = vmatpush1.msra.mxu0 %v4714
  %5090 = vmatprep.subr.mxu0 %v4717
  %5091 = vmatpush1.msra.mxu0 %v4716
  %5092 = vmatprep.subr.mxu0 %v4719
  %5093 = vmatpush1.msra.mxu0 %v4718
  %5094 = vmatprep.subr.mxu0 %v4721
  %5095 = vmatpush1.msra.mxu0 %v4720
  %5096 = vmatprep.subr.mxu0 %v4723
  %5097 = vmatpush1.msra.mxu0 %v4722
  %5098 = vmatprep.subr.mxu0 %v4725
  %5099 = vmatpush1.msra.mxu0 %v4724
  %5100 = vmatprep.subr.mxu0 %v4727
  %5101 = vmatpush1.msra.mxu0 %v4726
  %5102 = vmatprep.subr.mxu0 %v4729
  %5103 = vmatpush1.msra.mxu0 %v4728
  %5104 = vmatprep.subr.mxu0 %v4731
  %5105 = vmatpush1.msra.mxu0 %v4730
  %5106 = vmatprep.subr.mxu0 %v4733
  %5107 = vmatpush1.msra.mxu0 %v4732
  %5108 = vmatprep.subr.mxu0 %v4735
  %5109 = vmatpush1.msra.mxu0 %v4734
  %5110 = vmatprep.subr.mxu0 %v4737
  %5111 = vmatpush1.msra.mxu0 %v4736
  %5112 = vmatprep.mubr.f32.mxu0 %v4818
  %5113 = vmatmul.mubr.f32.gmra.mrb[0].mxu0 %v4816
  %v5114 = vpop.f32.mrb[0].mxu0
  %v5115 = vadd.f32 %v5044, %v5114
  %v5116 = vpop.f32.mrb[0].mxu0
  %v5117 = vadd.f32 %v5046, %v5116
  %5118 = vdwg.mxu0
  %5119 = vmatprep.subr.mxu0 %v4739
  %5120 = vmatpush1.msra.mxu0 %v4738
  %5121 = vmatprep.subr.mxu0 %v4741
  %5122 = vmatpush1.msra.mxu0 %v4740
  %5123 = vmatprep.subr.mxu0 %v4743
  %5124 = vmatpush1.msra.mxu0 %v4742
  %5125 = vmatprep.subr.mxu0 %v4745
  %5126 = vmatpush1.msra.mxu0 %v4744
  %5127 = vmatprep.subr.mxu0 %v4747
  %5128 = vmatpush1.msra.mxu0 %v4746
  %5129 = vmatprep.subr.mxu0 %v4749
  %5130 = vmatpush1.msra.mxu0 %v4748
  %5131 = vmatprep.subr.mxu0 %v4751
  %5132 = vmatpush1.msra.mxu0 %v4750
  %5133 = vmatprep.subr.mxu0 %v4753
  %5134 = vmatpush1.msra.mxu0 %v4752
  %5135 = vmatprep.subr.mxu0 %v4755
  %5136 = vmatpush1.msra.mxu0 %v4754
  %5137 = vmatprep.subr.mxu0 %v4757
  %5138 = vmatpush1.msra.mxu0 %v4756
  %5139 = vmatprep.subr.mxu0 %v4759
  %5140 = vmatpush1.msra.mxu0 %v4758
  %5141 = vmatprep.subr.mxu0 %v4761
  %5142 = vmatpush1.msra.mxu0 %v4760
  %5143 = vmatprep.subr.mxu0 %v4763
  %5144 = vmatpush1.msra.mxu0 %v4762
  %5145 = vmatprep.subr.mxu0 %v4765
  %5146 = vmatpush1.msra.mxu0 %v4764
  %5147 = vmatprep.subr.mxu0 %v4767
  %5148 = vmatpush1.msra.mxu0 %v4766
  %5149 = vmatprep.subr.mxu0 %v4769
  %5150 = vmatpush1.msra.mxu0 %v4768
  %5151 = vmatprep.subr.mxu0 0.0
  %5152 = vmatpush1.msra.mxu0 0.0
  %5153 = vmatprep.subr.mxu0 0.0
  %5154 = vmatpush1.msra.mxu0 0.0
  %5155 = vmatprep.subr.mxu0 0.0
  %5156 = vmatpush1.msra.mxu0 0.0
  %5157 = vmatprep.subr.mxu0 0.0
  %5158 = vmatpush1.msra.mxu0 0.0
  %5159 = vmatprep.subr.mxu0 0.0
  %5160 = vmatpush1.msra.mxu0 0.0
  %5161 = vmatprep.subr.mxu0 0.0
  %5162 = vmatpush1.msra.mxu0 0.0
  %5163 = vmatprep.subr.mxu0 0.0
  %5164 = vmatpush1.msra.mxu0 0.0
  %5165 = vmatprep.subr.mxu0 0.0
  %5166 = vmatpush1.msra.mxu0 0.0
  %5167 = vmatprep.subr.mxu0 0.0
  %5168 = vmatpush1.msra.mxu0 0.0
  %5169 = vmatprep.subr.mxu0 0.0
  %5170 = vmatpush1.msra.mxu0 0.0
  %5171 = vmatprep.subr.mxu0 0.0
  %5172 = vmatpush1.msra.mxu0 0.0
  %5173 = vmatprep.subr.mxu0 0.0
  %5174 = vmatpush1.msra.mxu0 0.0
  %5175 = vmatprep.subr.mxu0 0.0
  %5176 = vmatpush1.msra.mxu0 0.0
  %5177 = vmatprep.subr.mxu0 0.0
  %5178 = vmatpush1.msra.mxu0 0.0
  %5179 = vmatprep.subr.mxu0 0.0
  %5180 = vmatpush1.msra.mxu0 0.0
  %5181 = vmatprep.subr.mxu0 0.0
  %5182 = vmatpush1.msra.mxu0 0.0
  %5183 = vmatprep.mubr.f32.mxu0 0.0
  %5184 = vmatmul.mubr.f32.gmra.mrb[0].mxu0 %v4825
  %v5185 = vpop.f32.mrb[0].mxu0
  %v5186 = vadd.f32 %v5115, %v5185
  %v5187 = vpop.f32.mrb[0].mxu0
  %v5188 = vadd.f32 %v5117, %v5187
  %5189 = vdwg.mxu0
  %v5190 = vmax.f32 %v5186, 0.0
  %v5191 = vmax.f32 %v5188, 0.0
  %v5194 = vcombine.low %v5190, %v5191
  %v5196 = vunpack.c.l.s4 1983009808
  %v5197 = vunpack.c.0.s8 %v5196
  %v5198 = vlaneseq
  %v5199 = vshrl.u32 %v5198, 7
  %v5200 = vsub.s32 %v5197, %v5199
  %v5201 = vrot.slane %v5194, %v5200
  %5203 = vst [vmem:[#allocation2 + $0x18] sm:$0xf] %v5201
  %v5204 = vld [vmem:[%s0 + $0x3e] sm:$0xff]
  %v5205 = vld [vmem:[%s0 + $0x46] sm:$0xff]
  %v5206 = vld [vmem:[%s0 + $0x4e] sm:$0xf]
  %v5207 = vld [vmem:[%s1] sm:$0xff]
  %v5208 = vld [vmem:[%s1 + $0x8] sm:$0xff]
  %v5209 = vld [vmem:[%s1 + $0x10] sm:$0xff]
  %v5210 = vld [vmem:[%s1 + $0x18] sm:$0xff]
  %v5211 = vld [vmem:[%s1 + $0x20] sm:$0xff]
  %v5212 = vld [vmem:[%s1 + $0x28] sm:$0xff]
  %v5213 = vld [vmem:[%s1 + $0x30] sm:$0xff]
  %v5214 = vld [vmem:[%s1 + $0x38] sm:$0xff]
  %v5215 = vld [vmem:[%s1 + $0x40] sm:$0xff]
  %v5216 = vld [vmem:[%s1 + $0x48] sm:$0xff]
  %v5217 = vld [vmem:[%s1 + $0x50] sm:$0xff]
  %v5218 = vld [vmem:[%s1 + $0x58] sm:$0xff]
  %v5219 = vld [vmem:[%s1 + $0x60] sm:$0xff]
  %v5220 = vld [vmem:[%s1 + $0x68] sm:$0xff]
  %v5221 = vld [vmem:[%s1 + $0x70] sm:$0xff]
  %v5222 = vld [vmem:[%s1 + $0x78] sm:$0xff]
  %v5223 = vld [vmem:[%s1 + $0x80] sm:$0xff]
  %v5224 = vld [vmem:[%s1 + $0x88] sm:$0xff]
  %v5225 = vld [vmem:[%s1 + $0x90] sm:$0xff]
  %v5226 = vld [vmem:[%s1 + $0x98] sm:$0xff]
  %v5227 = vld [vmem:[%s1 + $0xa0] sm:$0xff]
  %v5228 = vld [vmem:[%s1 + $0xa8] sm:$0xff]
  %v5229 = vld [vmem:[%s1 + $0xb0] sm:$0xff]
  %v5230 = vld [vmem:[%s1 + $0xb8] sm:$0xff]
  %v5231 = vld [vmem:[%s1 + $0xc0] sm:$0xff]
  %v5232 = vld [vmem:[%s1 + $0xc8] sm:$0xff]
  %v5233 = vld [vmem:[%s1 + $0xd0] sm:$0xff]
  %v5234 = vld [vmem:[%s1 + $0xd8] sm:$0xff]
  %v5235 = vld [vmem:[%s1 + $0xe0] sm:$0xff]
  %v5236 = vld [vmem:[%s1 + $0xe8] sm:$0xff]
  %v5237 = vld [vmem:[%s1 + $0xf0] sm:$0xff]
  %v5238 = vld [vmem:[%s1 + $0xf8] sm:$0xff]
  %v5239 = vld [vmem:[%s1 + $0x100] sm:$0xff]
  %v5240 = vld [vmem:[%s1 + $0x108] sm:$0xff]
  %v5241 = vld [vmem:[%s1 + $0x110] sm:$0xff]
  %v5242 = vld [vmem:[%s1 + $0x118] sm:$0xff]
  %v5243 = vld [vmem:[%s1 + $0x120] sm:$0xff]
  %v5244 = vld [vmem:[%s1 + $0x128] sm:$0xff]
  %v5245 = vld [vmem:[%s1 + $0x130] sm:$0xff]
  %v5246 = vld [vmem:[%s1 + $0x138] sm:$0xff]
  %v5247 = vld [vmem:[%s1 + $0x140] sm:$0xff]
  %v5248 = vld [vmem:[%s1 + $0x148] sm:$0xff]
  %v5249 = vld [vmem:[%s1 + $0x150] sm:$0xff]
  %v5250 = vld [vmem:[%s1 + $0x158] sm:$0xff]
  %v5251 = vld [vmem:[%s1 + $0x160] sm:$0xff]
  %v5252 = vld [vmem:[%s1 + $0x168] sm:$0xff]
  %v5253 = vld [vmem:[%s1 + $0x170] sm:$0xff]
  %v5254 = vld [vmem:[%s1 + $0x178] sm:$0xff]
  %v5255 = vld [vmem:[%s1 + $0x180] sm:$0xff]
  %v5256 = vld [vmem:[%s1 + $0x188] sm:$0xff]
  %v5257 = vld [vmem:[%s1 + $0x190] sm:$0xff]
  %v5258 = vld [vmem:[%s1 + $0x198] sm:$0xff]
  %v5259 = vld [vmem:[%s1 + $0x1a0] sm:$0xff]
  %v5260 = vld [vmem:[%s1 + $0x1a8] sm:$0xff]
  %v5261 = vld [vmem:[%s1 + $0x1b0] sm:$0xff]
  %v5262 = vld [vmem:[%s1 + $0x1b8] sm:$0xff]
  %v5263 = vld [vmem:[%s1 + $0x1c0] sm:$0xff]
  %v5264 = vld [vmem:[%s1 + $0x1c8] sm:$0xff]
  %v5265 = vld [vmem:[%s1 + $0x1d0] sm:$0xff]
  %v5266 = vld [vmem:[%s1 + $0x1d8] sm:$0xff]
  %v5267 = vld [vmem:[%s1 + $0x1e0] sm:$0xff]
  %v5268 = vld [vmem:[%s1 + $0x1e8] sm:$0xff]
  %v5269 = vld [vmem:[%s1 + $0x1f0] sm:$0xff]
  %v5270 = vld [vmem:[%s1 + $0x1f8] sm:$0xff]
  %v5271 = vld [vmem:[%s1 + $0x200] sm:$0xff]
  %v5272 = vld [vmem:[%s1 + $0x208] sm:$0xff]
  %v5273 = vld [vmem:[%s1 + $0x210] sm:$0xff]
  %v5274 = vld [vmem:[%s1 + $0x218] sm:$0xff]
  %v5275 = vld [vmem:[%s1 + $0x220] sm:$0xff]
  %v5276 = vld [vmem:[%s1 + $0x228] sm:$0xff]
  %v5277 = vld [vmem:[%s1 + $0x230] sm:$0xff]
  %v5278 = vld [vmem:[%s1 + $0x238] sm:$0xff]
  %v5279 = vld [vmem:[%s1 + $0x240] sm:$0xff]
  %v5280 = vld [vmem:[%s1 + $0x248] sm:$0xff]
  %v5281 = vld [vmem:[%s1 + $0x250] sm:$0xff]
  %v5282 = vld [vmem:[%s1 + $0x258] sm:$0xff]
  %v5283 = vld [vmem:[%s1 + $0x260] sm:$0xff]
  %v5284 = vld [vmem:[%s1 + $0x268] sm:$0xff]
  %v5285 = vld [vmem:[%s1 + $0x270] sm:$0xff]
  %v5286 = vld [vmem:[%s1 + $0x278] sm:$0xff]
  %v5287 = vld [vmem:[%s1 + $0x280] sm:$0xff]
  %v5288 = vld [vmem:[%s1 + $0x288] sm:$0xff]
  %v5289 = vld [vmem:[%s1 + $0x290] sm:$0xff]
  %v5290 = vld [vmem:[%s1 + $0x298] sm:$0xff]
  %v5291 = vld [vmem:[%s1 + $0x2a0] sm:$0xff]
  %v5292 = vld [vmem:[%s1 + $0x2a8] sm:$0xff]
  %v5293 = vld [vmem:[%s1 + $0x2b0] sm:$0xff]
  %v5294 = vld [vmem:[%s1 + $0x2b8] sm:$0xff]
  %v5295 = vld [vmem:[%s1 + $0x2c0] sm:$0xff]
  %v5296 = vld [vmem:[%s1 + $0x2c8] sm:$0xff]
  %v5297 = vld [vmem:[%s1 + $0x2d0] sm:$0xff]
  %v5298 = vld [vmem:[%s1 + $0x2d8] sm:$0xff]
  %v5299 = vld [vmem:[%s1 + $0x2e0] sm:$0xff]
  %v5300 = vld [vmem:[%s1 + $0x2e8] sm:$0xff]
  %v5301 = vld [vmem:[%s1 + $0x2f0] sm:$0xff]
  %v5302 = vld [vmem:[%s1 + $0x2f8] sm:$0xff]
  %v5303 = vld [vmem:[%s1 + $0x300] sm:$0xff]
  %v5304 = vld [vmem:[%s1 + $0x308] sm:$0xff]
  %v5305 = vld [vmem:[%s1 + $0x310] sm:$0xff]
  %v5306 = vld [vmem:[%s1 + $0x318] sm:$0xff]
  %v5307 = vld [vmem:[%s1 + $0x320] sm:$0xff]
  %v5308 = vld [vmem:[%s1 + $0x328] sm:$0xff]
  %v5309 = vld [vmem:[%s1 + $0x330] sm:$0xff]
  %v5310 = vld [vmem:[%s1 + $0x338] sm:$0xff]
  %v5311 = vld [vmem:[%s1 + $0x340] sm:$0xff]
  %v5312 = vld [vmem:[%s1 + $0x348] sm:$0xff]
  %v5313 = vld [vmem:[%s1 + $0x350] sm:$0xff]
  %v5314 = vld [vmem:[%s1 + $0x358] sm:$0xff]
  %v5315 = vld [vmem:[%s1 + $0x360] sm:$0xff]
  %v5316 = vld [vmem:[%s1 + $0x368] sm:$0xff]
  %v5317 = vld [vmem:[%s1 + $0x370] sm:$0xff]
  %v5318 = vld [vmem:[%s1 + $0x378] sm:$0xff]
  %v5319 = vld [vmem:[%s1 + $0x380] sm:$0xff]
  %v5320 = vld [vmem:[%s1 + $0x388] sm:$0xff]
  %v5321 = vld [vmem:[%s1 + $0x390] sm:$0xff]
  %v5322 = vld [vmem:[%s1 + $0x398] sm:$0xff]
  %v5323 = vld [vmem:[%s1 + $0x3a0] sm:$0xff]
  %v5324 = vld [vmem:[%s1 + $0x3a8] sm:$0xff]
  %v5325 = vld [vmem:[%s1 + $0x3b0] sm:$0xff]
  %v5326 = vld [vmem:[%s1 + $0x3b8] sm:$0xff]
  %v5327 = vld [vmem:[%s1 + $0x3c0] sm:$0xff]
  %v5328 = vld [vmem:[%s1 + $0x3c8] sm:$0xff]
  %v5329 = vld [vmem:[%s1 + $0x3d0] sm:$0xff]
  %v5330 = vld [vmem:[%s1 + $0x3d8] sm:$0xff]
  %v5331 = vld [vmem:[%s1 + $0x3e0] sm:$0xff]
  %v5332 = vld [vmem:[%s1 + $0x3e8] sm:$0xff]
  %v5333 = vld [vmem:[%s1 + $0x3f0] sm:$0xff]
  %v5334 = vld [vmem:[%s1 + $0x3f8] sm:$0xff]
  %v5335 = vld [vmem:[%s1 + $0x400] sm:$0xff]
  %v5336 = vld [vmem:[%s1 + $0x408] sm:$0xff]
  %v5337 = vld [vmem:[%s1 + $0x410] sm:$0xff]
  %v5338 = vld [vmem:[%s1 + $0x418] sm:$0xff]
  %v5339 = vld [vmem:[%s1 + $0x420] sm:$0xff]
  %v5340 = vld [vmem:[%s1 + $0x428] sm:$0xff]
  %v5341 = vld [vmem:[%s1 + $0x430] sm:$0xff]
  %v5342 = vld [vmem:[%s1 + $0x438] sm:$0xff]
  %v5343 = vld [vmem:[%s1 + $0x440] sm:$0xff]
  %v5344 = vld [vmem:[%s1 + $0x448] sm:$0xff]
  %v5345 = vld [vmem:[%s1 + $0x450] sm:$0xff]
  %v5346 = vld [vmem:[%s1 + $0x458] sm:$0xff]
  %v5347 = vld [vmem:[%s1 + $0x460] sm:$0xff]
  %v5348 = vld [vmem:[%s1 + $0x468] sm:$0xff]
  %v5349 = vld [vmem:[%s1 + $0x470] sm:$0xff]
  %v5350 = vld [vmem:[%s1 + $0x478] sm:$0xff]
  %v5351 = vld [vmem:[%s1 + $0x480] sm:$0xff]
  %v5352 = vld [vmem:[%s1 + $0x488] sm:$0xff]
  %v5353 = vld [vmem:[%s1 + $0x490] sm:$0xff]
  %v5354 = vld [vmem:[%s1 + $0x498] sm:$0xff]
  %v5355 = vld [vmem:[%s1 + $0x4a0] sm:$0xff]
  %v5356 = vld [vmem:[%s1 + $0x4a8] sm:$0xff]
  %v5357 = vld [vmem:[%s1 + $0x4b0] sm:$0xff]
  %v5358 = vld [vmem:[%s1 + $0x4b8] sm:$0xff]
  %v5359 = vld [vmem:[%s1 + $0x4c0] sm:$0xff]
  %v5360 = vld [vmem:[%s1 + $0x4c8] sm:$0xff]
  %v5361 = vld [vmem:[%s1 + $0x4d0] sm:$0xff]
  %v5362 = vld [vmem:[%s1 + $0x4d8] sm:$0xff]
  %v5363 = vld [vmem:[%s1 + $0x4e0] sm:$0xff]
  %v5364 = vld [vmem:[%s1 + $0x4e8] sm:$0xff]
  %v5365 = vld [vmem:[%s1 + $0x4f0] sm:$0xff]
  %v5366 = vld [vmem:[%s1 + $0x4f8] sm:$0xff]
  %v5367 = vld [vmem:[%s1 + $0x500] sm:$0xff]
  %v5368 = vld [vmem:[%s1 + $0x508] sm:$0xff]
  %v5369 = vld [vmem:[%s1 + $0x510] sm:$0xff]
  %v5370 = vld [vmem:[%s1 + $0x518] sm:$0xff]
  %v5371 = vld [vmem:[%s1 + $0x520] sm:$0xff]
  %v5372 = vld [vmem:[%s1 + $0x528] sm:$0xff]
  %v5373 = vld [vmem:[%s1 + $0x530] sm:$0xff]
  %v5374 = vld [vmem:[%s1 + $0x538] sm:$0xff]
  %v5375 = vld [vmem:[%s1 + $0x540] sm:$0xff]
  %v5376 = vld [vmem:[%s1 + $0x548] sm:$0xff]
  %v5377 = vld [vmem:[%s1 + $0x550] sm:$0xff]
  %v5378 = vld [vmem:[%s1 + $0x558] sm:$0xff]
  %v5379 = vld [vmem:[%s1 + $0x560] sm:$0xff]
  %v5380 = vld [vmem:[%s1 + $0x568] sm:$0xff]
  %v5381 = vld [vmem:[%s1 + $0x570] sm:$0xff]
  %v5382 = vld [vmem:[%s1 + $0x578] sm:$0xff]
  %v5383 = vld [vmem:[%s1 + $0x580] sm:$0xff]
  %v5384 = vld [vmem:[%s1 + $0x588] sm:$0xff]
  %v5385 = vld [vmem:[%s1 + $0x590] sm:$0xff]
  %v5386 = vld [vmem:[%s1 + $0x598] sm:$0xff]
  %v5387 = vld [vmem:[%s1 + $0x5a0] sm:$0xff]
  %v5388 = vld [vmem:[%s1 + $0x5a8] sm:$0xff]
  %v5389 = vld [vmem:[%s1 + $0x5b0] sm:$0xff]
  %v5390 = vld [vmem:[%s1 + $0x5b8] sm:$0xff]
  %v5391 = vld [vmem:[%s1 + $0x5c0] sm:$0xff]
  %v5392 = vld [vmem:[%s1 + $0x5c8] sm:$0xff]
  %v5393 = vld [vmem:[%s1 + $0x5d0] sm:$0xff]
  %v5394 = vld [vmem:[%s1 + $0x5d8] sm:$0xff]
  %v5395 = vld [vmem:[%s1 + $0x5e0] sm:$0xff]
  %v5396 = vld [vmem:[%s1 + $0x5e8] sm:$0xff]
  %v5397 = vld [vmem:[%s1 + $0x5f0] sm:$0xff]
  %v5398 = vld [vmem:[%s1 + $0x5f8] sm:$0xff]
  %v5399 = vld [vmem:[%s1 + $0x600] sm:$0xff]
  %v5400 = vld [vmem:[%s1 + $0x608] sm:$0xff]
  %v5401 = vld [vmem:[%s1 + $0x610] sm:$0xff]
  %v5402 = vld [vmem:[%s1 + $0x618] sm:$0xff]
  %v5403 = vld [vmem:[%s1 + $0x620] sm:$0xff]
  %v5404 = vld [vmem:[%s1 + $0x628] sm:$0xff]
  %v5405 = vld [vmem:[%s1 + $0x630] sm:$0xff]
  %v5406 = vld [vmem:[%s1 + $0x638] sm:$0xff]
  %v5407 = vld [vmem:[%s1 + $0x640] sm:$0xff]
  %v5408 = vld [vmem:[%s1 + $0x648] sm:$0xff]
  %v5409 = vld [vmem:[%s1 + $0x650] sm:$0xff]
  %v5410 = vld [vmem:[%s1 + $0x658] sm:$0xff]
  %v5411 = vld [vmem:[%s1 + $0x660] sm:$0xff]
  %v5412 = vld [vmem:[%s1 + $0x668] sm:$0xff]
  %v5413 = vld [vmem:[%s1 + $0x670] sm:$0xff]
  %v5414 = vld [vmem:[%s1 + $0x678] sm:$0xff]
  %v5415 = vld [vmem:[%s1 + $0x680] sm:$0xff]
  %v5416 = vld [vmem:[%s1 + $0x688] sm:$0xff]
  %v5417 = vld [vmem:[%s1 + $0x690] sm:$0xff]
  %v5418 = vld [vmem:[%s1 + $0x698] sm:$0xff]
  %v5419 = vld [vmem:[%s1 + $0x6a0] sm:$0xff]
  %v5420 = vld [vmem:[%s1 + $0x6a8] sm:$0xff]
  %v5421 = vld [vmem:[%s1 + $0x6b0] sm:$0xff]
  %v5422 = vld [vmem:[%s1 + $0x6b8] sm:$0xff]
  %v5423 = vld [vmem:[%s1 + $0x6c0] sm:$0xff]
  %v5424 = vld [vmem:[%s1 + $0x6c8] sm:$0xff]
  %v5425 = vld [vmem:[%s1 + $0x6d0] sm:$0xff]
  %v5426 = vld [vmem:[%s1 + $0x6d8] sm:$0xff]
  %v5427 = vld [vmem:[%s1 + $0x6e0] sm:$0xff]
  %v5428 = vld [vmem:[%s1 + $0x6e8] sm:$0xff]
  %v5429 = vld [vmem:[%s1 + $0x6f0] sm:$0xff]
  %v5430 = vld [vmem:[%s1 + $0x6f8] sm:$0xff]
  %v5431 = vld [vmem:[%s1 + $0x700] sm:$0xff]
  %v5432 = vld [vmem:[%s1 + $0x708] sm:$0xff]
  %v5433 = vld [vmem:[%s1 + $0x710] sm:$0xff]
  %v5434 = vld [vmem:[%s1 + $0x718] sm:$0xff]
  %v5435 = vld [vmem:[%s1 + $0x720] sm:$0xff]
  %v5436 = vld [vmem:[%s1 + $0x728] sm:$0xff]
  %v5437 = vld [vmem:[%s1 + $0x730] sm:$0xff]
  %v5438 = vld [vmem:[%s1 + $0x738] sm:$0xff]
  %v5439 = vld [vmem:[%s1 + $0x740] sm:$0xff]
  %v5440 = vld [vmem:[%s1 + $0x748] sm:$0xff]
  %v5441 = vld [vmem:[%s1 + $0x750] sm:$0xff]
  %v5442 = vld [vmem:[%s1 + $0x758] sm:$0xff]
  %v5443 = vld [vmem:[%s1 + $0x760] sm:$0xff]
  %v5444 = vld [vmem:[%s1 + $0x768] sm:$0xff]
  %v5445 = vld [vmem:[%s1 + $0x770] sm:$0xff]
  %v5446 = vld [vmem:[%s1 + $0x778] sm:$0xff]
  %v5447 = vld [vmem:[%s1 + $0x780] sm:$0xff]
  %v5448 = vld [vmem:[%s1 + $0x788] sm:$0xff]
  %v5449 = vld [vmem:[%s1 + $0x790] sm:$0xff]
  %v5450 = vld [vmem:[%s1 + $0x798] sm:$0xff]
  %v5451 = vld [vmem:[%s1 + $0x7a0] sm:$0xff]
  %v5452 = vld [vmem:[%s1 + $0x7a8] sm:$0xff]
  %v5453 = vld [vmem:[%s1 + $0x7b0] sm:$0xff]
  %v5454 = vld [vmem:[%s1 + $0x7b8] sm:$0xff]
  %v5455 = vld [vmem:[%s1 + $0x7c0] sm:$0xff]
  %v5456 = vld [vmem:[%s1 + $0x7c8] sm:$0xff]
  %v5457 = vld [vmem:[%s1 + $0x7d0] sm:$0xff]
  %v5458 = vld [vmem:[%s1 + $0x7d8] sm:$0xff]
  %v5459 = vld [vmem:[%s1 + $0x7e0] sm:$0xff]
  %v5460 = vld [vmem:[%s1 + $0x7e8] sm:$0xff]
  %v5461 = vld [vmem:[%s1 + $0x7f0] sm:$0xff]
  %v5462 = vld [vmem:[%s1 + $0x7f8] sm:$0xff]
  %v5463 = vld [vmem:[%s1 + $0x800] sm:$0xff]
  %v5464 = vld [vmem:[%s1 + $0x808] sm:$0xff]
  %v5465 = vld [vmem:[%s1 + $0x810] sm:$0xff]
  %v5466 = vld [vmem:[%s1 + $0x818] sm:$0xff]
  %v5467 = vld [vmem:[%s1 + $0x820] sm:$0xff]
  %v5468 = vld [vmem:[%s1 + $0x828] sm:$0xff]
  %v5469 = vld [vmem:[%s1 + $0x830] sm:$0xff]
  %v5470 = vld [vmem:[%s1 + $0x838] sm:$0xff]
  %v5471 = vld [vmem:[%s1 + $0x840] sm:$0xff]
  %v5472 = vld [vmem:[%s1 + $0x848] sm:$0xff]
  %v5473 = vld [vmem:[%s1 + $0x850] sm:$0xff]
  %v5474 = vld [vmem:[%s1 + $0x858] sm:$0xff]
  %v5475 = vld [vmem:[%s1 + $0x860] sm:$0xff]
  %v5476 = vld [vmem:[%s1 + $0x868] sm:$0xff]
  %v5477 = vld [vmem:[%s1 + $0x870] sm:$0xff]
  %v5478 = vld [vmem:[%s1 + $0x878] sm:$0xff]
  %v5479 = vld [vmem:[%s1 + $0x880] sm:$0xff]
  %v5480 = vld [vmem:[%s1 + $0x888] sm:$0xff]
  %v5481 = vld [vmem:[%s1 + $0x890] sm:$0xff]
  %v5482 = vld [vmem:[%s1 + $0x898] sm:$0xff]
  %v5483 = vld [vmem:[%s1 + $0x8a0] sm:$0xff]
  %v5484 = vld [vmem:[%s1 + $0x8a8] sm:$0xff]
  %v5485 = vld [vmem:[%s1 + $0x8b0] sm:$0xff]
  %v5486 = vld [vmem:[%s1 + $0x8b8] sm:$0xff]
  %v5487 = vld [vmem:[%s1 + $0x8c0] sm:$0xff]
  %v5488 = vld [vmem:[%s1 + $0x8c8] sm:$0xff]
  %v5489 = vld [vmem:[%s1 + $0x8d0] sm:$0xff]
  %v5490 = vld [vmem:[%s1 + $0x8d8] sm:$0xff]
  %v5491 = vld [vmem:[%s1 + $0x8e0] sm:$0xff]
  %v5492 = vld [vmem:[%s1 + $0x8e8] sm:$0xff]
  %v5493 = vld [vmem:[%s1 + $0x8f0] sm:$0xff]
  %v5494 = vld [vmem:[%s1 + $0x8f8] sm:$0xff]
  %v5495 = vld [vmem:[%s2] sm:$0x3]
  %v5497 = vlaneseq
  %v5498 = vshrl.u32 %v5497, 7
  %v5499 = vsub.s32 0, %v5498
  %v5500 = vrot.slane %v5495, %v5499
  %v5501 = vlaneseq
  %v5502 = vshrl.u32 %v5501, 7
  %v5503 = vsub.s32 1, %v5502
  %v5504 = vrot.slane %v5495, %v5503
  %v5510 = vcombine.high %v5204, %v5204
  %v5512 = vunpack.c.l.s4 1983009808
  %v5513 = vunpack.c.0.s8 %v5512
  %v5514 = vlaneseq
  %v5515 = vshrl.u32 %v5514, 7
  %v5516 = vsub.s32 %v5513, %v5515
  %v5517 = vrot.slane %v5204, %v5516
  %v5519 = vunpack.c.l.s4 1983009808
  %v5520 = vunpack.c.0.s8 %v5519
  %v5521 = vlaneseq
  %v5522 = vshrl.u32 %v5521, 7
  %v5523 = vsub.s32 %v5520, %v5522
  %v5524 = vrot.slane %v5510, %v5523
  %v5525 = vcombine.high %v5517, %v5517
  %v5526 = vcombine.high %v5524, %v5524
  %v5527 = vcombine.high %v5205, %v5205
  %v5529 = vunpack.c.l.s4 1983009808
  %v5530 = vunpack.c.0.s8 %v5529
  %v5531 = vlaneseq
  %v5532 = vshrl.u32 %v5531, 7
  %v5533 = vsub.s32 %v5530, %v5532
  %v5534 = vrot.slane %v5205, %v5533
  %v5536 = vunpack.c.l.s4 1983009808
  %v5537 = vunpack.c.0.s8 %v5536
  %v5538 = vlaneseq
  %v5539 = vshrl.u32 %v5538, 7
  %v5540 = vsub.s32 %v5537, %v5539
  %v5541 = vrot.slane %v5527, %v5540
  %v5542 = vcombine.high %v5534, %v5534
  %v5543 = vcombine.high %v5541, %v5541
  %v5545 = vunpack.c.l.s4 1983009808
  %v5546 = vunpack.c.0.s8 %v5545
  %v5547 = vlaneseq
  %v5548 = vshrl.u32 %v5547, 7
  %v5549 = vsub.s32 %v5546, %v5548
  %v5550 = vrot.slane %v5206, %v5549
  %v5551 = vcombine.high %v5550, %v5550
  %5552 = vrot.lane.b32.xlu0 %v5517, 64
  %v5553 = vpop.permute.xlu0 %5552
  %5554 = vrot.lane.b32.xlu0 %v5525, 64
  %v5555 = vpop.permute.xlu0 %5554
  %5556 = vrot.lane.b32.xlu0 %v5524, 64
  %v5557 = vpop.permute.xlu0 %5556
  %5558 = vrot.lane.b32.xlu0 %v5526, 64
  %v5559 = vpop.permute.xlu0 %5558
  %5560 = vrot.lane.b32.xlu0 %v5534, 64
  %v5561 = vpop.permute.xlu0 %5560
  %5562 = vrot.lane.b32.xlu0 %v5542, 64
  %v5563 = vpop.permute.xlu0 %5562
  %5564 = vrot.lane.b32.xlu0 %v5541, 64
  %v5565 = vpop.permute.xlu0 %5564
  %5566 = vrot.lane.b32.xlu0 %v5543, 64
  %v5567 = vpop.permute.xlu0 %5566
  %5568 = vrot.lane.b32.xlu0 %v5550, 64
  %v5569 = vpop.permute.xlu0 %5568
  %5570 = vrot.lane.b32.xlu0 %v5551, 64
  %v5571 = vpop.permute.xlu0 %5570
  %v5572 = vsel %vm1131, %v5553, %v5555
  %v5573 = vsel %vm1131, %v5555, %v5557
  %v5574 = vsel %vm1131, %v5557, %v5559
  %v5575 = vsel %vm1131, %v5559, %v5561
  %v5576 = vsel %vm1131, %v5561, %v5563
  %v5577 = vsel %vm1131, %v5563, %v5565
  %v5578 = vsel %vm1131, %v5565, %v5567
  %v5579 = vsel %vm1131, %v5567, %v5569
  %v5580 = vsel %vm1131, %v5569, %v5571
  %5590 = vmatprep.subr.mxu0 %v5208
  %5591 = vmatpush1.msra.mxu0 %v5207
  %5592 = vmatprep.subr.mxu0 %v5210
  %5593 = vmatpush1.msra.mxu0 %v5209
  %5594 = vmatprep.subr.mxu0 %v5212
  %5595 = vmatpush1.msra.mxu0 %v5211
  %5596 = vmatprep.subr.mxu0 %v5214
  %5597 = vmatpush1.msra.mxu0 %v5213
  %5598 = vmatprep.subr.mxu0 %v5216
  %5599 = vmatpush1.msra.mxu0 %v5215
  %5600 = vmatprep.subr.mxu0 %v5218
  %5601 = vmatpush1.msra.mxu0 %v5217
  %5602 = vmatprep.subr.mxu0 %v5220
  %5603 = vmatpush1.msra.mxu0 %v5219
  %5604 = vmatprep.subr.mxu0 %v5222
  %5605 = vmatpush1.msra.mxu0 %v5221
  %5606 = vmatprep.subr.mxu0 %v5224
  %5607 = vmatpush1.msra.mxu0 %v5223
  %5608 = vmatprep.subr.mxu0 %v5226
  %5609 = vmatpush1.msra.mxu0 %v5225
  %5610 = vmatprep.subr.mxu0 %v5228
  %5611 = vmatpush1.msra.mxu0 %v5227
  %5612 = vmatprep.subr.mxu0 %v5230
  %5613 = vmatpush1.msra.mxu0 %v5229
  %5614 = vmatprep.subr.mxu0 %v5232
  %5615 = vmatpush1.msra.mxu0 %v5231
  %5616 = vmatprep.subr.mxu0 %v5234
  %5617 = vmatpush1.msra.mxu0 %v5233
  %5618 = vmatprep.subr.mxu0 %v5236
  %5619 = vmatpush1.msra.mxu0 %v5235
  %5620 = vmatprep.subr.mxu0 %v5238
  %5621 = vmatpush1.msra.mxu0 %v5237
  %5622 = vmatprep.subr.mxu0 %v5240
  %5623 = vmatpush1.msra.mxu0 %v5239
  %5624 = vmatprep.subr.mxu0 %v5242
  %5625 = vmatpush1.msra.mxu0 %v5241
  %5626 = vmatprep.subr.mxu0 %v5244
  %5627 = vmatpush1.msra.mxu0 %v5243
  %5628 = vmatprep.subr.mxu0 %v5246
  %5629 = vmatpush1.msra.mxu0 %v5245
  %5630 = vmatprep.subr.mxu0 %v5248
  %5631 = vmatpush1.msra.mxu0 %v5247
  %5632 = vmatprep.subr.mxu0 %v5250
  %5633 = vmatpush1.msra.mxu0 %v5249
  %5634 = vmatprep.subr.mxu0 %v5252
  %5635 = vmatpush1.msra.mxu0 %v5251
  %5636 = vmatprep.subr.mxu0 %v5254
  %5637 = vmatpush1.msra.mxu0 %v5253
  %5638 = vmatprep.subr.mxu0 %v5256
  %5639 = vmatpush1.msra.mxu0 %v5255
  %5640 = vmatprep.subr.mxu0 %v5258
  %5641 = vmatpush1.msra.mxu0 %v5257
  %5642 = vmatprep.subr.mxu0 %v5260
  %5643 = vmatpush1.msra.mxu0 %v5259
  %5644 = vmatprep.subr.mxu0 %v5262
  %5645 = vmatpush1.msra.mxu0 %v5261
  %5646 = vmatprep.subr.mxu0 %v5264
  %5647 = vmatpush1.msra.mxu0 %v5263
  %5648 = vmatprep.subr.mxu0 %v5266
  %5649 = vmatpush1.msra.mxu0 %v5265
  %5650 = vmatprep.subr.mxu0 %v5268
  %5651 = vmatpush1.msra.mxu0 %v5267
  %5652 = vmatprep.subr.mxu0 %v5270
  %5653 = vmatpush1.msra.mxu0 %v5269
  %5654 = vmatprep.mubr.f32.mxu0 %v5573
  %5655 = vmatmul.mubr.f32.gmra.mrb[0].mxu0 %v5572
  %v5656 = vpop.f32.mrb[0].mxu0
  %v5657 = vadd.f32 %v5500, %v5656
  %v5658 = vpop.f32.mrb[0].mxu0
  %v5659 = vadd.f32 %v5504, %v5658
  %5660 = vdwg.mxu0
  %5661 = vmatprep.subr.mxu0 %v5272
  %5662 = vmatpush1.msra.mxu0 %v5271
  %5663 = vmatprep.subr.mxu0 %v5274
  %5664 = vmatpush1.msra.mxu0 %v5273
  %5665 = vmatprep.subr.mxu0 %v5276
  %5666 = vmatpush1.msra.mxu0 %v5275
  %5667 = vmatprep.subr.mxu0 %v5278
  %5668 = vmatpush1.msra.mxu0 %v5277
  %5669 = vmatprep.subr.mxu0 %v5280
  %5670 = vmatpush1.msra.mxu0 %v5279
  %5671 = vmatprep.subr.mxu0 %v5282
  %5672 = vmatpush1.msra.mxu0 %v5281
  %5673 = vmatprep.subr.mxu0 %v5284
  %5674 = vmatpush1.msra.mxu0 %v5283
  %5675 = vmatprep.subr.mxu0 %v5286
  %5676 = vmatpush1.msra.mxu0 %v5285
  %5677 = vmatprep.subr.mxu0 %v5288
  %5678 = vmatpush1.msra.mxu0 %v5287
  %5679 = vmatprep.subr.mxu0 %v5290
  %5680 = vmatpush1.msra.mxu0 %v5289
  %5681 = vmatprep.subr.mxu0 %v5292
  %5682 = vmatpush1.msra.mxu0 %v5291
  %5683 = vmatprep.subr.mxu0 %v5294
  %5684 = vmatpush1.msra.mxu0 %v5293
  %5685 = vmatprep.subr.mxu0 %v5296
  %5686 = vmatpush1.msra.mxu0 %v5295
  %5687 = vmatprep.subr.mxu0 %v5298
  %5688 = vmatpush1.msra.mxu0 %v5297
  %5689 = vmatprep.subr.mxu0 %v5300
  %5690 = vmatpush1.msra.mxu0 %v5299
  %5691 = vmatprep.subr.mxu0 %v5302
  %5692 = vmatpush1.msra.mxu0 %v5301
  %5693 = vmatprep.subr.mxu0 %v5304
  %5694 = vmatpush1.msra.mxu0 %v5303
  %5695 = vmatprep.subr.mxu0 %v5306
  %5696 = vmatpush1.msra.mxu0 %v5305
  %5697 = vmatprep.subr.mxu0 %v5308
  %5698 = vmatpush1.msra.mxu0 %v5307
  %5699 = vmatprep.subr.mxu0 %v5310
  %5700 = vmatpush1.msra.mxu0 %v5309
  %5701 = vmatprep.subr.mxu0 %v5312
  %5702 = vmatpush1.msra.mxu0 %v5311
  %5703 = vmatprep.subr.mxu0 %v5314
  %5704 = vmatpush1.msra.mxu0 %v5313
  %5705 = vmatprep.subr.mxu0 %v5316
  %5706 = vmatpush1.msra.mxu0 %v5315
  %5707 = vmatprep.subr.mxu0 %v5318
  %5708 = vmatpush1.msra.mxu0 %v5317
  %5709 = vmatprep.subr.mxu0 %v5320
  %5710 = vmatpush1.msra.mxu0 %v5319
  %5711 = vmatprep.subr.mxu0 %v5322
  %5712 = vmatpush1.msra.mxu0 %v5321
  %5713 = vmatprep.subr.mxu0 %v5324
  %5714 = vmatpush1.msra.mxu0 %v5323
  %5715 = vmatprep.subr.mxu0 %v5326
  %5716 = vmatpush1.msra.mxu0 %v5325
  %5717 = vmatprep.subr.mxu0 %v5328
  %5718 = vmatpush1.msra.mxu0 %v5327
  %5719 = vmatprep.subr.mxu0 %v5330
  %5720 = vmatpush1.msra.mxu0 %v5329
  %5721 = vmatprep.subr.mxu0 %v5332
  %5722 = vmatpush1.msra.mxu0 %v5331
  %5723 = vmatprep.subr.mxu0 %v5334
  %5724 = vmatpush1.msra.mxu0 %v5333
  %5725 = vmatprep.mubr.f32.mxu0 %v5575
  %5726 = vmatmul.mubr.f32.gmra.mrb[0].mxu0 %v5574
  %v5727 = vpop.f32.mrb[0].mxu0
  %v5728 = vadd.f32 %v5657, %v5727
  %v5729 = vpop.f32.mrb[0].mxu0
  %v5730 = vadd.f32 %v5659, %v5729
  %5731 = vdwg.mxu0
  %5732 = vmatprep.subr.mxu0 %v5336
  %5733 = vmatpush1.msra.mxu0 %v5335
  %5734 = vmatprep.subr.mxu0 %v5338
  %5735 = vmatpush1.msra.mxu0 %v5337
  %5736 = vmatprep.subr.mxu0 %v5340
  %5737 = vmatpush1.msra.mxu0 %v5339
  %5738 = vmatprep.subr.mxu0 %v5342
  %5739 = vmatpush1.msra.mxu0 %v5341
  %5740 = vmatprep.subr.mxu0 %v5344
  %5741 = vmatpush1.msra.mxu0 %v5343
  %5742 = vmatprep.subr.mxu0 %v5346
  %5743 = vmatpush1.msra.mxu0 %v5345
  %5744 = vmatprep.subr.mxu0 %v5348
  %5745 = vmatpush1.msra.mxu0 %v5347
  %5746 = vmatprep.subr.mxu0 %v5350
  %5747 = vmatpush1.msra.mxu0 %v5349
  %5748 = vmatprep.subr.mxu0 %v5352
  %5749 = vmatpush1.msra.mxu0 %v5351
  %5750 = vmatprep.subr.mxu0 %v5354
  %5751 = vmatpush1.msra.mxu0 %v5353
  %5752 = vmatprep.subr.mxu0 %v5356
  %5753 = vmatpush1.msra.mxu0 %v5355
  %5754 = vmatprep.subr.mxu0 %v5358
  %5755 = vmatpush1.msra.mxu0 %v5357
  %5756 = vmatprep.subr.mxu0 %v5360
  %5757 = vmatpush1.msra.mxu0 %v5359
  %5758 = vmatprep.subr.mxu0 %v5362
  %5759 = vmatpush1.msra.mxu0 %v5361
  %5760 = vmatprep.subr.mxu0 %v5364
  %5761 = vmatpush1.msra.mxu0 %v5363
  %5762 = vmatprep.subr.mxu0 %v5366
  %5763 = vmatpush1.msra.mxu0 %v5365
  %5764 = vmatprep.subr.mxu0 %v5368
  %5765 = vmatpush1.msra.mxu0 %v5367
  %5766 = vmatprep.subr.mxu0 %v5370
  %5767 = vmatpush1.msra.mxu0 %v5369
  %5768 = vmatprep.subr.mxu0 %v5372
  %5769 = vmatpush1.msra.mxu0 %v5371
  %5770 = vmatprep.subr.mxu0 %v5374
  %5771 = vmatpush1.msra.mxu0 %v5373
  %5772 = vmatprep.subr.mxu0 %v5376
  %5773 = vmatpush1.msra.mxu0 %v5375
  %5774 = vmatprep.subr.mxu0 %v5378
  %5775 = vmatpush1.msra.mxu0 %v5377
  %5776 = vmatprep.subr.mxu0 %v5380
  %5777 = vmatpush1.msra.mxu0 %v5379
  %5778 = vmatprep.subr.mxu0 %v5382
  %5779 = vmatpush1.msra.mxu0 %v5381
  %5780 = vmatprep.subr.mxu0 %v5384
  %5781 = vmatpush1.msra.mxu0 %v5383
  %5782 = vmatprep.subr.mxu0 %v5386
  %5783 = vmatpush1.msra.mxu0 %v5385
  %5784 = vmatprep.subr.mxu0 %v5388
  %5785 = vmatpush1.msra.mxu0 %v5387
  %5786 = vmatprep.subr.mxu0 %v5390
  %5787 = vmatpush1.msra.mxu0 %v5389
  %5788 = vmatprep.subr.mxu0 %v5392
  %5789 = vmatpush1.msra.mxu0 %v5391
  %5790 = vmatprep.subr.mxu0 %v5394
  %5791 = vmatpush1.msra.mxu0 %v5393
  %5792 = vmatprep.subr.mxu0 %v5396
  %5793 = vmatpush1.msra.mxu0 %v5395
  %5794 = vmatprep.subr.mxu0 %v5398
  %5795 = vmatpush1.msra.mxu0 %v5397
  %5796 = vmatprep.mubr.f32.mxu0 %v5577
  %5797 = vmatmul.mubr.f32.gmra.mrb[0].mxu0 %v5576
  %v5798 = vpop.f32.mrb[0].mxu0
  %v5799 = vadd.f32 %v5728, %v5798
  %v5800 = vpop.f32.mrb[0].mxu0
  %v5801 = vadd.f32 %v5730, %v5800
  %5802 = vdwg.mxu0
  %5803 = vmatprep.subr.mxu0 %v5400
  %5804 = vmatpush1.msra.mxu0 %v5399
  %5805 = vmatprep.subr.mxu0 %v5402
  %5806 = vmatpush1.msra.mxu0 %v5401
  %5807 = vmatprep.subr.mxu0 %v5404
  %5808 = vmatpush1.msra.mxu0 %v5403
  %5809 = vmatprep.subr.mxu0 %v5406
  %5810 = vmatpush1.msra.mxu0 %v5405
  %5811 = vmatprep.subr.mxu0 %v5408
  %5812 = vmatpush1.msra.mxu0 %v5407
  %5813 = vmatprep.subr.mxu0 %v5410
  %5814 = vmatpush1.msra.mxu0 %v5409
  %5815 = vmatprep.subr.mxu0 %v5412
  %5816 = vmatpush1.msra.mxu0 %v5411
  %5817 = vmatprep.subr.mxu0 %v5414
  %5818 = vmatpush1.msra.mxu0 %v5413
  %5819 = vmatprep.subr.mxu0 %v5416
  %5820 = vmatpush1.msra.mxu0 %v5415
  %5821 = vmatprep.subr.mxu0 %v5418
  %5822 = vmatpush1.msra.mxu0 %v5417
  %5823 = vmatprep.subr.mxu0 %v5420
  %5824 = vmatpush1.msra.mxu0 %v5419
  %5825 = vmatprep.subr.mxu0 %v5422
  %5826 = vmatpush1.msra.mxu0 %v5421
  %5827 = vmatprep.subr.mxu0 %v5424
  %5828 = vmatpush1.msra.mxu0 %v5423
  %5829 = vmatprep.subr.mxu0 %v5426
  %5830 = vmatpush1.msra.mxu0 %v5425
  %5831 = vmatprep.subr.mxu0 %v5428
  %5832 = vmatpush1.msra.mxu0 %v5427
  %5833 = vmatprep.subr.mxu0 %v5430
  %5834 = vmatpush1.msra.mxu0 %v5429
  %5835 = vmatprep.subr.mxu0 %v5432
  %5836 = vmatpush1.msra.mxu0 %v5431
  %5837 = vmatprep.subr.mxu0 %v5434
  %5838 = vmatpush1.msra.mxu0 %v5433
  %5839 = vmatprep.subr.mxu0 %v5436
  %5840 = vmatpush1.msra.mxu0 %v5435
  %5841 = vmatprep.subr.mxu0 %v5438
  %5842 = vmatpush1.msra.mxu0 %v5437
  %5843 = vmatprep.subr.mxu0 %v5440
  %5844 = vmatpush1.msra.mxu0 %v5439
  %5845 = vmatprep.subr.mxu0 %v5442
  %5846 = vmatpush1.msra.mxu0 %v5441
  %5847 = vmatprep.subr.mxu0 %v5444
  %5848 = vmatpush1.msra.mxu0 %v5443
  %5849 = vmatprep.subr.mxu0 %v5446
  %5850 = vmatpush1.msra.mxu0 %v5445
  %5851 = vmatprep.subr.mxu0 %v5448
  %5852 = vmatpush1.msra.mxu0 %v5447
  %5853 = vmatprep.subr.mxu0 %v5450
  %5854 = vmatpush1.msra.mxu0 %v5449
  %5855 = vmatprep.subr.mxu0 %v5452
  %5856 = vmatpush1.msra.mxu0 %v5451
  %5857 = vmatprep.subr.mxu0 %v5454
  %5858 = vmatpush1.msra.mxu0 %v5453
  %5859 = vmatprep.subr.mxu0 %v5456
  %5860 = vmatpush1.msra.mxu0 %v5455
  %5861 = vmatprep.subr.mxu0 %v5458
  %5862 = vmatpush1.msra.mxu0 %v5457
  %5863 = vmatprep.subr.mxu0 %v5460
  %5864 = vmatpush1.msra.mxu0 %v5459
  %5865 = vmatprep.subr.mxu0 %v5462
  %5866 = vmatpush1.msra.mxu0 %v5461
  %5867 = vmatprep.mubr.f32.mxu0 %v5579
  %5868 = vmatmul.mubr.f32.gmra.mrb[0].mxu0 %v5578
  %v5869 = vpop.f32.mrb[0].mxu0
  %v5870 = vadd.f32 %v5799, %v5869
  %v5871 = vpop.f32.mrb[0].mxu0
  %v5872 = vadd.f32 %v5801, %v5871
  %5873 = vdwg.mxu0
  %5874 = vmatprep.subr.mxu0 %v5464
  %5875 = vmatpush1.msra.mxu0 %v5463
  %5876 = vmatprep.subr.mxu0 %v5466
  %5877 = vmatpush1.msra.mxu0 %v5465
  %5878 = vmatprep.subr.mxu0 %v5468
  %5879 = vmatpush1.msra.mxu0 %v5467
  %5880 = vmatprep.subr.mxu0 %v5470
  %5881 = vmatpush1.msra.mxu0 %v5469
  %5882 = vmatprep.subr.mxu0 %v5472
  %5883 = vmatpush1.msra.mxu0 %v5471
  %5884 = vmatprep.subr.mxu0 %v5474
  %5885 = vmatpush1.msra.mxu0 %v5473
  %5886 = vmatprep.subr.mxu0 %v5476
  %5887 = vmatpush1.msra.mxu0 %v5475
  %5888 = vmatprep.subr.mxu0 %v5478
  %5889 = vmatpush1.msra.mxu0 %v5477
  %5890 = vmatprep.subr.mxu0 %v5480
  %5891 = vmatpush1.msra.mxu0 %v5479
  %5892 = vmatprep.subr.mxu0 %v5482
  %5893 = vmatpush1.msra.mxu0 %v5481
  %5894 = vmatprep.subr.mxu0 %v5484
  %5895 = vmatpush1.msra.mxu0 %v5483
  %5896 = vmatprep.subr.mxu0 %v5486
  %5897 = vmatpush1.msra.mxu0 %v5485
  %5898 = vmatprep.subr.mxu0 %v5488
  %5899 = vmatpush1.msra.mxu0 %v5487
  %5900 = vmatprep.subr.mxu0 %v5490
  %5901 = vmatpush1.msra.mxu0 %v5489
  %5902 = vmatprep.subr.mxu0 %v5492
  %5903 = vmatpush1.msra.mxu0 %v5491
  %5904 = vmatprep.subr.mxu0 %v5494
  %5905 = vmatpush1.msra.mxu0 %v5493
  %5906 = vmatprep.subr.mxu0 0.0
  %5907 = vmatpush1.msra.mxu0 0.0
  %5908 = vmatprep.subr.mxu0 0.0
  %5909 = vmatpush1.msra.mxu0 0.0
  %5910 = vmatprep.subr.mxu0 0.0
  %5911 = vmatpush1.msra.mxu0 0.0
  %5912 = vmatprep.subr.mxu0 0.0
  %5913 = vmatpush1.msra.mxu0 0.0
  %5914 = vmatprep.subr.mxu0 0.0
  %5915 = vmatpush1.msra.mxu0 0.0
  %5916 = vmatprep.subr.mxu0 0.0
  %5917 = vmatpush1.msra.mxu0 0.0
  %5918 = vmatprep.subr.mxu0 0.0
  %5919 = vmatpush1.msra.mxu0 0.0
  %5920 = vmatprep.subr.mxu0 0.0
  %5921 = vmatpush1.msra.mxu0 0.0
  %5922 = vmatprep.subr.mxu0 0.0
  %5923 = vmatpush1.msra.mxu0 0.0
  %5924 = vmatprep.subr.mxu0 0.0
  %5925 = vmatpush1.msra.mxu0 0.0
  %5926 = vmatprep.subr.mxu0 0.0
  %5927 = vmatpush1.msra.mxu0 0.0
  %5928 = vmatprep.subr.mxu0 0.0
  %5929 = vmatpush1.msra.mxu0 0.0
  %5930 = vmatprep.subr.mxu0 0.0
  %5931 = vmatpush1.msra.mxu0 0.0
  %5932 = vmatprep.subr.mxu0 0.0
  %5933 = vmatpush1.msra.mxu0 0.0
  %5934 = vmatprep.subr.mxu0 0.0
  %5935 = vmatpush1.msra.mxu0 0.0
  %5936 = vmatprep.subr.mxu0 0.0
  %5937 = vmatpush1.msra.mxu0 0.0
  %5938 = vmatprep.mubr.f32.mxu0 0.0
  %5939 = vmatmul.mubr.f32.gmra.mrb[0].mxu0 %v5580
  %v5940 = vpop.f32.mrb[0].mxu0
  %v5941 = vadd.f32 %v5870, %v5940
  %v5942 = vpop.f32.mrb[0].mxu0
  %v5943 = vadd.f32 %v5872, %v5942
  %5944 = vdwg.mxu0
  %v5945 = vmax.f32 %v5941, 0.0
  %v5946 = vmax.f32 %v5943, 0.0
  %v5949 = vcombine.low %v5945, %v5946
  %v5951 = vunpack.c.l.s4 1983009808
  %v5952 = vunpack.c.0.s8 %v5951
  %v5953 = vlaneseq
  %v5954 = vshrl.u32 %v5953, 7
  %v5955 = vsub.s32 %v5952, %v5954
  %v5956 = vrot.slane %v5949, %v5955
  %5958 = vst [vmem:[#allocation2 + $0x1c] sm:$0xf] %v5956
  %v5959 = vld [vmem:[#allocation2] sm:$0xff]
  %v5960 = vld [vmem:[#allocation2 + $0x8] sm:$0xff]
  %v5961 = vld [vmem:[%s3] sm:$0xff]
  %v5962 = vld [vmem:[%s3 + $0x8] sm:$0xff]
  %v5963 = vld [vmem:[%s3 + $0x10] sm:$0xff]
  %v5964 = vld [vmem:[%s3 + $0x18] sm:$0xff]
  %v5965 = vld [vmem:[%s3 + $0x20] sm:$0xff]
  %v5966 = vld [vmem:[%s3 + $0x28] sm:$0xff]
  %v5967 = vld [vmem:[%s3 + $0x30] sm:$0xff]
  %v5968 = vld [vmem:[%s3 + $0x38] sm:$0xff]
  %v5969 = vld [vmem:[%s3 + $0x40] sm:$0xff]
  %v5970 = vld [vmem:[%s3 + $0x48] sm:$0xff]
  %v5971 = vld [vmem:[%s3 + $0x50] sm:$0xff]
  %v5972 = vld [vmem:[%s3 + $0x58] sm:$0xff]
  %v5973 = vld [vmem:[%s3 + $0x60] sm:$0xff]
  %v5974 = vld [vmem:[%s3 + $0x68] sm:$0xff]
  %v5975 = vld [vmem:[%s3 + $0x70] sm:$0xff]
  %v5976 = vld [vmem:[%s3 + $0x78] sm:$0xff]
  %v5977 = vld [vmem:[%s3 + $0x80] sm:$0xff]
  %v5978 = vld [vmem:[%s3 + $0x88] sm:$0xff]
  %v5979 = vld [vmem:[%s3 + $0x90] sm:$0xff]
  %v5980 = vld [vmem:[%s3 + $0x98] sm:$0xff]
  %v5981 = vld [vmem:[%s3 + $0xa0] sm:$0xff]
  %v5982 = vld [vmem:[%s3 + $0xa8] sm:$0xff]
  %v5983 = vld [vmem:[%s3 + $0xb0] sm:$0xff]
  %v5984 = vld [vmem:[%s3 + $0xb8] sm:$0xff]
  %v5985 = vld [vmem:[%s3 + $0xc0] sm:$0xff]
  %v5986 = vld [vmem:[%s3 + $0xc8] sm:$0xff]
  %v5987 = vld [vmem:[%s3 + $0xd0] sm:$0xff]
  %v5988 = vld [vmem:[%s3 + $0xd8] sm:$0xff]
  %v5989 = vld [vmem:[%s3 + $0xe0] sm:$0xff]
  %v5990 = vld [vmem:[%s3 + $0xe8] sm:$0xff]
  %v5991 = vld [vmem:[%s3 + $0xf0] sm:$0xff]
  %v5992 = vld [vmem:[%s3 + $0xf8] sm:$0xff]
  %v5993 = vld [vmem:[%s3 + $0x100] sm:$0xff]
  %v5994 = vld [vmem:[%s3 + $0x108] sm:$0xff]
  %v5995 = vld [vmem:[%s3 + $0x110] sm:$0xff]
  %v5996 = vld [vmem:[%s3 + $0x118] sm:$0xff]
  %v5997 = vld [vmem:[%s3 + $0x120] sm:$0xff]
  %v5998 = vld [vmem:[%s3 + $0x128] sm:$0xff]
  %v5999 = vld [vmem:[%s3 + $0x130] sm:$0xff]
  %v6000 = vld [vmem:[%s3 + $0x138] sm:$0xff]
  %v6001 = vld [vmem:[%s3 + $0x140] sm:$0xff]
  %v6002 = vld [vmem:[%s3 + $0x148] sm:$0xff]
  %v6003 = vld [vmem:[%s3 + $0x150] sm:$0xff]
  %v6004 = vld [vmem:[%s3 + $0x158] sm:$0xff]
  %v6005 = vld [vmem:[%s3 + $0x160] sm:$0xff]
  %v6006 = vld [vmem:[%s3 + $0x168] sm:$0xff]
  %v6007 = vld [vmem:[%s3 + $0x170] sm:$0xff]
  %v6008 = vld [vmem:[%s3 + $0x178] sm:$0xff]
  %v6009 = vld [vmem:[%s3 + $0x180] sm:$0xff]
  %v6010 = vld [vmem:[%s3 + $0x188] sm:$0xff]
  %v6011 = vld [vmem:[%s3 + $0x190] sm:$0xff]
  %v6012 = vld [vmem:[%s3 + $0x198] sm:$0xff]
  %v6013 = vld [vmem:[%s3 + $0x1a0] sm:$0xff]
  %v6014 = vld [vmem:[%s3 + $0x1a8] sm:$0xff]
  %v6015 = vld [vmem:[%s3 + $0x1b0] sm:$0xff]
  %v6016 = vld [vmem:[%s3 + $0x1b8] sm:$0xff]
  %v6017 = vld [vmem:[%s3 + $0x1c0] sm:$0xff]
  %v6018 = vld [vmem:[%s3 + $0x1c8] sm:$0xff]
  %v6019 = vld [vmem:[%s3 + $0x1d0] sm:$0xff]
  %v6020 = vld [vmem:[%s3 + $0x1d8] sm:$0xff]
  %v6021 = vld [vmem:[%s3 + $0x1e0] sm:$0xff]
  %v6022 = vld [vmem:[%s3 + $0x1e8] sm:$0xff]
  %v6023 = vld [vmem:[%s3 + $0x1f0] sm:$0xff]
  %v6024 = vld [vmem:[%s3 + $0x1f8] sm:$0xff]
  %v6025 = vld [vmem:[%s3 + $0x200] sm:$0xff]
  %v6026 = vld [vmem:[%s3 + $0x208] sm:$0xff]
  %v6027 = vld [vmem:[%s3 + $0x210] sm:$0xff]
  %v6028 = vld [vmem:[%s3 + $0x218] sm:$0xff]
  %v6029 = vld [vmem:[%s3 + $0x220] sm:$0xff]
  %v6030 = vld [vmem:[%s3 + $0x228] sm:$0xff]
  %v6031 = vld [vmem:[%s3 + $0x230] sm:$0xff]
  %v6032 = vld [vmem:[%s3 + $0x238] sm:$0xff]
  %v6033 = vld [vmem:[%s3 + $0x240] sm:$0xff]
  %v6034 = vld [vmem:[%s3 + $0x248] sm:$0xff]
  %v6035 = vld [vmem:[%s3 + $0x250] sm:$0xff]
  %v6036 = vld [vmem:[%s3 + $0x258] sm:$0xff]
  %v6037 = vld [vmem:[%s3 + $0x260] sm:$0xff]
  %v6038 = vld [vmem:[%s3 + $0x268] sm:$0xff]
  %v6039 = vld [vmem:[%s3 + $0x270] sm:$0xff]
  %v6040 = vld [vmem:[%s3 + $0x278] sm:$0xff]
  %v6041 = vld [vmem:[%s3 + $0x280] sm:$0xff]
  %v6042 = vld [vmem:[%s3 + $0x288] sm:$0xff]
  %v6043 = vld [vmem:[%s3 + $0x290] sm:$0xff]
  %v6044 = vld [vmem:[%s3 + $0x298] sm:$0xff]
  %v6045 = vld [vmem:[%s3 + $0x2a0] sm:$0xff]
  %v6046 = vld [vmem:[%s3 + $0x2a8] sm:$0xff]
  %v6047 = vld [vmem:[%s3 + $0x2b0] sm:$0xff]
  %v6048 = vld [vmem:[%s3 + $0x2b8] sm:$0xff]
  %v6049 = vld [vmem:[%s3 + $0x2c0] sm:$0xff]
  %v6050 = vld [vmem:[%s3 + $0x2c8] sm:$0xff]
  %v6051 = vld [vmem:[%s3 + $0x2d0] sm:$0xff]
  %v6052 = vld [vmem:[%s3 + $0x2d8] sm:$0xff]
  %v6053 = vld [vmem:[%s3 + $0x2e0] sm:$0xff]
  %v6054 = vld [vmem:[%s3 + $0x2e8] sm:$0xff]
  %v6055 = vld [vmem:[%s3 + $0x2f0] sm:$0xff]
  %v6056 = vld [vmem:[%s3 + $0x2f8] sm:$0xff]
  %v6057 = vld [vmem:[%s3 + $0x300] sm:$0xff]
  %v6058 = vld [vmem:[%s3 + $0x308] sm:$0xff]
  %v6059 = vld [vmem:[%s3 + $0x310] sm:$0xff]
  %v6060 = vld [vmem:[%s3 + $0x318] sm:$0xff]
  %v6061 = vld [vmem:[%s3 + $0x320] sm:$0xff]
  %v6062 = vld [vmem:[%s3 + $0x328] sm:$0xff]
  %v6063 = vld [vmem:[%s3 + $0x330] sm:$0xff]
  %v6064 = vld [vmem:[%s3 + $0x338] sm:$0xff]
  %v6065 = vld [vmem:[%s3 + $0x340] sm:$0xff]
  %v6066 = vld [vmem:[%s3 + $0x348] sm:$0xff]
  %v6067 = vld [vmem:[%s3 + $0x350] sm:$0xff]
  %v6068 = vld [vmem:[%s3 + $0x358] sm:$0xff]
  %v6069 = vld [vmem:[%s3 + $0x360] sm:$0xff]
  %v6070 = vld [vmem:[%s3 + $0x368] sm:$0xff]
  %v6071 = vld [vmem:[%s3 + $0x370] sm:$0xff]
  %v6072 = vld [vmem:[%s3 + $0x378] sm:$0xff]
  %v6073 = vld [vmem:[%s3 + $0x380] sm:$0xff]
  %v6074 = vld [vmem:[%s3 + $0x388] sm:$0xff]
  %v6075 = vld [vmem:[%s3 + $0x390] sm:$0xff]
  %v6076 = vld [vmem:[%s3 + $0x398] sm:$0xff]
  %v6077 = vld [vmem:[%s3 + $0x3a0] sm:$0xff]
  %v6078 = vld [vmem:[%s3 + $0x3a8] sm:$0xff]
  %v6079 = vld [vmem:[%s3 + $0x3b0] sm:$0xff]
  %v6080 = vld [vmem:[%s3 + $0x3b8] sm:$0xff]
  %v6081 = vld [vmem:[%s3 + $0x3c0] sm:$0xff]
  %v6082 = vld [vmem:[%s3 + $0x3c8] sm:$0xff]
  %v6083 = vld [vmem:[%s3 + $0x3d0] sm:$0xff]
  %v6084 = vld [vmem:[%s3 + $0x3d8] sm:$0xff]
  %v6085 = vld [vmem:[%s3 + $0x3e0] sm:$0xff]
  %v6086 = vld [vmem:[%s3 + $0x3e8] sm:$0xff]
  %v6087 = vld [vmem:[%s3 + $0x3f0] sm:$0xff]
  %v6088 = vld [vmem:[%s3 + $0x3f8] sm:$0xff]
  %v6089 = vld [vmem:[%s3 + $0x400] sm:$0xff]
  %v6090 = vld [vmem:[%s3 + $0x408] sm:$0xff]
  %v6091 = vld [vmem:[%s3 + $0x410] sm:$0xff]
  %v6092 = vld [vmem:[%s3 + $0x418] sm:$0xff]
  %v6093 = vld [vmem:[%s3 + $0x420] sm:$0xff]
  %v6094 = vld [vmem:[%s3 + $0x428] sm:$0xff]
  %v6095 = vld [vmem:[%s3 + $0x430] sm:$0xff]
  %v6096 = vld [vmem:[%s3 + $0x438] sm:$0xff]
  %v6097 = vld [vmem:[%s3 + $0x440] sm:$0xff]
  %v6098 = vld [vmem:[%s3 + $0x448] sm:$0xff]
  %v6099 = vld [vmem:[%s3 + $0x450] sm:$0xff]
  %v6100 = vld [vmem:[%s3 + $0x458] sm:$0xff]
  %v6101 = vld [vmem:[%s3 + $0x460] sm:$0xff]
  %v6102 = vld [vmem:[%s3 + $0x468] sm:$0xff]
  %v6103 = vld [vmem:[%s3 + $0x470] sm:$0xff]
  %v6104 = vld [vmem:[%s3 + $0x478] sm:$0xff]
  %v6105 = vld [vmem:[%s3 + $0x480] sm:$0xff]
  %v6106 = vld [vmem:[%s3 + $0x488] sm:$0xff]
  %v6107 = vld [vmem:[%s3 + $0x490] sm:$0xff]
  %v6108 = vld [vmem:[%s3 + $0x498] sm:$0xff]
  %v6109 = vld [vmem:[%s3 + $0x4a0] sm:$0xff]
  %v6110 = vld [vmem:[%s3 + $0x4a8] sm:$0xff]
  %v6111 = vld [vmem:[%s3 + $0x4b0] sm:$0xff]
  %v6112 = vld [vmem:[%s3 + $0x4b8] sm:$0xff]
  %v6113 = vld [vmem:[%s3 + $0x4c0] sm:$0xff]
  %v6114 = vld [vmem:[%s3 + $0x4c8] sm:$0xff]
  %v6115 = vld [vmem:[%s3 + $0x4d0] sm:$0xff]
  %v6116 = vld [vmem:[%s3 + $0x4d8] sm:$0xff]
  %v6117 = vld [vmem:[%s3 + $0x4e0] sm:$0xff]
  %v6118 = vld [vmem:[%s3 + $0x4e8] sm:$0xff]
  %v6119 = vld [vmem:[%s3 + $0x4f0] sm:$0xff]
  %v6120 = vld [vmem:[%s3 + $0x4f8] sm:$0xff]
  %v6121 = vld [vmem:[%s3 + $0x500] sm:$0xff]
  %v6122 = vld [vmem:[%s3 + $0x508] sm:$0xff]
  %v6123 = vld [vmem:[%s3 + $0x510] sm:$0xff]
  %v6124 = vld [vmem:[%s3 + $0x518] sm:$0xff]
  %v6125 = vld [vmem:[%s3 + $0x520] sm:$0xff]
  %v6126 = vld [vmem:[%s3 + $0x528] sm:$0xff]
  %v6127 = vld [vmem:[%s3 + $0x530] sm:$0xff]
  %v6128 = vld [vmem:[%s3 + $0x538] sm:$0xff]
  %v6129 = vld [vmem:[%s3 + $0x540] sm:$0xff]
  %v6130 = vld [vmem:[%s3 + $0x548] sm:$0xff]
  %v6131 = vld [vmem:[%s3 + $0x550] sm:$0xff]
  %v6132 = vld [vmem:[%s3 + $0x558] sm:$0xff]
  %v6133 = vld [vmem:[%s3 + $0x560] sm:$0xff]
  %v6134 = vld [vmem:[%s3 + $0x568] sm:$0xff]
  %v6135 = vld [vmem:[%s3 + $0x570] sm:$0xff]
  %v6136 = vld [vmem:[%s3 + $0x578] sm:$0xff]
  %v6137 = vld [vmem:[%s3 + $0x580] sm:$0xff]
  %v6138 = vld [vmem:[%s3 + $0x588] sm:$0xff]
  %v6139 = vld [vmem:[%s3 + $0x590] sm:$0xff]
  %v6140 = vld [vmem:[%s3 + $0x598] sm:$0xff]
  %v6141 = vld [vmem:[%s3 + $0x5a0] sm:$0xff]
  %v6142 = vld [vmem:[%s3 + $0x5a8] sm:$0xff]
  %v6143 = vld [vmem:[%s3 + $0x5b0] sm:$0xff]
  %v6144 = vld [vmem:[%s3 + $0x5b8] sm:$0xff]
  %v6145 = vld [vmem:[%s3 + $0x5c0] sm:$0xff]
  %v6146 = vld [vmem:[%s3 + $0x5c8] sm:$0xff]
  %v6147 = vld [vmem:[%s3 + $0x5d0] sm:$0xff]
  %v6148 = vld [vmem:[%s3 + $0x5d8] sm:$0xff]
  %v6149 = vld [vmem:[%s3 + $0x5e0] sm:$0xff]
  %v6150 = vld [vmem:[%s3 + $0x5e8] sm:$0xff]
  %v6151 = vld [vmem:[%s3 + $0x5f0] sm:$0xff]
  %v6152 = vld [vmem:[%s3 + $0x5f8] sm:$0xff]
  %v6153 = vld [vmem:[%s3 + $0x600] sm:$0xff]
  %v6154 = vld [vmem:[%s3 + $0x608] sm:$0xff]
  %v6155 = vld [vmem:[%s3 + $0x610] sm:$0xff]
  %v6156 = vld [vmem:[%s3 + $0x618] sm:$0xff]
  %v6157 = vld [vmem:[%s3 + $0x620] sm:$0xff]
  %v6158 = vld [vmem:[%s3 + $0x628] sm:$0xff]
  %v6159 = vld [vmem:[%s3 + $0x630] sm:$0xff]
  %v6160 = vld [vmem:[%s3 + $0x638] sm:$0xff]
  %v6161 = vld [vmem:[%s3 + $0x640] sm:$0xff]
  %v6162 = vld [vmem:[%s3 + $0x648] sm:$0xff]
  %v6163 = vld [vmem:[%s3 + $0x650] sm:$0xff]
  %v6164 = vld [vmem:[%s3 + $0x658] sm:$0xff]
  %v6165 = vld [vmem:[%s3 + $0x660] sm:$0xff]
  %v6166 = vld [vmem:[%s3 + $0x668] sm:$0xff]
  %v6167 = vld [vmem:[%s3 + $0x670] sm:$0xff]
  %v6168 = vld [vmem:[%s3 + $0x678] sm:$0xff]
  %v6169 = vld [vmem:[%s3 + $0x680] sm:$0xff]
  %v6170 = vld [vmem:[%s3 + $0x688] sm:$0xff]
  %v6171 = vld [vmem:[%s3 + $0x690] sm:$0xff]
  %v6172 = vld [vmem:[%s3 + $0x698] sm:$0xff]
  %v6173 = vld [vmem:[%s3 + $0x6a0] sm:$0xff]
  %v6174 = vld [vmem:[%s3 + $0x6a8] sm:$0xff]
  %v6175 = vld [vmem:[%s3 + $0x6b0] sm:$0xff]
  %v6176 = vld [vmem:[%s3 + $0x6b8] sm:$0xff]
  %v6177 = vld [vmem:[%s3 + $0x6c0] sm:$0xff]
  %v6178 = vld [vmem:[%s3 + $0x6c8] sm:$0xff]
  %v6179 = vld [vmem:[%s3 + $0x6d0] sm:$0xff]
  %v6180 = vld [vmem:[%s3 + $0x6d8] sm:$0xff]
  %v6181 = vld [vmem:[%s3 + $0x6e0] sm:$0xff]
  %v6182 = vld [vmem:[%s3 + $0x6e8] sm:$0xff]
  %v6183 = vld [vmem:[%s3 + $0x6f0] sm:$0xff]
  %v6184 = vld [vmem:[%s3 + $0x6f8] sm:$0xff]
  %v6185 = vld [vmem:[%s3 + $0x700] sm:$0xff]
  %v6186 = vld [vmem:[%s3 + $0x708] sm:$0xff]
  %v6187 = vld [vmem:[%s3 + $0x710] sm:$0xff]
  %v6188 = vld [vmem:[%s3 + $0x718] sm:$0xff]
  %v6189 = vld [vmem:[%s3 + $0x720] sm:$0xff]
  %v6190 = vld [vmem:[%s3 + $0x728] sm:$0xff]
  %v6191 = vld [vmem:[%s3 + $0x730] sm:$0xff]
  %v6192 = vld [vmem:[%s3 + $0x738] sm:$0xff]
  %v6193 = vld [vmem:[%s3 + $0x740] sm:$0xff]
  %v6194 = vld [vmem:[%s3 + $0x748] sm:$0xff]
  %v6195 = vld [vmem:[%s3 + $0x750] sm:$0xff]
  %v6196 = vld [vmem:[%s3 + $0x758] sm:$0xff]
  %v6197 = vld [vmem:[%s3 + $0x760] sm:$0xff]
  %v6198 = vld [vmem:[%s3 + $0x768] sm:$0xff]
  %v6199 = vld [vmem:[%s3 + $0x770] sm:$0xff]
  %v6200 = vld [vmem:[%s3 + $0x778] sm:$0xff]
  %v6201 = vld [vmem:[%s3 + $0x780] sm:$0xff]
  %v6202 = vld [vmem:[%s3 + $0x788] sm:$0xff]
  %v6203 = vld [vmem:[%s3 + $0x790] sm:$0xff]
  %v6204 = vld [vmem:[%s3 + $0x798] sm:$0xff]
  %v6205 = vld [vmem:[%s3 + $0x7a0] sm:$0xff]
  %v6206 = vld [vmem:[%s3 + $0x7a8] sm:$0xff]
  %v6207 = vld [vmem:[%s3 + $0x7b0] sm:$0xff]
  %v6208 = vld [vmem:[%s3 + $0x7b8] sm:$0xff]
  %v6209 = vld [vmem:[%s3 + $0x7c0] sm:$0xff]
  %v6210 = vld [vmem:[%s3 + $0x7c8] sm:$0xff]
  %v6211 = vld [vmem:[%s3 + $0x7d0] sm:$0xff]
  %v6212 = vld [vmem:[%s3 + $0x7d8] sm:$0xff]
  %v6213 = vld [vmem:[%s3 + $0x7e0] sm:$0xff]
  %v6214 = vld [vmem:[%s3 + $0x7e8] sm:$0xff]
  %v6215 = vld [vmem:[%s3 + $0x7f0] sm:$0xff]
  %v6216 = vld [vmem:[%s3 + $0x7f8] sm:$0xff]
  %v6217 = vld [vmem:[%s4] sm:$0x3]
  %v6219 = vlaneseq
  %v6220 = vshrl.u32 %v6219, 7
  %v6221 = vsub.s32 0, %v6220
  %v6222 = vrot.slane %v6217, %v6221
  %v6223 = vlaneseq
  %v6224 = vshrl.u32 %v6223, 7
  %v6225 = vsub.s32 1, %v6224
  %v6226 = vrot.slane %v6217, %v6225
  %v6231 = vcombine.high %v5959, %v5959
  %v6233 = vunpack.c.l.s4 1983009808
  %v6234 = vunpack.c.0.s8 %v6233
  %v6235 = vlaneseq
  %v6236 = vshrl.u32 %v6235, 7
  %v6237 = vsub.s32 %v6234, %v6236
  %v6238 = vrot.slane %v5959, %v6237
  %v6240 = vunpack.c.l.s4 1983009808
  %v6241 = vunpack.c.0.s8 %v6240
  %v6242 = vlaneseq
  %v6243 = vshrl.u32 %v6242, 7
  %v6244 = vsub.s32 %v6241, %v6243
  %v6245 = vrot.slane %v6231, %v6244
  %v6246 = vcombine.high %v6238, %v6238
  %v6247 = vcombine.high %v6245, %v6245
  %v6248 = vcombine.high %v5960, %v5960
  %v6250 = vunpack.c.l.s4 1983009808
  %v6251 = vunpack.c.0.s8 %v6250
  %v6252 = vlaneseq
  %v6253 = vshrl.u32 %v6252, 7
  %v6254 = vsub.s32 %v6251, %v6253
  %v6255 = vrot.slane %v5960, %v6254
  %v6257 = vunpack.c.l.s4 1983009808
  %v6258 = vunpack.c.0.s8 %v6257
  %v6259 = vlaneseq
  %v6260 = vshrl.u32 %v6259, 7
  %v6261 = vsub.s32 %v6258, %v6260
  %v6262 = vrot.slane %v6248, %v6261
  %v6263 = vcombine.high %v6255, %v6255
  %v6264 = vcombine.high %v6262, %v6262
  %6273 = vmatprep.subr.mxu0 %v5962
  %6274 = vmatpush1.msra.mxu0 %v5961
  %6275 = vmatprep.subr.mxu0 %v5964
  %6276 = vmatpush1.msra.mxu0 %v5963
  %6277 = vmatprep.subr.mxu0 %v5966
  %6278 = vmatpush1.msra.mxu0 %v5965
  %6279 = vmatprep.subr.mxu0 %v5968
  %6280 = vmatpush1.msra.mxu0 %v5967
  %6281 = vmatprep.subr.mxu0 %v5970
  %6282 = vmatpush1.msra.mxu0 %v5969
  %6283 = vmatprep.subr.mxu0 %v5972
  %6284 = vmatpush1.msra.mxu0 %v5971
  %6285 = vmatprep.subr.mxu0 %v5974
  %6286 = vmatpush1.msra.mxu0 %v5973
  %6287 = vmatprep.subr.mxu0 %v5976
  %6288 = vmatpush1.msra.mxu0 %v5975
  %6289 = vmatprep.subr.mxu0 %v5978
  %6290 = vmatpush1.msra.mxu0 %v5977
  %6291 = vmatprep.subr.mxu0 %v5980
  %6292 = vmatpush1.msra.mxu0 %v5979
  %6293 = vmatprep.subr.mxu0 %v5982
  %6294 = vmatpush1.msra.mxu0 %v5981
  %6295 = vmatprep.subr.mxu0 %v5984
  %6296 = vmatpush1.msra.mxu0 %v5983
  %6297 = vmatprep.subr.mxu0 %v5986
  %6298 = vmatpush1.msra.mxu0 %v5985
  %6299 = vmatprep.subr.mxu0 %v5988
  %6300 = vmatpush1.msra.mxu0 %v5987
  %6301 = vmatprep.subr.mxu0 %v5990
  %6302 = vmatpush1.msra.mxu0 %v5989
  %6303 = vmatprep.subr.mxu0 %v5992
  %6304 = vmatpush1.msra.mxu0 %v5991
  %6305 = vmatprep.subr.mxu0 %v5994
  %6306 = vmatpush1.msra.mxu0 %v5993
  %6307 = vmatprep.subr.mxu0 %v5996
  %6308 = vmatpush1.msra.mxu0 %v5995
  %6309 = vmatprep.subr.mxu0 %v5998
  %6310 = vmatpush1.msra.mxu0 %v5997
  %6311 = vmatprep.subr.mxu0 %v6000
  %6312 = vmatpush1.msra.mxu0 %v5999
  %6313 = vmatprep.subr.mxu0 %v6002
  %6314 = vmatpush1.msra.mxu0 %v6001
  %6315 = vmatprep.subr.mxu0 %v6004
  %6316 = vmatpush1.msra.mxu0 %v6003
  %6317 = vmatprep.subr.mxu0 %v6006
  %6318 = vmatpush1.msra.mxu0 %v6005
  %6319 = vmatprep.subr.mxu0 %v6008
  %6320 = vmatpush1.msra.mxu0 %v6007
  %6321 = vmatprep.subr.mxu0 %v6010
  %6322 = vmatpush1.msra.mxu0 %v6009
  %6323 = vmatprep.subr.mxu0 %v6012
  %6324 = vmatpush1.msra.mxu0 %v6011
  %6325 = vmatprep.subr.mxu0 %v6014
  %6326 = vmatpush1.msra.mxu0 %v6013
  %6327 = vmatprep.subr.mxu0 %v6016
  %6328 = vmatpush1.msra.mxu0 %v6015
  %6329 = vmatprep.subr.mxu0 %v6018
  %6330 = vmatpush1.msra.mxu0 %v6017
  %6331 = vmatprep.subr.mxu0 %v6020
  %6332 = vmatpush1.msra.mxu0 %v6019
  %6333 = vmatprep.subr.mxu0 %v6022
  %6334 = vmatpush1.msra.mxu0 %v6021
  %6335 = vmatprep.subr.mxu0 %v6024
  %6336 = vmatpush1.msra.mxu0 %v6023
  %6337 = vmatprep.mubr.f32.mxu0 %v6246
  %6338 = vmatmul.mubr.f32.gmra.mrb[0].mxu0 %v6238
  %v6339 = vpop.f32.mrb[0].mxu0
  %v6340 = vadd.f32 %v6222, %v6339
  %v6341 = vpop.f32.mrb[0].mxu0
  %v6342 = vadd.f32 %v6226, %v6341
  %6343 = vdwg.mxu0
  %6344 = vmatprep.subr.mxu0 %v6026
  %6345 = vmatpush1.msra.mxu0 %v6025
  %6346 = vmatprep.subr.mxu0 %v6028
  %6347 = vmatpush1.msra.mxu0 %v6027
  %6348 = vmatprep.subr.mxu0 %v6030
  %6349 = vmatpush1.msra.mxu0 %v6029
  %6350 = vmatprep.subr.mxu0 %v6032
  %6351 = vmatpush1.msra.mxu0 %v6031
  %6352 = vmatprep.subr.mxu0 %v6034
  %6353 = vmatpush1.msra.mxu0 %v6033
  %6354 = vmatprep.subr.mxu0 %v6036
  %6355 = vmatpush1.msra.mxu0 %v6035
  %6356 = vmatprep.subr.mxu0 %v6038
  %6357 = vmatpush1.msra.mxu0 %v6037
  %6358 = vmatprep.subr.mxu0 %v6040
  %6359 = vmatpush1.msra.mxu0 %v6039
  %6360 = vmatprep.subr.mxu0 %v6042
  %6361 = vmatpush1.msra.mxu0 %v6041
  %6362 = vmatprep.subr.mxu0 %v6044
  %6363 = vmatpush1.msra.mxu0 %v6043
  %6364 = vmatprep.subr.mxu0 %v6046
  %6365 = vmatpush1.msra.mxu0 %v6045
  %6366 = vmatprep.subr.mxu0 %v6048
  %6367 = vmatpush1.msra.mxu0 %v6047
  %6368 = vmatprep.subr.mxu0 %v6050
  %6369 = vmatpush1.msra.mxu0 %v6049
  %6370 = vmatprep.subr.mxu0 %v6052
  %6371 = vmatpush1.msra.mxu0 %v6051
  %6372 = vmatprep.subr.mxu0 %v6054
  %6373 = vmatpush1.msra.mxu0 %v6053
  %6374 = vmatprep.subr.mxu0 %v6056
  %6375 = vmatpush1.msra.mxu0 %v6055
  %6376 = vmatprep.subr.mxu0 %v6058
  %6377 = vmatpush1.msra.mxu0 %v6057
  %6378 = vmatprep.subr.mxu0 %v6060
  %6379 = vmatpush1.msra.mxu0 %v6059
  %6380 = vmatprep.subr.mxu0 %v6062
  %6381 = vmatpush1.msra.mxu0 %v6061
  %6382 = vmatprep.subr.mxu0 %v6064
  %6383 = vmatpush1.msra.mxu0 %v6063
  %6384 = vmatprep.subr.mxu0 %v6066
  %6385 = vmatpush1.msra.mxu0 %v6065
  %6386 = vmatprep.subr.mxu0 %v6068
  %6387 = vmatpush1.msra.mxu0 %v6067
  %6388 = vmatprep.subr.mxu0 %v6070
  %6389 = vmatpush1.msra.mxu0 %v6069
  %6390 = vmatprep.subr.mxu0 %v6072
  %6391 = vmatpush1.msra.mxu0 %v6071
  %6392 = vmatprep.subr.mxu0 %v6074
  %6393 = vmatpush1.msra.mxu0 %v6073
  %6394 = vmatprep.subr.mxu0 %v6076
  %6395 = vmatpush1.msra.mxu0 %v6075
  %6396 = vmatprep.subr.mxu0 %v6078
  %6397 = vmatpush1.msra.mxu0 %v6077
  %6398 = vmatprep.subr.mxu0 %v6080
  %6399 = vmatpush1.msra.mxu0 %v6079
  %6400 = vmatprep.subr.mxu0 %v6082
  %6401 = vmatpush1.msra.mxu0 %v6081
  %6402 = vmatprep.subr.mxu0 %v6084
  %6403 = vmatpush1.msra.mxu0 %v6083
  %6404 = vmatprep.subr.mxu0 %v6086
  %6405 = vmatpush1.msra.mxu0 %v6085
  %6406 = vmatprep.subr.mxu0 %v6088
  %6407 = vmatpush1.msra.mxu0 %v6087
  %6408 = vmatprep.mubr.f32.mxu0 %v6247
  %6409 = vmatmul.mubr.f32.gmra.mrb[0].mxu0 %v6245
  %v6410 = vpop.f32.mrb[0].mxu0
  %v6411 = vadd.f32 %v6340, %v6410
  %v6412 = vpop.f32.mrb[0].mxu0
  %v6413 = vadd.f32 %v6342, %v6412
  %6414 = vdwg.mxu0
  %6415 = vmatprep.subr.mxu0 %v6090
  %6416 = vmatpush1.msra.mxu0 %v6089
  %6417 = vmatprep.subr.mxu0 %v6092
  %6418 = vmatpush1.msra.mxu0 %v6091
  %6419 = vmatprep.subr.mxu0 %v6094
  %6420 = vmatpush1.msra.mxu0 %v6093
  %6421 = vmatprep.subr.mxu0 %v6096
  %6422 = vmatpush1.msra.mxu0 %v6095
  %6423 = vmatprep.subr.mxu0 %v6098
  %6424 = vmatpush1.msra.mxu0 %v6097
  %6425 = vmatprep.subr.mxu0 %v6100
  %6426 = vmatpush1.msra.mxu0 %v6099
  %6427 = vmatprep.subr.mxu0 %v6102
  %6428 = vmatpush1.msra.mxu0 %v6101
  %6429 = vmatprep.subr.mxu0 %v6104
  %6430 = vmatpush1.msra.mxu0 %v6103
  %6431 = vmatprep.subr.mxu0 %v6106
  %6432 = vmatpush1.msra.mxu0 %v6105
  %6433 = vmatprep.subr.mxu0 %v6108
  %6434 = vmatpush1.msra.mxu0 %v6107
  %6435 = vmatprep.subr.mxu0 %v6110
  %6436 = vmatpush1.msra.mxu0 %v6109
  %6437 = vmatprep.subr.mxu0 %v6112
  %6438 = vmatpush1.msra.mxu0 %v6111
  %6439 = vmatprep.subr.mxu0 %v6114
  %6440 = vmatpush1.msra.mxu0 %v6113
  %6441 = vmatprep.subr.mxu0 %v6116
  %6442 = vmatpush1.msra.mxu0 %v6115
  %6443 = vmatprep.subr.mxu0 %v6118
  %6444 = vmatpush1.msra.mxu0 %v6117
  %6445 = vmatprep.subr.mxu0 %v6120
  %6446 = vmatpush1.msra.mxu0 %v6119
  %6447 = vmatprep.subr.mxu0 %v6122
  %6448 = vmatpush1.msra.mxu0 %v6121
  %6449 = vmatprep.subr.mxu0 %v6124
  %6450 = vmatpush1.msra.mxu0 %v6123
  %6451 = vmatprep.subr.mxu0 %v6126
  %6452 = vmatpush1.msra.mxu0 %v6125
  %6453 = vmatprep.subr.mxu0 %v6128
  %6454 = vmatpush1.msra.mxu0 %v6127
  %6455 = vmatprep.subr.mxu0 %v6130
  %6456 = vmatpush1.msra.mxu0 %v6129
  %6457 = vmatprep.subr.mxu0 %v6132
  %6458 = vmatpush1.msra.mxu0 %v6131
  %6459 = vmatprep.subr.mxu0 %v6134
  %6460 = vmatpush1.msra.mxu0 %v6133
  %6461 = vmatprep.subr.mxu0 %v6136
  %6462 = vmatpush1.msra.mxu0 %v6135
  %6463 = vmatprep.subr.mxu0 %v6138
  %6464 = vmatpush1.msra.mxu0 %v6137
  %6465 = vmatprep.subr.mxu0 %v6140
  %6466 = vmatpush1.msra.mxu0 %v6139
  %6467 = vmatprep.subr.mxu0 %v6142
  %6468 = vmatpush1.msra.mxu0 %v6141
  %6469 = vmatprep.subr.mxu0 %v6144
  %6470 = vmatpush1.msra.mxu0 %v6143
  %6471 = vmatprep.subr.mxu0 %v6146
  %6472 = vmatpush1.msra.mxu0 %v6145
  %6473 = vmatprep.subr.mxu0 %v6148
  %6474 = vmatpush1.msra.mxu0 %v6147
  %6475 = vmatprep.subr.mxu0 %v6150
  %6476 = vmatpush1.msra.mxu0 %v6149
  %6477 = vmatprep.subr.mxu0 %v6152
  %6478 = vmatpush1.msra.mxu0 %v6151
  %6479 = vmatprep.mubr.f32.mxu0 %v6263
  %6480 = vmatmul.mubr.f32.gmra.mrb[0].mxu0 %v6255
  %v6481 = vpop.f32.mrb[0].mxu0
  %v6482 = vadd.f32 %v6411, %v6481
  %v6483 = vpop.f32.mrb[0].mxu0
  %v6484 = vadd.f32 %v6413, %v6483
  %6485 = vdwg.mxu0
  %6486 = vmatprep.subr.mxu0 %v6154
  %6487 = vmatpush1.msra.mxu0 %v6153
  %6488 = vmatprep.subr.mxu0 %v6156
  %6489 = vmatpush1.msra.mxu0 %v6155
  %6490 = vmatprep.subr.mxu0 %v6158
  %6491 = vmatpush1.msra.mxu0 %v6157
  %6492 = vmatprep.subr.mxu0 %v6160
  %6493 = vmatpush1.msra.mxu0 %v6159
  %6494 = vmatprep.subr.mxu0 %v6162
  %6495 = vmatpush1.msra.mxu0 %v6161
  %6496 = vmatprep.subr.mxu0 %v6164
  %6497 = vmatpush1.msra.mxu0 %v6163
  %6498 = vmatprep.subr.mxu0 %v6166
  %6499 = vmatpush1.msra.mxu0 %v6165
  %6500 = vmatprep.subr.mxu0 %v6168
  %6501 = vmatpush1.msra.mxu0 %v6167
  %6502 = vmatprep.subr.mxu0 %v6170
  %6503 = vmatpush1.msra.mxu0 %v6169
  %6504 = vmatprep.subr.mxu0 %v6172
  %6505 = vmatpush1.msra.mxu0 %v6171
  %6506 = vmatprep.subr.mxu0 %v6174
  %6507 = vmatpush1.msra.mxu0 %v6173
  %6508 = vmatprep.subr.mxu0 %v6176
  %6509 = vmatpush1.msra.mxu0 %v6175
  %6510 = vmatprep.subr.mxu0 %v6178
  %6511 = vmatpush1.msra.mxu0 %v6177
  %6512 = vmatprep.subr.mxu0 %v6180
  %6513 = vmatpush1.msra.mxu0 %v6179
  %6514 = vmatprep.subr.mxu0 %v6182
  %6515 = vmatpush1.msra.mxu0 %v6181
  %6516 = vmatprep.subr.mxu0 %v6184
  %6517 = vmatpush1.msra.mxu0 %v6183
  %6518 = vmatprep.subr.mxu0 %v6186
  %6519 = vmatpush1.msra.mxu0 %v6185
  %6520 = vmatprep.subr.mxu0 %v6188
  %6521 = vmatpush1.msra.mxu0 %v6187
  %6522 = vmatprep.subr.mxu0 %v6190
  %6523 = vmatpush1.msra.mxu0 %v6189
  %6524 = vmatprep.subr.mxu0 %v6192
  %6525 = vmatpush1.msra.mxu0 %v6191
  %6526 = vmatprep.subr.mxu0 %v6194
  %6527 = vmatpush1.msra.mxu0 %v6193
  %6528 = vmatprep.subr.mxu0 %v6196
  %6529 = vmatpush1.msra.mxu0 %v6195
  %6530 = vmatprep.subr.mxu0 %v6198
  %6531 = vmatpush1.msra.mxu0 %v6197
  %6532 = vmatprep.subr.mxu0 %v6200
  %6533 = vmatpush1.msra.mxu0 %v6199
  %6534 = vmatprep.subr.mxu0 %v6202
  %6535 = vmatpush1.msra.mxu0 %v6201
  %6536 = vmatprep.subr.mxu0 %v6204
  %6537 = vmatpush1.msra.mxu0 %v6203
  %6538 = vmatprep.subr.mxu0 %v6206
  %6539 = vmatpush1.msra.mxu0 %v6205
  %6540 = vmatprep.subr.mxu0 %v6208
  %6541 = vmatpush1.msra.mxu0 %v6207
  %6542 = vmatprep.subr.mxu0 %v6210
  %6543 = vmatpush1.msra.mxu0 %v6209
  %6544 = vmatprep.subr.mxu0 %v6212
  %6545 = vmatpush1.msra.mxu0 %v6211
  %6546 = vmatprep.subr.mxu0 %v6214
  %6547 = vmatpush1.msra.mxu0 %v6213
  %6548 = vmatprep.subr.mxu0 %v6216
  %6549 = vmatpush1.msra.mxu0 %v6215
  %6550 = vmatprep.mubr.f32.mxu0 %v6264
  %6551 = vmatmul.mubr.f32.gmra.mrb[0].mxu0 %v6262
  %v6552 = vpop.f32.mrb[0].mxu0
  %v6553 = vadd.f32 %v6482, %v6552
  %v6554 = vpop.f32.mrb[0].mxu0
  %v6555 = vadd.f32 %v6484, %v6554
  %6556 = vdwg.mxu0
  %v6557 = vmax.f32 %v6553, 0.0
  %v6558 = vmax.f32 %v6555, 0.0
  %v6561 = vcombine.low %v6557, %v6558
  %v6563 = vunpack.c.l.s4 1983009808
  %v6564 = vunpack.c.0.s8 %v6563
  %v6565 = vlaneseq
  %v6566 = vshrl.u32 %v6565, 7
  %v6567 = vsub.s32 %v6564, %v6566
  %v6568 = vrot.slane %v6561, %v6567
  %vm6570 = vcmask 1041408
  %vm6571 = vcmask 519170
  %vm6572 = vmor %vm6571, %vm6570
  %6573 = vst.msk [vmem:[#allocation3] sm:$0xf] %vm6572, %v6568
  %v6574 = vld [vmem:[#allocation2 + $0x8] sm:$0xff]
  %v6575 = vld [vmem:[#allocation2 + $0x10] sm:$0xff]
  %v6576 = vld [vmem:[%s3] sm:$0xff]
  %v6577 = vld [vmem:[%s3 + $0x8] sm:$0xff]
  %v6578 = vld [vmem:[%s3 + $0x10] sm:$0xff]
  %v6579 = vld [vmem:[%s3 + $0x18] sm:$0xff]
  %v6580 = vld [vmem:[%s3 + $0x20] sm:$0xff]
  %v6581 = vld [vmem:[%s3 + $0x28] sm:$0xff]
  %v6582 = vld [vmem:[%s3 + $0x30] sm:$0xff]
  %v6583 = vld [vmem:[%s3 + $0x38] sm:$0xff]
  %v6584 = vld [vmem:[%s3 + $0x40] sm:$0xff]
  %v6585 = vld [vmem:[%s3 + $0x48] sm:$0xff]
  %v6586 = vld [vmem:[%s3 + $0x50] sm:$0xff]
  %v6587 = vld [vmem:[%s3 + $0x58] sm:$0xff]
  %v6588 = vld [vmem:[%s3 + $0x60] sm:$0xff]
  %v6589 = vld [vmem:[%s3 + $0x68] sm:$0xff]
  %v6590 = vld [vmem:[%s3 + $0x70] sm:$0xff]
  %v6591 = vld [vmem:[%s3 + $0x78] sm:$0xff]
  %v6592 = vld [vmem:[%s3 + $0x80] sm:$0xff]
  %v6593 = vld [vmem:[%s3 + $0x88] sm:$0xff]
  %v6594 = vld [vmem:[%s3 + $0x90] sm:$0xff]
  %v6595 = vld [vmem:[%s3 + $0x98] sm:$0xff]
  %v6596 = vld [vmem:[%s3 + $0xa0] sm:$0xff]
  %v6597 = vld [vmem:[%s3 + $0xa8] sm:$0xff]
  %v6598 = vld [vmem:[%s3 + $0xb0] sm:$0xff]
  %v6599 = vld [vmem:[%s3 + $0xb8] sm:$0xff]
  %v6600 = vld [vmem:[%s3 + $0xc0] sm:$0xff]
  %v6601 = vld [vmem:[%s3 + $0xc8] sm:$0xff]
  %v6602 = vld [vmem:[%s3 + $0xd0] sm:$0xff]
  %v6603 = vld [vmem:[%s3 + $0xd8] sm:$0xff]
  %v6604 = vld [vmem:[%s3 + $0xe0] sm:$0xff]
  %v6605 = vld [vmem:[%s3 + $0xe8] sm:$0xff]
  %v6606 = vld [vmem:[%s3 + $0xf0] sm:$0xff]
  %v6607 = vld [vmem:[%s3 + $0xf8] sm:$0xff]
  %v6608 = vld [vmem:[%s3 + $0x100] sm:$0xff]
  %v6609 = vld [vmem:[%s3 + $0x108] sm:$0xff]
  %v6610 = vld [vmem:[%s3 + $0x110] sm:$0xff]
  %v6611 = vld [vmem:[%s3 + $0x118] sm:$0xff]
  %v6612 = vld [vmem:[%s3 + $0x120] sm:$0xff]
  %v6613 = vld [vmem:[%s3 + $0x128] sm:$0xff]
  %v6614 = vld [vmem:[%s3 + $0x130] sm:$0xff]
  %v6615 = vld [vmem:[%s3 + $0x138] sm:$0xff]
  %v6616 = vld [vmem:[%s3 + $0x140] sm:$0xff]
  %v6617 = vld [vmem:[%s3 + $0x148] sm:$0xff]
  %v6618 = vld [vmem:[%s3 + $0x150] sm:$0xff]
  %v6619 = vld [vmem:[%s3 + $0x158] sm:$0xff]
  %v6620 = vld [vmem:[%s3 + $0x160] sm:$0xff]
  %v6621 = vld [vmem:[%s3 + $0x168] sm:$0xff]
  %v6622 = vld [vmem:[%s3 + $0x170] sm:$0xff]
  %v6623 = vld [vmem:[%s3 + $0x178] sm:$0xff]
  %v6624 = vld [vmem:[%s3 + $0x180] sm:$0xff]
  %v6625 = vld [vmem:[%s3 + $0x188] sm:$0xff]
  %v6626 = vld [vmem:[%s3 + $0x190] sm:$0xff]
  %v6627 = vld [vmem:[%s3 + $0x198] sm:$0xff]
  %v6628 = vld [vmem:[%s3 + $0x1a0] sm:$0xff]
  %v6629 = vld [vmem:[%s3 + $0x1a8] sm:$0xff]
  %v6630 = vld [vmem:[%s3 + $0x1b0] sm:$0xff]
  %v6631 = vld [vmem:[%s3 + $0x1b8] sm:$0xff]
  %v6632 = vld [vmem:[%s3 + $0x1c0] sm:$0xff]
  %v6633 = vld [vmem:[%s3 + $0x1c8] sm:$0xff]
  %v6634 = vld [vmem:[%s3 + $0x1d0] sm:$0xff]
  %v6635 = vld [vmem:[%s3 + $0x1d8] sm:$0xff]
  %v6636 = vld [vmem:[%s3 + $0x1e0] sm:$0xff]
  %v6637 = vld [vmem:[%s3 + $0x1e8] sm:$0xff]
  %v6638 = vld [vmem:[%s3 + $0x1f0] sm:$0xff]
  %v6639 = vld [vmem:[%s3 + $0x1f8] sm:$0xff]
  %v6640 = vld [vmem:[%s3 + $0x200] sm:$0xff]
  %v6641 = vld [vmem:[%s3 + $0x208] sm:$0xff]
  %v6642 = vld [vmem:[%s3 + $0x210] sm:$0xff]
  %v6643 = vld [vmem:[%s3 + $0x218] sm:$0xff]
  %v6644 = vld [vmem:[%s3 + $0x220] sm:$0xff]
  %v6645 = vld [vmem:[%s3 + $0x228] sm:$0xff]
  %v6646 = vld [vmem:[%s3 + $0x230] sm:$0xff]
  %v6647 = vld [vmem:[%s3 + $0x238] sm:$0xff]
  %v6648 = vld [vmem:[%s3 + $0x240] sm:$0xff]
  %v6649 = vld [vmem:[%s3 + $0x248] sm:$0xff]
  %v6650 = vld [vmem:[%s3 + $0x250] sm:$0xff]
  %v6651 = vld [vmem:[%s3 + $0x258] sm:$0xff]
  %v6652 = vld [vmem:[%s3 + $0x260] sm:$0xff]
  %v6653 = vld [vmem:[%s3 + $0x268] sm:$0xff]
  %v6654 = vld [vmem:[%s3 + $0x270] sm:$0xff]
  %v6655 = vld [vmem:[%s3 + $0x278] sm:$0xff]
  %v6656 = vld [vmem:[%s3 + $0x280] sm:$0xff]
  %v6657 = vld [vmem:[%s3 + $0x288] sm:$0xff]
  %v6658 = vld [vmem:[%s3 + $0x290] sm:$0xff]
  %v6659 = vld [vmem:[%s3 + $0x298] sm:$0xff]
  %v6660 = vld [vmem:[%s3 + $0x2a0] sm:$0xff]
  %v6661 = vld [vmem:[%s3 + $0x2a8] sm:$0xff]
  %v6662 = vld [vmem:[%s3 + $0x2b0] sm:$0xff]
  %v6663 = vld [vmem:[%s3 + $0x2b8] sm:$0xff]
  %v6664 = vld [vmem:[%s3 + $0x2c0] sm:$0xff]
  %v6665 = vld [vmem:[%s3 + $0x2c8] sm:$0xff]
  %v6666 = vld [vmem:[%s3 + $0x2d0] sm:$0xff]
  %v6667 = vld [vmem:[%s3 + $0x2d8] sm:$0xff]
  %v6668 = vld [vmem:[%s3 + $0x2e0] sm:$0xff]
  %v6669 = vld [vmem:[%s3 + $0x2e8] sm:$0xff]
  %v6670 = vld [vmem:[%s3 + $0x2f0] sm:$0xff]
  %v6671 = vld [vmem:[%s3 + $0x2f8] sm:$0xff]
  %v6672 = vld [vmem:[%s3 + $0x300] sm:$0xff]
  %v6673 = vld [vmem:[%s3 + $0x308] sm:$0xff]
  %v6674 = vld [vmem:[%s3 + $0x310] sm:$0xff]
  %v6675 = vld [vmem:[%s3 + $0x318] sm:$0xff]
  %v6676 = vld [vmem:[%s3 + $0x320] sm:$0xff]
  %v6677 = vld [vmem:[%s3 + $0x328] sm:$0xff]
  %v6678 = vld [vmem:[%s3 + $0x330] sm:$0xff]
  %v6679 = vld [vmem:[%s3 + $0x338] sm:$0xff]
  %v6680 = vld [vmem:[%s3 + $0x340] sm:$0xff]
  %v6681 = vld [vmem:[%s3 + $0x348] sm:$0xff]
  %v6682 = vld [vmem:[%s3 + $0x350] sm:$0xff]
  %v6683 = vld [vmem:[%s3 + $0x358] sm:$0xff]
  %v6684 = vld [vmem:[%s3 + $0x360] sm:$0xff]
  %v6685 = vld [vmem:[%s3 + $0x368] sm:$0xff]
  %v6686 = vld [vmem:[%s3 + $0x370] sm:$0xff]
  %v6687 = vld [vmem:[%s3 + $0x378] sm:$0xff]
  %v6688 = vld [vmem:[%s3 + $0x380] sm:$0xff]
  %v6689 = vld [vmem:[%s3 + $0x388] sm:$0xff]
  %v6690 = vld [vmem:[%s3 + $0x390] sm:$0xff]
  %v6691 = vld [vmem:[%s3 + $0x398] sm:$0xff]
  %v6692 = vld [vmem:[%s3 + $0x3a0] sm:$0xff]
  %v6693 = vld [vmem:[%s3 + $0x3a8] sm:$0xff]
  %v6694 = vld [vmem:[%s3 + $0x3b0] sm:$0xff]
  %v6695 = vld [vmem:[%s3 + $0x3b8] sm:$0xff]
  %v6696 = vld [vmem:[%s3 + $0x3c0] sm:$0xff]
  %v6697 = vld [vmem:[%s3 + $0x3c8] sm:$0xff]
  %v6698 = vld [vmem:[%s3 + $0x3d0] sm:$0xff]
  %v6699 = vld [vmem:[%s3 + $0x3d8] sm:$0xff]
  %v6700 = vld [vmem:[%s3 + $0x3e0] sm:$0xff]
  %v6701 = vld [vmem:[%s3 + $0x3e8] sm:$0xff]
  %v6702 = vld [vmem:[%s3 + $0x3f0] sm:$0xff]
  %v6703 = vld [vmem:[%s3 + $0x3f8] sm:$0xff]
  %v6704 = vld [vmem:[%s3 + $0x400] sm:$0xff]
  %v6705 = vld [vmem:[%s3 + $0x408] sm:$0xff]
  %v6706 = vld [vmem:[%s3 + $0x410] sm:$0xff]
  %v6707 = vld [vmem:[%s3 + $0x418] sm:$0xff]
  %v6708 = vld [vmem:[%s3 + $0x420] sm:$0xff]
  %v6709 = vld [vmem:[%s3 + $0x428] sm:$0xff]
  %v6710 = vld [vmem:[%s3 + $0x430] sm:$0xff]
  %v6711 = vld [vmem:[%s3 + $0x438] sm:$0xff]
  %v6712 = vld [vmem:[%s3 + $0x440] sm:$0xff]
  %v6713 = vld [vmem:[%s3 + $0x448] sm:$0xff]
  %v6714 = vld [vmem:[%s3 + $0x450] sm:$0xff]
  %v6715 = vld [vmem:[%s3 + $0x458] sm:$0xff]
  %v6716 = vld [vmem:[%s3 + $0x460] sm:$0xff]
  %v6717 = vld [vmem:[%s3 + $0x468] sm:$0xff]
  %v6718 = vld [vmem:[%s3 + $0x470] sm:$0xff]
  %v6719 = vld [vmem:[%s3 + $0x478] sm:$0xff]
  %v6720 = vld [vmem:[%s3 + $0x480] sm:$0xff]
  %v6721 = vld [vmem:[%s3 + $0x488] sm:$0xff]
  %v6722 = vld [vmem:[%s3 + $0x490] sm:$0xff]
  %v6723 = vld [vmem:[%s3 + $0x498] sm:$0xff]
  %v6724 = vld [vmem:[%s3 + $0x4a0] sm:$0xff]
  %v6725 = vld [vmem:[%s3 + $0x4a8] sm:$0xff]
  %v6726 = vld [vmem:[%s3 + $0x4b0] sm:$0xff]
  %v6727 = vld [vmem:[%s3 + $0x4b8] sm:$0xff]
  %v6728 = vld [vmem:[%s3 + $0x4c0] sm:$0xff]
  %v6729 = vld [vmem:[%s3 + $0x4c8] sm:$0xff]
  %v6730 = vld [vmem:[%s3 + $0x4d0] sm:$0xff]
  %v6731 = vld [vmem:[%s3 + $0x4d8] sm:$0xff]
  %v6732 = vld [vmem:[%s3 + $0x4e0] sm:$0xff]
  %v6733 = vld [vmem:[%s3 + $0x4e8] sm:$0xff]
  %v6734 = vld [vmem:[%s3 + $0x4f0] sm:$0xff]
  %v6735 = vld [vmem:[%s3 + $0x4f8] sm:$0xff]
  %v6736 = vld [vmem:[%s3 + $0x500] sm:$0xff]
  %v6737 = vld [vmem:[%s3 + $0x508] sm:$0xff]
  %v6738 = vld [vmem:[%s3 + $0x510] sm:$0xff]
  %v6739 = vld [vmem:[%s3 + $0x518] sm:$0xff]
  %v6740 = vld [vmem:[%s3 + $0x520] sm:$0xff]
  %v6741 = vld [vmem:[%s3 + $0x528] sm:$0xff]
  %v6742 = vld [vmem:[%s3 + $0x530] sm:$0xff]
  %v6743 = vld [vmem:[%s3 + $0x538] sm:$0xff]
  %v6744 = vld [vmem:[%s3 + $0x540] sm:$0xff]
  %v6745 = vld [vmem:[%s3 + $0x548] sm:$0xff]
  %v6746 = vld [vmem:[%s3 + $0x550] sm:$0xff]
  %v6747 = vld [vmem:[%s3 + $0x558] sm:$0xff]
  %v6748 = vld [vmem:[%s3 + $0x560] sm:$0xff]
  %v6749 = vld [vmem:[%s3 + $0x568] sm:$0xff]
  %v6750 = vld [vmem:[%s3 + $0x570] sm:$0xff]
  %v6751 = vld [vmem:[%s3 + $0x578] sm:$0xff]
  %v6752 = vld [vmem:[%s3 + $0x580] sm:$0xff]
  %v6753 = vld [vmem:[%s3 + $0x588] sm:$0xff]
  %v6754 = vld [vmem:[%s3 + $0x590] sm:$0xff]
  %v6755 = vld [vmem:[%s3 + $0x598] sm:$0xff]
  %v6756 = vld [vmem:[%s3 + $0x5a0] sm:$0xff]
  %v6757 = vld [vmem:[%s3 + $0x5a8] sm:$0xff]
  %v6758 = vld [vmem:[%s3 + $0x5b0] sm:$0xff]
  %v6759 = vld [vmem:[%s3 + $0x5b8] sm:$0xff]
  %v6760 = vld [vmem:[%s3 + $0x5c0] sm:$0xff]
  %v6761 = vld [vmem:[%s3 + $0x5c8] sm:$0xff]
  %v6762 = vld [vmem:[%s3 + $0x5d0] sm:$0xff]
  %v6763 = vld [vmem:[%s3 + $0x5d8] sm:$0xff]
  %v6764 = vld [vmem:[%s3 + $0x5e0] sm:$0xff]
  %v6765 = vld [vmem:[%s3 + $0x5e8] sm:$0xff]
  %v6766 = vld [vmem:[%s3 + $0x5f0] sm:$0xff]
  %v6767 = vld [vmem:[%s3 + $0x5f8] sm:$0xff]
  %v6768 = vld [vmem:[%s3 + $0x600] sm:$0xff]
  %v6769 = vld [vmem:[%s3 + $0x608] sm:$0xff]
  %v6770 = vld [vmem:[%s3 + $0x610] sm:$0xff]
  %v6771 = vld [vmem:[%s3 + $0x618] sm:$0xff]
  %v6772 = vld [vmem:[%s3 + $0x620] sm:$0xff]
  %v6773 = vld [vmem:[%s3 + $0x628] sm:$0xff]
  %v6774 = vld [vmem:[%s3 + $0x630] sm:$0xff]
  %v6775 = vld [vmem:[%s3 + $0x638] sm:$0xff]
  %v6776 = vld [vmem:[%s3 + $0x640] sm:$0xff]
  %v6777 = vld [vmem:[%s3 + $0x648] sm:$0xff]
  %v6778 = vld [vmem:[%s3 + $0x650] sm:$0xff]
  %v6779 = vld [vmem:[%s3 + $0x658] sm:$0xff]
  %v6780 = vld [vmem:[%s3 + $0x660] sm:$0xff]
  %v6781 = vld [vmem:[%s3 + $0x668] sm:$0xff]
  %v6782 = vld [vmem:[%s3 + $0x670] sm:$0xff]
  %v6783 = vld [vmem:[%s3 + $0x678] sm:$0xff]
  %v6784 = vld [vmem:[%s3 + $0x680] sm:$0xff]
  %v6785 = vld [vmem:[%s3 + $0x688] sm:$0xff]
  %v6786 = vld [vmem:[%s3 + $0x690] sm:$0xff]
  %v6787 = vld [vmem:[%s3 + $0x698] sm:$0xff]
  %v6788 = vld [vmem:[%s3 + $0x6a0] sm:$0xff]
  %v6789 = vld [vmem:[%s3 + $0x6a8] sm:$0xff]
  %v6790 = vld [vmem:[%s3 + $0x6b0] sm:$0xff]
  %v6791 = vld [vmem:[%s3 + $0x6b8] sm:$0xff]
  %v6792 = vld [vmem:[%s3 + $0x6c0] sm:$0xff]
  %v6793 = vld [vmem:[%s3 + $0x6c8] sm:$0xff]
  %v6794 = vld [vmem:[%s3 + $0x6d0] sm:$0xff]
  %v6795 = vld [vmem:[%s3 + $0x6d8] sm:$0xff]
  %v6796 = vld [vmem:[%s3 + $0x6e0] sm:$0xff]
  %v6797 = vld [vmem:[%s3 + $0x6e8] sm:$0xff]
  %v6798 = vld [vmem:[%s3 + $0x6f0] sm:$0xff]
  %v6799 = vld [vmem:[%s3 + $0x6f8] sm:$0xff]
  %v6800 = vld [vmem:[%s3 + $0x700] sm:$0xff]
  %v6801 = vld [vmem:[%s3 + $0x708] sm:$0xff]
  %v6802 = vld [vmem:[%s3 + $0x710] sm:$0xff]
  %v6803 = vld [vmem:[%s3 + $0x718] sm:$0xff]
  %v6804 = vld [vmem:[%s3 + $0x720] sm:$0xff]
  %v6805 = vld [vmem:[%s3 + $0x728] sm:$0xff]
  %v6806 = vld [vmem:[%s3 + $0x730] sm:$0xff]
  %v6807 = vld [vmem:[%s3 + $0x738] sm:$0xff]
  %v6808 = vld [vmem:[%s3 + $0x740] sm:$0xff]
  %v6809 = vld [vmem:[%s3 + $0x748] sm:$0xff]
  %v6810 = vld [vmem:[%s3 + $0x750] sm:$0xff]
  %v6811 = vld [vmem:[%s3 + $0x758] sm:$0xff]
  %v6812 = vld [vmem:[%s3 + $0x760] sm:$0xff]
  %v6813 = vld [vmem:[%s3 + $0x768] sm:$0xff]
  %v6814 = vld [vmem:[%s3 + $0x770] sm:$0xff]
  %v6815 = vld [vmem:[%s3 + $0x778] sm:$0xff]
  %v6816 = vld [vmem:[%s3 + $0x780] sm:$0xff]
  %v6817 = vld [vmem:[%s3 + $0x788] sm:$0xff]
  %v6818 = vld [vmem:[%s3 + $0x790] sm:$0xff]
  %v6819 = vld [vmem:[%s3 + $0x798] sm:$0xff]
  %v6820 = vld [vmem:[%s3 + $0x7a0] sm:$0xff]
  %v6821 = vld [vmem:[%s3 + $0x7a8] sm:$0xff]
  %v6822 = vld [vmem:[%s3 + $0x7b0] sm:$0xff]
  %v6823 = vld [vmem:[%s3 + $0x7b8] sm:$0xff]
  %v6824 = vld [vmem:[%s3 + $0x7c0] sm:$0xff]
  %v6825 = vld [vmem:[%s3 + $0x7c8] sm:$0xff]
  %v6826 = vld [vmem:[%s3 + $0x7d0] sm:$0xff]
  %v6827 = vld [vmem:[%s3 + $0x7d8] sm:$0xff]
  %v6828 = vld [vmem:[%s3 + $0x7e0] sm:$0xff]
  %v6829 = vld [vmem:[%s3 + $0x7e8] sm:$0xff]
  %v6830 = vld [vmem:[%s3 + $0x7f0] sm:$0xff]
  %v6831 = vld [vmem:[%s3 + $0x7f8] sm:$0xff]
  %v6832 = vld [vmem:[%s4] sm:$0x3]
  %v6834 = vlaneseq
  %v6835 = vshrl.u32 %v6834, 7
  %v6836 = vsub.s32 0, %v6835
  %v6837 = vrot.slane %v6832, %v6836
  %v6838 = vlaneseq
  %v6839 = vshrl.u32 %v6838, 7
  %v6840 = vsub.s32 1, %v6839
  %v6841 = vrot.slane %v6832, %v6840
  %v6846 = vcombine.high %v6574, %v6574
  %v6848 = vunpack.c.l.s4 1983009808
  %v6849 = vunpack.c.0.s8 %v6848
  %v6850 = vlaneseq
  %v6851 = vshrl.u32 %v6850, 7
  %v6852 = vsub.s32 %v6849, %v6851
  %v6853 = vrot.slane %v6574, %v6852
  %v6855 = vunpack.c.l.s4 1983009808
  %v6856 = vunpack.c.0.s8 %v6855
  %v6857 = vlaneseq
  %v6858 = vshrl.u32 %v6857, 7
  %v6859 = vsub.s32 %v6856, %v6858
  %v6860 = vrot.slane %v6846, %v6859
  %v6861 = vcombine.high %v6853, %v6853
  %v6862 = vcombine.high %v6860, %v6860
  %v6863 = vcombine.high %v6575, %v6575
  %v6865 = vunpack.c.l.s4 1983009808
  %v6866 = vunpack.c.0.s8 %v6865
  %v6867 = vlaneseq
  %v6868 = vshrl.u32 %v6867, 7
  %v6869 = vsub.s32 %v6866, %v6868
  %v6870 = vrot.slane %v6575, %v6869
  %v6872 = vunpack.c.l.s4 1983009808
  %v6873 = vunpack.c.0.s8 %v6872
  %v6874 = vlaneseq
  %v6875 = vshrl.u32 %v6874, 7
  %v6876 = vsub.s32 %v6873, %v6875
  %v6877 = vrot.slane %v6863, %v6876
  %v6878 = vcombine.high %v6870, %v6870
  %v6879 = vcombine.high %v6877, %v6877
  %6888 = vmatprep.subr.mxu0 %v6577
  %6889 = vmatpush1.msra.mxu0 %v6576
  %6890 = vmatprep.subr.mxu0 %v6579
  %6891 = vmatpush1.msra.mxu0 %v6578
  %6892 = vmatprep.subr.mxu0 %v6581
  %6893 = vmatpush1.msra.mxu0 %v6580
  %6894 = vmatprep.subr.mxu0 %v6583
  %6895 = vmatpush1.msra.mxu0 %v6582
  %6896 = vmatprep.subr.mxu0 %v6585
  %6897 = vmatpush1.msra.mxu0 %v6584
  %6898 = vmatprep.subr.mxu0 %v6587
  %6899 = vmatpush1.msra.mxu0 %v6586
  %6900 = vmatprep.subr.mxu0 %v6589
  %6901 = vmatpush1.msra.mxu0 %v6588
  %6902 = vmatprep.subr.mxu0 %v6591
  %6903 = vmatpush1.msra.mxu0 %v6590
  %6904 = vmatprep.subr.mxu0 %v6593
  %6905 = vmatpush1.msra.mxu0 %v6592
  %6906 = vmatprep.subr.mxu0 %v6595
  %6907 = vmatpush1.msra.mxu0 %v6594
  %6908 = vmatprep.subr.mxu0 %v6597
  %6909 = vmatpush1.msra.mxu0 %v6596
  %6910 = vmatprep.subr.mxu0 %v6599
  %6911 = vmatpush1.msra.mxu0 %v6598
  %6912 = vmatprep.subr.mxu0 %v6601
  %6913 = vmatpush1.msra.mxu0 %v6600
  %6914 = vmatprep.subr.mxu0 %v6603
  %6915 = vmatpush1.msra.mxu0 %v6602
  %6916 = vmatprep.subr.mxu0 %v6605
  %6917 = vmatpush1.msra.mxu0 %v6604
  %6918 = vmatprep.subr.mxu0 %v6607
  %6919 = vmatpush1.msra.mxu0 %v6606
  %6920 = vmatprep.subr.mxu0 %v6609
  %6921 = vmatpush1.msra.mxu0 %v6608
  %6922 = vmatprep.subr.mxu0 %v6611
  %6923 = vmatpush1.msra.mxu0 %v6610
  %6924 = vmatprep.subr.mxu0 %v6613
  %6925 = vmatpush1.msra.mxu0 %v6612
  %6926 = vmatprep.subr.mxu0 %v6615
  %6927 = vmatpush1.msra.mxu0 %v6614
  %6928 = vmatprep.subr.mxu0 %v6617
  %6929 = vmatpush1.msra.mxu0 %v6616
  %6930 = vmatprep.subr.mxu0 %v6619
  %6931 = vmatpush1.msra.mxu0 %v6618
  %6932 = vmatprep.subr.mxu0 %v6621
  %6933 = vmatpush1.msra.mxu0 %v6620
  %6934 = vmatprep.subr.mxu0 %v6623
  %6935 = vmatpush1.msra.mxu0 %v6622
  %6936 = vmatprep.subr.mxu0 %v6625
  %6937 = vmatpush1.msra.mxu0 %v6624
  %6938 = vmatprep.subr.mxu0 %v6627
  %6939 = vmatpush1.msra.mxu0 %v6626
  %6940 = vmatprep.subr.mxu0 %v6629
  %6941 = vmatpush1.msra.mxu0 %v6628
  %6942 = vmatprep.subr.mxu0 %v6631
  %6943 = vmatpush1.msra.mxu0 %v6630
  %6944 = vmatprep.subr.mxu0 %v6633
  %6945 = vmatpush1.msra.mxu0 %v6632
  %6946 = vmatprep.subr.mxu0 %v6635
  %6947 = vmatpush1.msra.mxu0 %v6634
  %6948 = vmatprep.subr.mxu0 %v6637
  %6949 = vmatpush1.msra.mxu0 %v6636
  %6950 = vmatprep.subr.mxu0 %v6639
  %6951 = vmatpush1.msra.mxu0 %v6638
  %6952 = vmatprep.mubr.f32.mxu0 %v6861
  %6953 = vmatmul.mubr.f32.gmra.mrb[0].mxu0 %v6853
  %v6954 = vpop.f32.mrb[0].mxu0
  %v6955 = vadd.f32 %v6837, %v6954
  %v6956 = vpop.f32.mrb[0].mxu0
  %v6957 = vadd.f32 %v6841, %v6956
  %6958 = vdwg.mxu0
  %6959 = vmatprep.subr.mxu0 %v6641
  %6960 = vmatpush1.msra.mxu0 %v6640
  %6961 = vmatprep.subr.mxu0 %v6643
  %6962 = vmatpush1.msra.mxu0 %v6642
  %6963 = vmatprep.subr.mxu0 %v6645
  %6964 = vmatpush1.msra.mxu0 %v6644
  %6965 = vmatprep.subr.mxu0 %v6647
  %6966 = vmatpush1.msra.mxu0 %v6646
  %6967 = vmatprep.subr.mxu0 %v6649
  %6968 = vmatpush1.msra.mxu0 %v6648
  %6969 = vmatprep.subr.mxu0 %v6651
  %6970 = vmatpush1.msra.mxu0 %v6650
  %6971 = vmatprep.subr.mxu0 %v6653
  %6972 = vmatpush1.msra.mxu0 %v6652
  %6973 = vmatprep.subr.mxu0 %v6655
  %6974 = vmatpush1.msra.mxu0 %v6654
  %6975 = vmatprep.subr.mxu0 %v6657
  %6976 = vmatpush1.msra.mxu0 %v6656
  %6977 = vmatprep.subr.mxu0 %v6659
  %6978 = vmatpush1.msra.mxu0 %v6658
  %6979 = vmatprep.subr.mxu0 %v6661
  %6980 = vmatpush1.msra.mxu0 %v6660
  %6981 = vmatprep.subr.mxu0 %v6663
  %6982 = vmatpush1.msra.mxu0 %v6662
  %6983 = vmatprep.subr.mxu0 %v6665
  %6984 = vmatpush1.msra.mxu0 %v6664
  %6985 = vmatprep.subr.mxu0 %v6667
  %6986 = vmatpush1.msra.mxu0 %v6666
  %6987 = vmatprep.subr.mxu0 %v6669
  %6988 = vmatpush1.msra.mxu0 %v6668
  %6989 = vmatprep.subr.mxu0 %v6671
  %6990 = vmatpush1.msra.mxu0 %v6670
  %6991 = vmatprep.subr.mxu0 %v6673
  %6992 = vmatpush1.msra.mxu0 %v6672
  %6993 = vmatprep.subr.mxu0 %v6675
  %6994 = vmatpush1.msra.mxu0 %v6674
  %6995 = vmatprep.subr.mxu0 %v6677
  %6996 = vmatpush1.msra.mxu0 %v6676
  %6997 = vmatprep.subr.mxu0 %v6679
  %6998 = vmatpush1.msra.mxu0 %v6678
  %6999 = vmatprep.subr.mxu0 %v6681
  %7000 = vmatpush1.msra.mxu0 %v6680
  %7001 = vmatprep.subr.mxu0 %v6683
  %7002 = vmatpush1.msra.mxu0 %v6682
  %7003 = vmatprep.subr.mxu0 %v6685
  %7004 = vmatpush1.msra.mxu0 %v6684
  %7005 = vmatprep.subr.mxu0 %v6687
  %7006 = vmatpush1.msra.mxu0 %v6686
  %7007 = vmatprep.subr.mxu0 %v6689
  %7008 = vmatpush1.msra.mxu0 %v6688
  %7009 = vmatprep.subr.mxu0 %v6691
  %7010 = vmatpush1.msra.mxu0 %v6690
  %7011 = vmatprep.subr.mxu0 %v6693
  %7012 = vmatpush1.msra.mxu0 %v6692
  %7013 = vmatprep.subr.mxu0 %v6695
  %7014 = vmatpush1.msra.mxu0 %v6694
  %7015 = vmatprep.subr.mxu0 %v6697
  %7016 = vmatpush1.msra.mxu0 %v6696
  %7017 = vmatprep.subr.mxu0 %v6699
  %7018 = vmatpush1.msra.mxu0 %v6698
  %7019 = vmatprep.subr.mxu0 %v6701
  %7020 = vmatpush1.msra.mxu0 %v6700
  %7021 = vmatprep.subr.mxu0 %v6703
  %7022 = vmatpush1.msra.mxu0 %v6702
  %7023 = vmatprep.mubr.f32.mxu0 %v6862
  %7024 = vmatmul.mubr.f32.gmra.mrb[0].mxu0 %v6860
  %v7025 = vpop.f32.mrb[0].mxu0
  %v7026 = vadd.f32 %v6955, %v7025
  %v7027 = vpop.f32.mrb[0].mxu0
  %v7028 = vadd.f32 %v6957, %v7027
  %7029 = vdwg.mxu0
  %7030 = vmatprep.subr.mxu0 %v6705
  %7031 = vmatpush1.msra.mxu0 %v6704
  %7032 = vmatprep.subr.mxu0 %v6707
  %7033 = vmatpush1.msra.mxu0 %v6706
  %7034 = vmatprep.subr.mxu0 %v6709
  %7035 = vmatpush1.msra.mxu0 %v6708
  %7036 = vmatprep.subr.mxu0 %v6711
  %7037 = vmatpush1.msra.mxu0 %v6710
  %7038 = vmatprep.subr.mxu0 %v6713
  %7039 = vmatpush1.msra.mxu0 %v6712
  %7040 = vmatprep.subr.mxu0 %v6715
  %7041 = vmatpush1.msra.mxu0 %v6714
  %7042 = vmatprep.subr.mxu0 %v6717
  %7043 = vmatpush1.msra.mxu0 %v6716
  %7044 = vmatprep.subr.mxu0 %v6719
  %7045 = vmatpush1.msra.mxu0 %v6718
  %7046 = vmatprep.subr.mxu0 %v6721
  %7047 = vmatpush1.msra.mxu0 %v6720
  %7048 = vmatprep.subr.mxu0 %v6723
  %7049 = vmatpush1.msra.mxu0 %v6722
  %7050 = vmatprep.subr.mxu0 %v6725
  %7051 = vmatpush1.msra.mxu0 %v6724
  %7052 = vmatprep.subr.mxu0 %v6727
  %7053 = vmatpush1.msra.mxu0 %v6726
  %7054 = vmatprep.subr.mxu0 %v6729
  %7055 = vmatpush1.msra.mxu0 %v6728
  %7056 = vmatprep.subr.mxu0 %v6731
  %7057 = vmatpush1.msra.mxu0 %v6730
  %7058 = vmatprep.subr.mxu0 %v6733
  %7059 = vmatpush1.msra.mxu0 %v6732
  %7060 = vmatprep.subr.mxu0 %v6735
  %7061 = vmatpush1.msra.mxu0 %v6734
  %7062 = vmatprep.subr.mxu0 %v6737
  %7063 = vmatpush1.msra.mxu0 %v6736
  %7064 = vmatprep.subr.mxu0 %v6739
  %7065 = vmatpush1.msra.mxu0 %v6738
  %7066 = vmatprep.subr.mxu0 %v6741
  %7067 = vmatpush1.msra.mxu0 %v6740
  %7068 = vmatprep.subr.mxu0 %v6743
  %7069 = vmatpush1.msra.mxu0 %v6742
  %7070 = vmatprep.subr.mxu0 %v6745
  %7071 = vmatpush1.msra.mxu0 %v6744
  %7072 = vmatprep.subr.mxu0 %v6747
  %7073 = vmatpush1.msra.mxu0 %v6746
  %7074 = vmatprep.subr.mxu0 %v6749
  %7075 = vmatpush1.msra.mxu0 %v6748
  %7076 = vmatprep.subr.mxu0 %v6751
  %7077 = vmatpush1.msra.mxu0 %v6750
  %7078 = vmatprep.subr.mxu0 %v6753
  %7079 = vmatpush1.msra.mxu0 %v6752
  %7080 = vmatprep.subr.mxu0 %v6755
  %7081 = vmatpush1.msra.mxu0 %v6754
  %7082 = vmatprep.subr.mxu0 %v6757
  %7083 = vmatpush1.msra.mxu0 %v6756
  %7084 = vmatprep.subr.mxu0 %v6759
  %7085 = vmatpush1.msra.mxu0 %v6758
  %7086 = vmatprep.subr.mxu0 %v6761
  %7087 = vmatpush1.msra.mxu0 %v6760
  %7088 = vmatprep.subr.mxu0 %v6763
  %7089 = vmatpush1.msra.mxu0 %v6762
  %7090 = vmatprep.subr.mxu0 %v6765
  %7091 = vmatpush1.msra.mxu0 %v6764
  %7092 = vmatprep.subr.mxu0 %v6767
  %7093 = vmatpush1.msra.mxu0 %v6766
  %7094 = vmatprep.mubr.f32.mxu0 %v6878
  %7095 = vmatmul.mubr.f32.gmra.mrb[0].mxu0 %v6870
  %v7096 = vpop.f32.mrb[0].mxu0
  %v7097 = vadd.f32 %v7026, %v7096
  %v7098 = vpop.f32.mrb[0].mxu0
  %v7099 = vadd.f32 %v7028, %v7098
  %7100 = vdwg.mxu0
  %7101 = vmatprep.subr.mxu0 %v6769
  %7102 = vmatpush1.msra.mxu0 %v6768
  %7103 = vmatprep.subr.mxu0 %v6771
  %7104 = vmatpush1.msra.mxu0 %v6770
  %7105 = vmatprep.subr.mxu0 %v6773
  %7106 = vmatpush1.msra.mxu0 %v6772
  %7107 = vmatprep.subr.mxu0 %v6775
  %7108 = vmatpush1.msra.mxu0 %v6774
  %7109 = vmatprep.subr.mxu0 %v6777
  %7110 = vmatpush1.msra.mxu0 %v6776
  %7111 = vmatprep.subr.mxu0 %v6779
  %7112 = vmatpush1.msra.mxu0 %v6778
  %7113 = vmatprep.subr.mxu0 %v6781
  %7114 = vmatpush1.msra.mxu0 %v6780
  %7115 = vmatprep.subr.mxu0 %v6783
  %7116 = vmatpush1.msra.mxu0 %v6782
  %7117 = vmatprep.subr.mxu0 %v6785
  %7118 = vmatpush1.msra.mxu0 %v6784
  %7119 = vmatprep.subr.mxu0 %v6787
  %7120 = vmatpush1.msra.mxu0 %v6786
  %7121 = vmatprep.subr.mxu0 %v6789
  %7122 = vmatpush1.msra.mxu0 %v6788
  %7123 = vmatprep.subr.mxu0 %v6791
  %7124 = vmatpush1.msra.mxu0 %v6790
  %7125 = vmatprep.subr.mxu0 %v6793
  %7126 = vmatpush1.msra.mxu0 %v6792
  %7127 = vmatprep.subr.mxu0 %v6795
  %7128 = vmatpush1.msra.mxu0 %v6794
  %7129 = vmatprep.subr.mxu0 %v6797
  %7130 = vmatpush1.msra.mxu0 %v6796
  %7131 = vmatprep.subr.mxu0 %v6799
  %7132 = vmatpush1.msra.mxu0 %v6798
  %7133 = vmatprep.subr.mxu0 %v6801
  %7134 = vmatpush1.msra.mxu0 %v6800
  %7135 = vmatprep.subr.mxu0 %v6803
  %7136 = vmatpush1.msra.mxu0 %v6802
  %7137 = vmatprep.subr.mxu0 %v6805
  %7138 = vmatpush1.msra.mxu0 %v6804
  %7139 = vmatprep.subr.mxu0 %v6807
  %7140 = vmatpush1.msra.mxu0 %v6806
  %7141 = vmatprep.subr.mxu0 %v6809
  %7142 = vmatpush1.msra.mxu0 %v6808
  %7143 = vmatprep.subr.mxu0 %v6811
  %7144 = vmatpush1.msra.mxu0 %v6810
  %7145 = vmatprep.subr.mxu0 %v6813
  %7146 = vmatpush1.msra.mxu0 %v6812
  %7147 = vmatprep.subr.mxu0 %v6815
  %7148 = vmatpush1.msra.mxu0 %v6814
  %7149 = vmatprep.subr.mxu0 %v6817
  %7150 = vmatpush1.msra.mxu0 %v6816
  %7151 = vmatprep.subr.mxu0 %v6819
  %7152 = vmatpush1.msra.mxu0 %v6818
  %7153 = vmatprep.subr.mxu0 %v6821
  %7154 = vmatpush1.msra.mxu0 %v6820
  %7155 = vmatprep.subr.mxu0 %v6823
  %7156 = vmatpush1.msra.mxu0 %v6822
  %7157 = vmatprep.subr.mxu0 %v6825
  %7158 = vmatpush1.msra.mxu0 %v6824
  %7159 = vmatprep.subr.mxu0 %v6827
  %7160 = vmatpush1.msra.mxu0 %v6826
  %7161 = vmatprep.subr.mxu0 %v6829
  %7162 = vmatpush1.msra.mxu0 %v6828
  %7163 = vmatprep.subr.mxu0 %v6831
  %7164 = vmatpush1.msra.mxu0 %v6830
  %7165 = vmatprep.mubr.f32.mxu0 %v6879
  %7166 = vmatmul.mubr.f32.gmra.mrb[0].mxu0 %v6877
  %v7167 = vpop.f32.mrb[0].mxu0
  %v7168 = vadd.f32 %v7097, %v7167
  %v7169 = vpop.f32.mrb[0].mxu0
  %v7170 = vadd.f32 %v7099, %v7169
  %7171 = vdwg.mxu0
  %v7172 = vmax.f32 %v7168, 0.0
  %v7173 = vmax.f32 %v7170, 0.0
  %v7176 = vcombine.low %v7172, %v7173
  %v7178 = vunpack.c.l.s4 1983009808
  %v7179 = vunpack.c.0.s8 %v7178
  %v7180 = vlaneseq
  %v7181 = vshrl.u32 %v7180, 7
  %v7182 = vsub.s32 %v7179, %v7181
  %v7183 = vrot.slane %v7176, %v7182
  %7184 = vrot.lane.b32.xlu0 %v7183, 64
  %v7185 = vpop.permute.xlu0 %7184
  %v7186 = vrot.slane %v7185, 6
  %v7187 = vsel %vm1131, %v7186, %v7185
  %vm7189 = vcmask 1041920
  %vm7190 = vcmask 1043458
  %vm7191 = vmor %vm7190, %vm7189
  %7192 = vst.msk [vmem:[#allocation3 + $0x2] sm:$0xf] %vm7191, %v7187
  %v7193 = vld [vmem:[#allocation2 + $0x10] sm:$0xff]
  %v7194 = vld [vmem:[#allocation2 + $0x18] sm:$0xff]
  %v7195 = vld [vmem:[%s3] sm:$0xff]
  %v7196 = vld [vmem:[%s3 + $0x8] sm:$0xff]
  %v7197 = vld [vmem:[%s3 + $0x10] sm:$0xff]
  %v7198 = vld [vmem:[%s3 + $0x18] sm:$0xff]
  %v7199 = vld [vmem:[%s3 + $0x20] sm:$0xff]
  %v7200 = vld [vmem:[%s3 + $0x28] sm:$0xff]
  %v7201 = vld [vmem:[%s3 + $0x30] sm:$0xff]
  %v7202 = vld [vmem:[%s3 + $0x38] sm:$0xff]
  %v7203 = vld [vmem:[%s3 + $0x40] sm:$0xff]
  %v7204 = vld [vmem:[%s3 + $0x48] sm:$0xff]
  %v7205 = vld [vmem:[%s3 + $0x50] sm:$0xff]
  %v7206 = vld [vmem:[%s3 + $0x58] sm:$0xff]
  %v7207 = vld [vmem:[%s3 + $0x60] sm:$0xff]
  %v7208 = vld [vmem:[%s3 + $0x68] sm:$0xff]
  %v7209 = vld [vmem:[%s3 + $0x70] sm:$0xff]
  %v7210 = vld [vmem:[%s3 + $0x78] sm:$0xff]
  %v7211 = vld [vmem:[%s3 + $0x80] sm:$0xff]
  %v7212 = vld [vmem:[%s3 + $0x88] sm:$0xff]
  %v7213 = vld [vmem:[%s3 + $0x90] sm:$0xff]
  %v7214 = vld [vmem:[%s3 + $0x98] sm:$0xff]
  %v7215 = vld [vmem:[%s3 + $0xa0] sm:$0xff]
  %v7216 = vld [vmem:[%s3 + $0xa8] sm:$0xff]
  %v7217 = vld [vmem:[%s3 + $0xb0] sm:$0xff]
  %v7218 = vld [vmem:[%s3 + $0xb8] sm:$0xff]
  %v7219 = vld [vmem:[%s3 + $0xc0] sm:$0xff]
  %v7220 = vld [vmem:[%s3 + $0xc8] sm:$0xff]
  %v7221 = vld [vmem:[%s3 + $0xd0] sm:$0xff]
  %v7222 = vld [vmem:[%s3 + $0xd8] sm:$0xff]
  %v7223 = vld [vmem:[%s3 + $0xe0] sm:$0xff]
  %v7224 = vld [vmem:[%s3 + $0xe8] sm:$0xff]
  %v7225 = vld [vmem:[%s3 + $0xf0] sm:$0xff]
  %v7226 = vld [vmem:[%s3 + $0xf8] sm:$0xff]
  %v7227 = vld [vmem:[%s3 + $0x100] sm:$0xff]
  %v7228 = vld [vmem:[%s3 + $0x108] sm:$0xff]
  %v7229 = vld [vmem:[%s3 + $0x110] sm:$0xff]
  %v7230 = vld [vmem:[%s3 + $0x118] sm:$0xff]
  %v7231 = vld [vmem:[%s3 + $0x120] sm:$0xff]
  %v7232 = vld [vmem:[%s3 + $0x128] sm:$0xff]
  %v7233 = vld [vmem:[%s3 + $0x130] sm:$0xff]
  %v7234 = vld [vmem:[%s3 + $0x138] sm:$0xff]
  %v7235 = vld [vmem:[%s3 + $0x140] sm:$0xff]
  %v7236 = vld [vmem:[%s3 + $0x148] sm:$0xff]
  %v7237 = vld [vmem:[%s3 + $0x150] sm:$0xff]
  %v7238 = vld [vmem:[%s3 + $0x158] sm:$0xff]
  %v7239 = vld [vmem:[%s3 + $0x160] sm:$0xff]
  %v7240 = vld [vmem:[%s3 + $0x168] sm:$0xff]
  %v7241 = vld [vmem:[%s3 + $0x170] sm:$0xff]
  %v7242 = vld [vmem:[%s3 + $0x178] sm:$0xff]
  %v7243 = vld [vmem:[%s3 + $0x180] sm:$0xff]
  %v7244 = vld [vmem:[%s3 + $0x188] sm:$0xff]
  %v7245 = vld [vmem:[%s3 + $0x190] sm:$0xff]
  %v7246 = vld [vmem:[%s3 + $0x198] sm:$0xff]
  %v7247 = vld [vmem:[%s3 + $0x1a0] sm:$0xff]
  %v7248 = vld [vmem:[%s3 + $0x1a8] sm:$0xff]
  %v7249 = vld [vmem:[%s3 + $0x1b0] sm:$0xff]
  %v7250 = vld [vmem:[%s3 + $0x1b8] sm:$0xff]
  %v7251 = vld [vmem:[%s3 + $0x1c0] sm:$0xff]
  %v7252 = vld [vmem:[%s3 + $0x1c8] sm:$0xff]
  %v7253 = vld [vmem:[%s3 + $0x1d0] sm:$0xff]
  %v7254 = vld [vmem:[%s3 + $0x1d8] sm:$0xff]
  %v7255 = vld [vmem:[%s3 + $0x1e0] sm:$0xff]
  %v7256 = vld [vmem:[%s3 + $0x1e8] sm:$0xff]
  %v7257 = vld [vmem:[%s3 + $0x1f0] sm:$0xff]
  %v7258 = vld [vmem:[%s3 + $0x1f8] sm:$0xff]
  %v7259 = vld [vmem:[%s3 + $0x200] sm:$0xff]
  %v7260 = vld [vmem:[%s3 + $0x208] sm:$0xff]
  %v7261 = vld [vmem:[%s3 + $0x210] sm:$0xff]
  %v7262 = vld [vmem:[%s3 + $0x218] sm:$0xff]
  %v7263 = vld [vmem:[%s3 + $0x220] sm:$0xff]
  %v7264 = vld [vmem:[%s3 + $0x228] sm:$0xff]
  %v7265 = vld [vmem:[%s3 + $0x230] sm:$0xff]
  %v7266 = vld [vmem:[%s3 + $0x238] sm:$0xff]
  %v7267 = vld [vmem:[%s3 + $0x240] sm:$0xff]
  %v7268 = vld [vmem:[%s3 + $0x248] sm:$0xff]
  %v7269 = vld [vmem:[%s3 + $0x250] sm:$0xff]
  %v7270 = vld [vmem:[%s3 + $0x258] sm:$0xff]
  %v7271 = vld [vmem:[%s3 + $0x260] sm:$0xff]
  %v7272 = vld [vmem:[%s3 + $0x268] sm:$0xff]
  %v7273 = vld [vmem:[%s3 + $0x270] sm:$0xff]
  %v7274 = vld [vmem:[%s3 + $0x278] sm:$0xff]
  %v7275 = vld [vmem:[%s3 + $0x280] sm:$0xff]
  %v7276 = vld [vmem:[%s3 + $0x288] sm:$0xff]
  %v7277 = vld [vmem:[%s3 + $0x290] sm:$0xff]
  %v7278 = vld [vmem:[%s3 + $0x298] sm:$0xff]
  %v7279 = vld [vmem:[%s3 + $0x2a0] sm:$0xff]
  %v7280 = vld [vmem:[%s3 + $0x2a8] sm:$0xff]
  %v7281 = vld [vmem:[%s3 + $0x2b0] sm:$0xff]
  %v7282 = vld [vmem:[%s3 + $0x2b8] sm:$0xff]
  %v7283 = vld [vmem:[%s3 + $0x2c0] sm:$0xff]
  %v7284 = vld [vmem:[%s3 + $0x2c8] sm:$0xff]
  %v7285 = vld [vmem:[%s3 + $0x2d0] sm:$0xff]
  %v7286 = vld [vmem:[%s3 + $0x2d8] sm:$0xff]
  %v7287 = vld [vmem:[%s3 + $0x2e0] sm:$0xff]
  %v7288 = vld [vmem:[%s3 + $0x2e8] sm:$0xff]
  %v7289 = vld [vmem:[%s3 + $0x2f0] sm:$0xff]
  %v7290 = vld [vmem:[%s3 + $0x2f8] sm:$0xff]
  %v7291 = vld [vmem:[%s3 + $0x300] sm:$0xff]
  %v7292 = vld [vmem:[%s3 + $0x308] sm:$0xff]
  %v7293 = vld [vmem:[%s3 + $0x310] sm:$0xff]
  %v7294 = vld [vmem:[%s3 + $0x318] sm:$0xff]
  %v7295 = vld [vmem:[%s3 + $0x320] sm:$0xff]
  %v7296 = vld [vmem:[%s3 + $0x328] sm:$0xff]
  %v7297 = vld [vmem:[%s3 + $0x330] sm:$0xff]
  %v7298 = vld [vmem:[%s3 + $0x338] sm:$0xff]
  %v7299 = vld [vmem:[%s3 + $0x340] sm:$0xff]
  %v7300 = vld [vmem:[%s3 + $0x348] sm:$0xff]
  %v7301 = vld [vmem:[%s3 + $0x350] sm:$0xff]
  %v7302 = vld [vmem:[%s3 + $0x358] sm:$0xff]
  %v7303 = vld [vmem:[%s3 + $0x360] sm:$0xff]
  %v7304 = vld [vmem:[%s3 + $0x368] sm:$0xff]
  %v7305 = vld [vmem:[%s3 + $0x370] sm:$0xff]
  %v7306 = vld [vmem:[%s3 + $0x378] sm:$0xff]
  %v7307 = vld [vmem:[%s3 + $0x380] sm:$0xff]
  %v7308 = vld [vmem:[%s3 + $0x388] sm:$0xff]
  %v7309 = vld [vmem:[%s3 + $0x390] sm:$0xff]
  %v7310 = vld [vmem:[%s3 + $0x398] sm:$0xff]
  %v7311 = vld [vmem:[%s3 + $0x3a0] sm:$0xff]
  %v7312 = vld [vmem:[%s3 + $0x3a8] sm:$0xff]
  %v7313 = vld [vmem:[%s3 + $0x3b0] sm:$0xff]
  %v7314 = vld [vmem:[%s3 + $0x3b8] sm:$0xff]
  %v7315 = vld [vmem:[%s3 + $0x3c0] sm:$0xff]
  %v7316 = vld [vmem:[%s3 + $0x3c8] sm:$0xff]
  %v7317 = vld [vmem:[%s3 + $0x3d0] sm:$0xff]
  %v7318 = vld [vmem:[%s3 + $0x3d8] sm:$0xff]
  %v7319 = vld [vmem:[%s3 + $0x3e0] sm:$0xff]
  %v7320 = vld [vmem:[%s3 + $0x3e8] sm:$0xff]
  %v7321 = vld [vmem:[%s3 + $0x3f0] sm:$0xff]
  %v7322 = vld [vmem:[%s3 + $0x3f8] sm:$0xff]
  %v7323 = vld [vmem:[%s3 + $0x400] sm:$0xff]
  %v7324 = vld [vmem:[%s3 + $0x408] sm:$0xff]
  %v7325 = vld [vmem:[%s3 + $0x410] sm:$0xff]
  %v7326 = vld [vmem:[%s3 + $0x418] sm:$0xff]
  %v7327 = vld [vmem:[%s3 + $0x420] sm:$0xff]
  %v7328 = vld [vmem:[%s3 + $0x428] sm:$0xff]
  %v7329 = vld [vmem:[%s3 + $0x430] sm:$0xff]
  %v7330 = vld [vmem:[%s3 + $0x438] sm:$0xff]
  %v7331 = vld [vmem:[%s3 + $0x440] sm:$0xff]
  %v7332 = vld [vmem:[%s3 + $0x448] sm:$0xff]
  %v7333 = vld [vmem:[%s3 + $0x450] sm:$0xff]
  %v7334 = vld [vmem:[%s3 + $0x458] sm:$0xff]
  %v7335 = vld [vmem:[%s3 + $0x460] sm:$0xff]
  %v7336 = vld [vmem:[%s3 + $0x468] sm:$0xff]
  %v7337 = vld [vmem:[%s3 + $0x470] sm:$0xff]
  %v7338 = vld [vmem:[%s3 + $0x478] sm:$0xff]
  %v7339 = vld [vmem:[%s3 + $0x480] sm:$0xff]
  %v7340 = vld [vmem:[%s3 + $0x488] sm:$0xff]
  %v7341 = vld [vmem:[%s3 + $0x490] sm:$0xff]
  %v7342 = vld [vmem:[%s3 + $0x498] sm:$0xff]
  %v7343 = vld [vmem:[%s3 + $0x4a0] sm:$0xff]
  %v7344 = vld [vmem:[%s3 + $0x4a8] sm:$0xff]
  %v7345 = vld [vmem:[%s3 + $0x4b0] sm:$0xff]
  %v7346 = vld [vmem:[%s3 + $0x4b8] sm:$0xff]
  %v7347 = vld [vmem:[%s3 + $0x4c0] sm:$0xff]
  %v7348 = vld [vmem:[%s3 + $0x4c8] sm:$0xff]
  %v7349 = vld [vmem:[%s3 + $0x4d0] sm:$0xff]
  %v7350 = vld [vmem:[%s3 + $0x4d8] sm:$0xff]
  %v7351 = vld [vmem:[%s3 + $0x4e0] sm:$0xff]
  %v7352 = vld [vmem:[%s3 + $0x4e8] sm:$0xff]
  %v7353 = vld [vmem:[%s3 + $0x4f0] sm:$0xff]
  %v7354 = vld [vmem:[%s3 + $0x4f8] sm:$0xff]
  %v7355 = vld [vmem:[%s3 + $0x500] sm:$0xff]
  %v7356 = vld [vmem:[%s3 + $0x508] sm:$0xff]
  %v7357 = vld [vmem:[%s3 + $0x510] sm:$0xff]
  %v7358 = vld [vmem:[%s3 + $0x518] sm:$0xff]
  %v7359 = vld [vmem:[%s3 + $0x520] sm:$0xff]
  %v7360 = vld [vmem:[%s3 + $0x528] sm:$0xff]
  %v7361 = vld [vmem:[%s3 + $0x530] sm:$0xff]
  %v7362 = vld [vmem:[%s3 + $0x538] sm:$0xff]
  %v7363 = vld [vmem:[%s3 + $0x540] sm:$0xff]
  %v7364 = vld [vmem:[%s3 + $0x548] sm:$0xff]
  %v7365 = vld [vmem:[%s3 + $0x550] sm:$0xff]
  %v7366 = vld [vmem:[%s3 + $0x558] sm:$0xff]
  %v7367 = vld [vmem:[%s3 + $0x560] sm:$0xff]
  %v7368 = vld [vmem:[%s3 + $0x568] sm:$0xff]
  %v7369 = vld [vmem:[%s3 + $0x570] sm:$0xff]
  %v7370 = vld [vmem:[%s3 + $0x578] sm:$0xff]
  %v7371 = vld [vmem:[%s3 + $0x580] sm:$0xff]
  %v7372 = vld [vmem:[%s3 + $0x588] sm:$0xff]
  %v7373 = vld [vmem:[%s3 + $0x590] sm:$0xff]
  %v7374 = vld [vmem:[%s3 + $0x598] sm:$0xff]
  %v7375 = vld [vmem:[%s3 + $0x5a0] sm:$0xff]
  %v7376 = vld [vmem:[%s3 + $0x5a8] sm:$0xff]
  %v7377 = vld [vmem:[%s3 + $0x5b0] sm:$0xff]
  %v7378 = vld [vmem:[%s3 + $0x5b8] sm:$0xff]
  %v7379 = vld [vmem:[%s3 + $0x5c0] sm:$0xff]
  %v7380 = vld [vmem:[%s3 + $0x5c8] sm:$0xff]
  %v7381 = vld [vmem:[%s3 + $0x5d0] sm:$0xff]
  %v7382 = vld [vmem:[%s3 + $0x5d8] sm:$0xff]
  %v7383 = vld [vmem:[%s3 + $0x5e0] sm:$0xff]
  %v7384 = vld [vmem:[%s3 + $0x5e8] sm:$0xff]
  %v7385 = vld [vmem:[%s3 + $0x5f0] sm:$0xff]
  %v7386 = vld [vmem:[%s3 + $0x5f8] sm:$0xff]
  %v7387 = vld [vmem:[%s3 + $0x600] sm:$0xff]
  %v7388 = vld [vmem:[%s3 + $0x608] sm:$0xff]
  %v7389 = vld [vmem:[%s3 + $0x610] sm:$0xff]
  %v7390 = vld [vmem:[%s3 + $0x618] sm:$0xff]
  %v7391 = vld [vmem:[%s3 + $0x620] sm:$0xff]
  %v7392 = vld [vmem:[%s3 + $0x628] sm:$0xff]
  %v7393 = vld [vmem:[%s3 + $0x630] sm:$0xff]
  %v7394 = vld [vmem:[%s3 + $0x638] sm:$0xff]
  %v7395 = vld [vmem:[%s3 + $0x640] sm:$0xff]
  %v7396 = vld [vmem:[%s3 + $0x648] sm:$0xff]
  %v7397 = vld [vmem:[%s3 + $0x650] sm:$0xff]
  %v7398 = vld [vmem:[%s3 + $0x658] sm:$0xff]
  %v7399 = vld [vmem:[%s3 + $0x660] sm:$0xff]
  %v7400 = vld [vmem:[%s3 + $0x668] sm:$0xff]
  %v7401 = vld [vmem:[%s3 + $0x670] sm:$0xff]
  %v7402 = vld [vmem:[%s3 + $0x678] sm:$0xff]
  %v7403 = vld [vmem:[%s3 + $0x680] sm:$0xff]
  %v7404 = vld [vmem:[%s3 + $0x688] sm:$0xff]
  %v7405 = vld [vmem:[%s3 + $0x690] sm:$0xff]
  %v7406 = vld [vmem:[%s3 + $0x698] sm:$0xff]
  %v7407 = vld [vmem:[%s3 + $0x6a0] sm:$0xff]
  %v7408 = vld [vmem:[%s3 + $0x6a8] sm:$0xff]
  %v7409 = vld [vmem:[%s3 + $0x6b0] sm:$0xff]
  %v7410 = vld [vmem:[%s3 + $0x6b8] sm:$0xff]
  %v7411 = vld [vmem:[%s3 + $0x6c0] sm:$0xff]
  %v7412 = vld [vmem:[%s3 + $0x6c8] sm:$0xff]
  %v7413 = vld [vmem:[%s3 + $0x6d0] sm:$0xff]
  %v7414 = vld [vmem:[%s3 + $0x6d8] sm:$0xff]
  %v7415 = vld [vmem:[%s3 + $0x6e0] sm:$0xff]
  %v7416 = vld [vmem:[%s3 + $0x6e8] sm:$0xff]
  %v7417 = vld [vmem:[%s3 + $0x6f0] sm:$0xff]
  %v7418 = vld [vmem:[%s3 + $0x6f8] sm:$0xff]
  %v7419 = vld [vmem:[%s3 + $0x700] sm:$0xff]
  %v7420 = vld [vmem:[%s3 + $0x708] sm:$0xff]
  %v7421 = vld [vmem:[%s3 + $0x710] sm:$0xff]
  %v7422 = vld [vmem:[%s3 + $0x718] sm:$0xff]
  %v7423 = vld [vmem:[%s3 + $0x720] sm:$0xff]
  %v7424 = vld [vmem:[%s3 + $0x728] sm:$0xff]
  %v7425 = vld [vmem:[%s3 + $0x730] sm:$0xff]
  %v7426 = vld [vmem:[%s3 + $0x738] sm:$0xff]
  %v7427 = vld [vmem:[%s3 + $0x740] sm:$0xff]
  %v7428 = vld [vmem:[%s3 + $0x748] sm:$0xff]
  %v7429 = vld [vmem:[%s3 + $0x750] sm:$0xff]
  %v7430 = vld [vmem:[%s3 + $0x758] sm:$0xff]
  %v7431 = vld [vmem:[%s3 + $0x760] sm:$0xff]
  %v7432 = vld [vmem:[%s3 + $0x768] sm:$0xff]
  %v7433 = vld [vmem:[%s3 + $0x770] sm:$0xff]
  %v7434 = vld [vmem:[%s3 + $0x778] sm:$0xff]
  %v7435 = vld [vmem:[%s3 + $0x780] sm:$0xff]
  %v7436 = vld [vmem:[%s3 + $0x788] sm:$0xff]
  %v7437 = vld [vmem:[%s3 + $0x790] sm:$0xff]
  %v7438 = vld [vmem:[%s3 + $0x798] sm:$0xff]
  %v7439 = vld [vmem:[%s3 + $0x7a0] sm:$0xff]
  %v7440 = vld [vmem:[%s3 + $0x7a8] sm:$0xff]
  %v7441 = vld [vmem:[%s3 + $0x7b0] sm:$0xff]
  %v7442 = vld [vmem:[%s3 + $0x7b8] sm:$0xff]
  %v7443 = vld [vmem:[%s3 + $0x7c0] sm:$0xff]
  %v7444 = vld [vmem:[%s3 + $0x7c8] sm:$0xff]
  %v7445 = vld [vmem:[%s3 + $0x7d0] sm:$0xff]
  %v7446 = vld [vmem:[%s3 + $0x7d8] sm:$0xff]
  %v7447 = vld [vmem:[%s3 + $0x7e0] sm:$0xff]
  %v7448 = vld [vmem:[%s3 + $0x7e8] sm:$0xff]
  %v7449 = vld [vmem:[%s3 + $0x7f0] sm:$0xff]
  %v7450 = vld [vmem:[%s3 + $0x7f8] sm:$0xff]
  %v7451 = vld [vmem:[%s4] sm:$0x3]
  %v7453 = vlaneseq
  %v7454 = vshrl.u32 %v7453, 7
  %v7455 = vsub.s32 0, %v7454
  %v7456 = vrot.slane %v7451, %v7455
  %v7457 = vlaneseq
  %v7458 = vshrl.u32 %v7457, 7
  %v7459 = vsub.s32 1, %v7458
  %v7460 = vrot.slane %v7451, %v7459
  %v7465 = vcombine.high %v7193, %v7193
  %v7467 = vunpack.c.l.s4 1983009808
  %v7468 = vunpack.c.0.s8 %v7467
  %v7469 = vlaneseq
  %v7470 = vshrl.u32 %v7469, 7
  %v7471 = vsub.s32 %v7468, %v7470
  %v7472 = vrot.slane %v7193, %v7471
  %v7474 = vunpack.c.l.s4 1983009808
  %v7475 = vunpack.c.0.s8 %v7474
  %v7476 = vlaneseq
  %v7477 = vshrl.u32 %v7476, 7
  %v7478 = vsub.s32 %v7475, %v7477
  %v7479 = vrot.slane %v7465, %v7478
  %v7480 = vcombine.high %v7472, %v7472
  %v7481 = vcombine.high %v7479, %v7479
  %v7482 = vcombine.high %v7194, %v7194
  %v7484 = vunpack.c.l.s4 1983009808
  %v7485 = vunpack.c.0.s8 %v7484
  %v7486 = vlaneseq
  %v7487 = vshrl.u32 %v7486, 7
  %v7488 = vsub.s32 %v7485, %v7487
  %v7489 = vrot.slane %v7194, %v7488
  %v7491 = vunpack.c.l.s4 1983009808
  %v7492 = vunpack.c.0.s8 %v7491
  %v7493 = vlaneseq
  %v7494 = vshrl.u32 %v7493, 7
  %v7495 = vsub.s32 %v7492, %v7494
  %v7496 = vrot.slane %v7482, %v7495
  %v7497 = vcombine.high %v7489, %v7489
  %v7498 = vcombine.high %v7496, %v7496
  %7507 = vmatprep.subr.mxu0 %v7196
  %7508 = vmatpush1.msra.mxu0 %v7195
  %7509 = vmatprep.subr.mxu0 %v7198
  %7510 = vmatpush1.msra.mxu0 %v7197
  %7511 = vmatprep.subr.mxu0 %v7200
  %7512 = vmatpush1.msra.mxu0 %v7199
  %7513 = vmatprep.subr.mxu0 %v7202
  %7514 = vmatpush1.msra.mxu0 %v7201
  %7515 = vmatprep.subr.mxu0 %v7204
  %7516 = vmatpush1.msra.mxu0 %v7203
  %7517 = vmatprep.subr.mxu0 %v7206
  %7518 = vmatpush1.msra.mxu0 %v7205
  %7519 = vmatprep.subr.mxu0 %v7208
  %7520 = vmatpush1.msra.mxu0 %v7207
  %7521 = vmatprep.subr.mxu0 %v7210
  %7522 = vmatpush1.msra.mxu0 %v7209
  %7523 = vmatprep.subr.mxu0 %v7212
  %7524 = vmatpush1.msra.mxu0 %v7211
  %7525 = vmatprep.subr.mxu0 %v7214
  %7526 = vmatpush1.msra.mxu0 %v7213
  %7527 = vmatprep.subr.mxu0 %v7216
  %7528 = vmatpush1.msra.mxu0 %v7215
  %7529 = vmatprep.subr.mxu0 %v7218
  %7530 = vmatpush1.msra.mxu0 %v7217
  %7531 = vmatprep.subr.mxu0 %v7220
  %7532 = vmatpush1.msra.mxu0 %v7219
  %7533 = vmatprep.subr.mxu0 %v7222
  %7534 = vmatpush1.msra.mxu0 %v7221
  %7535 = vmatprep.subr.mxu0 %v7224
  %7536 = vmatpush1.msra.mxu0 %v7223
  %7537 = vmatprep.subr.mxu0 %v7226
  %7538 = vmatpush1.msra.mxu0 %v7225
  %7539 = vmatprep.subr.mxu0 %v7228
  %7540 = vmatpush1.msra.mxu0 %v7227
  %7541 = vmatprep.subr.mxu0 %v7230
  %7542 = vmatpush1.msra.mxu0 %v7229
  %7543 = vmatprep.subr.mxu0 %v7232
  %7544 = vmatpush1.msra.mxu0 %v7231
  %7545 = vmatprep.subr.mxu0 %v7234
  %7546 = vmatpush1.msra.mxu0 %v7233
  %7547 = vmatprep.subr.mxu0 %v7236
  %7548 = vmatpush1.msra.mxu0 %v7235
  %7549 = vmatprep.subr.mxu0 %v7238
  %7550 = vmatpush1.msra.mxu0 %v7237
  %7551 = vmatprep.subr.mxu0 %v7240
  %7552 = vmatpush1.msra.mxu0 %v7239
  %7553 = vmatprep.subr.mxu0 %v7242
  %7554 = vmatpush1.msra.mxu0 %v7241
  %7555 = vmatprep.subr.mxu0 %v7244
  %7556 = vmatpush1.msra.mxu0 %v7243
  %7557 = vmatprep.subr.mxu0 %v7246
  %7558 = vmatpush1.msra.mxu0 %v7245
  %7559 = vmatprep.subr.mxu0 %v7248
  %7560 = vmatpush1.msra.mxu0 %v7247
  %7561 = vmatprep.subr.mxu0 %v7250
  %7562 = vmatpush1.msra.mxu0 %v7249
  %7563 = vmatprep.subr.mxu0 %v7252
  %7564 = vmatpush1.msra.mxu0 %v7251
  %7565 = vmatprep.subr.mxu0 %v7254
  %7566 = vmatpush1.msra.mxu0 %v7253
  %7567 = vmatprep.subr.mxu0 %v7256
  %7568 = vmatpush1.msra.mxu0 %v7255
  %7569 = vmatprep.subr.mxu0 %v7258
  %7570 = vmatpush1.msra.mxu0 %v7257
  %7571 = vmatprep.mubr.f32.mxu0 %v7480
  %7572 = vmatmul.mubr.f32.gmra.mrb[0].mxu0 %v7472
  %v7573 = vpop.f32.mrb[0].mxu0
  %v7574 = vadd.f32 %v7456, %v7573
  %v7575 = vpop.f32.mrb[0].mxu0
  %v7576 = vadd.f32 %v7460, %v7575
  %7577 = vdwg.mxu0
  %7578 = vmatprep.subr.mxu0 %v7260
  %7579 = vmatpush1.msra.mxu0 %v7259
  %7580 = vmatprep.subr.mxu0 %v7262
  %7581 = vmatpush1.msra.mxu0 %v7261
  %7582 = vmatprep.subr.mxu0 %v7264
  %7583 = vmatpush1.msra.mxu0 %v7263
  %7584 = vmatprep.subr.mxu0 %v7266
  %7585 = vmatpush1.msra.mxu0 %v7265
  %7586 = vmatprep.subr.mxu0 %v7268
  %7587 = vmatpush1.msra.mxu0 %v7267
  %7588 = vmatprep.subr.mxu0 %v7270
  %7589 = vmatpush1.msra.mxu0 %v7269
  %7590 = vmatprep.subr.mxu0 %v7272
  %7591 = vmatpush1.msra.mxu0 %v7271
  %7592 = vmatprep.subr.mxu0 %v7274
  %7593 = vmatpush1.msra.mxu0 %v7273
  %7594 = vmatprep.subr.mxu0 %v7276
  %7595 = vmatpush1.msra.mxu0 %v7275
  %7596 = vmatprep.subr.mxu0 %v7278
  %7597 = vmatpush1.msra.mxu0 %v7277
  %7598 = vmatprep.subr.mxu0 %v7280
  %7599 = vmatpush1.msra.mxu0 %v7279
  %7600 = vmatprep.subr.mxu0 %v7282
  %7601 = vmatpush1.msra.mxu0 %v7281
  %7602 = vmatprep.subr.mxu0 %v7284
  %7603 = vmatpush1.msra.mxu0 %v7283
  %7604 = vmatprep.subr.mxu0 %v7286
  %7605 = vmatpush1.msra.mxu0 %v7285
  %7606 = vmatprep.subr.mxu0 %v7288
  %7607 = vmatpush1.msra.mxu0 %v7287
  %7608 = vmatprep.subr.mxu0 %v7290
  %7609 = vmatpush1.msra.mxu0 %v7289
  %7610 = vmatprep.subr.mxu0 %v7292
  %7611 = vmatpush1.msra.mxu0 %v7291
  %7612 = vmatprep.subr.mxu0 %v7294
  %7613 = vmatpush1.msra.mxu0 %v7293
  %7614 = vmatprep.subr.mxu0 %v7296
  %7615 = vmatpush1.msra.mxu0 %v7295
  %7616 = vmatprep.subr.mxu0 %v7298
  %7617 = vmatpush1.msra.mxu0 %v7297
  %7618 = vmatprep.subr.mxu0 %v7300
  %7619 = vmatpush1.msra.mxu0 %v7299
  %7620 = vmatprep.subr.mxu0 %v7302
  %7621 = vmatpush1.msra.mxu0 %v7301
  %7622 = vmatprep.subr.mxu0 %v7304
  %7623 = vmatpush1.msra.mxu0 %v7303
  %7624 = vmatprep.subr.mxu0 %v7306
  %7625 = vmatpush1.msra.mxu0 %v7305
  %7626 = vmatprep.subr.mxu0 %v7308
  %7627 = vmatpush1.msra.mxu0 %v7307
  %7628 = vmatprep.subr.mxu0 %v7310
  %7629 = vmatpush1.msra.mxu0 %v7309
  %7630 = vmatprep.subr.mxu0 %v7312
  %7631 = vmatpush1.msra.mxu0 %v7311
  %7632 = vmatprep.subr.mxu0 %v7314
  %7633 = vmatpush1.msra.mxu0 %v7313
  %7634 = vmatprep.subr.mxu0 %v7316
  %7635 = vmatpush1.msra.mxu0 %v7315
  %7636 = vmatprep.subr.mxu0 %v7318
  %7637 = vmatpush1.msra.mxu0 %v7317
  %7638 = vmatprep.subr.mxu0 %v7320
  %7639 = vmatpush1.msra.mxu0 %v7319
  %7640 = vmatprep.subr.mxu0 %v7322
  %7641 = vmatpush1.msra.mxu0 %v7321
  %7642 = vmatprep.mubr.f32.mxu0 %v7481
  %7643 = vmatmul.mubr.f32.gmra.mrb[0].mxu0 %v7479
  %v7644 = vpop.f32.mrb[0].mxu0
  %v7645 = vadd.f32 %v7574, %v7644
  %v7646 = vpop.f32.mrb[0].mxu0
  %v7647 = vadd.f32 %v7576, %v7646
  %7648 = vdwg.mxu0
  %7649 = vmatprep.subr.mxu0 %v7324
  %7650 = vmatpush1.msra.mxu0 %v7323
  %7651 = vmatprep.subr.mxu0 %v7326
  %7652 = vmatpush1.msra.mxu0 %v7325
  %7653 = vmatprep.subr.mxu0 %v7328
  %7654 = vmatpush1.msra.mxu0 %v7327
  %7655 = vmatprep.subr.mxu0 %v7330
  %7656 = vmatpush1.msra.mxu0 %v7329
  %7657 = vmatprep.subr.mxu0 %v7332
  %7658 = vmatpush1.msra.mxu0 %v7331
  %7659 = vmatprep.subr.mxu0 %v7334
  %7660 = vmatpush1.msra.mxu0 %v7333
  %7661 = vmatprep.subr.mxu0 %v7336
  %7662 = vmatpush1.msra.mxu0 %v7335
  %7663 = vmatprep.subr.mxu0 %v7338
  %7664 = vmatpush1.msra.mxu0 %v7337
  %7665 = vmatprep.subr.mxu0 %v7340
  %7666 = vmatpush1.msra.mxu0 %v7339
  %7667 = vmatprep.subr.mxu0 %v7342
  %7668 = vmatpush1.msra.mxu0 %v7341
  %7669 = vmatprep.subr.mxu0 %v7344
  %7670 = vmatpush1.msra.mxu0 %v7343
  %7671 = vmatprep.subr.mxu0 %v7346
  %7672 = vmatpush1.msra.mxu0 %v7345
  %7673 = vmatprep.subr.mxu0 %v7348
  %7674 = vmatpush1.msra.mxu0 %v7347
  %7675 = vmatprep.subr.mxu0 %v7350
  %7676 = vmatpush1.msra.mxu0 %v7349
  %7677 = vmatprep.subr.mxu0 %v7352
  %7678 = vmatpush1.msra.mxu0 %v7351
  %7679 = vmatprep.subr.mxu0 %v7354
  %7680 = vmatpush1.msra.mxu0 %v7353
  %7681 = vmatprep.subr.mxu0 %v7356
  %7682 = vmatpush1.msra.mxu0 %v7355
  %7683 = vmatprep.subr.mxu0 %v7358
  %7684 = vmatpush1.msra.mxu0 %v7357
  %7685 = vmatprep.subr.mxu0 %v7360
  %7686 = vmatpush1.msra.mxu0 %v7359
  %7687 = vmatprep.subr.mxu0 %v7362
  %7688 = vmatpush1.msra.mxu0 %v7361
  %7689 = vmatprep.subr.mxu0 %v7364
  %7690 = vmatpush1.msra.mxu0 %v7363
  %7691 = vmatprep.subr.mxu0 %v7366
  %7692 = vmatpush1.msra.mxu0 %v7365
  %7693 = vmatprep.subr.mxu0 %v7368
  %7694 = vmatpush1.msra.mxu0 %v7367
  %7695 = vmatprep.subr.mxu0 %v7370
  %7696 = vmatpush1.msra.mxu0 %v7369
  %7697 = vmatprep.subr.mxu0 %v7372
  %7698 = vmatpush1.msra.mxu0 %v7371
  %7699 = vmatprep.subr.mxu0 %v7374
  %7700 = vmatpush1.msra.mxu0 %v7373
  %7701 = vmatprep.subr.mxu0 %v7376
  %7702 = vmatpush1.msra.mxu0 %v7375
  %7703 = vmatprep.subr.mxu0 %v7378
  %7704 = vmatpush1.msra.mxu0 %v7377
  %7705 = vmatprep.subr.mxu0 %v7380
  %7706 = vmatpush1.msra.mxu0 %v7379
  %7707 = vmatprep.subr.mxu0 %v7382
  %7708 = vmatpush1.msra.mxu0 %v7381
  %7709 = vmatprep.subr.mxu0 %v7384
  %7710 = vmatpush1.msra.mxu0 %v7383
  %7711 = vmatprep.subr.mxu0 %v7386
  %7712 = vmatpush1.msra.mxu0 %v7385
  %7713 = vmatprep.mubr.f32.mxu0 %v7497
  %7714 = vmatmul.mubr.f32.gmra.mrb[0].mxu0 %v7489
  %v7715 = vpop.f32.mrb[0].mxu0
  %v7716 = vadd.f32 %v7645, %v7715
  %v7717 = vpop.f32.mrb[0].mxu0
  %v7718 = vadd.f32 %v7647, %v7717
  %7719 = vdwg.mxu0
  %7720 = vmatprep.subr.mxu0 %v7388
  %7721 = vmatpush1.msra.mxu0 %v7387
  %7722 = vmatprep.subr.mxu0 %v7390
  %7723 = vmatpush1.msra.mxu0 %v7389
  %7724 = vmatprep.subr.mxu0 %v7392
  %7725 = vmatpush1.msra.mxu0 %v7391
  %7726 = vmatprep.subr.mxu0 %v7394
  %7727 = vmatpush1.msra.mxu0 %v7393
  %7728 = vmatprep.subr.mxu0 %v7396
  %7729 = vmatpush1.msra.mxu0 %v7395
  %7730 = vmatprep.subr.mxu0 %v7398
  %7731 = vmatpush1.msra.mxu0 %v7397
  %7732 = vmatprep.subr.mxu0 %v7400
  %7733 = vmatpush1.msra.mxu0 %v7399
  %7734 = vmatprep.subr.mxu0 %v7402
  %7735 = vmatpush1.msra.mxu0 %v7401
  %7736 = vmatprep.subr.mxu0 %v7404
  %7737 = vmatpush1.msra.mxu0 %v7403
  %7738 = vmatprep.subr.mxu0 %v7406
  %7739 = vmatpush1.msra.mxu0 %v7405
  %7740 = vmatprep.subr.mxu0 %v7408
  %7741 = vmatpush1.msra.mxu0 %v7407
  %7742 = vmatprep.subr.mxu0 %v7410
  %7743 = vmatpush1.msra.mxu0 %v7409
  %7744 = vmatprep.subr.mxu0 %v7412
  %7745 = vmatpush1.msra.mxu0 %v7411
  %7746 = vmatprep.subr.mxu0 %v7414
  %7747 = vmatpush1.msra.mxu0 %v7413
  %7748 = vmatprep.subr.mxu0 %v7416
  %7749 = vmatpush1.msra.mxu0 %v7415
  %7750 = vmatprep.subr.mxu0 %v7418
  %7751 = vmatpush1.msra.mxu0 %v7417
  %7752 = vmatprep.subr.mxu0 %v7420
  %7753 = vmatpush1.msra.mxu0 %v7419
  %7754 = vmatprep.subr.mxu0 %v7422
  %7755 = vmatpush1.msra.mxu0 %v7421
  %7756 = vmatprep.subr.mxu0 %v7424
  %7757 = vmatpush1.msra.mxu0 %v7423
  %7758 = vmatprep.subr.mxu0 %v7426
  %7759 = vmatpush1.msra.mxu0 %v7425
  %7760 = vmatprep.subr.mxu0 %v7428
  %7761 = vmatpush1.msra.mxu0 %v7427
  %7762 = vmatprep.subr.mxu0 %v7430
  %7763 = vmatpush1.msra.mxu0 %v7429
  %7764 = vmatprep.subr.mxu0 %v7432
  %7765 = vmatpush1.msra.mxu0 %v7431
  %7766 = vmatprep.subr.mxu0 %v7434
  %7767 = vmatpush1.msra.mxu0 %v7433
  %7768 = vmatprep.subr.mxu0 %v7436
  %7769 = vmatpush1.msra.mxu0 %v7435
  %7770 = vmatprep.subr.mxu0 %v7438
  %7771 = vmatpush1.msra.mxu0 %v7437
  %7772 = vmatprep.subr.mxu0 %v7440
  %7773 = vmatpush1.msra.mxu0 %v7439
  %7774 = vmatprep.subr.mxu0 %v7442
  %7775 = vmatpush1.msra.mxu0 %v7441
  %7776 = vmatprep.subr.mxu0 %v7444
  %7777 = vmatpush1.msra.mxu0 %v7443
  %7778 = vmatprep.subr.mxu0 %v7446
  %7779 = vmatpush1.msra.mxu0 %v7445
  %7780 = vmatprep.subr.mxu0 %v7448
  %7781 = vmatpush1.msra.mxu0 %v7447
  %7782 = vmatprep.subr.mxu0 %v7450
  %7783 = vmatpush1.msra.mxu0 %v7449
  %7784 = vmatprep.mubr.f32.mxu0 %v7498
  %7785 = vmatmul.mubr.f32.gmra.mrb[0].mxu0 %v7496
  %v7786 = vpop.f32.mrb[0].mxu0
  %v7787 = vadd.f32 %v7716, %v7786
  %v7788 = vpop.f32.mrb[0].mxu0
  %v7789 = vadd.f32 %v7718, %v7788
  %7790 = vdwg.mxu0
  %v7791 = vmax.f32 %v7787, 0.0
  %v7792 = vmax.f32 %v7789, 0.0
  %v7795 = vcombine.low %v7791, %v7792
  %v7797 = vunpack.c.l.s4 1983009808
  %v7798 = vunpack.c.0.s8 %v7797
  %v7799 = vlaneseq
  %v7800 = vshrl.u32 %v7799, 7
  %v7801 = vsub.s32 %v7798, %v7800
  %v7802 = vrot.slane %v7795, %v7801
  %7804 = vst.msk [vmem:[#allocation3 + $0x6] sm:$0xf] %vm6572, %v7802
  %v7805 = vld [vmem:[#allocation3] sm:$0xff]
  %v7806 = vld [vmem:[#allocation3 + $0x8] sm:$0x3]
  %v7807 = vld [vmem:[%s5] sm:$0xff]
  %v7808 = vld [vmem:[%s5 + $0x8] sm:$0xff]
  %v7809 = vld [vmem:[%s5 + $0x10] sm:$0xff]
  %v7810 = vld [vmem:[%s5 + $0x18] sm:$0xff]
  %v7811 = vld [vmem:[%s5 + $0x20] sm:$0xff]
  %v7812 = vld [vmem:[%s5 + $0x28] sm:$0xff]
  %v7813 = vld [vmem:[%s5 + $0x30] sm:$0xff]
  %v7814 = vld [vmem:[%s5 + $0x38] sm:$0xff]
  %v7815 = vld [vmem:[%s5 + $0x40] sm:$0xff]
  %v7816 = vld [vmem:[%s5 + $0x48] sm:$0xff]
  %v7817 = vld [vmem:[%s5 + $0x50] sm:$0xff]
  %v7818 = vld [vmem:[%s5 + $0x58] sm:$0xff]
  %v7819 = vld [vmem:[%s5 + $0x60] sm:$0xff]
  %v7820 = vld [vmem:[%s5 + $0x68] sm:$0xff]
  %v7821 = vld [vmem:[%s5 + $0x70] sm:$0xff]
  %v7822 = vld [vmem:[%s5 + $0x78] sm:$0xff]
  %v7823 = vld [vmem:[%s5 + $0x80] sm:$0xff]
  %v7824 = vld [vmem:[%s5 + $0x88] sm:$0xff]
  %v7825 = vld [vmem:[%s5 + $0x90] sm:$0xff]
  %v7826 = vld [vmem:[%s5 + $0x98] sm:$0xff]
  %v7827 = vld [vmem:[%s5 + $0xa0] sm:$0xff]
  %v7828 = vld [vmem:[%s5 + $0xa8] sm:$0xff]
  %v7829 = vld [vmem:[%s5 + $0xb0] sm:$0xff]
  %v7830 = vld [vmem:[%s5 + $0xb8] sm:$0xff]
  %v7831 = vld [vmem:[%s5 + $0xc0] sm:$0xff]
  %v7832 = vld [vmem:[%s5 + $0xc8] sm:$0xff]
  %v7833 = vld [vmem:[%s5 + $0xd0] sm:$0xff]
  %v7834 = vld [vmem:[%s5 + $0xd8] sm:$0xff]
  %v7835 = vld [vmem:[%s5 + $0xe0] sm:$0xff]
  %v7836 = vld [vmem:[%s5 + $0xe8] sm:$0xff]
  %v7837 = vld [vmem:[%s5 + $0xf0] sm:$0xff]
  %v7838 = vld [vmem:[%s5 + $0xf8] sm:$0xff]
  %v7839 = vld [vmem:[%s5 + $0x100] sm:$0xff]
  %v7840 = vld [vmem:[%s5 + $0x108] sm:$0xff]
  %v7841 = vld [vmem:[%s5 + $0x110] sm:$0xff]
  %v7842 = vld [vmem:[%s5 + $0x118] sm:$0xff]
  %v7843 = vld [vmem:[%s5 + $0x120] sm:$0xff]
  %v7844 = vld [vmem:[%s5 + $0x128] sm:$0xff]
  %v7845 = vld [vmem:[%s5 + $0x130] sm:$0xff]
  %v7846 = vld [vmem:[%s5 + $0x138] sm:$0xff]
  %v7847 = vld [vmem:[%s5 + $0x140] sm:$0xff]
  %v7848 = vld [vmem:[%s5 + $0x148] sm:$0xff]
  %v7849 = vld [vmem:[%s5 + $0x150] sm:$0xff]
  %v7850 = vld [vmem:[%s5 + $0x158] sm:$0xff]
  %v7851 = vld [vmem:[%s5 + $0x160] sm:$0xff]
  %v7852 = vld [vmem:[%s5 + $0x168] sm:$0xff]
  %v7853 = vld [vmem:[%s5 + $0x170] sm:$0xff]
  %v7854 = vld [vmem:[%s5 + $0x178] sm:$0xff]
  %v7855 = vld [vmem:[%s5 + $0x180] sm:$0xff]
  %v7856 = vld [vmem:[%s5 + $0x188] sm:$0xff]
  %v7857 = vld [vmem:[%s5 + $0x190] sm:$0xff]
  %v7858 = vld [vmem:[%s5 + $0x198] sm:$0xff]
  %v7859 = vld [vmem:[%s5 + $0x1a0] sm:$0xff]
  %v7860 = vld [vmem:[%s5 + $0x1a8] sm:$0xff]
  %v7861 = vld [vmem:[%s5 + $0x1b0] sm:$0xff]
  %v7862 = vld [vmem:[%s5 + $0x1b8] sm:$0xff]
  %v7863 = vld [vmem:[%s5 + $0x1c0] sm:$0xff]
  %v7864 = vld [vmem:[%s5 + $0x1c8] sm:$0xff]
  %v7865 = vld [vmem:[%s5 + $0x1d0] sm:$0xff]
  %v7866 = vld [vmem:[%s5 + $0x1d8] sm:$0xff]
  %v7867 = vld [vmem:[%s5 + $0x1e0] sm:$0xff]
  %v7868 = vld [vmem:[%s5 + $0x1e8] sm:$0xff]
  %v7869 = vld [vmem:[%s5 + $0x1f0] sm:$0xff]
  %v7870 = vld [vmem:[%s5 + $0x1f8] sm:$0xff]
  %v7871 = vld [vmem:[%s5 + $0x200] sm:$0xff]
  %v7872 = vld [vmem:[%s5 + $0x208] sm:$0xff]
  %v7873 = vld [vmem:[%s5 + $0x210] sm:$0xff]
  %v7874 = vld [vmem:[%s5 + $0x218] sm:$0xff]
  %v7875 = vld [vmem:[%s5 + $0x220] sm:$0xff]
  %v7876 = vld [vmem:[%s5 + $0x228] sm:$0xff]
  %v7877 = vld [vmem:[%s5 + $0x230] sm:$0xff]
  %v7878 = vld [vmem:[%s5 + $0x238] sm:$0xff]
  %v7879 = vld [vmem:[%s6] sm:$0x1]
  %v7881 = vlaneseq
  %v7882 = vshrl.u32 %v7881, 7
  %v7883 = vsub.s32 0, %v7882
  %v7884 = vrot.slane %v7879, %v7883
  %v7888 = vcombine.high %v7805, %v7805
  %v7890 = vunpack.c.l.s4 1983009808
  %v7891 = vunpack.c.0.s8 %v7890
  %v7892 = vlaneseq
  %v7893 = vshrl.u32 %v7892, 7
  %v7894 = vsub.s32 %v7891, %v7893
  %v7895 = vrot.slane %v7805, %v7894
  %v7897 = vunpack.c.l.s4 1983009808
  %v7898 = vunpack.c.0.s8 %v7897
  %v7899 = vlaneseq
  %v7900 = vshrl.u32 %v7899, 7
  %v7901 = vsub.s32 %v7898, %v7900
  %v7902 = vrot.slane %v7888, %v7901
  %v7903 = vcombine.high %v7895, %v7895
  %v7904 = vcombine.high %v7902, %v7902
  %v7906 = vunpack.c.l.s4 1983009808
  %v7907 = vunpack.c.0.s8 %v7906
  %v7908 = vlaneseq
  %v7909 = vshrl.u32 %v7908, 7
  %v7910 = vsub.s32 %v7907, %v7909
  %v7911 = vrot.slane %v7806, %v7910
  %v7916 = vsel %vm1131, %v7911, 0
  %7918 = vmatprep.subr.mxu0 0.0
  %7919 = vmatpush1.msra.mxu0 %v7807
  %7920 = vmatprep.subr.mxu0 0.0
  %7921 = vmatpush1.msra.mxu0 %v7808
  %7922 = vmatprep.subr.mxu0 0.0
  %7923 = vmatpush1.msra.mxu0 %v7809
  %7924 = vmatprep.subr.mxu0 0.0
  %7925 = vmatpush1.msra.mxu0 %v7810
  %7926 = vmatprep.subr.mxu0 0.0
  %7927 = vmatpush1.msra.mxu0 %v7811
  %7928 = vmatprep.subr.mxu0 0.0
  %7929 = vmatpush1.msra.mxu0 %v7812
  %7930 = vmatprep.subr.mxu0 0.0
  %7931 = vmatpush1.msra.mxu0 %v7813
  %7932 = vmatprep.subr.mxu0 0.0
  %7933 = vmatpush1.msra.mxu0 %v7814
  %7934 = vmatprep.subr.mxu0 0.0
  %7935 = vmatpush1.msra.mxu0 %v7815
  %7936 = vmatprep.subr.mxu0 0.0
  %7937 = vmatpush1.msra.mxu0 %v7816
  %7938 = vmatprep.subr.mxu0 0.0
  %7939 = vmatpush1.msra.mxu0 %v7817
  %7940 = vmatprep.subr.mxu0 0.0
  %7941 = vmatpush1.msra.mxu0 %v7818
  %7942 = vmatprep.subr.mxu0 0.0
  %7943 = vmatpush1.msra.mxu0 %v7819
  %7944 = vmatprep.subr.mxu0 0.0
  %7945 = vmatpush1.msra.mxu0 %v7820
  %7946 = vmatprep.subr.mxu0 0.0
  %7947 = vmatpush1.msra.mxu0 %v7821
  %7948 = vmatprep.subr.mxu0 0.0
  %7949 = vmatpush1.msra.mxu0 %v7822
  %7950 = vmatprep.subr.mxu0 0.0
  %7951 = vmatpush1.msra.mxu0 %v7823
  %7952 = vmatprep.subr.mxu0 0.0
  %7953 = vmatpush1.msra.mxu0 %v7824
  %7954 = vmatprep.subr.mxu0 0.0
  %7955 = vmatpush1.msra.mxu0 %v7825
  %7956 = vmatprep.subr.mxu0 0.0
  %7957 = vmatpush1.msra.mxu0 %v7826
  %7958 = vmatprep.subr.mxu0 0.0
  %7959 = vmatpush1.msra.mxu0 %v7827
  %7960 = vmatprep.subr.mxu0 0.0
  %7961 = vmatpush1.msra.mxu0 %v7828
  %7962 = vmatprep.subr.mxu0 0.0
  %7963 = vmatpush1.msra.mxu0 %v7829
  %7964 = vmatprep.subr.mxu0 0.0
  %7965 = vmatpush1.msra.mxu0 %v7830
  %7966 = vmatprep.subr.mxu0 0.0
  %7967 = vmatpush1.msra.mxu0 %v7831
  %7968 = vmatprep.subr.mxu0 0.0
  %7969 = vmatpush1.msra.mxu0 %v7832
  %7970 = vmatprep.subr.mxu0 0.0
  %7971 = vmatpush1.msra.mxu0 %v7833
  %7972 = vmatprep.subr.mxu0 0.0
  %7973 = vmatpush1.msra.mxu0 %v7834
  %7974 = vmatprep.subr.mxu0 0.0
  %7975 = vmatpush1.msra.mxu0 %v7835
  %7976 = vmatprep.subr.mxu0 0.0
  %7977 = vmatpush1.msra.mxu0 %v7836
  %7978 = vmatprep.subr.mxu0 0.0
  %7979 = vmatpush1.msra.mxu0 %v7837
  %7980 = vmatprep.subr.mxu0 0.0
  %7981 = vmatpush1.msra.mxu0 %v7838
  %7982 = vmatprep.mubr.f32.mxu0 %v7903
  %7983 = vmatmul.mubr.f32.gmra.mrb[0].mxu0 %v7895
  %v7984 = vpop.f32.mrb[0].mxu0
  %v7985 = vadd.f32 %v7884, %v7984
  %v7986 = vpop.f32.mrb[0].mxu0
  %7987 = vdwg.mxu0
  %7988 = vmatprep.subr.mxu0 0.0
  %7989 = vmatpush1.msra.mxu0 %v7839
  %7990 = vmatprep.subr.mxu0 0.0
  %7991 = vmatpush1.msra.mxu0 %v7840
  %7992 = vmatprep.subr.mxu0 0.0
  %7993 = vmatpush1.msra.mxu0 %v7841
  %7994 = vmatprep.subr.mxu0 0.0
  %7995 = vmatpush1.msra.mxu0 %v7842
  %7996 = vmatprep.subr.mxu0 0.0
  %7997 = vmatpush1.msra.mxu0 %v7843
  %7998 = vmatprep.subr.mxu0 0.0
  %7999 = vmatpush1.msra.mxu0 %v7844
  %8000 = vmatprep.subr.mxu0 0.0
  %8001 = vmatpush1.msra.mxu0 %v7845
  %8002 = vmatprep.subr.mxu0 0.0
  %8003 = vmatpush1.msra.mxu0 %v7846
  %8004 = vmatprep.subr.mxu0 0.0
  %8005 = vmatpush1.msra.mxu0 %v7847
  %8006 = vmatprep.subr.mxu0 0.0
  %8007 = vmatpush1.msra.mxu0 %v7848
  %8008 = vmatprep.subr.mxu0 0.0
  %8009 = vmatpush1.msra.mxu0 %v7849
  %8010 = vmatprep.subr.mxu0 0.0
  %8011 = vmatpush1.msra.mxu0 %v7850
  %8012 = vmatprep.subr.mxu0 0.0
  %8013 = vmatpush1.msra.mxu0 %v7851
  %8014 = vmatprep.subr.mxu0 0.0
  %8015 = vmatpush1.msra.mxu0 %v7852
  %8016 = vmatprep.subr.mxu0 0.0
  %8017 = vmatpush1.msra.mxu0 %v7853
  %8018 = vmatprep.subr.mxu0 0.0
  %8019 = vmatpush1.msra.mxu0 %v7854
  %8020 = vmatprep.subr.mxu0 0.0
  %8021 = vmatpush1.msra.mxu0 %v7855
  %8022 = vmatprep.subr.mxu0 0.0
  %8023 = vmatpush1.msra.mxu0 %v7856
  %8024 = vmatprep.subr.mxu0 0.0
  %8025 = vmatpush1.msra.mxu0 %v7857
  %8026 = vmatprep.subr.mxu0 0.0
  %8027 = vmatpush1.msra.mxu0 %v7858
  %8028 = vmatprep.subr.mxu0 0.0
  %8029 = vmatpush1.msra.mxu0 %v7859
  %8030 = vmatprep.subr.mxu0 0.0
  %8031 = vmatpush1.msra.mxu0 %v7860
  %8032 = vmatprep.subr.mxu0 0.0
  %8033 = vmatpush1.msra.mxu0 %v7861
  %8034 = vmatprep.subr.mxu0 0.0
  %8035 = vmatpush1.msra.mxu0 %v7862
  %8036 = vmatprep.subr.mxu0 0.0
  %8037 = vmatpush1.msra.mxu0 %v7863
  %8038 = vmatprep.subr.mxu0 0.0
  %8039 = vmatpush1.msra.mxu0 %v7864
  %8040 = vmatprep.subr.mxu0 0.0
  %8041 = vmatpush1.msra.mxu0 %v7865
  %8042 = vmatprep.subr.mxu0 0.0
  %8043 = vmatpush1.msra.mxu0 %v7866
  %8044 = vmatprep.subr.mxu0 0.0
  %8045 = vmatpush1.msra.mxu0 %v7867
  %8046 = vmatprep.subr.mxu0 0.0
  %8047 = vmatpush1.msra.mxu0 %v7868
  %8048 = vmatprep.subr.mxu0 0.0
  %8049 = vmatpush1.msra.mxu0 %v7869
  %8050 = vmatprep.subr.mxu0 0.0
  %8051 = vmatpush1.msra.mxu0 %v7870
  %8052 = vmatprep.mubr.f32.mxu0 %v7904
  %8053 = vmatmul.mubr.f32.gmra.mrb[0].mxu0 %v7902
  %v8054 = vpop.f32.mrb[0].mxu0
  %v8055 = vadd.f32 %v7985, %v8054
  %v8056 = vpop.f32.mrb[0].mxu0
  %8057 = vdwg.mxu0
  %8058 = vmatprep.subr.mxu0 0.0
  %8059 = vmatpush1.msra.mxu0 %v7871
  %8060 = vmatprep.subr.mxu0 0.0
  %8061 = vmatpush1.msra.mxu0 %v7872
  %8062 = vmatprep.subr.mxu0 0.0
  %8063 = vmatpush1.msra.mxu0 %v7873
  %8064 = vmatprep.subr.mxu0 0.0
  %8065 = vmatpush1.msra.mxu0 %v7874
  %8066 = vmatprep.subr.mxu0 0.0
  %8067 = vmatpush1.msra.mxu0 %v7875
  %8068 = vmatprep.subr.mxu0 0.0
  %8069 = vmatpush1.msra.mxu0 %v7876
  %8070 = vmatprep.subr.mxu0 0.0
  %8071 = vmatpush1.msra.mxu0 %v7877
  %8072 = vmatprep.subr.mxu0 0.0
  %8073 = vmatpush1.msra.mxu0 %v7878
  %8074 = vmatprep.subr.mxu0 0.0
  %8075 = vmatpush1.msra.mxu0 0.0
  %8076 = vmatprep.subr.mxu0 0.0
  %8077 = vmatpush1.msra.mxu0 0.0
  %8078 = vmatprep.subr.mxu0 0.0
  %8079 = vmatpush1.msra.mxu0 0.0
  %8080 = vmatprep.subr.mxu0 0.0
  %8081 = vmatpush1.msra.mxu0 0.0
  %8082 = vmatprep.subr.mxu0 0.0
  %8083 = vmatpush1.msra.mxu0 0.0
  %8084 = vmatprep.subr.mxu0 0.0
  %8085 = vmatpush1.msra.mxu0 0.0
  %8086 = vmatprep.subr.mxu0 0.0
  %8087 = vmatpush1.msra.mxu0 0.0
  %8088 = vmatprep.subr.mxu0 0.0
  %8089 = vmatpush1.msra.mxu0 0.0
  %8090 = vmatprep.subr.mxu0 0.0
  %8091 = vmatpush1.msra.mxu0 0.0
  %8092 = vmatprep.subr.mxu0 0.0
  %8093 = vmatpush1.msra.mxu0 0.0
  %8094 = vmatprep.subr.mxu0 0.0
  %8095 = vmatpush1.msra.mxu0 0.0
  %8096 = vmatprep.subr.mxu0 0.0
  %8097 = vmatpush1.msra.mxu0 0.0
  %8098 = vmatprep.subr.mxu0 0.0
  %8099 = vmatpush1.msra.mxu0 0.0
  %8100 = vmatprep.subr.mxu0 0.0
  %8101 = vmatpush1.msra.mxu0 0.0
  %8102 = vmatprep.subr.mxu0 0.0
  %8103 = vmatpush1.msra.mxu0 0.0
  %8104 = vmatprep.subr.mxu0 0.0
  %8105 = vmatpush1.msra.mxu0 0.0
  %8106 = vmatprep.subr.mxu0 0.0
  %8107 = vmatpush1.msra.mxu0 0.0
  %8108 = vmatprep.subr.mxu0 0.0
  %8109 = vmatpush1.msra.mxu0 0.0
  %8110 = vmatprep.subr.mxu0 0.0
  %8111 = vmatpush1.msra.mxu0 0.0
  %8112 = vmatprep.subr.mxu0 0.0
  %8113 = vmatpush1.msra.mxu0 0.0
  %8114 = vmatprep.subr.mxu0 0.0
  %8115 = vmatpush1.msra.mxu0 0.0
  %8116 = vmatprep.subr.mxu0 0.0
  %8117 = vmatpush1.msra.mxu0 0.0
  %8118 = vmatprep.subr.mxu0 0.0
  %8119 = vmatpush1.msra.mxu0 0.0
  %8120 = vmatprep.subr.mxu0 0.0
  %8121 = vmatpush1.msra.mxu0 0.0
  %8122 = vmatprep.mubr.f32.mxu0 0.0
  %8123 = vmatmul.mubr.f32.gmra.mrb[0].mxu0 %v7916
  %v8124 = vpop.f32.mrb[0].mxu0
  %v8125 = vadd.f32 %v8055, %v8124
  %v8126 = vpop.f32.mrb[0].mxu0
  %8127 = vdwg.mxu0
  %v8128 = vmax.f32 %v8125, 0.0
  %vm8129 = vcmask 517120
  %8130 = vst.msk [vmem:[#allocation4] sm:$0x3] %vm8129, %v8128
  %v8131 = vld [vmem:[#allocation4] sm:$0x3]
  %v8132 = vld [vmem:[%s7] sm:$0xff]
  %v8133 = vld [vmem:[%s7 + $0x8] sm:$0xff]
  %v8134 = vld [vmem:[%s7 + $0x10] sm:$0xff]
  %v8135 = vld [vmem:[%s7 + $0x18] sm:$0xff]
  %v8136 = vld [vmem:[%s7 + $0x20] sm:$0xff]
  %v8137 = vld [vmem:[%s7 + $0x28] sm:$0xff]
  %v8138 = vld [vmem:[%s7 + $0x30] sm:$0xff]
  %v8139 = vld [vmem:[%s7 + $0x38] sm:$0xff]
  %v8140 = vld [vmem:[%s7 + $0x40] sm:$0xff]
  %v8141 = vld [vmem:[%s7 + $0x48] sm:$0xff]
  %v8142 = vld [vmem:[%s7 + $0x50] sm:$0xff]
  %v8143 = vld [vmem:[%s7 + $0x58] sm:$0xff]
  %v8144 = vld [vmem:[%s7 + $0x60] sm:$0xff]
  %v8145 = vld [vmem:[%s7 + $0x68] sm:$0xff]
  %v8146 = vld [vmem:[%s7 + $0x70] sm:$0xff]
  %v8147 = vld [vmem:[%s7 + $0x78] sm:$0xff]
  %v8148 = vld [vmem:[%s7 + $0x80] sm:$0xff]
  %v8149 = vld [vmem:[%s7 + $0x88] sm:$0xff]
  %v8150 = vld [vmem:[%s7 + $0x90] sm:$0xff]
  %v8151 = vld [vmem:[%s7 + $0x98] sm:$0xff]
  %v8152 = vld [vmem:[%s7 + $0xa0] sm:$0xff]
  %v8153 = vld [vmem:[%s7 + $0xa8] sm:$0xff]
  %v8154 = vld [vmem:[%s7 + $0xb0] sm:$0xff]
  %v8155 = vld [vmem:[%s7 + $0xb8] sm:$0xff]
  %v8156 = vld [vmem:[%s7 + $0xc0] sm:$0xff]
  %v8157 = vld [vmem:[%s7 + $0xc8] sm:$0xff]
  %v8158 = vld [vmem:[%s7 + $0xd0] sm:$0xff]
  %v8159 = vld [vmem:[%s7 + $0xd8] sm:$0xff]
  %v8160 = vld [vmem:[%s7 + $0xe0] sm:$0xff]
  %v8161 = vld [vmem:[%s7 + $0xe8] sm:$0xff]
  %v8162 = vld [vmem:[%s7 + $0xf0] sm:$0xff]
  %v8163 = vld [vmem:[%s7 + $0xf8] sm:$0xff]
  %v8164 = vld [vmem:[%s8] sm:$0xf]
  %v8166 = vlaneseq
  %v8167 = vshrl.u32 %v8166, 7
  %v8168 = vsub.s32 0, %v8167
  %v8169 = vrot.slane %v8164, %v8168
  %v8170 = vlaneseq
  %v8171 = vshrl.u32 %v8170, 7
  %v8172 = vsub.s32 1, %v8171
  %v8173 = vrot.slane %v8164, %v8172
  %v8174 = vlaneseq
  %v8175 = vshrl.u32 %v8174, 7
  %v8176 = vsub.s32 2, %v8175
  %v8177 = vrot.slane %v8164, %v8176
  %v8178 = vlaneseq
  %v8179 = vshrl.u32 %v8178, 7
  %v8180 = vsub.s32 3, %v8179
  %v8181 = vrot.slane %v8164, %v8180
  %v8187 = vsel %vm1131, %v8131, 0
  %8189 = vmatprep.subr.mxu0 %v8133
  %8190 = vmatpush1.msra.mxu0 %v8132
  %8191 = vmatprep.subr.mxu0 %v8137
  %8192 = vmatpush1.msra.mxu0 %v8136
  %8193 = vmatprep.subr.mxu0 %v8141
  %8194 = vmatpush1.msra.mxu0 %v8140
  %8195 = vmatprep.subr.mxu0 %v8145
  %8196 = vmatpush1.msra.mxu0 %v8144
  %8197 = vmatprep.subr.mxu0 %v8149
  %8198 = vmatpush1.msra.mxu0 %v8148
  %8199 = vmatprep.subr.mxu0 %v8153
  %8200 = vmatpush1.msra.mxu0 %v8152
  %8201 = vmatprep.subr.mxu0 %v8157
  %8202 = vmatpush1.msra.mxu0 %v8156
  %8203 = vmatprep.subr.mxu0 %v8161
  %8204 = vmatpush1.msra.mxu0 %v8160
  %8205 = vmatprep.subr.mxu0 0.0
  %8206 = vmatpush1.msra.mxu0 0.0
  %8207 = vmatprep.subr.mxu0 0.0
  %8208 = vmatpush1.msra.mxu0 0.0
  %8209 = vmatprep.subr.mxu0 0.0
  %8210 = vmatpush1.msra.mxu0 0.0
  %8211 = vmatprep.subr.mxu0 0.0
  %8212 = vmatpush1.msra.mxu0 0.0
  %8213 = vmatprep.subr.mxu0 0.0
  %8214 = vmatpush1.msra.mxu0 0.0
  %8215 = vmatprep.subr.mxu0 0.0
  %8216 = vmatpush1.msra.mxu0 0.0
  %8217 = vmatprep.subr.mxu0 0.0
  %8218 = vmatpush1.msra.mxu0 0.0
  %8219 = vmatprep.subr.mxu0 0.0
  %8220 = vmatpush1.msra.mxu0 0.0
  %8221 = vmatprep.subr.mxu0 0.0
  %8222 = vmatpush1.msra.mxu0 0.0
  %8223 = vmatprep.subr.mxu0 0.0
  %8224 = vmatpush1.msra.mxu0 0.0
  %8225 = vmatprep.subr.mxu0 0.0
  %8226 = vmatpush1.msra.mxu0 0.0
  %8227 = vmatprep.subr.mxu0 0.0
  %8228 = vmatpush1.msra.mxu0 0.0
  %8229 = vmatprep.subr.mxu0 0.0
  %8230 = vmatpush1.msra.mxu0 0.0
  %8231 = vmatprep.subr.mxu0 0.0
  %8232 = vmatpush1.msra.mxu0 0.0
  %8233 = vmatprep.subr.mxu0 0.0
  %8234 = vmatpush1.msra.mxu0 0.0
  %8235 = vmatprep.subr.mxu0 0.0
  %8236 = vmatpush1.msra.mxu0 0.0
  %8237 = vmatprep.subr.mxu0 0.0
  %8238 = vmatpush1.msra.mxu0 0.0
  %8239 = vmatprep.subr.mxu0 0.0
  %8240 = vmatpush1.msra.mxu0 0.0
  %8241 = vmatprep.subr.mxu0 0.0
  %8242 = vmatpush1.msra.mxu0 0.0
  %8243 = vmatprep.subr.mxu0 0.0
  %8244 = vmatpush1.msra.mxu0 0.0
  %8245 = vmatprep.subr.mxu0 0.0
  %8246 = vmatpush1.msra.mxu0 0.0
  %8247 = vmatprep.subr.mxu0 0.0
  %8248 = vmatpush1.msra.mxu0 0.0
  %8249 = vmatprep.subr.mxu0 0.0
  %8250 = vmatpush1.msra.mxu0 0.0
  %8251 = vmatprep.subr.mxu0 0.0
  %8252 = vmatpush1.msra.mxu0 0.0
  %8253 = vmatprep.mubr.f32.mxu0 0.0
  %8254 = vmatmul.mubr.f32.gmra.mrb[0].mxu0 %v8187
  %v8255 = vpop.f32.mrb[0].mxu0
  %v8256 = vadd.f32 %v8169, %v8255
  %v8257 = vpop.f32.mrb[0].mxu0
  %v8258 = vadd.f32 %v8173, %v8257
  %8259 = vdwg.mxu0
  %8260 = vmatprep.subr.mxu0 %v8135
  %8261 = vmatpush1.msra.mxu0 %v8134
  %8262 = vmatprep.subr.mxu0 %v8139
  %8263 = vmatpush1.msra.mxu0 %v8138
  %8264 = vmatprep.subr.mxu0 %v8143
  %8265 = vmatpush1.msra.mxu0 %v8142
  %8266 = vmatprep.subr.mxu0 %v8147
  %8267 = vmatpush1.msra.mxu0 %v8146
  %8268 = vmatprep.subr.mxu0 %v8151
  %8269 = vmatpush1.msra.mxu0 %v8150
  %8270 = vmatprep.subr.mxu0 %v8155
  %8271 = vmatpush1.msra.mxu0 %v8154
  %8272 = vmatprep.subr.mxu0 %v8159
  %8273 = vmatpush1.msra.mxu0 %v8158
  %8274 = vmatprep.subr.mxu0 %v8163
  %8275 = vmatpush1.msra.mxu0 %v8162
  %8276 = vmatprep.subr.mxu0 0.0
  %8277 = vmatpush1.msra.mxu0 0.0
  %8278 = vmatprep.subr.mxu0 0.0
  %8279 = vmatpush1.msra.mxu0 0.0
  %8280 = vmatprep.subr.mxu0 0.0
  %8281 = vmatpush1.msra.mxu0 0.0
  %8282 = vmatprep.subr.mxu0 0.0
  %8283 = vmatpush1.msra.mxu0 0.0
  %8284 = vmatprep.subr.mxu0 0.0
  %8285 = vmatpush1.msra.mxu0 0.0
  %8286 = vmatprep.subr.mxu0 0.0
  %8287 = vmatpush1.msra.mxu0 0.0
  %8288 = vmatprep.subr.mxu0 0.0
  %8289 = vmatpush1.msra.mxu0 0.0
  %8290 = vmatprep.subr.mxu0 0.0
  %8291 = vmatpush1.msra.mxu0 0.0
  %8292 = vmatprep.subr.mxu0 0.0
  %8293 = vmatpush1.msra.mxu0 0.0
  %8294 = vmatprep.subr.mxu0 0.0
  %8295 = vmatpush1.msra.mxu0 0.0
  %8296 = vmatprep.subr.mxu0 0.0
  %8297 = vmatpush1.msra.mxu0 0.0
  %8298 = vmatprep.subr.mxu0 0.0
  %8299 = vmatpush1.msra.mxu0 0.0
  %8300 = vmatprep.subr.mxu0 0.0
  %8301 = vmatpush1.msra.mxu0 0.0
  %8302 = vmatprep.subr.mxu0 0.0
  %8303 = vmatpush1.msra.mxu0 0.0
  %8304 = vmatprep.subr.mxu0 0.0
  %8305 = vmatpush1.msra.mxu0 0.0
  %8306 = vmatprep.subr.mxu0 0.0
  %8307 = vmatpush1.msra.mxu0 0.0
  %8308 = vmatprep.subr.mxu0 0.0
  %8309 = vmatpush1.msra.mxu0 0.0
  %8310 = vmatprep.subr.mxu0 0.0
  %8311 = vmatpush1.msra.mxu0 0.0
  %8312 = vmatprep.subr.mxu0 0.0
  %8313 = vmatpush1.msra.mxu0 0.0
  %8314 = vmatprep.subr.mxu0 0.0
  %8315 = vmatpush1.msra.mxu0 0.0
  %8316 = vmatprep.subr.mxu0 0.0
  %8317 = vmatpush1.msra.mxu0 0.0
  %8318 = vmatprep.subr.mxu0 0.0
  %8319 = vmatpush1.msra.mxu0 0.0
  %8320 = vmatprep.subr.mxu0 0.0
  %8321 = vmatpush1.msra.mxu0 0.0
  %8322 = vmatprep.subr.mxu0 0.0
  %8323 = vmatpush1.msra.mxu0 0.0
  %8324 = vmatprep.mubr.f32.mxu0 0.0
  %8325 = vmatmul.mubr.f32.gmra.mrb[0].mxu0 %v8187
  %v8326 = vpop.f32.mrb[0].mxu0
  %v8327 = vadd.f32 %v8177, %v8326
  %v8328 = vpop.f32.mrb[0].mxu0
  %v8329 = vadd.f32 %v8181, %v8328
  %8330 = vdwg.mxu0
  %v8331 = vmax.f32 %v8256, 0.0
  %v8332 = vmax.f32 %v8258, 0.0
  %v8333 = vmax.f32 %v8327, 0.0
  %v8334 = vmax.f32 %v8329, 0.0
  %v8335 = vld [vmem:[%s9] sm:$0xff]
  %v8336 = vld [vmem:[%s9 + $0x8] sm:$0xff]
  %v8337 = vld [vmem:[%s9 + $0x10] sm:$0xff]
  %v8338 = vld [vmem:[%s9 + $0x18] sm:$0xff]
  %v8339 = vld [vmem:[%s9 + $0x20] sm:$0xff]
  %v8340 = vld [vmem:[%s9 + $0x28] sm:$0xff]
  %v8341 = vld [vmem:[%s9 + $0x30] sm:$0xff]
  %v8342 = vld [vmem:[%s9 + $0x38] sm:$0xff]
  %v8343 = vld [vmem:[%s9 + $0x40] sm:$0xff]
  %v8344 = vld [vmem:[%s9 + $0x48] sm:$0xff]
  %v8345 = vld [vmem:[%s9 + $0x50] sm:$0xff]
  %v8346 = vld [vmem:[%s9 + $0x58] sm:$0xff]
  %v8347 = vld [vmem:[%s9 + $0x60] sm:$0xff]
  %v8348 = vld [vmem:[%s9 + $0x68] sm:$0xff]
  %v8349 = vld [vmem:[%s9 + $0x70] sm:$0xff]
  %v8350 = vld [vmem:[%s9 + $0x78] sm:$0xff]
  %v8351 = vld [vmem:[%s9 + $0x80] sm:$0xff]
  %v8352 = vld [vmem:[%s9 + $0x88] sm:$0xff]
  %v8353 = vld [vmem:[%s9 + $0x90] sm:$0xff]
  %v8354 = vld [vmem:[%s9 + $0x98] sm:$0xff]
  %v8355 = vld [vmem:[%s9 + $0xa0] sm:$0xff]
  %v8356 = vld [vmem:[%s9 + $0xa8] sm:$0xff]
  %v8357 = vld [vmem:[%s9 + $0xb0] sm:$0xff]
  %v8358 = vld [vmem:[%s9 + $0xb8] sm:$0xff]
  %v8359 = vld [vmem:[%s9 + $0xc0] sm:$0xff]
  %v8360 = vld [vmem:[%s9 + $0xc8] sm:$0xff]
  %v8361 = vld [vmem:[%s9 + $0xd0] sm:$0xff]
  %v8362 = vld [vmem:[%s9 + $0xd8] sm:$0xff]
  %v8363 = vld [vmem:[%s9 + $0xe0] sm:$0xff]
  %v8364 = vld [vmem:[%s9 + $0xe8] sm:$0xff]
  %v8365 = vld [vmem:[%s9 + $0xf0] sm:$0xff]
  %v8366 = vld [vmem:[%s9 + $0xf8] sm:$0xff]
  %v8367 = vld [vmem:[%s9 + $0x100] sm:$0xff]
  %v8368 = vld [vmem:[%s9 + $0x108] sm:$0xff]
  %v8369 = vld [vmem:[%s9 + $0x110] sm:$0xff]
  %v8370 = vld [vmem:[%s9 + $0x118] sm:$0xff]
  %v8371 = vld [vmem:[%s9 + $0x120] sm:$0xff]
  %v8372 = vld [vmem:[%s9 + $0x128] sm:$0xff]
  %v8373 = vld [vmem:[%s9 + $0x130] sm:$0xff]
  %v8374 = vld [vmem:[%s9 + $0x138] sm:$0xff]
  %v8375 = vld [vmem:[%s9 + $0x140] sm:$0xff]
  %v8376 = vld [vmem:[%s9 + $0x148] sm:$0xff]
  %v8377 = vld [vmem:[%s9 + $0x150] sm:$0xff]
  %v8378 = vld [vmem:[%s9 + $0x158] sm:$0xff]
  %v8379 = vld [vmem:[%s9 + $0x160] sm:$0xff]
  %v8380 = vld [vmem:[%s9 + $0x168] sm:$0xff]
  %v8381 = vld [vmem:[%s9 + $0x170] sm:$0xff]
  %v8382 = vld [vmem:[%s9 + $0x178] sm:$0xff]
  %v8383 = vld [vmem:[%s9 + $0x180] sm:$0xff]
  %v8384 = vld [vmem:[%s9 + $0x188] sm:$0xff]
  %v8385 = vld [vmem:[%s9 + $0x190] sm:$0xff]
  %v8386 = vld [vmem:[%s9 + $0x198] sm:$0xff]
  %v8387 = vld [vmem:[%s9 + $0x1a0] sm:$0xff]
  %v8388 = vld [vmem:[%s9 + $0x1a8] sm:$0xff]
  %v8389 = vld [vmem:[%s9 + $0x1b0] sm:$0xff]
  %v8390 = vld [vmem:[%s9 + $0x1b8] sm:$0xff]
  %v8391 = vld [vmem:[%s9 + $0x1c0] sm:$0xff]
  %v8392 = vld [vmem:[%s9 + $0x1c8] sm:$0xff]
  %v8393 = vld [vmem:[%s9 + $0x1d0] sm:$0xff]
  %v8394 = vld [vmem:[%s9 + $0x1d8] sm:$0xff]
  %v8395 = vld [vmem:[%s9 + $0x1e0] sm:$0xff]
  %v8396 = vld [vmem:[%s9 + $0x1e8] sm:$0xff]
  %v8397 = vld [vmem:[%s9 + $0x1f0] sm:$0xff]
  %v8398 = vld [vmem:[%s9 + $0x1f8] sm:$0xff]
  %v8399 = vld [vmem:[%s10] sm:$0x1]
  %v8401 = vlaneseq
  %v8402 = vshrl.u32 %v8401, 7
  %v8403 = vsub.s32 0, %v8402
  %v8404 = vrot.slane %v8399, %v8403
  %8406 = vmatprep.subr.mxu0 0.0
  %8407 = vmatpush1.msra.mxu0 %v8335
  %8408 = vmatprep.subr.mxu0 0.0
  %8409 = vmatpush1.msra.mxu0 %v8336
  %8410 = vmatprep.subr.mxu0 0.0
  %8411 = vmatpush1.msra.mxu0 %v8337
  %8412 = vmatprep.subr.mxu0 0.0
  %8413 = vmatpush1.msra.mxu0 %v8338
  %8414 = vmatprep.subr.mxu0 0.0
  %8415 = vmatpush1.msra.mxu0 %v8339
  %8416 = vmatprep.subr.mxu0 0.0
  %8417 = vmatpush1.msra.mxu0 %v8340
  %8418 = vmatprep.subr.mxu0 0.0
  %8419 = vmatpush1.msra.mxu0 %v8341
  %8420 = vmatprep.subr.mxu0 0.0
  %8421 = vmatpush1.msra.mxu0 %v8342
  %8422 = vmatprep.subr.mxu0 0.0
  %8423 = vmatpush1.msra.mxu0 %v8343
  %8424 = vmatprep.subr.mxu0 0.0
  %8425 = vmatpush1.msra.mxu0 %v8344
  %8426 = vmatprep.subr.mxu0 0.0
  %8427 = vmatpush1.msra.mxu0 %v8345
  %8428 = vmatprep.subr.mxu0 0.0
  %8429 = vmatpush1.msra.mxu0 %v8346
  %8430 = vmatprep.subr.mxu0 0.0
  %8431 = vmatpush1.msra.mxu0 %v8347
  %8432 = vmatprep.subr.mxu0 0.0
  %8433 = vmatpush1.msra.mxu0 %v8348
  %8434 = vmatprep.subr.mxu0 0.0
  %8435 = vmatpush1.msra.mxu0 %v8349
  %8436 = vmatprep.subr.mxu0 0.0
  %8437 = vmatpush1.msra.mxu0 %v8350
  %8438 = vmatprep.subr.mxu0 0.0
  %8439 = vmatpush1.msra.mxu0 %v8351
  %8440 = vmatprep.subr.mxu0 0.0
  %8441 = vmatpush1.msra.mxu0 %v8352
  %8442 = vmatprep.subr.mxu0 0.0
  %8443 = vmatpush1.msra.mxu0 %v8353
  %8444 = vmatprep.subr.mxu0 0.0
  %8445 = vmatpush1.msra.mxu0 %v8354
  %8446 = vmatprep.subr.mxu0 0.0
  %8447 = vmatpush1.msra.mxu0 %v8355
  %8448 = vmatprep.subr.mxu0 0.0
  %8449 = vmatpush1.msra.mxu0 %v8356
  %8450 = vmatprep.subr.mxu0 0.0
  %8451 = vmatpush1.msra.mxu0 %v8357
  %8452 = vmatprep.subr.mxu0 0.0
  %8453 = vmatpush1.msra.mxu0 %v8358
  %8454 = vmatprep.subr.mxu0 0.0
  %8455 = vmatpush1.msra.mxu0 %v8359
  %8456 = vmatprep.subr.mxu0 0.0
  %8457 = vmatpush1.msra.mxu0 %v8360
  %8458 = vmatprep.subr.mxu0 0.0
  %8459 = vmatpush1.msra.mxu0 %v8361
  %8460 = vmatprep.subr.mxu0 0.0
  %8461 = vmatpush1.msra.mxu0 %v8362
  %8462 = vmatprep.subr.mxu0 0.0
  %8463 = vmatpush1.msra.mxu0 %v8363
  %8464 = vmatprep.subr.mxu0 0.0
  %8465 = vmatpush1.msra.mxu0 %v8364
  %8466 = vmatprep.subr.mxu0 0.0
  %8467 = vmatpush1.msra.mxu0 %v8365
  %8468 = vmatprep.subr.mxu0 0.0
  %8469 = vmatpush1.msra.mxu0 %v8366
  %8470 = vmatprep.mubr.f32.mxu0 %v8332
  %8471 = vmatmul.mubr.f32.gmra.mrb[0].mxu0 %v8331
  %v8472 = vpop.f32.mrb[0].mxu0
  %v8473 = vadd.f32 %v8404, %v8472
  %v8474 = vpop.f32.mrb[0].mxu0
  %8475 = vdwg.mxu0
  %8476 = vmatprep.subr.mxu0 0.0
  %8477 = vmatpush1.msra.mxu0 %v8367
  %8478 = vmatprep.subr.mxu0 0.0
  %8479 = vmatpush1.msra.mxu0 %v8368
  %8480 = vmatprep.subr.mxu0 0.0
  %8481 = vmatpush1.msra.mxu0 %v8369
  %8482 = vmatprep.subr.mxu0 0.0
  %8483 = vmatpush1.msra.mxu0 %v8370
  %8484 = vmatprep.subr.mxu0 0.0
  %8485 = vmatpush1.msra.mxu0 %v8371
  %8486 = vmatprep.subr.mxu0 0.0
  %8487 = vmatpush1.msra.mxu0 %v8372
  %8488 = vmatprep.subr.mxu0 0.0
  %8489 = vmatpush1.msra.mxu0 %v8373
  %8490 = vmatprep.subr.mxu0 0.0
  %8491 = vmatpush1.msra.mxu0 %v8374
  %8492 = vmatprep.subr.mxu0 0.0
  %8493 = vmatpush1.msra.mxu0 %v8375
  %8494 = vmatprep.subr.mxu0 0.0
  %8495 = vmatpush1.msra.mxu0 %v8376
  %8496 = vmatprep.subr.mxu0 0.0
  %8497 = vmatpush1.msra.mxu0 %v8377
  %8498 = vmatprep.subr.mxu0 0.0
  %8499 = vmatpush1.msra.mxu0 %v8378
  %8500 = vmatprep.subr.mxu0 0.0
  %8501 = vmatpush1.msra.mxu0 %v8379
  %8502 = vmatprep.subr.mxu0 0.0
  %8503 = vmatpush1.msra.mxu0 %v8380
  %8504 = vmatprep.subr.mxu0 0.0
  %8505 = vmatpush1.msra.mxu0 %v8381
  %8506 = vmatprep.subr.mxu0 0.0
  %8507 = vmatpush1.msra.mxu0 %v8382
  %8508 = vmatprep.subr.mxu0 0.0
  %8509 = vmatpush1.msra.mxu0 %v8383
  %8510 = vmatprep.subr.mxu0 0.0
  %8511 = vmatpush1.msra.mxu0 %v8384
  %8512 = vmatprep.subr.mxu0 0.0
  %8513 = vmatpush1.msra.mxu0 %v8385
  %8514 = vmatprep.subr.mxu0 0.0
  %8515 = vmatpush1.msra.mxu0 %v8386
  %8516 = vmatprep.subr.mxu0 0.0
  %8517 = vmatpush1.msra.mxu0 %v8387
  %8518 = vmatprep.subr.mxu0 0.0
  %8519 = vmatpush1.msra.mxu0 %v8388
  %8520 = vmatprep.subr.mxu0 0.0
  %8521 = vmatpush1.msra.mxu0 %v8389
  %8522 = vmatprep.subr.mxu0 0.0
  %8523 = vmatpush1.msra.mxu0 %v8390
  %8524 = vmatprep.subr.mxu0 0.0
  %8525 = vmatpush1.msra.mxu0 %v8391
  %8526 = vmatprep.subr.mxu0 0.0
  %8527 = vmatpush1.msra.mxu0 %v8392
  %8528 = vmatprep.subr.mxu0 0.0
  %8529 = vmatpush1.msra.mxu0 %v8393
  %8530 = vmatprep.subr.mxu0 0.0
  %8531 = vmatpush1.msra.mxu0 %v8394
  %8532 = vmatprep.subr.mxu0 0.0
  %8533 = vmatpush1.msra.mxu0 %v8395
  %8534 = vmatprep.subr.mxu0 0.0
  %8535 = vmatpush1.msra.mxu0 %v8396
  %8536 = vmatprep.subr.mxu0 0.0
  %8537 = vmatpush1.msra.mxu0 %v8397
  %8538 = vmatprep.subr.mxu0 0.0
  %8539 = vmatpush1.msra.mxu0 %v8398
  %8540 = vmatprep.mubr.f32.mxu0 %v8334
  %8541 = vmatmul.mubr.f32.gmra.mrb[0].mxu0 %v8333
  %v8542 = vpop.f32.mrb[0].mxu0
  %v8543 = vadd.f32 %v8473, %v8542
  %v8544 = vpop.f32.mrb[0].mxu0
  %8545 = vdwg.mxu0
  %8546 = vst [vmem:[%s11] sm:$0x3] %v8543
  // Predicated region
  $region46: #{dqn_forward.1} parent=0 // pred_check
    _
  $region47: #{dqn_forward.1} parent=0 // pred_check_branch
    %8548 = sbr.rel (0) target = $region49
  $region48: #{dqn_forward.1} parent=0 // pred_region
    _
  $region49: #{dqn_forward.1} parent=0 // pred_fallthru
    _
  // Predicated region
  $region50: #{dqn_forward.1} parent=0 // pred_check
    _
  $region51: #{dqn_forward.1} parent=0 // pred_check_branch
    %8550 = sbr.rel (0) target = $region53
  $region52: #{dqn_forward.1} parent=0 // pred_region
    _
  $region53: #{dqn_forward.1} parent=0 // pred_fallthru
    _

</llo_original>
